<compile_context>
chip_gen: v5e
topology: v5e:2x2
jax: 0.10.0
libtpu: 0.0.40
codegen_flags: <defaults>
</compile_context>

<pallas_src>
import jax
import jax.numpy as jnp
from jax.experimental import pallas as pl
from jax.experimental.pallas import tpu as pltpu

D_H1 = 2048
D_H2 = 1024


def mlp_kernel(x_ref, w1_ref, b1_ref, w2_ref, b2_ref, w3_ref, b3_ref, o_ref):
    cdt = w1_ref.dtype  # MXU-input dtype (bf16 by default; f32 on the debug path)
    # firstLayer + ReLU (f32 accumulation; bf16 cast fused into the ReLU epilogue)
    x = x_ref[...].astype(cdt)
    h1 = jnp.dot(x, w1_ref[...], preferred_element_type=jnp.float32)
    h1 = jnp.maximum(h1 + b1_ref[...].astype(jnp.float32), 0.0).astype(cdt)
    # secondLayer + ReLU
    h2 = jnp.dot(h1, w2_ref[...], preferred_element_type=jnp.float32)
    h2 = jnp.maximum(h2 + b2_ref[...].astype(jnp.float32), 0.0).astype(cdt)
    # thirdLayer (no activation)
    y = jnp.dot(h2, w3_ref[...], preferred_element_type=jnp.float32)
    y = y + b3_ref[...].astype(jnp.float32)
    o_ref[...] = y.astype(o_ref.dtype)


def _round_up(x, m):
    return ((x + m - 1) // m) * m


def _choose_tile(batch, device_kind):
    """Batch tile: saturate the MXU M dim; only shard across v7x's 2 cores when compute-bound."""
    kind = device_kind.lower()
    tb_max = 128 if "v5" in kind else 256          # v5e MXU is 128-wide; v6e/v7x 256-wide
    steps = max(1, -(-batch // tb_max))
    # v7x: each TensorCore has its own VMEM, so a 'parallel' split duplicates the resident
    # weight DMA. Only force a 2-way split when the per-core compute amortizes it.
    if "v7" in kind and batch >= 1024:
        steps = max(steps, 2)
    tb = -(-batch // steps)
    return max(8, min(tb_max, _round_up(tb, 8)))


def rating_dense_representation(x, params, *, compute_dtype=jnp.bfloat16,
                                tb=None, device_kind=None):
    """Fused RatingDenseRepresentation forward as a single Pallas kernel.

    x: (B, input_dim) float32
    params: dict with w1 (in,2048), b1 (1,2048), w2 (2048,1024), b2 (1,1024),
            w3 (1024,out), b3 (1,out) — all float32.
    compute_dtype: MXU-input dtype for weights AND staged activations (accumulation is
            always f32). Default bf16; pass jnp.float32 for exact nn.Linear semantics.
    """
    w1, b1 = params["w1"], params["b1"]
    w2, b2 = params["w2"], params["b2"]
    w3, b3 = params["w3"], params["b3"]
    B, input_dim = x.shape
    output_dim = w3.shape[1]

    if device_kind is None:
        device_kind = jax.devices()[0].device_kind
    kind = device_kind.lower()

    # Lane-dense padding: pad the first-matmul K and the output N to multiples of 128.
    # Zero padding is exact: padded x columns hit zero w1 rows; padded output columns
    # are sliced off below.
    K_pad = _round_up(input_dim, 128)
    N_pad = _round_up(output_dim, 128)
    if K_pad != input_dim:
        x = jnp.pad(x, ((0, 0), (0, K_pad - input_dim)))
        w1 = jnp.pad(w1, ((0, K_pad - input_dim), (0, 0)))
    if N_pad != output_dim:
        w3 = jnp.pad(w3, ((0, 0), (0, N_pad - output_dim)))
        b3 = jnp.pad(b3, ((0, 0), (0, N_pad - output_dim)))

    # MXU-input weights (bf16 default halves the HBM weight-read floor and runs the MXU
    # at full rate); biases stay f32 and are added to the f32 accumulator.
    w1 = w1.astype(compute_dtype)
    w2 = w2.astype(compute_dtype)
    w3 = w3.astype(compute_dtype)
    # TODO(synk): optional fp8 weight path (v7x-only) would quarter the weight-read floor.

    if tb is None:
        tb = _choose_tile(B, device_kind)
    tb = max(8, min(tb, _round_up(B, 8)))
    grid = (pl.cdiv(B, tb),)

    # Grid-invariant weights/biases: whole array resident in VMEM, single copy.
    resident = pl.BlockSpec(memory_space=pltpu.MemorySpace.VMEM)

    # VMEM budget from the actual footprint; device-dependent cap, never below footprint.
    param_bytes = sum(int(a.size) * a.dtype.itemsize for a in (w1, b1, w2, b2, w3, b3))
    io_bytes = 2 * tb * (K_pad + N_pad) * x.dtype.itemsize       # double-buffered x/out tiles
    act_itemsize = jnp.dtype(compute_dtype).itemsize
    scratch_bytes = tb * (D_H1 + D_H2) * (4 + act_itemsize)      # f32 dot outputs + staged copies
    need = param_bytes + io_bytes + scratch_bytes + (4 << 20)
    cap = (48 << 20) if "v7" in kind else (100 << 20)            # v7x: 64 MiB/TC; v5e/v6e: 128 MiB
    vmem_limit = min(cap, max(16 << 20, int(1.25 * need)))
    vmem_limit = max(vmem_limit, need)   # don't clamp below the resident footprint
    # TODO(synk): for very large input_dim on v7x (w1 alone > ~28 MiB resident), switch w1
    # to a K-tiled pipelined BlockSpec with a small f32 accumulator instead of residency.

    flops = 2 * B * (K_pad * D_H1 + D_H1 * D_H2 + D_H2 * N_pad)
    bytes_accessed = (param_bytes
                      + B * K_pad * x.dtype.itemsize
                      + B * N_pad * x.dtype.itemsize)

    out = pl.pallas_call(
        mlp_kernel,
        out_shape=jax.ShapeDtypeStruct((B, N_pad), x.dtype),
        grid=grid,
        in_specs=[
            pl.BlockSpec((tb, K_pad), lambda i: (i, 0)),   # x tile (batch-tiled)
            resident, resident,                            # w1, b1
            resident, resident,                            # w2, b2
            resident, resident,                            # w3, b3
        ],
        out_specs=pl.BlockSpec((tb, N_pad), lambda i: (i, 0)),
        compiler_params=pltpu.CompilerParams(
            dimension_semantics=("parallel",),
            vmem_limit_bytes=int(vmem_limit),
        ),
        cost_estimate=pl.CostEstimate(
            flops=flops, transcendentals=0, bytes_accessed=bytes_accessed),
    )(x, w1, b1, w2, b2, w3, b3)

    if N_pad != output_dim:
        out = out[:, :output_dim]
    return out


def init_params(key, input_dim, output_dim):
    """Deterministic init mimicking nn.Linear default (U[-1/sqrt(fan_in), +1/sqrt(fan_in)])."""
    ks = jax.random.split(key, 6)

    def linear(kw, kb, fan_in, fan_out):
        bound = 1.0 / jnp.sqrt(fan_in)
        w = jax.random.uniform(kw, (fan_in, fan_out), jnp.float32, -bound, bound)
        b = jax.random.uniform(kb, (1, fan_out), jnp.float32, -bound, bound)
        return w, b

    w1, b1 = linear(ks[0], ks[1], input_dim, D_H1)
    w2, b2 = linear(ks[2], ks[3], D_H1, D_H2)
    w3, b3 = linear(ks[4], ks[5], D_H2, output_dim)
    return dict(w1=w1, b1=b1, w2=w2, b2=b2, w3=w3, b3=b3)


def reference(x, p):
    h = jnp.maximum(x @ p["w1"] + p["b1"], 0.0)
    h = jnp.maximum(h @ p["w2"] + p["b2"], 0.0)
    return h @ p["w3"] + p["b3"]


if __name__ == "__main__":
    # Deliberately non-multiple-of-128 dims to exercise the lane-dense padding path.
    input_dim = 200
    output_dim = 100
    batch = 8

    key = jax.random.PRNGKey(0)
    kx, kp = jax.random.split(key)
    x = jax.random.normal(kx, (batch, input_dim), jnp.float32)
    params = init_params(kp, input_dim, output_dim)

    ref = reference(x, params)

    # Accuracy-debug path: pure f32 MXU inputs — exact nn.Linear semantics.
    out_f32 = jax.block_until_ready(
        rating_dense_representation(x, params, compute_dtype=jnp.float32))
    assert out_f32.shape == (batch, output_dim)
    assert jnp.allclose(out_f32, ref, atol=1e-4, rtol=1e-4)

    # Default path: bf16 MXU inputs (weights + staged activations), f32 accumulation.
    out = jax.block_until_ready(rating_dense_representation(x, params))
    assert out.shape == (batch, output_dim)
    assert jnp.allclose(out, ref, atol=5e-2, rtol=5e-2)

    print("KERNEL_OK")
</pallas_src>

<mosaic_0001>
module attributes {stable_mosaic.version = 11 : i64} {
  func.func @mlp_kernel(%arg0: i32, %arg1: memref<8x256xf32, #tpu.memory_space<vmem>>, %arg2: memref<256x2048xf32, #tpu.memory_space<vmem>>, %arg3: memref<1x2048xf32, #tpu.memory_space<vmem>>, %arg4: memref<2048x1024xf32, #tpu.memory_space<vmem>>, %arg5: memref<1x1024xf32, #tpu.memory_space<vmem>>, %arg6: memref<1024x128xf32, #tpu.memory_space<vmem>>, %arg7: memref<1x128xf32, #tpu.memory_space<vmem>>, %arg8: memref<8x128xf32, #tpu.memory_space<vmem>>) attributes {dimension_semantics = [#tpu.dimension_semantics<parallel>], iteration_bounds = array<i64: 1>, scalar_prefetch = 0 : i64, scratch_operands = 0 : i64, tpu.core_type = #tpu.core_type<tc>, window_params = [{transform_indices = @transform_0, window_bounds = array<i64: 8, 256>}, {pipeline_mode = #tpu.pipeline_mode<synchronous>, transform_indices = @transform_1, window_bounds = array<i64: 256, 2048>}, {pipeline_mode = #tpu.pipeline_mode<synchronous>, transform_indices = @transform_2, window_bounds = array<i64: 1, 2048>}, {pipeline_mode = #tpu.pipeline_mode<synchronous>, transform_indices = @transform_3, window_bounds = array<i64: 2048, 1024>}, {pipeline_mode = #tpu.pipeline_mode<synchronous>, transform_indices = @transform_4, window_bounds = array<i64: 1, 1024>}, {pipeline_mode = #tpu.pipeline_mode<synchronous>, transform_indices = @transform_5, window_bounds = array<i64: 1024, 128>}, {pipeline_mode = #tpu.pipeline_mode<synchronous>, transform_indices = @transform_6, window_bounds = array<i64: 1, 128>}, {transform_indices = @transform_7, window_bounds = array<i64: 8, 128>}]} {
    %c0 = arith.constant 0 : index
    %c0_0 = arith.constant 0 : index
    %0 = vector.load %arg1[%c0, %c0_0] : memref<8x256xf32, #tpu.memory_space<vmem>>, vector<8x256xf32>
    %c0_1 = arith.constant 0 : index
    %c0_2 = arith.constant 0 : index
    %1 = vector.load %arg2[%c0_1, %c0_2] : memref<256x2048xf32, #tpu.memory_space<vmem>>, vector<256x2048xf32>
    %cst = arith.constant dense<0.000000e+00> : vector<8x2048xf32>
    %2 = tpu.matmul %0, %1, %cst {dimension_numbers = #tpu.dot_dimension_numbers<[1], [0], [0], [1], [0, 0, 1, 1], [], []>} : vector<8x256xf32>, vector<256x2048xf32>, vector<8x2048xf32> -> vector<8x2048xf32>
    %c0_3 = arith.constant 0 : index
    %c0_4 = arith.constant 0 : index
    %3 = vector.load %arg3[%c0_3, %c0_4] : memref<1x2048xf32, #tpu.memory_space<vmem>>, vector<1x2048xf32>
    %4 = vector.broadcast %3 : vector<1x2048xf32> to vector<8x2048xf32>
    %5 = arith.addf %2, %4 : vector<8x2048xf32>
    %cst_5 = arith.constant 0.000000e+00 : f32
    %6 = vector.broadcast %cst_5 : f32 to vector<8x2048xf32>
    %7 = arith.maximumf %5, %6 : vector<8x2048xf32>
    %c0_6 = arith.constant 0 : index
    %c0_7 = arith.constant 0 : index
    %8 = vector.load %arg4[%c0_6, %c0_7] : memref<2048x1024xf32, #tpu.memory_space<vmem>>, vector<2048x1024xf32>
    %cst_8 = arith.constant dense<0.000000e+00> : vector<8x1024xf32>
    %9 = tpu.matmul %7, %8, %cst_8 {dimension_numbers = #tpu.dot_dimension_numbers<[1], [0], [0], [1], [0, 0, 1, 1], [], []>} : vector<8x2048xf32>, vector<2048x1024xf32>, vector<8x1024xf32> -> vector<8x1024xf32>
    %c0_9 = arith.constant 0 : index
    %c0_10 = arith.constant 0 : index
    %10 = vector.load %arg5[%c0_9, %c0_10] : memref<1x1024xf32, #tpu.memory_space<vmem>>, vector<1x1024xf32>
    %11 = vector.broadcast %10 : vector<1x1024xf32> to vector<8x1024xf32>
    %12 = arith.addf %9, %11 : vector<8x1024xf32>
    %cst_11 = arith.constant 0.000000e+00 : f32
    %13 = vector.broadcast %cst_11 : f32 to vector<8x1024xf32>
    %14 = arith.maximumf %12, %13 : vector<8x1024xf32>
    %c0_12 = arith.constant 0 : index
    %c0_13 = arith.constant 0 : index
    %15 = vector.load %arg6[%c0_12, %c0_13] : memref<1024x128xf32, #tpu.memory_space<vmem>>, vector<1024x128xf32>
    %cst_14 = arith.constant dense<0.000000e+00> : vector<8x128xf32>
    %16 = tpu.matmul %14, %15, %cst_14 {dimension_numbers = #tpu.dot_dimension_numbers<[1], [0], [0], [1], [0, 0, 1, 1], [], []>} : vector<8x1024xf32>, vector<1024x128xf32>, vector<8x128xf32> -> vector<8x128xf32>
    %c0_15 = arith.constant 0 : index
    %c0_16 = arith.constant 0 : index
    %17 = vector.load %arg7[%c0_15, %c0_16] : memref<1x128xf32, #tpu.memory_space<vmem>>, vector<1x128xf32>
    %18 = vector.broadcast %17 : vector<1x128xf32> to vector<8x128xf32>
    %19 = arith.addf %16, %18 : vector<8x128xf32>
    %c0_17 = arith.constant 0 : index
    %c0_18 = arith.constant 0 : index
    %20 = vector.load %arg8[%c0_17, %c0_18] : memref<8x128xf32, #tpu.memory_space<vmem>>, vector<8x128xf32>
    tpu.vector_store %arg8[%c0_17, %c0_18], %19 {strides = array<i32>} : memref<8x128xf32, #tpu.memory_space<vmem>>, vector<8x128xf32>,
    return
  }
  func.func @transform_0(%arg0: i32) -> (i32, i32) {
    %c0_i32 = arith.constant 0 : i32
    %c0_i32_0 = arith.constant 0 : i32
    return %arg0, %c0_i32 : i32, i32
  }
  func.func @transform_1(%arg0: i32) -> (i32, i32) {
    %c0_i32 = arith.constant 0 : i32
    %c0_i32_0 = arith.constant 0 : i32
    %c0_i32_1 = arith.constant 0 : i32
    return %c0_i32, %c0_i32_0 : i32, i32
  }
  func.func @transform_2(%arg0: i32) -> (i32, i32) {
    %c0_i32 = arith.constant 0 : i32
    %c0_i32_0 = arith.constant 0 : i32
    %c0_i32_1 = arith.constant 0 : i32
    return %c0_i32, %c0_i32_0 : i32, i32
  }
  func.func @transform_3(%arg0: i32) -> (i32, i32) {
    %c0_i32 = arith.constant 0 : i32
    %c0_i32_0 = arith.constant 0 : i32
    %c0_i32_1 = arith.constant 0 : i32
    return %c0_i32, %c0_i32_0 : i32, i32
  }
  func.func @transform_4(%arg0: i32) -> (i32, i32) {
    %c0_i32 = arith.constant 0 : i32
    %c0_i32_0 = arith.constant 0 : i32
    %c0_i32_1 = arith.constant 0 : i32
    return %c0_i32, %c0_i32_0 : i32, i32
  }
  func.func @transform_5(%arg0: i32) -> (i32, i32) {
    %c0_i32 = arith.constant 0 : i32
    %c0_i32_0 = arith.constant 0 : i32
    %c0_i32_1 = arith.constant 0 : i32
    return %c0_i32, %c0_i32_0 : i32, i32
  }
  func.func @transform_6(%arg0: i32) -> (i32, i32) {
    %c0_i32 = arith.constant 0 : i32
    %c0_i32_0 = arith.constant 0 : i32
    %c0_i32_1 = arith.constant 0 : i32
    return %c0_i32, %c0_i32_0 : i32, i32
  }
  func.func @transform_7(%arg0: i32) -> (i32, i32) {
    %c0_i32 = arith.constant 0 : i32
    %c0_i32_0 = arith.constant 0 : i32
    return %arg0, %c0_i32 : i32, i32
  }
}

</mosaic_0001>

<llo_original>
// kernel: tpu_custom_call.1
$region0: #{tpu_custom_call.1}
  #allocation0 [shape = 'u32[]', space=smem, size = 0x4, offset = 0x4, fixed_abs, tag = 'smem constant byte address 0x4 - core index']
  #allocation1 [shape = 'u32[72,128]{1,0:T(1,128)}', space=vmem, size = 0x9000, scoped, tag = 'internal scratch']
  %s0 = inlined_call_operand.hbm [shape: f32[8,256], index: 0, kind: input, shape index: {}]
  %s1 = inlined_call_operand.hbm [shape: f32[256,2048], index: 1, kind: input, shape index: {}]
  %s2 = inlined_call_operand.hbm [shape: f32[1,2048], index: 2, kind: input, shape index: {}]
  %s3 = inlined_call_operand.hbm [shape: f32[2048,1024], index: 3, kind: input, shape index: {}]
  %s4 = inlined_call_operand.hbm [shape: f32[1,1024], index: 4, kind: input, shape index: {}]
  %s5 = inlined_call_operand.hbm [shape: f32[1024,128], index: 5, kind: input, shape index: {}]
  %s6 = inlined_call_operand.hbm [shape: f32[1,128], index: 6, kind: input, shape index: {}]
  %s7 = inlined_call_operand.hbm [shape: f32[8,128], index: 7, kind: output, shape index: {}]
  %s8 = sld [smem:[#allocation0]]
  $region66: #{tpu_custom_call.1} parent=0
    _
  %s10 = ssub.s32 1, %s8
  %s11 = scalar_select 0, %s10, %s8
  $region1: #{tpu_custom_call.1} parent=0
    #allocation2 [shape = 'u8[8192]{0}', space=vmem, size = 0x2000, scoped, tag = 'input window, operand 0, single buffered']
    #allocation3 [shape = 's32[1]{0}', space=sflag, size = 0x4, scoped, tag = 'scoped memory for tpu_custom_call.1']
    #allocation4 [shape = 's32[1]{0}', space=sflag, size = 0x4, scoped, tag = 'scoped memory for tpu_custom_call.1']
    #allocation5 [shape = 'u8[2097152]{0}', space=vmem, size = 0x200000, scoped, tag = 'input window, operand 1, single buffered']
    #allocation6 [shape = 's32[1]{0}', space=sflag, size = 0x4, scoped, tag = 'scoped memory for tpu_custom_call.1']
    #allocation7 [shape = 'u8[8192]{0}', space=vmem, size = 0x2000, scoped, tag = 'input window, operand 2, single buffered']
    #allocation8 [shape = 'u8[8388608]{0}', space=vmem, size = 0x800000, scoped, tag = 'input window, operand 3, single buffered']
    #allocation9 [shape = 's32[1]{0}', space=sflag, size = 0x4, scoped, tag = 'scoped memory for tpu_custom_call.1']
    #allocation10 [shape = 'u8[4096]{0}', space=vmem, size = 0x1000, scoped, tag = 'input window, operand 4, single buffered']
    #allocation11 [shape = 'u8[524288]{0}', space=vmem, size = 0x80000, scoped, tag = 'input window, operand 5, single buffered']
    #allocation12 [shape = 's32[1]{0}', space=sflag, size = 0x4, scoped, tag = 'scoped memory for tpu_custom_call.1']
    #allocation13 [shape = 'u8[512]{0}', space=vmem, size = 0x400, scoped, tag = 'input window, operand 6, single buffered']
    #allocation14 [shape = 'u8[4096]{0}', space=vmem, size = 0x1000, scoped, tag = 'output window, operand 0, single buffered']
    %12 = vsyncpa [#allocation3], 0
    %13 = vsyncpa [#allocation6], 0
    %14 = vsyncpa [#allocation9], 0
    %15 = vsyncpa [#allocation12], 0
    %16 = vsyncpa [#allocation4], 0
    // Predicated region
    $region2: #{tpu_custom_call.1} parent=1 // pred_check
      _
    $region3: #{tpu_custom_call.1} parent=1 // pred_check_branch
      %18 = sbr.rel (0) target = $region5
    $region4: #{tpu_custom_call.1} parent=1 // pred_region
      %20 = vsyncadd [#allocation3], 0
      %s22 = sshll.u32 %s0, 4
      %s23 = int_to_ptr.hbm [resolvable:$true] %s22
      %s24 = sshll.u32 [#allocation2], 4
      %s25 = int_to_ptr.vmem [resolvable:$true] %s24
      %27 = dma.hbm_to_vmem [thread:$0]  %s23, 256, %s25, [#allocation3]
    $region5: #{tpu_custom_call.1} parent=1 // pred_fallthru
      _
    // Predicated region
    $region6: #{tpu_custom_call.1} parent=1 // pred_check
      _
    $region7: #{tpu_custom_call.1} parent=1 // pred_check_branch
      %29 = sbr.rel (0) target = $region9
    $region8: #{tpu_custom_call.1} parent=1 // pred_region
      %31 = vsyncadd [#allocation6], 0
      %s32 = sshll.u32 %s1, 4
      %s33 = int_to_ptr.hbm [resolvable:$true] %s32
      %s34 = sshll.u32 [#allocation5], 4
      %s35 = int_to_ptr.vmem [resolvable:$true] %s34
      %40 = dma.hbm_to_vmem [thread:$0]  %s33, 65536, %s35, [#allocation6], 2048, 2048, 128
    $region9: #{tpu_custom_call.1} parent=1 // pred_fallthru
      _
    // Predicated region
    $region10: #{tpu_custom_call.1} parent=1 // pred_check
      _
    $region11: #{tpu_custom_call.1} parent=1 // pred_check_branch
      %42 = sbr.rel (0) target = $region13
    $region12: #{tpu_custom_call.1} parent=1 // pred_region
      %44 = vsyncadd [#allocation6], 0
      %s46 = sshll.u32 %s2, 4
      %s47 = int_to_ptr.hbm [resolvable:$true] %s46
      %s48 = sshll.u32 [#allocation7], 4
      %s49 = int_to_ptr.vmem [resolvable:$true] %s48
      %51 = dma.hbm_to_vmem [thread:$0]  %s47, 256, %s49, [#allocation6]
    $region13: #{tpu_custom_call.1} parent=1 // pred_fallthru
      _
    // Predicated region
    $region14: #{tpu_custom_call.1} parent=1 // pred_check
      _
    $region15: #{tpu_custom_call.1} parent=1 // pred_check_branch
      %53 = sbr.rel (0) target = $region17
    $region16: #{tpu_custom_call.1} parent=1 // pred_region
      %55 = vsyncadd [#allocation9], 0
      %s56 = sshll.u32 %s3, 4
      %s57 = int_to_ptr.hbm [resolvable:$true] %s56
      %s58 = sshll.u32 [#allocation8], 4
      %s59 = int_to_ptr.vmem [resolvable:$true] %s58
      %64 = dma.hbm_to_vmem [thread:$0]  %s57, 262144, %s59, [#allocation9], 1024, 1024, 64
    $region17: #{tpu_custom_call.1} parent=1 // pred_fallthru
      _
    // Predicated region
    $region18: #{tpu_custom_call.1} parent=1 // pred_check
      _
    $region19: #{tpu_custom_call.1} parent=1 // pred_check_branch
      %66 = sbr.rel (0) target = $region21
    $region20: #{tpu_custom_call.1} parent=1 // pred_region
      %68 = vsyncadd [#allocation9], 0
      %s70 = sshll.u32 %s4, 4
      %s71 = int_to_ptr.hbm [resolvable:$true] %s70
      %s72 = sshll.u32 [#allocation10], 4
      %s73 = int_to_ptr.vmem [resolvable:$true] %s72
      %75 = dma.hbm_to_vmem [thread:$0]  %s71, 128, %s73, [#allocation9]
    $region21: #{tpu_custom_call.1} parent=1 // pred_fallthru
      _
    // Predicated region
    $region22: #{tpu_custom_call.1} parent=1 // pred_check
      _
    $region23: #{tpu_custom_call.1} parent=1 // pred_check_branch
      %77 = sbr.rel (0) target = $region25
    $region24: #{tpu_custom_call.1} parent=1 // pred_region
      %79 = vsyncadd [#allocation12], 0
      %s80 = sshll.u32 %s5, 4
      %s81 = int_to_ptr.hbm [resolvable:$true] %s80
      %s82 = sshll.u32 [#allocation11], 4
      %s83 = int_to_ptr.vmem [resolvable:$true] %s82
      %88 = dma.hbm_to_vmem [thread:$0]  %s81, 16384, %s83, [#allocation12], 128, 128, 8
    $region25: #{tpu_custom_call.1} parent=1 // pred_fallthru
      _
    // Predicated region
    $region26: #{tpu_custom_call.1} parent=1 // pred_check
      _
    $region27: #{tpu_custom_call.1} parent=1 // pred_check_branch
      %90 = sbr.rel (0) target = $region29
    $region28: #{tpu_custom_call.1} parent=1 // pred_region
      %92 = vsyncadd [#allocation12], 0
      %s94 = sshll.u32 %s6, 4
      %s95 = int_to_ptr.hbm [resolvable:$true] %s94
      %s96 = sshll.u32 [#allocation13], 4
      %s97 = int_to_ptr.vmem [resolvable:$true] %s96
      %99 = dma.hbm_to_vmem [thread:$0]  %s95, 16, %s97, [#allocation12]
    $region29: #{tpu_custom_call.1} parent=1 // pred_fallthru
      _
    // Predicated region
    $region30: #{tpu_custom_call.1} parent=1 // pred_check
      _
    $region31: #{tpu_custom_call.1} parent=1 // pred_check_branch
      %101 = sbr.rel (0) target = $region33
    $region32: #{tpu_custom_call.1} parent=1 // pred_region
      %103 = dma.done [#allocation3], 256
    $region33: #{tpu_custom_call.1} parent=1 // pred_fallthru
      _
    // Predicated region
    $region34: #{tpu_custom_call.1} parent=1 // pred_check
      _
    $region35: #{tpu_custom_call.1} parent=1 // pred_check_branch
      %105 = sbr.rel (0) target = $region37
    $region36: #{tpu_custom_call.1} parent=1 // pred_region
      %107 = dma.done [#allocation6], 65536
    $region37: #{tpu_custom_call.1} parent=1 // pred_fallthru
      _
    // Predicated region
    $region38: #{tpu_custom_call.1} parent=1 // pred_check
      _
    $region39: #{tpu_custom_call.1} parent=1 // pred_check_branch
      %109 = sbr.rel (0) target = $region41
    $region40: #{tpu_custom_call.1} parent=1 // pred_region
      %111 = dma.done [#allocation6], 256
    $region41: #{tpu_custom_call.1} parent=1 // pred_fallthru
      _
    // Predicated region
    $region42: #{tpu_custom_call.1} parent=1 // pred_check
      _
    $region43: #{tpu_custom_call.1} parent=1 // pred_check_branch
      %113 = sbr.rel (0) target = $region45
    $region44: #{tpu_custom_call.1} parent=1 // pred_region
      %115 = dma.done [#allocation9], 262144
    $region45: #{tpu_custom_call.1} parent=1 // pred_fallthru
      _
    // Predicated region
    $region46: #{tpu_custom_call.1} parent=1 // pred_check
      _
    $region47: #{tpu_custom_call.1} parent=1 // pred_check_branch
      %117 = sbr.rel (0) target = $region49
    $region48: #{tpu_custom_call.1} parent=1 // pred_region
      %119 = dma.done [#allocation9], 128
    $region49: #{tpu_custom_call.1} parent=1 // pred_fallthru
      _
    // Predicated region
    $region50: #{tpu_custom_call.1} parent=1 // pred_check
      _
    $region51: #{tpu_custom_call.1} parent=1 // pred_check_branch
      %121 = sbr.rel (0) target = $region53
    $region52: #{tpu_custom_call.1} parent=1 // pred_region
      %123 = dma.done [#allocation12], 16384
    $region53: #{tpu_custom_call.1} parent=1 // pred_fallthru
      _
    // Predicated region
    $region54: #{tpu_custom_call.1} parent=1 // pred_check
      _
    $region55: #{tpu_custom_call.1} parent=1 // pred_check_branch
      %125 = sbr.rel (0) target = $region57
    $region56: #{tpu_custom_call.1} parent=1 // pred_region
      %127 = dma.done [#allocation12], 16
    $region57: #{tpu_custom_call.1} parent=1 // pred_fallthru
      _
    %v128 = vld [vmem:[#allocation2] sm:$0xff]
    %v129 = vld [vmem:[#allocation2 + $0x8] sm:$0xff]
    %v130 = vld [vmem:[#allocation5] sm:$0xff]
    %v131 = vld [vmem:[#allocation5 + $0x8] sm:$0xff]
    %v132 = vld [vmem:[#allocation5 + $0x10] sm:$0xff]
    %v133 = vld [vmem:[#allocation5 + $0x18] sm:$0xff]
    %v134 = vld [vmem:[#allocation5 + $0x20] sm:$0xff]
    %v135 = vld [vmem:[#allocation5 + $0x28] sm:$0xff]
    %v136 = vld [vmem:[#allocation5 + $0x30] sm:$0xff]
    %v137 = vld [vmem:[#allocation5 + $0x38] sm:$0xff]
    %v138 = vld [vmem:[#allocation5 + $0x40] sm:$0xff]
    %v139 = vld [vmem:[#allocation5 + $0x48] sm:$0xff]
    %v140 = vld [vmem:[#allocation5 + $0x50] sm:$0xff]
    %v141 = vld [vmem:[#allocation5 + $0x58] sm:$0xff]
    %v142 = vld [vmem:[#allocation5 + $0x60] sm:$0xff]
    %v143 = vld [vmem:[#allocation5 + $0x68] sm:$0xff]
    %v144 = vld [vmem:[#allocation5 + $0x70] sm:$0xff]
    %v145 = vld [vmem:[#allocation5 + $0x78] sm:$0xff]
    %v146 = vld [vmem:[#allocation5 + $0x80] sm:$0xff]
    %v147 = vld [vmem:[#allocation5 + $0x88] sm:$0xff]
    %v148 = vld [vmem:[#allocation5 + $0x90] sm:$0xff]
    %v149 = vld [vmem:[#allocation5 + $0x98] sm:$0xff]
    %v150 = vld [vmem:[#allocation5 + $0xa0] sm:$0xff]
    %v151 = vld [vmem:[#allocation5 + $0xa8] sm:$0xff]
    %v152 = vld [vmem:[#allocation5 + $0xb0] sm:$0xff]
    %v153 = vld [vmem:[#allocation5 + $0xb8] sm:$0xff]
    %v154 = vld [vmem:[#allocation5 + $0xc0] sm:$0xff]
    %v155 = vld [vmem:[#allocation5 + $0xc8] sm:$0xff]
    %v156 = vld [vmem:[#allocation5 + $0xd0] sm:$0xff]
    %v157 = vld [vmem:[#allocation5 + $0xd8] sm:$0xff]
    %v158 = vld [vmem:[#allocation5 + $0xe0] sm:$0xff]
    %v159 = vld [vmem:[#allocation5 + $0xe8] sm:$0xff]
    %v160 = vld [vmem:[#allocation5 + $0xf0] sm:$0xff]
    %v161 = vld [vmem:[#allocation5 + $0xf8] sm:$0xff]
    %v162 = vld [vmem:[#allocation5 + $0x100] sm:$0xff]
    %v163 = vld [vmem:[#allocation5 + $0x108] sm:$0xff]
    %v164 = vld [vmem:[#allocation5 + $0x110] sm:$0xff]
    %v165 = vld [vmem:[#allocation5 + $0x118] sm:$0xff]
    %v166 = vld [vmem:[#allocation5 + $0x120] sm:$0xff]
    %v167 = vld [vmem:[#allocation5 + $0x128] sm:$0xff]
    %v168 = vld [vmem:[#allocation5 + $0x130] sm:$0xff]
    %v169 = vld [vmem:[#allocation5 + $0x138] sm:$0xff]
    %v170 = vld [vmem:[#allocation5 + $0x140] sm:$0xff]
    %v171 = vld [vmem:[#allocation5 + $0x148] sm:$0xff]
    %v172 = vld [vmem:[#allocation5 + $0x150] sm:$0xff]
    %v173 = vld [vmem:[#allocation5 + $0x158] sm:$0xff]
    %v174 = vld [vmem:[#allocation5 + $0x160] sm:$0xff]
    %v175 = vld [vmem:[#allocation5 + $0x168] sm:$0xff]
    %v176 = vld [vmem:[#allocation5 + $0x170] sm:$0xff]
    %v177 = vld [vmem:[#allocation5 + $0x178] sm:$0xff]
    %v178 = vld [vmem:[#allocation5 + $0x180] sm:$0xff]
    %v179 = vld [vmem:[#allocation5 + $0x188] sm:$0xff]
    %v180 = vld [vmem:[#allocation5 + $0x190] sm:$0xff]
    %v181 = vld [vmem:[#allocation5 + $0x198] sm:$0xff]
    %v182 = vld [vmem:[#allocation5 + $0x1a0] sm:$0xff]
    %v183 = vld [vmem:[#allocation5 + $0x1a8] sm:$0xff]
    %v184 = vld [vmem:[#allocation5 + $0x1b0] sm:$0xff]
    %v185 = vld [vmem:[#allocation5 + $0x1b8] sm:$0xff]
    %v186 = vld [vmem:[#allocation5 + $0x1c0] sm:$0xff]
    %v187 = vld [vmem:[#allocation5 + $0x1c8] sm:$0xff]
    %v188 = vld [vmem:[#allocation5 + $0x1d0] sm:$0xff]
    %v189 = vld [vmem:[#allocation5 + $0x1d8] sm:$0xff]
    %v190 = vld [vmem:[#allocation5 + $0x1e0] sm:$0xff]
    %v191 = vld [vmem:[#allocation5 + $0x1e8] sm:$0xff]
    %v192 = vld [vmem:[#allocation5 + $0x1f0] sm:$0xff]
    %v193 = vld [vmem:[#allocation5 + $0x1f8] sm:$0xff]
    %v194 = vld [vmem:[#allocation5 + $0x200] sm:$0xff]
    %v195 = vld [vmem:[#allocation5 + $0x208] sm:$0xff]
    %v196 = vld [vmem:[#allocation5 + $0x210] sm:$0xff]
    %v197 = vld [vmem:[#allocation5 + $0x218] sm:$0xff]
    %v198 = vld [vmem:[#allocation5 + $0x220] sm:$0xff]
    %v199 = vld [vmem:[#allocation5 + $0x228] sm:$0xff]
    %v200 = vld [vmem:[#allocation5 + $0x230] sm:$0xff]
    %v201 = vld [vmem:[#allocation5 + $0x238] sm:$0xff]
    %v202 = vld [vmem:[#allocation5 + $0x240] sm:$0xff]
    %v203 = vld [vmem:[#allocation5 + $0x248] sm:$0xff]
    %v204 = vld [vmem:[#allocation5 + $0x250] sm:$0xff]
    %v205 = vld [vmem:[#allocation5 + $0x258] sm:$0xff]
    %v206 = vld [vmem:[#allocation5 + $0x260] sm:$0xff]
    %v207 = vld [vmem:[#allocation5 + $0x268] sm:$0xff]
    %v208 = vld [vmem:[#allocation5 + $0x270] sm:$0xff]
    %v209 = vld [vmem:[#allocation5 + $0x278] sm:$0xff]
    %v210 = vld [vmem:[#allocation5 + $0x280] sm:$0xff]
    %v211 = vld [vmem:[#allocation5 + $0x288] sm:$0xff]
    %v212 = vld [vmem:[#allocation5 + $0x290] sm:$0xff]
    %v213 = vld [vmem:[#allocation5 + $0x298] sm:$0xff]
    %v214 = vld [vmem:[#allocation5 + $0x2a0] sm:$0xff]
    %v215 = vld [vmem:[#allocation5 + $0x2a8] sm:$0xff]
    %v216 = vld [vmem:[#allocation5 + $0x2b0] sm:$0xff]
    %v217 = vld [vmem:[#allocation5 + $0x2b8] sm:$0xff]
    %v218 = vld [vmem:[#allocation5 + $0x2c0] sm:$0xff]
    %v219 = vld [vmem:[#allocation5 + $0x2c8] sm:$0xff]
    %v220 = vld [vmem:[#allocation5 + $0x2d0] sm:$0xff]
    %v221 = vld [vmem:[#allocation5 + $0x2d8] sm:$0xff]
    %v222 = vld [vmem:[#allocation5 + $0x2e0] sm:$0xff]
    %v223 = vld [vmem:[#allocation5 + $0x2e8] sm:$0xff]
    %v224 = vld [vmem:[#allocation5 + $0x2f0] sm:$0xff]
    %v225 = vld [vmem:[#allocation5 + $0x2f8] sm:$0xff]
    %v226 = vld [vmem:[#allocation5 + $0x300] sm:$0xff]
    %v227 = vld [vmem:[#allocation5 + $0x308] sm:$0xff]
    %v228 = vld [vmem:[#allocation5 + $0x310] sm:$0xff]
    %v229 = vld [vmem:[#allocation5 + $0x318] sm:$0xff]
    %v230 = vld [vmem:[#allocation5 + $0x320] sm:$0xff]
    %v231 = vld [vmem:[#allocation5 + $0x328] sm:$0xff]
    %v232 = vld [vmem:[#allocation5 + $0x330] sm:$0xff]
    %v233 = vld [vmem:[#allocation5 + $0x338] sm:$0xff]
    %v234 = vld [vmem:[#allocation5 + $0x340] sm:$0xff]
    %v235 = vld [vmem:[#allocation5 + $0x348] sm:$0xff]
    %v236 = vld [vmem:[#allocation5 + $0x350] sm:$0xff]
    %v237 = vld [vmem:[#allocation5 + $0x358] sm:$0xff]
    %v238 = vld [vmem:[#allocation5 + $0x360] sm:$0xff]
    %v239 = vld [vmem:[#allocation5 + $0x368] sm:$0xff]
    %v240 = vld [vmem:[#allocation5 + $0x370] sm:$0xff]
    %v241 = vld [vmem:[#allocation5 + $0x378] sm:$0xff]
    %v242 = vld [vmem:[#allocation5 + $0x380] sm:$0xff]
    %v243 = vld [vmem:[#allocation5 + $0x388] sm:$0xff]
    %v244 = vld [vmem:[#allocation5 + $0x390] sm:$0xff]
    %v245 = vld [vmem:[#allocation5 + $0x398] sm:$0xff]
    %v246 = vld [vmem:[#allocation5 + $0x3a0] sm:$0xff]
    %v247 = vld [vmem:[#allocation5 + $0x3a8] sm:$0xff]
    %v248 = vld [vmem:[#allocation5 + $0x3b0] sm:$0xff]
    %v249 = vld [vmem:[#allocation5 + $0x3b8] sm:$0xff]
    %v250 = vld [vmem:[#allocation5 + $0x3c0] sm:$0xff]
    %v251 = vld [vmem:[#allocation5 + $0x3c8] sm:$0xff]
    %v252 = vld [vmem:[#allocation5 + $0x3d0] sm:$0xff]
    %v253 = vld [vmem:[#allocation5 + $0x3d8] sm:$0xff]
    %v254 = vld [vmem:[#allocation5 + $0x3e0] sm:$0xff]
    %v255 = vld [vmem:[#allocation5 + $0x3e8] sm:$0xff]
    %v256 = vld [vmem:[#allocation5 + $0x3f0] sm:$0xff]
    %v257 = vld [vmem:[#allocation5 + $0x3f8] sm:$0xff]
    %v258 = vld [vmem:[#allocation5 + $0x400] sm:$0xff]
    %v259 = vld [vmem:[#allocation5 + $0x408] sm:$0xff]
    %v260 = vld [vmem:[#allocation5 + $0x410] sm:$0xff]
    %v261 = vld [vmem:[#allocation5 + $0x418] sm:$0xff]
    %v262 = vld [vmem:[#allocation5 + $0x420] sm:$0xff]
    %v263 = vld [vmem:[#allocation5 + $0x428] sm:$0xff]
    %v264 = vld [vmem:[#allocation5 + $0x430] sm:$0xff]
    %v265 = vld [vmem:[#allocation5 + $0x438] sm:$0xff]
    %v266 = vld [vmem:[#allocation5 + $0x440] sm:$0xff]
    %v267 = vld [vmem:[#allocation5 + $0x448] sm:$0xff]
    %v268 = vld [vmem:[#allocation5 + $0x450] sm:$0xff]
    %v269 = vld [vmem:[#allocation5 + $0x458] sm:$0xff]
    %v270 = vld [vmem:[#allocation5 + $0x460] sm:$0xff]
    %v271 = vld [vmem:[#allocation5 + $0x468] sm:$0xff]
    %v272 = vld [vmem:[#allocation5 + $0x470] sm:$0xff]
    %v273 = vld [vmem:[#allocation5 + $0x478] sm:$0xff]
    %v274 = vld [vmem:[#allocation5 + $0x480] sm:$0xff]
    %v275 = vld [vmem:[#allocation5 + $0x488] sm:$0xff]
    %v276 = vld [vmem:[#allocation5 + $0x490] sm:$0xff]
    %v277 = vld [vmem:[#allocation5 + $0x498] sm:$0xff]
    %v278 = vld [vmem:[#allocation5 + $0x4a0] sm:$0xff]
    %v279 = vld [vmem:[#allocation5 + $0x4a8] sm:$0xff]
    %v280 = vld [vmem:[#allocation5 + $0x4b0] sm:$0xff]
    %v281 = vld [vmem:[#allocation5 + $0x4b8] sm:$0xff]
    %v282 = vld [vmem:[#allocation5 + $0x4c0] sm:$0xff]
    %v283 = vld [vmem:[#allocation5 + $0x4c8] sm:$0xff]
    %v284 = vld [vmem:[#allocation5 + $0x4d0] sm:$0xff]
    %v285 = vld [vmem:[#allocation5 + $0x4d8] sm:$0xff]
    %v286 = vld [vmem:[#allocation5 + $0x4e0] sm:$0xff]
    %v287 = vld [vmem:[#allocation5 + $0x4e8] sm:$0xff]
    %v288 = vld [vmem:[#allocation5 + $0x4f0] sm:$0xff]
    %v289 = vld [vmem:[#allocation5 + $0x4f8] sm:$0xff]
    %v290 = vld [vmem:[#allocation5 + $0x500] sm:$0xff]
    %v291 = vld [vmem:[#allocation5 + $0x508] sm:$0xff]
    %v292 = vld [vmem:[#allocation5 + $0x510] sm:$0xff]
    %v293 = vld [vmem:[#allocation5 + $0x518] sm:$0xff]
    %v294 = vld [vmem:[#allocation5 + $0x520] sm:$0xff]
    %v295 = vld [vmem:[#allocation5 + $0x528] sm:$0xff]
    %v296 = vld [vmem:[#allocation5 + $0x530] sm:$0xff]
    %v297 = vld [vmem:[#allocation5 + $0x538] sm:$0xff]
    %v298 = vld [vmem:[#allocation5 + $0x540] sm:$0xff]
    %v299 = vld [vmem:[#allocation5 + $0x548] sm:$0xff]
    %v300 = vld [vmem:[#allocation5 + $0x550] sm:$0xff]
    %v301 = vld [vmem:[#allocation5 + $0x558] sm:$0xff]
    %v302 = vld [vmem:[#allocation5 + $0x560] sm:$0xff]
    %v303 = vld [vmem:[#allocation5 + $0x568] sm:$0xff]
    %v304 = vld [vmem:[#allocation5 + $0x570] sm:$0xff]
    %v305 = vld [vmem:[#allocation5 + $0x578] sm:$0xff]
    %v306 = vld [vmem:[#allocation5 + $0x580] sm:$0xff]
    %v307 = vld [vmem:[#allocation5 + $0x588] sm:$0xff]
    %v308 = vld [vmem:[#allocation5 + $0x590] sm:$0xff]
    %v309 = vld [vmem:[#allocation5 + $0x598] sm:$0xff]
    %v310 = vld [vmem:[#allocation5 + $0x5a0] sm:$0xff]
    %v311 = vld [vmem:[#allocation5 + $0x5a8] sm:$0xff]
    %v312 = vld [vmem:[#allocation5 + $0x5b0] sm:$0xff]
    %v313 = vld [vmem:[#allocation5 + $0x5b8] sm:$0xff]
    %v314 = vld [vmem:[#allocation5 + $0x5c0] sm:$0xff]
    %v315 = vld [vmem:[#allocation5 + $0x5c8] sm:$0xff]
    %v316 = vld [vmem:[#allocation5 + $0x5d0] sm:$0xff]
    %v317 = vld [vmem:[#allocation5 + $0x5d8] sm:$0xff]
    %v318 = vld [vmem:[#allocation5 + $0x5e0] sm:$0xff]
    %v319 = vld [vmem:[#allocation5 + $0x5e8] sm:$0xff]
    %v320 = vld [vmem:[#allocation5 + $0x5f0] sm:$0xff]
    %v321 = vld [vmem:[#allocation5 + $0x5f8] sm:$0xff]
    %v322 = vld [vmem:[#allocation5 + $0x600] sm:$0xff]
    %v323 = vld [vmem:[#allocation5 + $0x608] sm:$0xff]
    %v324 = vld [vmem:[#allocation5 + $0x610] sm:$0xff]
    %v325 = vld [vmem:[#allocation5 + $0x618] sm:$0xff]
    %v326 = vld [vmem:[#allocation5 + $0x620] sm:$0xff]
    %v327 = vld [vmem:[#allocation5 + $0x628] sm:$0xff]
    %v328 = vld [vmem:[#allocation5 + $0x630] sm:$0xff]
    %v329 = vld [vmem:[#allocation5 + $0x638] sm:$0xff]
    %v330 = vld [vmem:[#allocation5 + $0x640] sm:$0xff]
    %v331 = vld [vmem:[#allocation5 + $0x648] sm:$0xff]
    %v332 = vld [vmem:[#allocation5 + $0x650] sm:$0xff]
    %v333 = vld [vmem:[#allocation5 + $0x658] sm:$0xff]
    %v334 = vld [vmem:[#allocation5 + $0x660] sm:$0xff]
    %v335 = vld [vmem:[#allocation5 + $0x668] sm:$0xff]
    %v336 = vld [vmem:[#allocation5 + $0x670] sm:$0xff]
    %v337 = vld [vmem:[#allocation5 + $0x678] sm:$0xff]
    %v338 = vld [vmem:[#allocation5 + $0x680] sm:$0xff]
    %v339 = vld [vmem:[#allocation5 + $0x688] sm:$0xff]
    %v340 = vld [vmem:[#allocation5 + $0x690] sm:$0xff]
    %v341 = vld [vmem:[#allocation5 + $0x698] sm:$0xff]
    %v342 = vld [vmem:[#allocation5 + $0x6a0] sm:$0xff]
    %v343 = vld [vmem:[#allocation5 + $0x6a8] sm:$0xff]
    %v344 = vld [vmem:[#allocation5 + $0x6b0] sm:$0xff]
    %v345 = vld [vmem:[#allocation5 + $0x6b8] sm:$0xff]
    %v346 = vld [vmem:[#allocation5 + $0x6c0] sm:$0xff]
    %v347 = vld [vmem:[#allocation5 + $0x6c8] sm:$0xff]
    %v348 = vld [vmem:[#allocation5 + $0x6d0] sm:$0xff]
    %v349 = vld [vmem:[#allocation5 + $0x6d8] sm:$0xff]
    %v350 = vld [vmem:[#allocation5 + $0x6e0] sm:$0xff]
    %v351 = vld [vmem:[#allocation5 + $0x6e8] sm:$0xff]
    %v352 = vld [vmem:[#allocation5 + $0x6f0] sm:$0xff]
    %v353 = vld [vmem:[#allocation5 + $0x6f8] sm:$0xff]
    %v354 = vld [vmem:[#allocation5 + $0x700] sm:$0xff]
    %v355 = vld [vmem:[#allocation5 + $0x708] sm:$0xff]
    %v356 = vld [vmem:[#allocation5 + $0x710] sm:$0xff]
    %v357 = vld [vmem:[#allocation5 + $0x718] sm:$0xff]
    %v358 = vld [vmem:[#allocation5 + $0x720] sm:$0xff]
    %v359 = vld [vmem:[#allocation5 + $0x728] sm:$0xff]
    %v360 = vld [vmem:[#allocation5 + $0x730] sm:$0xff]
    %v361 = vld [vmem:[#allocation5 + $0x738] sm:$0xff]
    %v362 = vld [vmem:[#allocation5 + $0x740] sm:$0xff]
    %v363 = vld [vmem:[#allocation5 + $0x748] sm:$0xff]
    %v364 = vld [vmem:[#allocation5 + $0x750] sm:$0xff]
    %v365 = vld [vmem:[#allocation5 + $0x758] sm:$0xff]
    %v366 = vld [vmem:[#allocation5 + $0x760] sm:$0xff]
    %v367 = vld [vmem:[#allocation5 + $0x768] sm:$0xff]
    %v368 = vld [vmem:[#allocation5 + $0x770] sm:$0xff]
    %v369 = vld [vmem:[#allocation5 + $0x778] sm:$0xff]
    %v370 = vld [vmem:[#allocation5 + $0x780] sm:$0xff]
    %v371 = vld [vmem:[#allocation5 + $0x788] sm:$0xff]
    %v372 = vld [vmem:[#allocation5 + $0x790] sm:$0xff]
    %v373 = vld [vmem:[#allocation5 + $0x798] sm:$0xff]
    %v374 = vld [vmem:[#allocation5 + $0x7a0] sm:$0xff]
    %v375 = vld [vmem:[#allocation5 + $0x7a8] sm:$0xff]
    %v376 = vld [vmem:[#allocation5 + $0x7b0] sm:$0xff]
    %v377 = vld [vmem:[#allocation5 + $0x7b8] sm:$0xff]
    %v378 = vld [vmem:[#allocation5 + $0x7c0] sm:$0xff]
    %v379 = vld [vmem:[#allocation5 + $0x7c8] sm:$0xff]
    %v380 = vld [vmem:[#allocation5 + $0x7d0] sm:$0xff]
    %v381 = vld [vmem:[#allocation5 + $0x7d8] sm:$0xff]
    %v382 = vld [vmem:[#allocation5 + $0x7e0] sm:$0xff]
    %v383 = vld [vmem:[#allocation5 + $0x7e8] sm:$0xff]
    %v384 = vld [vmem:[#allocation5 + $0x7f0] sm:$0xff]
    %v385 = vld [vmem:[#allocation5 + $0x7f8] sm:$0xff]
    %v386 = vld [vmem:[#allocation5 + $0x800] sm:$0xff]
    %v387 = vld [vmem:[#allocation5 + $0x808] sm:$0xff]
    %v388 = vld [vmem:[#allocation5 + $0x810] sm:$0xff]
    %v389 = vld [vmem:[#allocation5 + $0x818] sm:$0xff]
    %v390 = vld [vmem:[#allocation5 + $0x820] sm:$0xff]
    %v391 = vld [vmem:[#allocation5 + $0x828] sm:$0xff]
    %v392 = vld [vmem:[#allocation5 + $0x830] sm:$0xff]
    %v393 = vld [vmem:[#allocation5 + $0x838] sm:$0xff]
    %v394 = vld [vmem:[#allocation5 + $0x840] sm:$0xff]
    %v395 = vld [vmem:[#allocation5 + $0x848] sm:$0xff]
    %v396 = vld [vmem:[#allocation5 + $0x850] sm:$0xff]
    %v397 = vld [vmem:[#allocation5 + $0x858] sm:$0xff]
    %v398 = vld [vmem:[#allocation5 + $0x860] sm:$0xff]
    %v399 = vld [vmem:[#allocation5 + $0x868] sm:$0xff]
    %v400 = vld [vmem:[#allocation5 + $0x870] sm:$0xff]
    %v401 = vld [vmem:[#allocation5 + $0x878] sm:$0xff]
    %v402 = vld [vmem:[#allocation5 + $0x880] sm:$0xff]
    %v403 = vld [vmem:[#allocation5 + $0x888] sm:$0xff]
    %v404 = vld [vmem:[#allocation5 + $0x890] sm:$0xff]
    %v405 = vld [vmem:[#allocation5 + $0x898] sm:$0xff]
    %v406 = vld [vmem:[#allocation5 + $0x8a0] sm:$0xff]
    %v407 = vld [vmem:[#allocation5 + $0x8a8] sm:$0xff]
    %v408 = vld [vmem:[#allocation5 + $0x8b0] sm:$0xff]
    %v409 = vld [vmem:[#allocation5 + $0x8b8] sm:$0xff]
    %v410 = vld [vmem:[#allocation5 + $0x8c0] sm:$0xff]
    %v411 = vld [vmem:[#allocation5 + $0x8c8] sm:$0xff]
    %v412 = vld [vmem:[#allocation5 + $0x8d0] sm:$0xff]
    %v413 = vld [vmem:[#allocation5 + $0x8d8] sm:$0xff]
    %v414 = vld [vmem:[#allocation5 + $0x8e0] sm:$0xff]
    %v415 = vld [vmem:[#allocation5 + $0x8e8] sm:$0xff]
    %v416 = vld [vmem:[#allocation5 + $0x8f0] sm:$0xff]
    %v417 = vld [vmem:[#allocation5 + $0x8f8] sm:$0xff]
    %v418 = vld [vmem:[#allocation5 + $0x900] sm:$0xff]
    %v419 = vld [vmem:[#allocation5 + $0x908] sm:$0xff]
    %v420 = vld [vmem:[#allocation5 + $0x910] sm:$0xff]
    %v421 = vld [vmem:[#allocation5 + $0x918] sm:$0xff]
    %v422 = vld [vmem:[#allocation5 + $0x920] sm:$0xff]
    %v423 = vld [vmem:[#allocation5 + $0x928] sm:$0xff]
    %v424 = vld [vmem:[#allocation5 + $0x930] sm:$0xff]
    %v425 = vld [vmem:[#allocation5 + $0x938] sm:$0xff]
    %v426 = vld [vmem:[#allocation5 + $0x940] sm:$0xff]
    %v427 = vld [vmem:[#allocation5 + $0x948] sm:$0xff]
    %v428 = vld [vmem:[#allocation5 + $0x950] sm:$0xff]
    %v429 = vld [vmem:[#allocation5 + $0x958] sm:$0xff]
    %v430 = vld [vmem:[#allocation5 + $0x960] sm:$0xff]
    %v431 = vld [vmem:[#allocation5 + $0x968] sm:$0xff]
    %v432 = vld [vmem:[#allocation5 + $0x970] sm:$0xff]
    %v433 = vld [vmem:[#allocation5 + $0x978] sm:$0xff]
    %v434 = vld [vmem:[#allocation5 + $0x980] sm:$0xff]
    %v435 = vld [vmem:[#allocation5 + $0x988] sm:$0xff]
    %v436 = vld [vmem:[#allocation5 + $0x990] sm:$0xff]
    %v437 = vld [vmem:[#allocation5 + $0x998] sm:$0xff]
    %v438 = vld [vmem:[#allocation5 + $0x9a0] sm:$0xff]
    %v439 = vld [vmem:[#allocation5 + $0x9a8] sm:$0xff]
    %v440 = vld [vmem:[#allocation5 + $0x9b0] sm:$0xff]
    %v441 = vld [vmem:[#allocation5 + $0x9b8] sm:$0xff]
    %v442 = vld [vmem:[#allocation5 + $0x9c0] sm:$0xff]
    %v443 = vld [vmem:[#allocation5 + $0x9c8] sm:$0xff]
    %v444 = vld [vmem:[#allocation5 + $0x9d0] sm:$0xff]
    %v445 = vld [vmem:[#allocation5 + $0x9d8] sm:$0xff]
    %v446 = vld [vmem:[#allocation5 + $0x9e0] sm:$0xff]
    %v447 = vld [vmem:[#allocation5 + $0x9e8] sm:$0xff]
    %v448 = vld [vmem:[#allocation5 + $0x9f0] sm:$0xff]
    %v449 = vld [vmem:[#allocation5 + $0x9f8] sm:$0xff]
    %v450 = vld [vmem:[#allocation5 + $0xa00] sm:$0xff]
    %v451 = vld [vmem:[#allocation5 + $0xa08] sm:$0xff]
    %v452 = vld [vmem:[#allocation5 + $0xa10] sm:$0xff]
    %v453 = vld [vmem:[#allocation5 + $0xa18] sm:$0xff]
    %v454 = vld [vmem:[#allocation5 + $0xa20] sm:$0xff]
    %v455 = vld [vmem:[#allocation5 + $0xa28] sm:$0xff]
    %v456 = vld [vmem:[#allocation5 + $0xa30] sm:$0xff]
    %v457 = vld [vmem:[#allocation5 + $0xa38] sm:$0xff]
    %v458 = vld [vmem:[#allocation5 + $0xa40] sm:$0xff]
    %v459 = vld [vmem:[#allocation5 + $0xa48] sm:$0xff]
    %v460 = vld [vmem:[#allocation5 + $0xa50] sm:$0xff]
    %v461 = vld [vmem:[#allocation5 + $0xa58] sm:$0xff]
    %v462 = vld [vmem:[#allocation5 + $0xa60] sm:$0xff]
    %v463 = vld [vmem:[#allocation5 + $0xa68] sm:$0xff]
    %v464 = vld [vmem:[#allocation5 + $0xa70] sm:$0xff]
    %v465 = vld [vmem:[#allocation5 + $0xa78] sm:$0xff]
    %v466 = vld [vmem:[#allocation5 + $0xa80] sm:$0xff]
    %v467 = vld [vmem:[#allocation5 + $0xa88] sm:$0xff]
    %v468 = vld [vmem:[#allocation5 + $0xa90] sm:$0xff]
    %v469 = vld [vmem:[#allocation5 + $0xa98] sm:$0xff]
    %v470 = vld [vmem:[#allocation5 + $0xaa0] sm:$0xff]
    %v471 = vld [vmem:[#allocation5 + $0xaa8] sm:$0xff]
    %v472 = vld [vmem:[#allocation5 + $0xab0] sm:$0xff]
    %v473 = vld [vmem:[#allocation5 + $0xab8] sm:$0xff]
    %v474 = vld [vmem:[#allocation5 + $0xac0] sm:$0xff]
    %v475 = vld [vmem:[#allocation5 + $0xac8] sm:$0xff]
    %v476 = vld [vmem:[#allocation5 + $0xad0] sm:$0xff]
    %v477 = vld [vmem:[#allocation5 + $0xad8] sm:$0xff]
    %v478 = vld [vmem:[#allocation5 + $0xae0] sm:$0xff]
    %v479 = vld [vmem:[#allocation5 + $0xae8] sm:$0xff]
    %v480 = vld [vmem:[#allocation5 + $0xaf0] sm:$0xff]
    %v481 = vld [vmem:[#allocation5 + $0xaf8] sm:$0xff]
    %v482 = vld [vmem:[#allocation5 + $0xb00] sm:$0xff]
    %v483 = vld [vmem:[#allocation5 + $0xb08] sm:$0xff]
    %v484 = vld [vmem:[#allocation5 + $0xb10] sm:$0xff]
    %v485 = vld [vmem:[#allocation5 + $0xb18] sm:$0xff]
    %v486 = vld [vmem:[#allocation5 + $0xb20] sm:$0xff]
    %v487 = vld [vmem:[#allocation5 + $0xb28] sm:$0xff]
    %v488 = vld [vmem:[#allocation5 + $0xb30] sm:$0xff]
    %v489 = vld [vmem:[#allocation5 + $0xb38] sm:$0xff]
    %v490 = vld [vmem:[#allocation5 + $0xb40] sm:$0xff]
    %v491 = vld [vmem:[#allocation5 + $0xb48] sm:$0xff]
    %v492 = vld [vmem:[#allocation5 + $0xb50] sm:$0xff]
    %v493 = vld [vmem:[#allocation5 + $0xb58] sm:$0xff]
    %v494 = vld [vmem:[#allocation5 + $0xb60] sm:$0xff]
    %v495 = vld [vmem:[#allocation5 + $0xb68] sm:$0xff]
    %v496 = vld [vmem:[#allocation5 + $0xb70] sm:$0xff]
    %v497 = vld [vmem:[#allocation5 + $0xb78] sm:$0xff]
    %v498 = vld [vmem:[#allocation5 + $0xb80] sm:$0xff]
    %v499 = vld [vmem:[#allocation5 + $0xb88] sm:$0xff]
    %v500 = vld [vmem:[#allocation5 + $0xb90] sm:$0xff]
    %v501 = vld [vmem:[#allocation5 + $0xb98] sm:$0xff]
    %v502 = vld [vmem:[#allocation5 + $0xba0] sm:$0xff]
    %v503 = vld [vmem:[#allocation5 + $0xba8] sm:$0xff]
    %v504 = vld [vmem:[#allocation5 + $0xbb0] sm:$0xff]
    %v505 = vld [vmem:[#allocation5 + $0xbb8] sm:$0xff]
    %v506 = vld [vmem:[#allocation5 + $0xbc0] sm:$0xff]
    %v507 = vld [vmem:[#allocation5 + $0xbc8] sm:$0xff]
    %v508 = vld [vmem:[#allocation5 + $0xbd0] sm:$0xff]
    %v509 = vld [vmem:[#allocation5 + $0xbd8] sm:$0xff]
    %v510 = vld [vmem:[#allocation5 + $0xbe0] sm:$0xff]
    %v511 = vld [vmem:[#allocation5 + $0xbe8] sm:$0xff]
    %v512 = vld [vmem:[#allocation5 + $0xbf0] sm:$0xff]
    %v513 = vld [vmem:[#allocation5 + $0xbf8] sm:$0xff]
    %v514 = vld [vmem:[#allocation5 + $0xc00] sm:$0xff]
    %v515 = vld [vmem:[#allocation5 + $0xc08] sm:$0xff]
    %v516 = vld [vmem:[#allocation5 + $0xc10] sm:$0xff]
    %v517 = vld [vmem:[#allocation5 + $0xc18] sm:$0xff]
    %v518 = vld [vmem:[#allocation5 + $0xc20] sm:$0xff]
    %v519 = vld [vmem:[#allocation5 + $0xc28] sm:$0xff]
    %v520 = vld [vmem:[#allocation5 + $0xc30] sm:$0xff]
    %v521 = vld [vmem:[#allocation5 + $0xc38] sm:$0xff]
    %v522 = vld [vmem:[#allocation5 + $0xc40] sm:$0xff]
    %v523 = vld [vmem:[#allocation5 + $0xc48] sm:$0xff]
    %v524 = vld [vmem:[#allocation5 + $0xc50] sm:$0xff]
    %v525 = vld [vmem:[#allocation5 + $0xc58] sm:$0xff]
    %v526 = vld [vmem:[#allocation5 + $0xc60] sm:$0xff]
    %v527 = vld [vmem:[#allocation5 + $0xc68] sm:$0xff]
    %v528 = vld [vmem:[#allocation5 + $0xc70] sm:$0xff]
    %v529 = vld [vmem:[#allocation5 + $0xc78] sm:$0xff]
    %v530 = vld [vmem:[#allocation5 + $0xc80] sm:$0xff]
    %v531 = vld [vmem:[#allocation5 + $0xc88] sm:$0xff]
    %v532 = vld [vmem:[#allocation5 + $0xc90] sm:$0xff]
    %v533 = vld [vmem:[#allocation5 + $0xc98] sm:$0xff]
    %v534 = vld [vmem:[#allocation5 + $0xca0] sm:$0xff]
    %v535 = vld [vmem:[#allocation5 + $0xca8] sm:$0xff]
    %v536 = vld [vmem:[#allocation5 + $0xcb0] sm:$0xff]
    %v537 = vld [vmem:[#allocation5 + $0xcb8] sm:$0xff]
    %v538 = vld [vmem:[#allocation5 + $0xcc0] sm:$0xff]
    %v539 = vld [vmem:[#allocation5 + $0xcc8] sm:$0xff]
    %v540 = vld [vmem:[#allocation5 + $0xcd0] sm:$0xff]
    %v541 = vld [vmem:[#allocation5 + $0xcd8] sm:$0xff]
    %v542 = vld [vmem:[#allocation5 + $0xce0] sm:$0xff]
    %v543 = vld [vmem:[#allocation5 + $0xce8] sm:$0xff]
    %v544 = vld [vmem:[#allocation5 + $0xcf0] sm:$0xff]
    %v545 = vld [vmem:[#allocation5 + $0xcf8] sm:$0xff]
    %v546 = vld [vmem:[#allocation5 + $0xd00] sm:$0xff]
    %v547 = vld [vmem:[#allocation5 + $0xd08] sm:$0xff]
    %v548 = vld [vmem:[#allocation5 + $0xd10] sm:$0xff]
    %v549 = vld [vmem:[#allocation5 + $0xd18] sm:$0xff]
    %v550 = vld [vmem:[#allocation5 + $0xd20] sm:$0xff]
    %v551 = vld [vmem:[#allocation5 + $0xd28] sm:$0xff]
    %v552 = vld [vmem:[#allocation5 + $0xd30] sm:$0xff]
    %v553 = vld [vmem:[#allocation5 + $0xd38] sm:$0xff]
    %v554 = vld [vmem:[#allocation5 + $0xd40] sm:$0xff]
    %v555 = vld [vmem:[#allocation5 + $0xd48] sm:$0xff]
    %v556 = vld [vmem:[#allocation5 + $0xd50] sm:$0xff]
    %v557 = vld [vmem:[#allocation5 + $0xd58] sm:$0xff]
    %v558 = vld [vmem:[#allocation5 + $0xd60] sm:$0xff]
    %v559 = vld [vmem:[#allocation5 + $0xd68] sm:$0xff]
    %v560 = vld [vmem:[#allocation5 + $0xd70] sm:$0xff]
    %v561 = vld [vmem:[#allocation5 + $0xd78] sm:$0xff]
    %v562 = vld [vmem:[#allocation5 + $0xd80] sm:$0xff]
    %v563 = vld [vmem:[#allocation5 + $0xd88] sm:$0xff]
    %v564 = vld [vmem:[#allocation5 + $0xd90] sm:$0xff]
    %v565 = vld [vmem:[#allocation5 + $0xd98] sm:$0xff]
    %v566 = vld [vmem:[#allocation5 + $0xda0] sm:$0xff]
    %v567 = vld [vmem:[#allocation5 + $0xda8] sm:$0xff]
    %v568 = vld [vmem:[#allocation5 + $0xdb0] sm:$0xff]
    %v569 = vld [vmem:[#allocation5 + $0xdb8] sm:$0xff]
    %v570 = vld [vmem:[#allocation5 + $0xdc0] sm:$0xff]
    %v571 = vld [vmem:[#allocation5 + $0xdc8] sm:$0xff]
    %v572 = vld [vmem:[#allocation5 + $0xdd0] sm:$0xff]
    %v573 = vld [vmem:[#allocation5 + $0xdd8] sm:$0xff]
    %v574 = vld [vmem:[#allocation5 + $0xde0] sm:$0xff]
    %v575 = vld [vmem:[#allocation5 + $0xde8] sm:$0xff]
    %v576 = vld [vmem:[#allocation5 + $0xdf0] sm:$0xff]
    %v577 = vld [vmem:[#allocation5 + $0xdf8] sm:$0xff]
    %v578 = vld [vmem:[#allocation5 + $0xe00] sm:$0xff]
    %v579 = vld [vmem:[#allocation5 + $0xe08] sm:$0xff]
    %v580 = vld [vmem:[#allocation5 + $0xe10] sm:$0xff]
    %v581 = vld [vmem:[#allocation5 + $0xe18] sm:$0xff]
    %v582 = vld [vmem:[#allocation5 + $0xe20] sm:$0xff]
    %v583 = vld [vmem:[#allocation5 + $0xe28] sm:$0xff]
    %v584 = vld [vmem:[#allocation5 + $0xe30] sm:$0xff]
    %v585 = vld [vmem:[#allocation5 + $0xe38] sm:$0xff]
    %v586 = vld [vmem:[#allocation5 + $0xe40] sm:$0xff]
    %v587 = vld [vmem:[#allocation5 + $0xe48] sm:$0xff]
    %v588 = vld [vmem:[#allocation5 + $0xe50] sm:$0xff]
    %v589 = vld [vmem:[#allocation5 + $0xe58] sm:$0xff]
    %v590 = vld [vmem:[#allocation5 + $0xe60] sm:$0xff]
    %v591 = vld [vmem:[#allocation5 + $0xe68] sm:$0xff]
    %v592 = vld [vmem:[#allocation5 + $0xe70] sm:$0xff]
    %v593 = vld [vmem:[#allocation5 + $0xe78] sm:$0xff]
    %v594 = vld [vmem:[#allocation5 + $0xe80] sm:$0xff]
    %v595 = vld [vmem:[#allocation5 + $0xe88] sm:$0xff]
    %v596 = vld [vmem:[#allocation5 + $0xe90] sm:$0xff]
    %v597 = vld [vmem:[#allocation5 + $0xe98] sm:$0xff]
    %v598 = vld [vmem:[#allocation5 + $0xea0] sm:$0xff]
    %v599 = vld [vmem:[#allocation5 + $0xea8] sm:$0xff]
    %v600 = vld [vmem:[#allocation5 + $0xeb0] sm:$0xff]
    %v601 = vld [vmem:[#allocation5 + $0xeb8] sm:$0xff]
    %v602 = vld [vmem:[#allocation5 + $0xec0] sm:$0xff]
    %v603 = vld [vmem:[#allocation5 + $0xec8] sm:$0xff]
    %v604 = vld [vmem:[#allocation5 + $0xed0] sm:$0xff]
    %v605 = vld [vmem:[#allocation5 + $0xed8] sm:$0xff]
    %v606 = vld [vmem:[#allocation5 + $0xee0] sm:$0xff]
    %v607 = vld [vmem:[#allocation5 + $0xee8] sm:$0xff]
    %v608 = vld [vmem:[#allocation5 + $0xef0] sm:$0xff]
    %v609 = vld [vmem:[#allocation5 + $0xef8] sm:$0xff]
    %v610 = vld [vmem:[#allocation5 + $0xf00] sm:$0xff]
    %v611 = vld [vmem:[#allocation5 + $0xf08] sm:$0xff]
    %v612 = vld [vmem:[#allocation5 + $0xf10] sm:$0xff]
    %v613 = vld [vmem:[#allocation5 + $0xf18] sm:$0xff]
    %v614 = vld [vmem:[#allocation5 + $0xf20] sm:$0xff]
    %v615 = vld [vmem:[#allocation5 + $0xf28] sm:$0xff]
    %v616 = vld [vmem:[#allocation5 + $0xf30] sm:$0xff]
    %v617 = vld [vmem:[#allocation5 + $0xf38] sm:$0xff]
    %v618 = vld [vmem:[#allocation5 + $0xf40] sm:$0xff]
    %v619 = vld [vmem:[#allocation5 + $0xf48] sm:$0xff]
    %v620 = vld [vmem:[#allocation5 + $0xf50] sm:$0xff]
    %v621 = vld [vmem:[#allocation5 + $0xf58] sm:$0xff]
    %v622 = vld [vmem:[#allocation5 + $0xf60] sm:$0xff]
    %v623 = vld [vmem:[#allocation5 + $0xf68] sm:$0xff]
    %v624 = vld [vmem:[#allocation5 + $0xf70] sm:$0xff]
    %v625 = vld [vmem:[#allocation5 + $0xf78] sm:$0xff]
    %v626 = vld [vmem:[#allocation5 + $0xf80] sm:$0xff]
    %v627 = vld [vmem:[#allocation5 + $0xf88] sm:$0xff]
    %v628 = vld [vmem:[#allocation5 + $0xf90] sm:$0xff]
    %v629 = vld [vmem:[#allocation5 + $0xf98] sm:$0xff]
    %v630 = vld [vmem:[#allocation5 + $0xfa0] sm:$0xff]
    %v631 = vld [vmem:[#allocation5 + $0xfa8] sm:$0xff]
    %v632 = vld [vmem:[#allocation5 + $0xfb0] sm:$0xff]
    %v633 = vld [vmem:[#allocation5 + $0xfb8] sm:$0xff]
    %v634 = vld [vmem:[#allocation5 + $0xfc0] sm:$0xff]
    %v635 = vld [vmem:[#allocation5 + $0xfc8] sm:$0xff]
    %v636 = vld [vmem:[#allocation5 + $0xfd0] sm:$0xff]
    %v637 = vld [vmem:[#allocation5 + $0xfd8] sm:$0xff]
    %v638 = vld [vmem:[#allocation5 + $0xfe0] sm:$0xff]
    %v639 = vld [vmem:[#allocation5 + $0xfe8] sm:$0xff]
    %v640 = vld [vmem:[#allocation5 + $0xff0] sm:$0xff]
    %v641 = vld [vmem:[#allocation5 + $0xff8] sm:$0xff]
    %v642 = vld [vmem:[#allocation7] sm:$0xff]
    %v643 = vld [vmem:[#allocation7 + $0x8] sm:$0xff]
    %v646 = vperm.slane %v642, 0
    %v647 = vperm.slane %v642, 1
    %v648 = vperm.slane %v642, 2
    %v649 = vperm.slane %v642, 3
    %v650 = vperm.slane %v642, 4
    %v651 = vperm.slane %v642, 5
    %v652 = vperm.slane %v642, 6
    %v653 = vperm.slane %v642, 7
    %v654 = vperm.slane %v643, 0
    %v655 = vperm.slane %v643, 1
    %v656 = vperm.slane %v643, 2
    %v657 = vperm.slane %v643, 3
    %v658 = vperm.slane %v643, 4
    %v659 = vperm.slane %v643, 5
    %v660 = vperm.slane %v643, 6
    %v661 = vperm.slane %v643, 7
    %678 = vmatpush.msra.mxu0 %v370
    %679 = vmatpush.msra.mxu0 %v354
    %680 = vmatpush.msra.mxu0 %v338
    %681 = vmatpush.msra.mxu0 %v322
    %682 = vmatpush.msra.mxu0 %v306
    %683 = vmatpush.msra.mxu0 %v290
    %684 = vmatpush.msra.mxu0 %v274
    %685 = vmatpush.msra.mxu0 %v258
    %686 = vmatpush.msra.mxu0 %v242
    %687 = vmatpush.msra.mxu0 %v226
    %688 = vmatpush.msra.mxu0 %v210
    %689 = vmatpush.msra.mxu0 %v194
    %690 = vmatpush.msra.mxu0 %v178
    %691 = vmatpush.msra.mxu0 %v162
    %692 = vmatpush.msra.mxu0 %v146
    %693 = vmatpush.msra.mxu0 %v130
    %694 = vmatmul.f32.gmra.mxu0 %v128
    %v695 = vpop.f32.mrf.mxu0
    %v696 = vadd.f32 %v646, %v695
    %697 = vdwg.mxu0
    %698 = vmatpush.msra.mxu0 %v626
    %699 = vmatpush.msra.mxu0 %v610
    %700 = vmatpush.msra.mxu0 %v594
    %701 = vmatpush.msra.mxu0 %v578
    %702 = vmatpush.msra.mxu0 %v562
    %703 = vmatpush.msra.mxu0 %v546
    %704 = vmatpush.msra.mxu0 %v530
    %705 = vmatpush.msra.mxu0 %v514
    %706 = vmatpush.msra.mxu0 %v498
    %707 = vmatpush.msra.mxu0 %v482
    %708 = vmatpush.msra.mxu0 %v466
    %709 = vmatpush.msra.mxu0 %v450
    %710 = vmatpush.msra.mxu0 %v434
    %711 = vmatpush.msra.mxu0 %v418
    %712 = vmatpush.msra.mxu0 %v402
    %713 = vmatpush.msra.mxu0 %v386
    %714 = vmatmul.f32.gmra.mxu0 %v129
    %v715 = vpop.f32.mrf.mxu0
    %v716 = vadd.f32 %v696, %v715
    %717 = vdwg.mxu0
    %718 = vmatpush.msra.mxu0 %v371
    %719 = vmatpush.msra.mxu0 %v355
    %720 = vmatpush.msra.mxu0 %v339
    %721 = vmatpush.msra.mxu0 %v323
    %722 = vmatpush.msra.mxu0 %v307
    %723 = vmatpush.msra.mxu0 %v291
    %724 = vmatpush.msra.mxu0 %v275
    %725 = vmatpush.msra.mxu0 %v259
    %726 = vmatpush.msra.mxu0 %v243
    %727 = vmatpush.msra.mxu0 %v227
    %728 = vmatpush.msra.mxu0 %v211
    %729 = vmatpush.msra.mxu0 %v195
    %730 = vmatpush.msra.mxu0 %v179
    %731 = vmatpush.msra.mxu0 %v163
    %732 = vmatpush.msra.mxu0 %v147
    %733 = vmatpush.msra.mxu0 %v131
    %734 = vmatmul.f32.gmra.mxu0 %v128
    %v735 = vpop.f32.mrf.mxu0
    %v736 = vadd.f32 %v647, %v735
    %737 = vdwg.mxu0
    %738 = vmatpush.msra.mxu0 %v627
    %739 = vmatpush.msra.mxu0 %v611
    %740 = vmatpush.msra.mxu0 %v595
    %741 = vmatpush.msra.mxu0 %v579
    %742 = vmatpush.msra.mxu0 %v563
    %743 = vmatpush.msra.mxu0 %v547
    %744 = vmatpush.msra.mxu0 %v531
    %745 = vmatpush.msra.mxu0 %v515
    %746 = vmatpush.msra.mxu0 %v499
    %747 = vmatpush.msra.mxu0 %v483
    %748 = vmatpush.msra.mxu0 %v467
    %749 = vmatpush.msra.mxu0 %v451
    %750 = vmatpush.msra.mxu0 %v435
    %751 = vmatpush.msra.mxu0 %v419
    %752 = vmatpush.msra.mxu0 %v403
    %753 = vmatpush.msra.mxu0 %v387
    %754 = vmatmul.f32.gmra.mxu0 %v129
    %v755 = vpop.f32.mrf.mxu0
    %v756 = vadd.f32 %v736, %v755
    %757 = vdwg.mxu0
    %758 = vmatpush.msra.mxu0 %v372
    %759 = vmatpush.msra.mxu0 %v356
    %760 = vmatpush.msra.mxu0 %v340
    %761 = vmatpush.msra.mxu0 %v324
    %762 = vmatpush.msra.mxu0 %v308
    %763 = vmatpush.msra.mxu0 %v292
    %764 = vmatpush.msra.mxu0 %v276
    %765 = vmatpush.msra.mxu0 %v260
    %766 = vmatpush.msra.mxu0 %v244
    %767 = vmatpush.msra.mxu0 %v228
    %768 = vmatpush.msra.mxu0 %v212
    %769 = vmatpush.msra.mxu0 %v196
    %770 = vmatpush.msra.mxu0 %v180
    %771 = vmatpush.msra.mxu0 %v164
    %772 = vmatpush.msra.mxu0 %v148
    %773 = vmatpush.msra.mxu0 %v132
    %774 = vmatmul.f32.gmra.mxu0 %v128
    %v775 = vpop.f32.mrf.mxu0
    %v776 = vadd.f32 %v648, %v775
    %777 = vdwg.mxu0
    %778 = vmatpush.msra.mxu0 %v628
    %779 = vmatpush.msra.mxu0 %v612
    %780 = vmatpush.msra.mxu0 %v596
    %781 = vmatpush.msra.mxu0 %v580
    %782 = vmatpush.msra.mxu0 %v564
    %783 = vmatpush.msra.mxu0 %v548
    %784 = vmatpush.msra.mxu0 %v532
    %785 = vmatpush.msra.mxu0 %v516
    %786 = vmatpush.msra.mxu0 %v500
    %787 = vmatpush.msra.mxu0 %v484
    %788 = vmatpush.msra.mxu0 %v468
    %789 = vmatpush.msra.mxu0 %v452
    %790 = vmatpush.msra.mxu0 %v436
    %791 = vmatpush.msra.mxu0 %v420
    %792 = vmatpush.msra.mxu0 %v404
    %793 = vmatpush.msra.mxu0 %v388
    %794 = vmatmul.f32.gmra.mxu0 %v129
    %v795 = vpop.f32.mrf.mxu0
    %v796 = vadd.f32 %v776, %v795
    %797 = vdwg.mxu0
    %798 = vmatpush.msra.mxu0 %v373
    %799 = vmatpush.msra.mxu0 %v357
    %800 = vmatpush.msra.mxu0 %v341
    %801 = vmatpush.msra.mxu0 %v325
    %802 = vmatpush.msra.mxu0 %v309
    %803 = vmatpush.msra.mxu0 %v293
    %804 = vmatpush.msra.mxu0 %v277
    %805 = vmatpush.msra.mxu0 %v261
    %806 = vmatpush.msra.mxu0 %v245
    %807 = vmatpush.msra.mxu0 %v229
    %808 = vmatpush.msra.mxu0 %v213
    %809 = vmatpush.msra.mxu0 %v197
    %810 = vmatpush.msra.mxu0 %v181
    %811 = vmatpush.msra.mxu0 %v165
    %812 = vmatpush.msra.mxu0 %v149
    %813 = vmatpush.msra.mxu0 %v133
    %814 = vmatmul.f32.gmra.mxu0 %v128
    %v815 = vpop.f32.mrf.mxu0
    %v816 = vadd.f32 %v649, %v815
    %817 = vdwg.mxu0
    %818 = vmatpush.msra.mxu0 %v629
    %819 = vmatpush.msra.mxu0 %v613
    %820 = vmatpush.msra.mxu0 %v597
    %821 = vmatpush.msra.mxu0 %v581
    %822 = vmatpush.msra.mxu0 %v565
    %823 = vmatpush.msra.mxu0 %v549
    %824 = vmatpush.msra.mxu0 %v533
    %825 = vmatpush.msra.mxu0 %v517
    %826 = vmatpush.msra.mxu0 %v501
    %827 = vmatpush.msra.mxu0 %v485
    %828 = vmatpush.msra.mxu0 %v469
    %829 = vmatpush.msra.mxu0 %v453
    %830 = vmatpush.msra.mxu0 %v437
    %831 = vmatpush.msra.mxu0 %v421
    %832 = vmatpush.msra.mxu0 %v405
    %833 = vmatpush.msra.mxu0 %v389
    %834 = vmatmul.f32.gmra.mxu0 %v129
    %v835 = vpop.f32.mrf.mxu0
    %v836 = vadd.f32 %v816, %v835
    %837 = vdwg.mxu0
    %838 = vmatpush.msra.mxu0 %v374
    %839 = vmatpush.msra.mxu0 %v358
    %840 = vmatpush.msra.mxu0 %v342
    %841 = vmatpush.msra.mxu0 %v326
    %842 = vmatpush.msra.mxu0 %v310
    %843 = vmatpush.msra.mxu0 %v294
    %844 = vmatpush.msra.mxu0 %v278
    %845 = vmatpush.msra.mxu0 %v262
    %846 = vmatpush.msra.mxu0 %v246
    %847 = vmatpush.msra.mxu0 %v230
    %848 = vmatpush.msra.mxu0 %v214
    %849 = vmatpush.msra.mxu0 %v198
    %850 = vmatpush.msra.mxu0 %v182
    %851 = vmatpush.msra.mxu0 %v166
    %852 = vmatpush.msra.mxu0 %v150
    %853 = vmatpush.msra.mxu0 %v134
    %854 = vmatmul.f32.gmra.mxu0 %v128
    %v855 = vpop.f32.mrf.mxu0
    %v856 = vadd.f32 %v650, %v855
    %857 = vdwg.mxu0
    %858 = vmatpush.msra.mxu0 %v630
    %859 = vmatpush.msra.mxu0 %v614
    %860 = vmatpush.msra.mxu0 %v598
    %861 = vmatpush.msra.mxu0 %v582
    %862 = vmatpush.msra.mxu0 %v566
    %863 = vmatpush.msra.mxu0 %v550
    %864 = vmatpush.msra.mxu0 %v534
    %865 = vmatpush.msra.mxu0 %v518
    %866 = vmatpush.msra.mxu0 %v502
    %867 = vmatpush.msra.mxu0 %v486
    %868 = vmatpush.msra.mxu0 %v470
    %869 = vmatpush.msra.mxu0 %v454
    %870 = vmatpush.msra.mxu0 %v438
    %871 = vmatpush.msra.mxu0 %v422
    %872 = vmatpush.msra.mxu0 %v406
    %873 = vmatpush.msra.mxu0 %v390
    %874 = vmatmul.f32.gmra.mxu0 %v129
    %v875 = vpop.f32.mrf.mxu0
    %v876 = vadd.f32 %v856, %v875
    %877 = vdwg.mxu0
    %878 = vmatpush.msra.mxu0 %v375
    %879 = vmatpush.msra.mxu0 %v359
    %880 = vmatpush.msra.mxu0 %v343
    %881 = vmatpush.msra.mxu0 %v327
    %882 = vmatpush.msra.mxu0 %v311
    %883 = vmatpush.msra.mxu0 %v295
    %884 = vmatpush.msra.mxu0 %v279
    %885 = vmatpush.msra.mxu0 %v263
    %886 = vmatpush.msra.mxu0 %v247
    %887 = vmatpush.msra.mxu0 %v231
    %888 = vmatpush.msra.mxu0 %v215
    %889 = vmatpush.msra.mxu0 %v199
    %890 = vmatpush.msra.mxu0 %v183
    %891 = vmatpush.msra.mxu0 %v167
    %892 = vmatpush.msra.mxu0 %v151
    %893 = vmatpush.msra.mxu0 %v135
    %894 = vmatmul.f32.gmra.mxu0 %v128
    %v895 = vpop.f32.mrf.mxu0
    %v896 = vadd.f32 %v651, %v895
    %897 = vdwg.mxu0
    %898 = vmatpush.msra.mxu0 %v631
    %899 = vmatpush.msra.mxu0 %v615
    %900 = vmatpush.msra.mxu0 %v599
    %901 = vmatpush.msra.mxu0 %v583
    %902 = vmatpush.msra.mxu0 %v567
    %903 = vmatpush.msra.mxu0 %v551
    %904 = vmatpush.msra.mxu0 %v535
    %905 = vmatpush.msra.mxu0 %v519
    %906 = vmatpush.msra.mxu0 %v503
    %907 = vmatpush.msra.mxu0 %v487
    %908 = vmatpush.msra.mxu0 %v471
    %909 = vmatpush.msra.mxu0 %v455
    %910 = vmatpush.msra.mxu0 %v439
    %911 = vmatpush.msra.mxu0 %v423
    %912 = vmatpush.msra.mxu0 %v407
    %913 = vmatpush.msra.mxu0 %v391
    %914 = vmatmul.f32.gmra.mxu0 %v129
    %v915 = vpop.f32.mrf.mxu0
    %v916 = vadd.f32 %v896, %v915
    %917 = vdwg.mxu0
    %918 = vmatpush.msra.mxu0 %v376
    %919 = vmatpush.msra.mxu0 %v360
    %920 = vmatpush.msra.mxu0 %v344
    %921 = vmatpush.msra.mxu0 %v328
    %922 = vmatpush.msra.mxu0 %v312
    %923 = vmatpush.msra.mxu0 %v296
    %924 = vmatpush.msra.mxu0 %v280
    %925 = vmatpush.msra.mxu0 %v264
    %926 = vmatpush.msra.mxu0 %v248
    %927 = vmatpush.msra.mxu0 %v232
    %928 = vmatpush.msra.mxu0 %v216
    %929 = vmatpush.msra.mxu0 %v200
    %930 = vmatpush.msra.mxu0 %v184
    %931 = vmatpush.msra.mxu0 %v168
    %932 = vmatpush.msra.mxu0 %v152
    %933 = vmatpush.msra.mxu0 %v136
    %934 = vmatmul.f32.gmra.mxu0 %v128
    %v935 = vpop.f32.mrf.mxu0
    %v936 = vadd.f32 %v652, %v935
    %937 = vdwg.mxu0
    %938 = vmatpush.msra.mxu0 %v632
    %939 = vmatpush.msra.mxu0 %v616
    %940 = vmatpush.msra.mxu0 %v600
    %941 = vmatpush.msra.mxu0 %v584
    %942 = vmatpush.msra.mxu0 %v568
    %943 = vmatpush.msra.mxu0 %v552
    %944 = vmatpush.msra.mxu0 %v536
    %945 = vmatpush.msra.mxu0 %v520
    %946 = vmatpush.msra.mxu0 %v504
    %947 = vmatpush.msra.mxu0 %v488
    %948 = vmatpush.msra.mxu0 %v472
    %949 = vmatpush.msra.mxu0 %v456
    %950 = vmatpush.msra.mxu0 %v440
    %951 = vmatpush.msra.mxu0 %v424
    %952 = vmatpush.msra.mxu0 %v408
    %953 = vmatpush.msra.mxu0 %v392
    %954 = vmatmul.f32.gmra.mxu0 %v129
    %v955 = vpop.f32.mrf.mxu0
    %v956 = vadd.f32 %v936, %v955
    %957 = vdwg.mxu0
    %958 = vmatpush.msra.mxu0 %v377
    %959 = vmatpush.msra.mxu0 %v361
    %960 = vmatpush.msra.mxu0 %v345
    %961 = vmatpush.msra.mxu0 %v329
    %962 = vmatpush.msra.mxu0 %v313
    %963 = vmatpush.msra.mxu0 %v297
    %964 = vmatpush.msra.mxu0 %v281
    %965 = vmatpush.msra.mxu0 %v265
    %966 = vmatpush.msra.mxu0 %v249
    %967 = vmatpush.msra.mxu0 %v233
    %968 = vmatpush.msra.mxu0 %v217
    %969 = vmatpush.msra.mxu0 %v201
    %970 = vmatpush.msra.mxu0 %v185
    %971 = vmatpush.msra.mxu0 %v169
    %972 = vmatpush.msra.mxu0 %v153
    %973 = vmatpush.msra.mxu0 %v137
    %974 = vmatmul.f32.gmra.mxu0 %v128
    %v975 = vpop.f32.mrf.mxu0
    %v976 = vadd.f32 %v653, %v975
    %977 = vdwg.mxu0
    %978 = vmatpush.msra.mxu0 %v633
    %979 = vmatpush.msra.mxu0 %v617
    %980 = vmatpush.msra.mxu0 %v601
    %981 = vmatpush.msra.mxu0 %v585
    %982 = vmatpush.msra.mxu0 %v569
    %983 = vmatpush.msra.mxu0 %v553
    %984 = vmatpush.msra.mxu0 %v537
    %985 = vmatpush.msra.mxu0 %v521
    %986 = vmatpush.msra.mxu0 %v505
    %987 = vmatpush.msra.mxu0 %v489
    %988 = vmatpush.msra.mxu0 %v473
    %989 = vmatpush.msra.mxu0 %v457
    %990 = vmatpush.msra.mxu0 %v441
    %991 = vmatpush.msra.mxu0 %v425
    %992 = vmatpush.msra.mxu0 %v409
    %993 = vmatpush.msra.mxu0 %v393
    %994 = vmatmul.f32.gmra.mxu0 %v129
    %v995 = vpop.f32.mrf.mxu0
    %v996 = vadd.f32 %v976, %v995
    %997 = vdwg.mxu0
    %998 = vmatpush.msra.mxu0 %v378
    %999 = vmatpush.msra.mxu0 %v362
    %1000 = vmatpush.msra.mxu0 %v346
    %1001 = vmatpush.msra.mxu0 %v330
    %1002 = vmatpush.msra.mxu0 %v314
    %1003 = vmatpush.msra.mxu0 %v298
    %1004 = vmatpush.msra.mxu0 %v282
    %1005 = vmatpush.msra.mxu0 %v266
    %1006 = vmatpush.msra.mxu0 %v250
    %1007 = vmatpush.msra.mxu0 %v234
    %1008 = vmatpush.msra.mxu0 %v218
    %1009 = vmatpush.msra.mxu0 %v202
    %1010 = vmatpush.msra.mxu0 %v186
    %1011 = vmatpush.msra.mxu0 %v170
    %1012 = vmatpush.msra.mxu0 %v154
    %1013 = vmatpush.msra.mxu0 %v138
    %1014 = vmatmul.f32.gmra.mxu0 %v128
    %v1015 = vpop.f32.mrf.mxu0
    %v1016 = vadd.f32 %v654, %v1015
    %1017 = vdwg.mxu0
    %1018 = vmatpush.msra.mxu0 %v634
    %1019 = vmatpush.msra.mxu0 %v618
    %1020 = vmatpush.msra.mxu0 %v602
    %1021 = vmatpush.msra.mxu0 %v586
    %1022 = vmatpush.msra.mxu0 %v570
    %1023 = vmatpush.msra.mxu0 %v554
    %1024 = vmatpush.msra.mxu0 %v538
    %1025 = vmatpush.msra.mxu0 %v522
    %1026 = vmatpush.msra.mxu0 %v506
    %1027 = vmatpush.msra.mxu0 %v490
    %1028 = vmatpush.msra.mxu0 %v474
    %1029 = vmatpush.msra.mxu0 %v458
    %1030 = vmatpush.msra.mxu0 %v442
    %1031 = vmatpush.msra.mxu0 %v426
    %1032 = vmatpush.msra.mxu0 %v410
    %1033 = vmatpush.msra.mxu0 %v394
    %1034 = vmatmul.f32.gmra.mxu0 %v129
    %v1035 = vpop.f32.mrf.mxu0
    %v1036 = vadd.f32 %v1016, %v1035
    %1037 = vdwg.mxu0
    %1038 = vmatpush.msra.mxu0 %v379
    %1039 = vmatpush.msra.mxu0 %v363
    %1040 = vmatpush.msra.mxu0 %v347
    %1041 = vmatpush.msra.mxu0 %v331
    %1042 = vmatpush.msra.mxu0 %v315
    %1043 = vmatpush.msra.mxu0 %v299
    %1044 = vmatpush.msra.mxu0 %v283
    %1045 = vmatpush.msra.mxu0 %v267
    %1046 = vmatpush.msra.mxu0 %v251
    %1047 = vmatpush.msra.mxu0 %v235
    %1048 = vmatpush.msra.mxu0 %v219
    %1049 = vmatpush.msra.mxu0 %v203
    %1050 = vmatpush.msra.mxu0 %v187
    %1051 = vmatpush.msra.mxu0 %v171
    %1052 = vmatpush.msra.mxu0 %v155
    %1053 = vmatpush.msra.mxu0 %v139
    %1054 = vmatmul.f32.gmra.mxu0 %v128
    %v1055 = vpop.f32.mrf.mxu0
    %v1056 = vadd.f32 %v655, %v1055
    %1057 = vdwg.mxu0
    %1058 = vmatpush.msra.mxu0 %v635
    %1059 = vmatpush.msra.mxu0 %v619
    %1060 = vmatpush.msra.mxu0 %v603
    %1061 = vmatpush.msra.mxu0 %v587
    %1062 = vmatpush.msra.mxu0 %v571
    %1063 = vmatpush.msra.mxu0 %v555
    %1064 = vmatpush.msra.mxu0 %v539
    %1065 = vmatpush.msra.mxu0 %v523
    %1066 = vmatpush.msra.mxu0 %v507
    %1067 = vmatpush.msra.mxu0 %v491
    %1068 = vmatpush.msra.mxu0 %v475
    %1069 = vmatpush.msra.mxu0 %v459
    %1070 = vmatpush.msra.mxu0 %v443
    %1071 = vmatpush.msra.mxu0 %v427
    %1072 = vmatpush.msra.mxu0 %v411
    %1073 = vmatpush.msra.mxu0 %v395
    %1074 = vmatmul.f32.gmra.mxu0 %v129
    %v1075 = vpop.f32.mrf.mxu0
    %v1076 = vadd.f32 %v1056, %v1075
    %1077 = vdwg.mxu0
    %1078 = vmatpush.msra.mxu0 %v380
    %1079 = vmatpush.msra.mxu0 %v364
    %1080 = vmatpush.msra.mxu0 %v348
    %1081 = vmatpush.msra.mxu0 %v332
    %1082 = vmatpush.msra.mxu0 %v316
    %1083 = vmatpush.msra.mxu0 %v300
    %1084 = vmatpush.msra.mxu0 %v284
    %1085 = vmatpush.msra.mxu0 %v268
    %1086 = vmatpush.msra.mxu0 %v252
    %1087 = vmatpush.msra.mxu0 %v236
    %1088 = vmatpush.msra.mxu0 %v220
    %1089 = vmatpush.msra.mxu0 %v204
    %1090 = vmatpush.msra.mxu0 %v188
    %1091 = vmatpush.msra.mxu0 %v172
    %1092 = vmatpush.msra.mxu0 %v156
    %1093 = vmatpush.msra.mxu0 %v140
    %1094 = vmatmul.f32.gmra.mxu0 %v128
    %v1095 = vpop.f32.mrf.mxu0
    %v1096 = vadd.f32 %v656, %v1095
    %1097 = vdwg.mxu0
    %1098 = vmatpush.msra.mxu0 %v636
    %1099 = vmatpush.msra.mxu0 %v620
    %1100 = vmatpush.msra.mxu0 %v604
    %1101 = vmatpush.msra.mxu0 %v588
    %1102 = vmatpush.msra.mxu0 %v572
    %1103 = vmatpush.msra.mxu0 %v556
    %1104 = vmatpush.msra.mxu0 %v540
    %1105 = vmatpush.msra.mxu0 %v524
    %1106 = vmatpush.msra.mxu0 %v508
    %1107 = vmatpush.msra.mxu0 %v492
    %1108 = vmatpush.msra.mxu0 %v476
    %1109 = vmatpush.msra.mxu0 %v460
    %1110 = vmatpush.msra.mxu0 %v444
    %1111 = vmatpush.msra.mxu0 %v428
    %1112 = vmatpush.msra.mxu0 %v412
    %1113 = vmatpush.msra.mxu0 %v396
    %1114 = vmatmul.f32.gmra.mxu0 %v129
    %v1115 = vpop.f32.mrf.mxu0
    %v1116 = vadd.f32 %v1096, %v1115
    %1117 = vdwg.mxu0
    %1118 = vmatpush.msra.mxu0 %v381
    %1119 = vmatpush.msra.mxu0 %v365
    %1120 = vmatpush.msra.mxu0 %v349
    %1121 = vmatpush.msra.mxu0 %v333
    %1122 = vmatpush.msra.mxu0 %v317
    %1123 = vmatpush.msra.mxu0 %v301
    %1124 = vmatpush.msra.mxu0 %v285
    %1125 = vmatpush.msra.mxu0 %v269
    %1126 = vmatpush.msra.mxu0 %v253
    %1127 = vmatpush.msra.mxu0 %v237
    %1128 = vmatpush.msra.mxu0 %v221
    %1129 = vmatpush.msra.mxu0 %v205
    %1130 = vmatpush.msra.mxu0 %v189
    %1131 = vmatpush.msra.mxu0 %v173
    %1132 = vmatpush.msra.mxu0 %v157
    %1133 = vmatpush.msra.mxu0 %v141
    %1134 = vmatmul.f32.gmra.mxu0 %v128
    %v1135 = vpop.f32.mrf.mxu0
    %v1136 = vadd.f32 %v657, %v1135
    %1137 = vdwg.mxu0
    %1138 = vmatpush.msra.mxu0 %v637
    %1139 = vmatpush.msra.mxu0 %v621
    %1140 = vmatpush.msra.mxu0 %v605
    %1141 = vmatpush.msra.mxu0 %v589
    %1142 = vmatpush.msra.mxu0 %v573
    %1143 = vmatpush.msra.mxu0 %v557
    %1144 = vmatpush.msra.mxu0 %v541
    %1145 = vmatpush.msra.mxu0 %v525
    %1146 = vmatpush.msra.mxu0 %v509
    %1147 = vmatpush.msra.mxu0 %v493
    %1148 = vmatpush.msra.mxu0 %v477
    %1149 = vmatpush.msra.mxu0 %v461
    %1150 = vmatpush.msra.mxu0 %v445
    %1151 = vmatpush.msra.mxu0 %v429
    %1152 = vmatpush.msra.mxu0 %v413
    %1153 = vmatpush.msra.mxu0 %v397
    %1154 = vmatmul.f32.gmra.mxu0 %v129
    %v1155 = vpop.f32.mrf.mxu0
    %v1156 = vadd.f32 %v1136, %v1155
    %1157 = vdwg.mxu0
    %1158 = vmatpush.msra.mxu0 %v382
    %1159 = vmatpush.msra.mxu0 %v366
    %1160 = vmatpush.msra.mxu0 %v350
    %1161 = vmatpush.msra.mxu0 %v334
    %1162 = vmatpush.msra.mxu0 %v318
    %1163 = vmatpush.msra.mxu0 %v302
    %1164 = vmatpush.msra.mxu0 %v286
    %1165 = vmatpush.msra.mxu0 %v270
    %1166 = vmatpush.msra.mxu0 %v254
    %1167 = vmatpush.msra.mxu0 %v238
    %1168 = vmatpush.msra.mxu0 %v222
    %1169 = vmatpush.msra.mxu0 %v206
    %1170 = vmatpush.msra.mxu0 %v190
    %1171 = vmatpush.msra.mxu0 %v174
    %1172 = vmatpush.msra.mxu0 %v158
    %1173 = vmatpush.msra.mxu0 %v142
    %1174 = vmatmul.f32.gmra.mxu0 %v128
    %v1175 = vpop.f32.mrf.mxu0
    %v1176 = vadd.f32 %v658, %v1175
    %1177 = vdwg.mxu0
    %1178 = vmatpush.msra.mxu0 %v638
    %1179 = vmatpush.msra.mxu0 %v622
    %1180 = vmatpush.msra.mxu0 %v606
    %1181 = vmatpush.msra.mxu0 %v590
    %1182 = vmatpush.msra.mxu0 %v574
    %1183 = vmatpush.msra.mxu0 %v558
    %1184 = vmatpush.msra.mxu0 %v542
    %1185 = vmatpush.msra.mxu0 %v526
    %1186 = vmatpush.msra.mxu0 %v510
    %1187 = vmatpush.msra.mxu0 %v494
    %1188 = vmatpush.msra.mxu0 %v478
    %1189 = vmatpush.msra.mxu0 %v462
    %1190 = vmatpush.msra.mxu0 %v446
    %1191 = vmatpush.msra.mxu0 %v430
    %1192 = vmatpush.msra.mxu0 %v414
    %1193 = vmatpush.msra.mxu0 %v398
    %1194 = vmatmul.f32.gmra.mxu0 %v129
    %v1195 = vpop.f32.mrf.mxu0
    %v1196 = vadd.f32 %v1176, %v1195
    %1197 = vdwg.mxu0
    %1198 = vmatpush.msra.mxu0 %v383
    %1199 = vmatpush.msra.mxu0 %v367
    %1200 = vmatpush.msra.mxu0 %v351
    %1201 = vmatpush.msra.mxu0 %v335
    %1202 = vmatpush.msra.mxu0 %v319
    %1203 = vmatpush.msra.mxu0 %v303
    %1204 = vmatpush.msra.mxu0 %v287
    %1205 = vmatpush.msra.mxu0 %v271
    %1206 = vmatpush.msra.mxu0 %v255
    %1207 = vmatpush.msra.mxu0 %v239
    %1208 = vmatpush.msra.mxu0 %v223
    %1209 = vmatpush.msra.mxu0 %v207
    %1210 = vmatpush.msra.mxu0 %v191
    %1211 = vmatpush.msra.mxu0 %v175
    %1212 = vmatpush.msra.mxu0 %v159
    %1213 = vmatpush.msra.mxu0 %v143
    %1214 = vmatmul.f32.gmra.mxu0 %v128
    %v1215 = vpop.f32.mrf.mxu0
    %v1216 = vadd.f32 %v659, %v1215
    %1217 = vdwg.mxu0
    %1218 = vmatpush.msra.mxu0 %v639
    %1219 = vmatpush.msra.mxu0 %v623
    %1220 = vmatpush.msra.mxu0 %v607
    %1221 = vmatpush.msra.mxu0 %v591
    %1222 = vmatpush.msra.mxu0 %v575
    %1223 = vmatpush.msra.mxu0 %v559
    %1224 = vmatpush.msra.mxu0 %v543
    %1225 = vmatpush.msra.mxu0 %v527
    %1226 = vmatpush.msra.mxu0 %v511
    %1227 = vmatpush.msra.mxu0 %v495
    %1228 = vmatpush.msra.mxu0 %v479
    %1229 = vmatpush.msra.mxu0 %v463
    %1230 = vmatpush.msra.mxu0 %v447
    %1231 = vmatpush.msra.mxu0 %v431
    %1232 = vmatpush.msra.mxu0 %v415
    %1233 = vmatpush.msra.mxu0 %v399
    %1234 = vmatmul.f32.gmra.mxu0 %v129
    %v1235 = vpop.f32.mrf.mxu0
    %v1236 = vadd.f32 %v1216, %v1235
    %1237 = vdwg.mxu0
    %1238 = vmatpush.msra.mxu0 %v384
    %1239 = vmatpush.msra.mxu0 %v368
    %1240 = vmatpush.msra.mxu0 %v352
    %1241 = vmatpush.msra.mxu0 %v336
    %1242 = vmatpush.msra.mxu0 %v320
    %1243 = vmatpush.msra.mxu0 %v304
    %1244 = vmatpush.msra.mxu0 %v288
    %1245 = vmatpush.msra.mxu0 %v272
    %1246 = vmatpush.msra.mxu0 %v256
    %1247 = vmatpush.msra.mxu0 %v240
    %1248 = vmatpush.msra.mxu0 %v224
    %1249 = vmatpush.msra.mxu0 %v208
    %1250 = vmatpush.msra.mxu0 %v192
    %1251 = vmatpush.msra.mxu0 %v176
    %1252 = vmatpush.msra.mxu0 %v160
    %1253 = vmatpush.msra.mxu0 %v144
    %1254 = vmatmul.f32.gmra.mxu0 %v128
    %v1255 = vpop.f32.mrf.mxu0
    %v1256 = vadd.f32 %v660, %v1255
    %1257 = vdwg.mxu0
    %1258 = vmatpush.msra.mxu0 %v640
    %1259 = vmatpush.msra.mxu0 %v624
    %1260 = vmatpush.msra.mxu0 %v608
    %1261 = vmatpush.msra.mxu0 %v592
    %1262 = vmatpush.msra.mxu0 %v576
    %1263 = vmatpush.msra.mxu0 %v560
    %1264 = vmatpush.msra.mxu0 %v544
    %1265 = vmatpush.msra.mxu0 %v528
    %1266 = vmatpush.msra.mxu0 %v512
    %1267 = vmatpush.msra.mxu0 %v496
    %1268 = vmatpush.msra.mxu0 %v480
    %1269 = vmatpush.msra.mxu0 %v464
    %1270 = vmatpush.msra.mxu0 %v448
    %1271 = vmatpush.msra.mxu0 %v432
    %1272 = vmatpush.msra.mxu0 %v416
    %1273 = vmatpush.msra.mxu0 %v400
    %1274 = vmatmul.f32.gmra.mxu0 %v129
    %v1275 = vpop.f32.mrf.mxu0
    %v1276 = vadd.f32 %v1256, %v1275
    %1277 = vdwg.mxu0
    %1278 = vmatpush.msra.mxu0 %v385
    %1279 = vmatpush.msra.mxu0 %v369
    %1280 = vmatpush.msra.mxu0 %v353
    %1281 = vmatpush.msra.mxu0 %v337
    %1282 = vmatpush.msra.mxu0 %v321
    %1283 = vmatpush.msra.mxu0 %v305
    %1284 = vmatpush.msra.mxu0 %v289
    %1285 = vmatpush.msra.mxu0 %v273
    %1286 = vmatpush.msra.mxu0 %v257
    %1287 = vmatpush.msra.mxu0 %v241
    %1288 = vmatpush.msra.mxu0 %v225
    %1289 = vmatpush.msra.mxu0 %v209
    %1290 = vmatpush.msra.mxu0 %v193
    %1291 = vmatpush.msra.mxu0 %v177
    %1292 = vmatpush.msra.mxu0 %v161
    %1293 = vmatpush.msra.mxu0 %v145
    %1294 = vmatmul.f32.gmra.mxu0 %v128
    %v1295 = vpop.f32.mrf.mxu0
    %v1296 = vadd.f32 %v661, %v1295
    %1297 = vdwg.mxu0
    %1298 = vmatpush.msra.mxu0 %v641
    %1299 = vmatpush.msra.mxu0 %v625
    %1300 = vmatpush.msra.mxu0 %v609
    %1301 = vmatpush.msra.mxu0 %v593
    %1302 = vmatpush.msra.mxu0 %v577
    %1303 = vmatpush.msra.mxu0 %v561
    %1304 = vmatpush.msra.mxu0 %v545
    %1305 = vmatpush.msra.mxu0 %v529
    %1306 = vmatpush.msra.mxu0 %v513
    %1307 = vmatpush.msra.mxu0 %v497
    %1308 = vmatpush.msra.mxu0 %v481
    %1309 = vmatpush.msra.mxu0 %v465
    %1310 = vmatpush.msra.mxu0 %v449
    %1311 = vmatpush.msra.mxu0 %v433
    %1312 = vmatpush.msra.mxu0 %v417
    %1313 = vmatpush.msra.mxu0 %v401
    %1314 = vmatmul.f32.gmra.mxu0 %v129
    %v1315 = vpop.f32.mrf.mxu0
    %v1316 = vadd.f32 %v1296, %v1315
    %1317 = vdwg.mxu0
    %v1318 = vmax.f32 %v716, 0.0
    %v1319 = vmax.f32 %v756, 0.0
    %v1320 = vmax.f32 %v796, 0.0
    %v1321 = vmax.f32 %v836, 0.0
    %v1322 = vmax.f32 %v876, 0.0
    %v1323 = vmax.f32 %v916, 0.0
    %v1324 = vmax.f32 %v956, 0.0
    %v1325 = vmax.f32 %v996, 0.0
    %v1326 = vmax.f32 %v1036, 0.0
    %v1327 = vmax.f32 %v1076, 0.0
    %v1328 = vmax.f32 %v1116, 0.0
    %v1329 = vmax.f32 %v1156, 0.0
    %v1330 = vmax.f32 %v1196, 0.0
    %v1331 = vmax.f32 %v1236, 0.0
    %v1332 = vmax.f32 %v1276, 0.0
    %v1333 = vmax.f32 %v1316, 0.0
    %v1334 = vld [vmem:[#allocation8] sm:$0xff]
    %v1335 = vld [vmem:[#allocation8 + $0x8] sm:$0xff]
    %v1336 = vld [vmem:[#allocation8 + $0x10] sm:$0xff]
    %v1337 = vld [vmem:[#allocation8 + $0x18] sm:$0xff]
    %v1338 = vld [vmem:[#allocation8 + $0x20] sm:$0xff]
    %v1339 = vld [vmem:[#allocation8 + $0x28] sm:$0xff]
    %v1340 = vld [vmem:[#allocation8 + $0x30] sm:$0xff]
    %v1341 = vld [vmem:[#allocation8 + $0x38] sm:$0xff]
    %v1342 = vld [vmem:[#allocation8 + $0x40] sm:$0xff]
    %v1343 = vld [vmem:[#allocation8 + $0x48] sm:$0xff]
    %v1344 = vld [vmem:[#allocation8 + $0x50] sm:$0xff]
    %v1345 = vld [vmem:[#allocation8 + $0x58] sm:$0xff]
    %v1346 = vld [vmem:[#allocation8 + $0x60] sm:$0xff]
    %v1347 = vld [vmem:[#allocation8 + $0x68] sm:$0xff]
    %v1348 = vld [vmem:[#allocation8 + $0x70] sm:$0xff]
    %v1349 = vld [vmem:[#allocation8 + $0x78] sm:$0xff]
    %v1350 = vld [vmem:[#allocation8 + $0x80] sm:$0xff]
    %v1351 = vld [vmem:[#allocation8 + $0x88] sm:$0xff]
    %v1352 = vld [vmem:[#allocation8 + $0x90] sm:$0xff]
    %v1353 = vld [vmem:[#allocation8 + $0x98] sm:$0xff]
    %v1354 = vld [vmem:[#allocation8 + $0xa0] sm:$0xff]
    %v1355 = vld [vmem:[#allocation8 + $0xa8] sm:$0xff]
    %v1356 = vld [vmem:[#allocation8 + $0xb0] sm:$0xff]
    %v1357 = vld [vmem:[#allocation8 + $0xb8] sm:$0xff]
    %v1358 = vld [vmem:[#allocation8 + $0xc0] sm:$0xff]
    %v1359 = vld [vmem:[#allocation8 + $0xc8] sm:$0xff]
    %v1360 = vld [vmem:[#allocation8 + $0xd0] sm:$0xff]
    %v1361 = vld [vmem:[#allocation8 + $0xd8] sm:$0xff]
    %v1362 = vld [vmem:[#allocation8 + $0xe0] sm:$0xff]
    %v1363 = vld [vmem:[#allocation8 + $0xe8] sm:$0xff]
    %v1364 = vld [vmem:[#allocation8 + $0xf0] sm:$0xff]
    %v1365 = vld [vmem:[#allocation8 + $0xf8] sm:$0xff]
    %v1366 = vld [vmem:[#allocation8 + $0x100] sm:$0xff]
    %v1367 = vld [vmem:[#allocation8 + $0x108] sm:$0xff]
    %v1368 = vld [vmem:[#allocation8 + $0x110] sm:$0xff]
    %v1369 = vld [vmem:[#allocation8 + $0x118] sm:$0xff]
    %v1370 = vld [vmem:[#allocation8 + $0x120] sm:$0xff]
    %v1371 = vld [vmem:[#allocation8 + $0x128] sm:$0xff]
    %v1372 = vld [vmem:[#allocation8 + $0x130] sm:$0xff]
    %v1373 = vld [vmem:[#allocation8 + $0x138] sm:$0xff]
    %v1374 = vld [vmem:[#allocation8 + $0x140] sm:$0xff]
    %v1375 = vld [vmem:[#allocation8 + $0x148] sm:$0xff]
    %v1376 = vld [vmem:[#allocation8 + $0x150] sm:$0xff]
    %v1377 = vld [vmem:[#allocation8 + $0x158] sm:$0xff]
    %v1378 = vld [vmem:[#allocation8 + $0x160] sm:$0xff]
    %v1379 = vld [vmem:[#allocation8 + $0x168] sm:$0xff]
    %v1380 = vld [vmem:[#allocation8 + $0x170] sm:$0xff]
    %v1381 = vld [vmem:[#allocation8 + $0x178] sm:$0xff]
    %v1382 = vld [vmem:[#allocation8 + $0x180] sm:$0xff]
    %v1383 = vld [vmem:[#allocation8 + $0x188] sm:$0xff]
    %v1384 = vld [vmem:[#allocation8 + $0x190] sm:$0xff]
    %v1385 = vld [vmem:[#allocation8 + $0x198] sm:$0xff]
    %v1386 = vld [vmem:[#allocation8 + $0x1a0] sm:$0xff]
    %v1387 = vld [vmem:[#allocation8 + $0x1a8] sm:$0xff]
    %v1388 = vld [vmem:[#allocation8 + $0x1b0] sm:$0xff]
    %v1389 = vld [vmem:[#allocation8 + $0x1b8] sm:$0xff]
    %v1390 = vld [vmem:[#allocation8 + $0x1c0] sm:$0xff]
    %v1391 = vld [vmem:[#allocation8 + $0x1c8] sm:$0xff]
    %v1392 = vld [vmem:[#allocation8 + $0x1d0] sm:$0xff]
    %v1393 = vld [vmem:[#allocation8 + $0x1d8] sm:$0xff]
    %v1394 = vld [vmem:[#allocation8 + $0x1e0] sm:$0xff]
    %v1395 = vld [vmem:[#allocation8 + $0x1e8] sm:$0xff]
    %v1396 = vld [vmem:[#allocation8 + $0x1f0] sm:$0xff]
    %v1397 = vld [vmem:[#allocation8 + $0x1f8] sm:$0xff]
    %v1398 = vld [vmem:[#allocation8 + $0x200] sm:$0xff]
    %v1399 = vld [vmem:[#allocation8 + $0x208] sm:$0xff]
    %v1400 = vld [vmem:[#allocation8 + $0x210] sm:$0xff]
    %v1401 = vld [vmem:[#allocation8 + $0x218] sm:$0xff]
    %v1402 = vld [vmem:[#allocation8 + $0x220] sm:$0xff]
    %v1403 = vld [vmem:[#allocation8 + $0x228] sm:$0xff]
    %v1404 = vld [vmem:[#allocation8 + $0x230] sm:$0xff]
    %v1405 = vld [vmem:[#allocation8 + $0x238] sm:$0xff]
    %v1406 = vld [vmem:[#allocation8 + $0x240] sm:$0xff]
    %v1407 = vld [vmem:[#allocation8 + $0x248] sm:$0xff]
    %v1408 = vld [vmem:[#allocation8 + $0x250] sm:$0xff]
    %v1409 = vld [vmem:[#allocation8 + $0x258] sm:$0xff]
    %v1410 = vld [vmem:[#allocation8 + $0x260] sm:$0xff]
    %v1411 = vld [vmem:[#allocation8 + $0x268] sm:$0xff]
    %v1412 = vld [vmem:[#allocation8 + $0x270] sm:$0xff]
    %v1413 = vld [vmem:[#allocation8 + $0x278] sm:$0xff]
    %v1414 = vld [vmem:[#allocation8 + $0x280] sm:$0xff]
    %v1415 = vld [vmem:[#allocation8 + $0x288] sm:$0xff]
    %v1416 = vld [vmem:[#allocation8 + $0x290] sm:$0xff]
    %v1417 = vld [vmem:[#allocation8 + $0x298] sm:$0xff]
    %v1418 = vld [vmem:[#allocation8 + $0x2a0] sm:$0xff]
    %v1419 = vld [vmem:[#allocation8 + $0x2a8] sm:$0xff]
    %v1420 = vld [vmem:[#allocation8 + $0x2b0] sm:$0xff]
    %v1421 = vld [vmem:[#allocation8 + $0x2b8] sm:$0xff]
    %v1422 = vld [vmem:[#allocation8 + $0x2c0] sm:$0xff]
    %v1423 = vld [vmem:[#allocation8 + $0x2c8] sm:$0xff]
    %v1424 = vld [vmem:[#allocation8 + $0x2d0] sm:$0xff]
    %v1425 = vld [vmem:[#allocation8 + $0x2d8] sm:$0xff]
    %v1426 = vld [vmem:[#allocation8 + $0x2e0] sm:$0xff]
    %v1427 = vld [vmem:[#allocation8 + $0x2e8] sm:$0xff]
    %v1428 = vld [vmem:[#allocation8 + $0x2f0] sm:$0xff]
    %v1429 = vld [vmem:[#allocation8 + $0x2f8] sm:$0xff]
    %v1430 = vld [vmem:[#allocation8 + $0x300] sm:$0xff]
    %v1431 = vld [vmem:[#allocation8 + $0x308] sm:$0xff]
    %v1432 = vld [vmem:[#allocation8 + $0x310] sm:$0xff]
    %v1433 = vld [vmem:[#allocation8 + $0x318] sm:$0xff]
    %v1434 = vld [vmem:[#allocation8 + $0x320] sm:$0xff]
    %v1435 = vld [vmem:[#allocation8 + $0x328] sm:$0xff]
    %v1436 = vld [vmem:[#allocation8 + $0x330] sm:$0xff]
    %v1437 = vld [vmem:[#allocation8 + $0x338] sm:$0xff]
    %v1438 = vld [vmem:[#allocation8 + $0x340] sm:$0xff]
    %v1439 = vld [vmem:[#allocation8 + $0x348] sm:$0xff]
    %v1440 = vld [vmem:[#allocation8 + $0x350] sm:$0xff]
    %v1441 = vld [vmem:[#allocation8 + $0x358] sm:$0xff]
    %v1442 = vld [vmem:[#allocation8 + $0x360] sm:$0xff]
    %v1443 = vld [vmem:[#allocation8 + $0x368] sm:$0xff]
    %v1444 = vld [vmem:[#allocation8 + $0x370] sm:$0xff]
    %v1445 = vld [vmem:[#allocation8 + $0x378] sm:$0xff]
    %v1446 = vld [vmem:[#allocation8 + $0x380] sm:$0xff]
    %v1447 = vld [vmem:[#allocation8 + $0x388] sm:$0xff]
    %v1448 = vld [vmem:[#allocation8 + $0x390] sm:$0xff]
    %v1449 = vld [vmem:[#allocation8 + $0x398] sm:$0xff]
    %v1450 = vld [vmem:[#allocation8 + $0x3a0] sm:$0xff]
    %v1451 = vld [vmem:[#allocation8 + $0x3a8] sm:$0xff]
    %v1452 = vld [vmem:[#allocation8 + $0x3b0] sm:$0xff]
    %v1453 = vld [vmem:[#allocation8 + $0x3b8] sm:$0xff]
    %v1454 = vld [vmem:[#allocation8 + $0x3c0] sm:$0xff]
    %v1455 = vld [vmem:[#allocation8 + $0x3c8] sm:$0xff]
    %v1456 = vld [vmem:[#allocation8 + $0x3d0] sm:$0xff]
    %v1457 = vld [vmem:[#allocation8 + $0x3d8] sm:$0xff]
    %v1458 = vld [vmem:[#allocation8 + $0x3e0] sm:$0xff]
    %v1459 = vld [vmem:[#allocation8 + $0x3e8] sm:$0xff]
    %v1460 = vld [vmem:[#allocation8 + $0x3f0] sm:$0xff]
    %v1461 = vld [vmem:[#allocation8 + $0x3f8] sm:$0xff]
    %v1462 = vld [vmem:[#allocation8 + $0x400] sm:$0xff]
    %v1463 = vld [vmem:[#allocation8 + $0x408] sm:$0xff]
    %v1464 = vld [vmem:[#allocation8 + $0x410] sm:$0xff]
    %v1465 = vld [vmem:[#allocation8 + $0x418] sm:$0xff]
    %v1466 = vld [vmem:[#allocation8 + $0x420] sm:$0xff]
    %v1467 = vld [vmem:[#allocation8 + $0x428] sm:$0xff]
    %v1468 = vld [vmem:[#allocation8 + $0x430] sm:$0xff]
    %v1469 = vld [vmem:[#allocation8 + $0x438] sm:$0xff]
    %v1470 = vld [vmem:[#allocation8 + $0x440] sm:$0xff]
    %v1471 = vld [vmem:[#allocation8 + $0x448] sm:$0xff]
    %v1472 = vld [vmem:[#allocation8 + $0x450] sm:$0xff]
    %v1473 = vld [vmem:[#allocation8 + $0x458] sm:$0xff]
    %v1474 = vld [vmem:[#allocation8 + $0x460] sm:$0xff]
    %v1475 = vld [vmem:[#allocation8 + $0x468] sm:$0xff]
    %v1476 = vld [vmem:[#allocation8 + $0x470] sm:$0xff]
    %v1477 = vld [vmem:[#allocation8 + $0x478] sm:$0xff]
    %v1478 = vld [vmem:[#allocation8 + $0x480] sm:$0xff]
    %v1479 = vld [vmem:[#allocation8 + $0x488] sm:$0xff]
    %v1480 = vld [vmem:[#allocation8 + $0x490] sm:$0xff]
    %v1481 = vld [vmem:[#allocation8 + $0x498] sm:$0xff]
    %v1482 = vld [vmem:[#allocation8 + $0x4a0] sm:$0xff]
    %v1483 = vld [vmem:[#allocation8 + $0x4a8] sm:$0xff]
    %v1484 = vld [vmem:[#allocation8 + $0x4b0] sm:$0xff]
    %v1485 = vld [vmem:[#allocation8 + $0x4b8] sm:$0xff]
    %v1486 = vld [vmem:[#allocation8 + $0x4c0] sm:$0xff]
    %v1487 = vld [vmem:[#allocation8 + $0x4c8] sm:$0xff]
    %v1488 = vld [vmem:[#allocation8 + $0x4d0] sm:$0xff]
    %v1489 = vld [vmem:[#allocation8 + $0x4d8] sm:$0xff]
    %v1490 = vld [vmem:[#allocation8 + $0x4e0] sm:$0xff]
    %v1491 = vld [vmem:[#allocation8 + $0x4e8] sm:$0xff]
    %v1492 = vld [vmem:[#allocation8 + $0x4f0] sm:$0xff]
    %v1493 = vld [vmem:[#allocation8 + $0x4f8] sm:$0xff]
    %v1494 = vld [vmem:[#allocation8 + $0x500] sm:$0xff]
    %v1495 = vld [vmem:[#allocation8 + $0x508] sm:$0xff]
    %v1496 = vld [vmem:[#allocation8 + $0x510] sm:$0xff]
    %v1497 = vld [vmem:[#allocation8 + $0x518] sm:$0xff]
    %v1498 = vld [vmem:[#allocation8 + $0x520] sm:$0xff]
    %v1499 = vld [vmem:[#allocation8 + $0x528] sm:$0xff]
    %v1500 = vld [vmem:[#allocation8 + $0x530] sm:$0xff]
    %v1501 = vld [vmem:[#allocation8 + $0x538] sm:$0xff]
    %v1502 = vld [vmem:[#allocation8 + $0x540] sm:$0xff]
    %v1503 = vld [vmem:[#allocation8 + $0x548] sm:$0xff]
    %v1504 = vld [vmem:[#allocation8 + $0x550] sm:$0xff]
    %v1505 = vld [vmem:[#allocation8 + $0x558] sm:$0xff]
    %v1506 = vld [vmem:[#allocation8 + $0x560] sm:$0xff]
    %v1507 = vld [vmem:[#allocation8 + $0x568] sm:$0xff]
    %v1508 = vld [vmem:[#allocation8 + $0x570] sm:$0xff]
    %v1509 = vld [vmem:[#allocation8 + $0x578] sm:$0xff]
    %v1510 = vld [vmem:[#allocation8 + $0x580] sm:$0xff]
    %v1511 = vld [vmem:[#allocation8 + $0x588] sm:$0xff]
    %v1512 = vld [vmem:[#allocation8 + $0x590] sm:$0xff]
    %v1513 = vld [vmem:[#allocation8 + $0x598] sm:$0xff]
    %v1514 = vld [vmem:[#allocation8 + $0x5a0] sm:$0xff]
    %v1515 = vld [vmem:[#allocation8 + $0x5a8] sm:$0xff]
    %v1516 = vld [vmem:[#allocation8 + $0x5b0] sm:$0xff]
    %v1517 = vld [vmem:[#allocation8 + $0x5b8] sm:$0xff]
    %v1518 = vld [vmem:[#allocation8 + $0x5c0] sm:$0xff]
    %v1519 = vld [vmem:[#allocation8 + $0x5c8] sm:$0xff]
    %v1520 = vld [vmem:[#allocation8 + $0x5d0] sm:$0xff]
    %v1521 = vld [vmem:[#allocation8 + $0x5d8] sm:$0xff]
    %v1522 = vld [vmem:[#allocation8 + $0x5e0] sm:$0xff]
    %v1523 = vld [vmem:[#allocation8 + $0x5e8] sm:$0xff]
    %v1524 = vld [vmem:[#allocation8 + $0x5f0] sm:$0xff]
    %v1525 = vld [vmem:[#allocation8 + $0x5f8] sm:$0xff]
    %v1526 = vld [vmem:[#allocation8 + $0x600] sm:$0xff]
    %v1527 = vld [vmem:[#allocation8 + $0x608] sm:$0xff]
    %v1528 = vld [vmem:[#allocation8 + $0x610] sm:$0xff]
    %v1529 = vld [vmem:[#allocation8 + $0x618] sm:$0xff]
    %v1530 = vld [vmem:[#allocation8 + $0x620] sm:$0xff]
    %v1531 = vld [vmem:[#allocation8 + $0x628] sm:$0xff]
    %v1532 = vld [vmem:[#allocation8 + $0x630] sm:$0xff]
    %v1533 = vld [vmem:[#allocation8 + $0x638] sm:$0xff]
    %v1534 = vld [vmem:[#allocation8 + $0x640] sm:$0xff]
    %v1535 = vld [vmem:[#allocation8 + $0x648] sm:$0xff]
    %v1536 = vld [vmem:[#allocation8 + $0x650] sm:$0xff]
    %v1537 = vld [vmem:[#allocation8 + $0x658] sm:$0xff]
    %v1538 = vld [vmem:[#allocation8 + $0x660] sm:$0xff]
    %v1539 = vld [vmem:[#allocation8 + $0x668] sm:$0xff]
    %v1540 = vld [vmem:[#allocation8 + $0x670] sm:$0xff]
    %v1541 = vld [vmem:[#allocation8 + $0x678] sm:$0xff]
    %v1542 = vld [vmem:[#allocation8 + $0x680] sm:$0xff]
    %v1543 = vld [vmem:[#allocation8 + $0x688] sm:$0xff]
    %v1544 = vld [vmem:[#allocation8 + $0x690] sm:$0xff]
    %v1545 = vld [vmem:[#allocation8 + $0x698] sm:$0xff]
    %v1546 = vld [vmem:[#allocation8 + $0x6a0] sm:$0xff]
    %v1547 = vld [vmem:[#allocation8 + $0x6a8] sm:$0xff]
    %v1548 = vld [vmem:[#allocation8 + $0x6b0] sm:$0xff]
    %v1549 = vld [vmem:[#allocation8 + $0x6b8] sm:$0xff]
    %v1550 = vld [vmem:[#allocation8 + $0x6c0] sm:$0xff]
    %v1551 = vld [vmem:[#allocation8 + $0x6c8] sm:$0xff]
    %v1552 = vld [vmem:[#allocation8 + $0x6d0] sm:$0xff]
    %v1553 = vld [vmem:[#allocation8 + $0x6d8] sm:$0xff]
    %v1554 = vld [vmem:[#allocation8 + $0x6e0] sm:$0xff]
    %v1555 = vld [vmem:[#allocation8 + $0x6e8] sm:$0xff]
    %v1556 = vld [vmem:[#allocation8 + $0x6f0] sm:$0xff]
    %v1557 = vld [vmem:[#allocation8 + $0x6f8] sm:$0xff]
    %v1558 = vld [vmem:[#allocation8 + $0x700] sm:$0xff]
    %v1559 = vld [vmem:[#allocation8 + $0x708] sm:$0xff]
    %v1560 = vld [vmem:[#allocation8 + $0x710] sm:$0xff]
    %v1561 = vld [vmem:[#allocation8 + $0x718] sm:$0xff]
    %v1562 = vld [vmem:[#allocation8 + $0x720] sm:$0xff]
    %v1563 = vld [vmem:[#allocation8 + $0x728] sm:$0xff]
    %v1564 = vld [vmem:[#allocation8 + $0x730] sm:$0xff]
    %v1565 = vld [vmem:[#allocation8 + $0x738] sm:$0xff]
    %v1566 = vld [vmem:[#allocation8 + $0x740] sm:$0xff]
    %v1567 = vld [vmem:[#allocation8 + $0x748] sm:$0xff]
    %v1568 = vld [vmem:[#allocation8 + $0x750] sm:$0xff]
    %v1569 = vld [vmem:[#allocation8 + $0x758] sm:$0xff]
    %v1570 = vld [vmem:[#allocation8 + $0x760] sm:$0xff]
    %v1571 = vld [vmem:[#allocation8 + $0x768] sm:$0xff]
    %v1572 = vld [vmem:[#allocation8 + $0x770] sm:$0xff]
    %v1573 = vld [vmem:[#allocation8 + $0x778] sm:$0xff]
    %v1574 = vld [vmem:[#allocation8 + $0x780] sm:$0xff]
    %v1575 = vld [vmem:[#allocation8 + $0x788] sm:$0xff]
    %v1576 = vld [vmem:[#allocation8 + $0x790] sm:$0xff]
    %v1577 = vld [vmem:[#allocation8 + $0x798] sm:$0xff]
    %v1578 = vld [vmem:[#allocation8 + $0x7a0] sm:$0xff]
    %v1579 = vld [vmem:[#allocation8 + $0x7a8] sm:$0xff]
    %v1580 = vld [vmem:[#allocation8 + $0x7b0] sm:$0xff]
    %v1581 = vld [vmem:[#allocation8 + $0x7b8] sm:$0xff]
    %v1582 = vld [vmem:[#allocation8 + $0x7c0] sm:$0xff]
    %v1583 = vld [vmem:[#allocation8 + $0x7c8] sm:$0xff]
    %v1584 = vld [vmem:[#allocation8 + $0x7d0] sm:$0xff]
    %v1585 = vld [vmem:[#allocation8 + $0x7d8] sm:$0xff]
    %v1586 = vld [vmem:[#allocation8 + $0x7e0] sm:$0xff]
    %v1587 = vld [vmem:[#allocation8 + $0x7e8] sm:$0xff]
    %v1588 = vld [vmem:[#allocation8 + $0x7f0] sm:$0xff]
    %v1589 = vld [vmem:[#allocation8 + $0x7f8] sm:$0xff]
    %v1590 = vld [vmem:[#allocation8 + $0x800] sm:$0xff]
    %v1591 = vld [vmem:[#allocation8 + $0x808] sm:$0xff]
    %v1592 = vld [vmem:[#allocation8 + $0x810] sm:$0xff]
    %v1593 = vld [vmem:[#allocation8 + $0x818] sm:$0xff]
    %v1594 = vld [vmem:[#allocation8 + $0x820] sm:$0xff]
    %v1595 = vld [vmem:[#allocation8 + $0x828] sm:$0xff]
    %v1596 = vld [vmem:[#allocation8 + $0x830] sm:$0xff]
    %v1597 = vld [vmem:[#allocation8 + $0x838] sm:$0xff]
    %v1598 = vld [vmem:[#allocation8 + $0x840] sm:$0xff]
    %v1599 = vld [vmem:[#allocation8 + $0x848] sm:$0xff]
    %v1600 = vld [vmem:[#allocation8 + $0x850] sm:$0xff]
    %v1601 = vld [vmem:[#allocation8 + $0x858] sm:$0xff]
    %v1602 = vld [vmem:[#allocation8 + $0x860] sm:$0xff]
    %v1603 = vld [vmem:[#allocation8 + $0x868] sm:$0xff]
    %v1604 = vld [vmem:[#allocation8 + $0x870] sm:$0xff]
    %v1605 = vld [vmem:[#allocation8 + $0x878] sm:$0xff]
    %v1606 = vld [vmem:[#allocation8 + $0x880] sm:$0xff]
    %v1607 = vld [vmem:[#allocation8 + $0x888] sm:$0xff]
    %v1608 = vld [vmem:[#allocation8 + $0x890] sm:$0xff]
    %v1609 = vld [vmem:[#allocation8 + $0x898] sm:$0xff]
    %v1610 = vld [vmem:[#allocation8 + $0x8a0] sm:$0xff]
    %v1611 = vld [vmem:[#allocation8 + $0x8a8] sm:$0xff]
    %v1612 = vld [vmem:[#allocation8 + $0x8b0] sm:$0xff]
    %v1613 = vld [vmem:[#allocation8 + $0x8b8] sm:$0xff]
    %v1614 = vld [vmem:[#allocation8 + $0x8c0] sm:$0xff]
    %v1615 = vld [vmem:[#allocation8 + $0x8c8] sm:$0xff]
    %v1616 = vld [vmem:[#allocation8 + $0x8d0] sm:$0xff]
    %v1617 = vld [vmem:[#allocation8 + $0x8d8] sm:$0xff]
    %v1618 = vld [vmem:[#allocation8 + $0x8e0] sm:$0xff]
    %v1619 = vld [vmem:[#allocation8 + $0x8e8] sm:$0xff]
    %v1620 = vld [vmem:[#allocation8 + $0x8f0] sm:$0xff]
    %v1621 = vld [vmem:[#allocation8 + $0x8f8] sm:$0xff]
    %v1622 = vld [vmem:[#allocation8 + $0x900] sm:$0xff]
    %v1623 = vld [vmem:[#allocation8 + $0x908] sm:$0xff]
    %v1624 = vld [vmem:[#allocation8 + $0x910] sm:$0xff]
    %v1625 = vld [vmem:[#allocation8 + $0x918] sm:$0xff]
    %v1626 = vld [vmem:[#allocation8 + $0x920] sm:$0xff]
    %v1627 = vld [vmem:[#allocation8 + $0x928] sm:$0xff]
    %v1628 = vld [vmem:[#allocation8 + $0x930] sm:$0xff]
    %v1629 = vld [vmem:[#allocation8 + $0x938] sm:$0xff]
    %v1630 = vld [vmem:[#allocation8 + $0x940] sm:$0xff]
    %v1631 = vld [vmem:[#allocation8 + $0x948] sm:$0xff]
    %v1632 = vld [vmem:[#allocation8 + $0x950] sm:$0xff]
    %v1633 = vld [vmem:[#allocation8 + $0x958] sm:$0xff]
    %v1634 = vld [vmem:[#allocation8 + $0x960] sm:$0xff]
    %v1635 = vld [vmem:[#allocation8 + $0x968] sm:$0xff]
    %v1636 = vld [vmem:[#allocation8 + $0x970] sm:$0xff]
    %v1637 = vld [vmem:[#allocation8 + $0x978] sm:$0xff]
    %v1638 = vld [vmem:[#allocation8 + $0x980] sm:$0xff]
    %v1639 = vld [vmem:[#allocation8 + $0x988] sm:$0xff]
    %v1640 = vld [vmem:[#allocation8 + $0x990] sm:$0xff]
    %v1641 = vld [vmem:[#allocation8 + $0x998] sm:$0xff]
    %v1642 = vld [vmem:[#allocation8 + $0x9a0] sm:$0xff]
    %v1643 = vld [vmem:[#allocation8 + $0x9a8] sm:$0xff]
    %v1644 = vld [vmem:[#allocation8 + $0x9b0] sm:$0xff]
    %v1645 = vld [vmem:[#allocation8 + $0x9b8] sm:$0xff]
    %v1646 = vld [vmem:[#allocation8 + $0x9c0] sm:$0xff]
    %v1647 = vld [vmem:[#allocation8 + $0x9c8] sm:$0xff]
    %v1648 = vld [vmem:[#allocation8 + $0x9d0] sm:$0xff]
    %v1649 = vld [vmem:[#allocation8 + $0x9d8] sm:$0xff]
    %v1650 = vld [vmem:[#allocation8 + $0x9e0] sm:$0xff]
    %v1651 = vld [vmem:[#allocation8 + $0x9e8] sm:$0xff]
    %v1652 = vld [vmem:[#allocation8 + $0x9f0] sm:$0xff]
    %v1653 = vld [vmem:[#allocation8 + $0x9f8] sm:$0xff]
    %v1654 = vld [vmem:[#allocation8 + $0xa00] sm:$0xff]
    %v1655 = vld [vmem:[#allocation8 + $0xa08] sm:$0xff]
    %v1656 = vld [vmem:[#allocation8 + $0xa10] sm:$0xff]
    %v1657 = vld [vmem:[#allocation8 + $0xa18] sm:$0xff]
    %v1658 = vld [vmem:[#allocation8 + $0xa20] sm:$0xff]
    %v1659 = vld [vmem:[#allocation8 + $0xa28] sm:$0xff]
    %v1660 = vld [vmem:[#allocation8 + $0xa30] sm:$0xff]
    %v1661 = vld [vmem:[#allocation8 + $0xa38] sm:$0xff]
    %v1662 = vld [vmem:[#allocation8 + $0xa40] sm:$0xff]
    %v1663 = vld [vmem:[#allocation8 + $0xa48] sm:$0xff]
    %v1664 = vld [vmem:[#allocation8 + $0xa50] sm:$0xff]
    %v1665 = vld [vmem:[#allocation8 + $0xa58] sm:$0xff]
    %v1666 = vld [vmem:[#allocation8 + $0xa60] sm:$0xff]
    %v1667 = vld [vmem:[#allocation8 + $0xa68] sm:$0xff]
    %v1668 = vld [vmem:[#allocation8 + $0xa70] sm:$0xff]
    %v1669 = vld [vmem:[#allocation8 + $0xa78] sm:$0xff]
    %v1670 = vld [vmem:[#allocation8 + $0xa80] sm:$0xff]
    %v1671 = vld [vmem:[#allocation8 + $0xa88] sm:$0xff]
    %v1672 = vld [vmem:[#allocation8 + $0xa90] sm:$0xff]
    %v1673 = vld [vmem:[#allocation8 + $0xa98] sm:$0xff]
    %v1674 = vld [vmem:[#allocation8 + $0xaa0] sm:$0xff]
    %v1675 = vld [vmem:[#allocation8 + $0xaa8] sm:$0xff]
    %v1676 = vld [vmem:[#allocation8 + $0xab0] sm:$0xff]
    %v1677 = vld [vmem:[#allocation8 + $0xab8] sm:$0xff]
    %v1678 = vld [vmem:[#allocation8 + $0xac0] sm:$0xff]
    %v1679 = vld [vmem:[#allocation8 + $0xac8] sm:$0xff]
    %v1680 = vld [vmem:[#allocation8 + $0xad0] sm:$0xff]
    %v1681 = vld [vmem:[#allocation8 + $0xad8] sm:$0xff]
    %v1682 = vld [vmem:[#allocation8 + $0xae0] sm:$0xff]
    %v1683 = vld [vmem:[#allocation8 + $0xae8] sm:$0xff]
    %v1684 = vld [vmem:[#allocation8 + $0xaf0] sm:$0xff]
    %v1685 = vld [vmem:[#allocation8 + $0xaf8] sm:$0xff]
    %v1686 = vld [vmem:[#allocation8 + $0xb00] sm:$0xff]
    %v1687 = vld [vmem:[#allocation8 + $0xb08] sm:$0xff]
    %v1688 = vld [vmem:[#allocation8 + $0xb10] sm:$0xff]
    %v1689 = vld [vmem:[#allocation8 + $0xb18] sm:$0xff]
    %v1690 = vld [vmem:[#allocation8 + $0xb20] sm:$0xff]
    %v1691 = vld [vmem:[#allocation8 + $0xb28] sm:$0xff]
    %v1692 = vld [vmem:[#allocation8 + $0xb30] sm:$0xff]
    %v1693 = vld [vmem:[#allocation8 + $0xb38] sm:$0xff]
    %v1694 = vld [vmem:[#allocation8 + $0xb40] sm:$0xff]
    %v1695 = vld [vmem:[#allocation8 + $0xb48] sm:$0xff]
    %v1696 = vld [vmem:[#allocation8 + $0xb50] sm:$0xff]
    %v1697 = vld [vmem:[#allocation8 + $0xb58] sm:$0xff]
    %v1698 = vld [vmem:[#allocation8 + $0xb60] sm:$0xff]
    %v1699 = vld [vmem:[#allocation8 + $0xb68] sm:$0xff]
    %v1700 = vld [vmem:[#allocation8 + $0xb70] sm:$0xff]
    %v1701 = vld [vmem:[#allocation8 + $0xb78] sm:$0xff]
    %v1702 = vld [vmem:[#allocation8 + $0xb80] sm:$0xff]
    %v1703 = vld [vmem:[#allocation8 + $0xb88] sm:$0xff]
    %v1704 = vld [vmem:[#allocation8 + $0xb90] sm:$0xff]
    %v1705 = vld [vmem:[#allocation8 + $0xb98] sm:$0xff]
    %v1706 = vld [vmem:[#allocation8 + $0xba0] sm:$0xff]
    %v1707 = vld [vmem:[#allocation8 + $0xba8] sm:$0xff]
    %v1708 = vld [vmem:[#allocation8 + $0xbb0] sm:$0xff]
    %v1709 = vld [vmem:[#allocation8 + $0xbb8] sm:$0xff]
    %v1710 = vld [vmem:[#allocation8 + $0xbc0] sm:$0xff]
    %v1711 = vld [vmem:[#allocation8 + $0xbc8] sm:$0xff]
    %v1712 = vld [vmem:[#allocation8 + $0xbd0] sm:$0xff]
    %v1713 = vld [vmem:[#allocation8 + $0xbd8] sm:$0xff]
    %v1714 = vld [vmem:[#allocation8 + $0xbe0] sm:$0xff]
    %v1715 = vld [vmem:[#allocation8 + $0xbe8] sm:$0xff]
    %v1716 = vld [vmem:[#allocation8 + $0xbf0] sm:$0xff]
    %v1717 = vld [vmem:[#allocation8 + $0xbf8] sm:$0xff]
    %v1718 = vld [vmem:[#allocation8 + $0xc00] sm:$0xff]
    %v1719 = vld [vmem:[#allocation8 + $0xc08] sm:$0xff]
    %v1720 = vld [vmem:[#allocation8 + $0xc10] sm:$0xff]
    %v1721 = vld [vmem:[#allocation8 + $0xc18] sm:$0xff]
    %v1722 = vld [vmem:[#allocation8 + $0xc20] sm:$0xff]
    %v1723 = vld [vmem:[#allocation8 + $0xc28] sm:$0xff]
    %v1724 = vld [vmem:[#allocation8 + $0xc30] sm:$0xff]
    %v1725 = vld [vmem:[#allocation8 + $0xc38] sm:$0xff]
    %v1726 = vld [vmem:[#allocation8 + $0xc40] sm:$0xff]
    %v1727 = vld [vmem:[#allocation8 + $0xc48] sm:$0xff]
    %v1728 = vld [vmem:[#allocation8 + $0xc50] sm:$0xff]
    %v1729 = vld [vmem:[#allocation8 + $0xc58] sm:$0xff]
    %v1730 = vld [vmem:[#allocation8 + $0xc60] sm:$0xff]
    %v1731 = vld [vmem:[#allocation8 + $0xc68] sm:$0xff]
    %v1732 = vld [vmem:[#allocation8 + $0xc70] sm:$0xff]
    %v1733 = vld [vmem:[#allocation8 + $0xc78] sm:$0xff]
    %v1734 = vld [vmem:[#allocation8 + $0xc80] sm:$0xff]
    %v1735 = vld [vmem:[#allocation8 + $0xc88] sm:$0xff]
    %v1736 = vld [vmem:[#allocation8 + $0xc90] sm:$0xff]
    %v1737 = vld [vmem:[#allocation8 + $0xc98] sm:$0xff]
    %v1738 = vld [vmem:[#allocation8 + $0xca0] sm:$0xff]
    %v1739 = vld [vmem:[#allocation8 + $0xca8] sm:$0xff]
    %v1740 = vld [vmem:[#allocation8 + $0xcb0] sm:$0xff]
    %v1741 = vld [vmem:[#allocation8 + $0xcb8] sm:$0xff]
    %v1742 = vld [vmem:[#allocation8 + $0xcc0] sm:$0xff]
    %v1743 = vld [vmem:[#allocation8 + $0xcc8] sm:$0xff]
    %v1744 = vld [vmem:[#allocation8 + $0xcd0] sm:$0xff]
    %v1745 = vld [vmem:[#allocation8 + $0xcd8] sm:$0xff]
    %v1746 = vld [vmem:[#allocation8 + $0xce0] sm:$0xff]
    %v1747 = vld [vmem:[#allocation8 + $0xce8] sm:$0xff]
    %v1748 = vld [vmem:[#allocation8 + $0xcf0] sm:$0xff]
    %v1749 = vld [vmem:[#allocation8 + $0xcf8] sm:$0xff]
    %v1750 = vld [vmem:[#allocation8 + $0xd00] sm:$0xff]
    %v1751 = vld [vmem:[#allocation8 + $0xd08] sm:$0xff]
    %v1752 = vld [vmem:[#allocation8 + $0xd10] sm:$0xff]
    %v1753 = vld [vmem:[#allocation8 + $0xd18] sm:$0xff]
    %v1754 = vld [vmem:[#allocation8 + $0xd20] sm:$0xff]
    %v1755 = vld [vmem:[#allocation8 + $0xd28] sm:$0xff]
    %v1756 = vld [vmem:[#allocation8 + $0xd30] sm:$0xff]
    %v1757 = vld [vmem:[#allocation8 + $0xd38] sm:$0xff]
    %v1758 = vld [vmem:[#allocation8 + $0xd40] sm:$0xff]
    %v1759 = vld [vmem:[#allocation8 + $0xd48] sm:$0xff]
    %v1760 = vld [vmem:[#allocation8 + $0xd50] sm:$0xff]
    %v1761 = vld [vmem:[#allocation8 + $0xd58] sm:$0xff]
    %v1762 = vld [vmem:[#allocation8 + $0xd60] sm:$0xff]
    %v1763 = vld [vmem:[#allocation8 + $0xd68] sm:$0xff]
    %v1764 = vld [vmem:[#allocation8 + $0xd70] sm:$0xff]
    %v1765 = vld [vmem:[#allocation8 + $0xd78] sm:$0xff]
    %v1766 = vld [vmem:[#allocation8 + $0xd80] sm:$0xff]
    %v1767 = vld [vmem:[#allocation8 + $0xd88] sm:$0xff]
    %v1768 = vld [vmem:[#allocation8 + $0xd90] sm:$0xff]
    %v1769 = vld [vmem:[#allocation8 + $0xd98] sm:$0xff]
    %v1770 = vld [vmem:[#allocation8 + $0xda0] sm:$0xff]
    %v1771 = vld [vmem:[#allocation8 + $0xda8] sm:$0xff]
    %v1772 = vld [vmem:[#allocation8 + $0xdb0] sm:$0xff]
    %v1773 = vld [vmem:[#allocation8 + $0xdb8] sm:$0xff]
    %v1774 = vld [vmem:[#allocation8 + $0xdc0] sm:$0xff]
    %v1775 = vld [vmem:[#allocation8 + $0xdc8] sm:$0xff]
    %v1776 = vld [vmem:[#allocation8 + $0xdd0] sm:$0xff]
    %v1777 = vld [vmem:[#allocation8 + $0xdd8] sm:$0xff]
    %v1778 = vld [vmem:[#allocation8 + $0xde0] sm:$0xff]
    %v1779 = vld [vmem:[#allocation8 + $0xde8] sm:$0xff]
    %v1780 = vld [vmem:[#allocation8 + $0xdf0] sm:$0xff]
    %v1781 = vld [vmem:[#allocation8 + $0xdf8] sm:$0xff]
    %v1782 = vld [vmem:[#allocation8 + $0xe00] sm:$0xff]
    %v1783 = vld [vmem:[#allocation8 + $0xe08] sm:$0xff]
    %v1784 = vld [vmem:[#allocation8 + $0xe10] sm:$0xff]
    %v1785 = vld [vmem:[#allocation8 + $0xe18] sm:$0xff]
    %v1786 = vld [vmem:[#allocation8 + $0xe20] sm:$0xff]
    %v1787 = vld [vmem:[#allocation8 + $0xe28] sm:$0xff]
    %v1788 = vld [vmem:[#allocation8 + $0xe30] sm:$0xff]
    %v1789 = vld [vmem:[#allocation8 + $0xe38] sm:$0xff]
    %v1790 = vld [vmem:[#allocation8 + $0xe40] sm:$0xff]
    %v1791 = vld [vmem:[#allocation8 + $0xe48] sm:$0xff]
    %v1792 = vld [vmem:[#allocation8 + $0xe50] sm:$0xff]
    %v1793 = vld [vmem:[#allocation8 + $0xe58] sm:$0xff]
    %v1794 = vld [vmem:[#allocation8 + $0xe60] sm:$0xff]
    %v1795 = vld [vmem:[#allocation8 + $0xe68] sm:$0xff]
    %v1796 = vld [vmem:[#allocation8 + $0xe70] sm:$0xff]
    %v1797 = vld [vmem:[#allocation8 + $0xe78] sm:$0xff]
    %v1798 = vld [vmem:[#allocation8 + $0xe80] sm:$0xff]
    %v1799 = vld [vmem:[#allocation8 + $0xe88] sm:$0xff]
    %v1800 = vld [vmem:[#allocation8 + $0xe90] sm:$0xff]
    %v1801 = vld [vmem:[#allocation8 + $0xe98] sm:$0xff]
    %v1802 = vld [vmem:[#allocation8 + $0xea0] sm:$0xff]
    %v1803 = vld [vmem:[#allocation8 + $0xea8] sm:$0xff]
    %v1804 = vld [vmem:[#allocation8 + $0xeb0] sm:$0xff]
    %v1805 = vld [vmem:[#allocation8 + $0xeb8] sm:$0xff]
    %v1806 = vld [vmem:[#allocation8 + $0xec0] sm:$0xff]
    %v1807 = vld [vmem:[#allocation8 + $0xec8] sm:$0xff]
    %v1808 = vld [vmem:[#allocation8 + $0xed0] sm:$0xff]
    %v1809 = vld [vmem:[#allocation8 + $0xed8] sm:$0xff]
    %v1810 = vld [vmem:[#allocation8 + $0xee0] sm:$0xff]
    %v1811 = vld [vmem:[#allocation8 + $0xee8] sm:$0xff]
    %v1812 = vld [vmem:[#allocation8 + $0xef0] sm:$0xff]
    %v1813 = vld [vmem:[#allocation8 + $0xef8] sm:$0xff]
    %v1814 = vld [vmem:[#allocation8 + $0xf00] sm:$0xff]
    %v1815 = vld [vmem:[#allocation8 + $0xf08] sm:$0xff]
    %v1816 = vld [vmem:[#allocation8 + $0xf10] sm:$0xff]
    %v1817 = vld [vmem:[#allocation8 + $0xf18] sm:$0xff]
    %v1818 = vld [vmem:[#allocation8 + $0xf20] sm:$0xff]
    %v1819 = vld [vmem:[#allocation8 + $0xf28] sm:$0xff]
    %v1820 = vld [vmem:[#allocation8 + $0xf30] sm:$0xff]
    %v1821 = vld [vmem:[#allocation8 + $0xf38] sm:$0xff]
    %v1822 = vld [vmem:[#allocation8 + $0xf40] sm:$0xff]
    %v1823 = vld [vmem:[#allocation8 + $0xf48] sm:$0xff]
    %v1824 = vld [vmem:[#allocation8 + $0xf50] sm:$0xff]
    %v1825 = vld [vmem:[#allocation8 + $0xf58] sm:$0xff]
    %v1826 = vld [vmem:[#allocation8 + $0xf60] sm:$0xff]
    %v1827 = vld [vmem:[#allocation8 + $0xf68] sm:$0xff]
    %v1828 = vld [vmem:[#allocation8 + $0xf70] sm:$0xff]
    %v1829 = vld [vmem:[#allocation8 + $0xf78] sm:$0xff]
    %v1830 = vld [vmem:[#allocation8 + $0xf80] sm:$0xff]
    %v1831 = vld [vmem:[#allocation8 + $0xf88] sm:$0xff]
    %v1832 = vld [vmem:[#allocation8 + $0xf90] sm:$0xff]
    %v1833 = vld [vmem:[#allocation8 + $0xf98] sm:$0xff]
    %v1834 = vld [vmem:[#allocation8 + $0xfa0] sm:$0xff]
    %v1835 = vld [vmem:[#allocation8 + $0xfa8] sm:$0xff]
    %v1836 = vld [vmem:[#allocation8 + $0xfb0] sm:$0xff]
    %v1837 = vld [vmem:[#allocation8 + $0xfb8] sm:$0xff]
    %v1838 = vld [vmem:[#allocation8 + $0xfc0] sm:$0xff]
    %v1839 = vld [vmem:[#allocation8 + $0xfc8] sm:$0xff]
    %v1840 = vld [vmem:[#allocation8 + $0xfd0] sm:$0xff]
    %v1841 = vld [vmem:[#allocation8 + $0xfd8] sm:$0xff]
    %v1842 = vld [vmem:[#allocation8 + $0xfe0] sm:$0xff]
    %v1843 = vld [vmem:[#allocation8 + $0xfe8] sm:$0xff]
    %v1844 = vld [vmem:[#allocation8 + $0xff0] sm:$0xff]
    %v1845 = vld [vmem:[#allocation8 + $0xff8] sm:$0xff]
    %v1846 = vld [vmem:[#allocation8 + $0x1000] sm:$0xff]
    %v1847 = vld [vmem:[#allocation8 + $0x1008] sm:$0xff]
    %v1848 = vld [vmem:[#allocation8 + $0x1010] sm:$0xff]
    %v1849 = vld [vmem:[#allocation8 + $0x1018] sm:$0xff]
    %v1850 = vld [vmem:[#allocation8 + $0x1020] sm:$0xff]
    %v1851 = vld [vmem:[#allocation8 + $0x1028] sm:$0xff]
    %v1852 = vld [vmem:[#allocation8 + $0x1030] sm:$0xff]
    %v1853 = vld [vmem:[#allocation8 + $0x1038] sm:$0xff]
    %v1854 = vld [vmem:[#allocation8 + $0x1040] sm:$0xff]
    %v1855 = vld [vmem:[#allocation8 + $0x1048] sm:$0xff]
    %v1856 = vld [vmem:[#allocation8 + $0x1050] sm:$0xff]
    %v1857 = vld [vmem:[#allocation8 + $0x1058] sm:$0xff]
    %v1858 = vld [vmem:[#allocation8 + $0x1060] sm:$0xff]
    %v1859 = vld [vmem:[#allocation8 + $0x1068] sm:$0xff]
    %v1860 = vld [vmem:[#allocation8 + $0x1070] sm:$0xff]
    %v1861 = vld [vmem:[#allocation8 + $0x1078] sm:$0xff]
    %v1862 = vld [vmem:[#allocation8 + $0x1080] sm:$0xff]
    %v1863 = vld [vmem:[#allocation8 + $0x1088] sm:$0xff]
    %v1864 = vld [vmem:[#allocation8 + $0x1090] sm:$0xff]
    %v1865 = vld [vmem:[#allocation8 + $0x1098] sm:$0xff]
    %v1866 = vld [vmem:[#allocation8 + $0x10a0] sm:$0xff]
    %v1867 = vld [vmem:[#allocation8 + $0x10a8] sm:$0xff]
    %v1868 = vld [vmem:[#allocation8 + $0x10b0] sm:$0xff]
    %v1869 = vld [vmem:[#allocation8 + $0x10b8] sm:$0xff]
    %v1870 = vld [vmem:[#allocation8 + $0x10c0] sm:$0xff]
    %v1871 = vld [vmem:[#allocation8 + $0x10c8] sm:$0xff]
    %v1872 = vld [vmem:[#allocation8 + $0x10d0] sm:$0xff]
    %v1873 = vld [vmem:[#allocation8 + $0x10d8] sm:$0xff]
    %v1874 = vld [vmem:[#allocation8 + $0x10e0] sm:$0xff]
    %v1875 = vld [vmem:[#allocation8 + $0x10e8] sm:$0xff]
    %v1876 = vld [vmem:[#allocation8 + $0x10f0] sm:$0xff]
    %v1877 = vld [vmem:[#allocation8 + $0x10f8] sm:$0xff]
    %v1878 = vld [vmem:[#allocation8 + $0x1100] sm:$0xff]
    %v1879 = vld [vmem:[#allocation8 + $0x1108] sm:$0xff]
    %v1880 = vld [vmem:[#allocation8 + $0x1110] sm:$0xff]
    %v1881 = vld [vmem:[#allocation8 + $0x1118] sm:$0xff]
    %v1882 = vld [vmem:[#allocation8 + $0x1120] sm:$0xff]
    %v1883 = vld [vmem:[#allocation8 + $0x1128] sm:$0xff]
    %v1884 = vld [vmem:[#allocation8 + $0x1130] sm:$0xff]
    %v1885 = vld [vmem:[#allocation8 + $0x1138] sm:$0xff]
    %v1886 = vld [vmem:[#allocation8 + $0x1140] sm:$0xff]
    %v1887 = vld [vmem:[#allocation8 + $0x1148] sm:$0xff]
    %v1888 = vld [vmem:[#allocation8 + $0x1150] sm:$0xff]
    %v1889 = vld [vmem:[#allocation8 + $0x1158] sm:$0xff]
    %v1890 = vld [vmem:[#allocation8 + $0x1160] sm:$0xff]
    %v1891 = vld [vmem:[#allocation8 + $0x1168] sm:$0xff]
    %v1892 = vld [vmem:[#allocation8 + $0x1170] sm:$0xff]
    %v1893 = vld [vmem:[#allocation8 + $0x1178] sm:$0xff]
    %v1894 = vld [vmem:[#allocation8 + $0x1180] sm:$0xff]
    %v1895 = vld [vmem:[#allocation8 + $0x1188] sm:$0xff]
    %v1896 = vld [vmem:[#allocation8 + $0x1190] sm:$0xff]
    %v1897 = vld [vmem:[#allocation8 + $0x1198] sm:$0xff]
    %v1898 = vld [vmem:[#allocation8 + $0x11a0] sm:$0xff]
    %v1899 = vld [vmem:[#allocation8 + $0x11a8] sm:$0xff]
    %v1900 = vld [vmem:[#allocation8 + $0x11b0] sm:$0xff]
    %v1901 = vld [vmem:[#allocation8 + $0x11b8] sm:$0xff]
    %v1902 = vld [vmem:[#allocation8 + $0x11c0] sm:$0xff]
    %v1903 = vld [vmem:[#allocation8 + $0x11c8] sm:$0xff]
    %v1904 = vld [vmem:[#allocation8 + $0x11d0] sm:$0xff]
    %v1905 = vld [vmem:[#allocation8 + $0x11d8] sm:$0xff]
    %v1906 = vld [vmem:[#allocation8 + $0x11e0] sm:$0xff]
    %v1907 = vld [vmem:[#allocation8 + $0x11e8] sm:$0xff]
    %v1908 = vld [vmem:[#allocation8 + $0x11f0] sm:$0xff]
    %v1909 = vld [vmem:[#allocation8 + $0x11f8] sm:$0xff]
    %v1910 = vld [vmem:[#allocation8 + $0x1200] sm:$0xff]
    %v1911 = vld [vmem:[#allocation8 + $0x1208] sm:$0xff]
    %v1912 = vld [vmem:[#allocation8 + $0x1210] sm:$0xff]
    %v1913 = vld [vmem:[#allocation8 + $0x1218] sm:$0xff]
    %v1914 = vld [vmem:[#allocation8 + $0x1220] sm:$0xff]
    %v1915 = vld [vmem:[#allocation8 + $0x1228] sm:$0xff]
    %v1916 = vld [vmem:[#allocation8 + $0x1230] sm:$0xff]
    %v1917 = vld [vmem:[#allocation8 + $0x1238] sm:$0xff]
    %v1918 = vld [vmem:[#allocation8 + $0x1240] sm:$0xff]
    %v1919 = vld [vmem:[#allocation8 + $0x1248] sm:$0xff]
    %v1920 = vld [vmem:[#allocation8 + $0x1250] sm:$0xff]
    %v1921 = vld [vmem:[#allocation8 + $0x1258] sm:$0xff]
    %v1922 = vld [vmem:[#allocation8 + $0x1260] sm:$0xff]
    %v1923 = vld [vmem:[#allocation8 + $0x1268] sm:$0xff]
    %v1924 = vld [vmem:[#allocation8 + $0x1270] sm:$0xff]
    %v1925 = vld [vmem:[#allocation8 + $0x1278] sm:$0xff]
    %v1926 = vld [vmem:[#allocation8 + $0x1280] sm:$0xff]
    %v1927 = vld [vmem:[#allocation8 + $0x1288] sm:$0xff]
    %v1928 = vld [vmem:[#allocation8 + $0x1290] sm:$0xff]
    %v1929 = vld [vmem:[#allocation8 + $0x1298] sm:$0xff]
    %v1930 = vld [vmem:[#allocation8 + $0x12a0] sm:$0xff]
    %v1931 = vld [vmem:[#allocation8 + $0x12a8] sm:$0xff]
    %v1932 = vld [vmem:[#allocation8 + $0x12b0] sm:$0xff]
    %v1933 = vld [vmem:[#allocation8 + $0x12b8] sm:$0xff]
    %v1934 = vld [vmem:[#allocation8 + $0x12c0] sm:$0xff]
    %v1935 = vld [vmem:[#allocation8 + $0x12c8] sm:$0xff]
    %v1936 = vld [vmem:[#allocation8 + $0x12d0] sm:$0xff]
    %v1937 = vld [vmem:[#allocation8 + $0x12d8] sm:$0xff]
    %v1938 = vld [vmem:[#allocation8 + $0x12e0] sm:$0xff]
    %v1939 = vld [vmem:[#allocation8 + $0x12e8] sm:$0xff]
    %v1940 = vld [vmem:[#allocation8 + $0x12f0] sm:$0xff]
    %v1941 = vld [vmem:[#allocation8 + $0x12f8] sm:$0xff]
    %v1942 = vld [vmem:[#allocation8 + $0x1300] sm:$0xff]
    %v1943 = vld [vmem:[#allocation8 + $0x1308] sm:$0xff]
    %v1944 = vld [vmem:[#allocation8 + $0x1310] sm:$0xff]
    %v1945 = vld [vmem:[#allocation8 + $0x1318] sm:$0xff]
    %v1946 = vld [vmem:[#allocation8 + $0x1320] sm:$0xff]
    %v1947 = vld [vmem:[#allocation8 + $0x1328] sm:$0xff]
    %v1948 = vld [vmem:[#allocation8 + $0x1330] sm:$0xff]
    %v1949 = vld [vmem:[#allocation8 + $0x1338] sm:$0xff]
    %v1950 = vld [vmem:[#allocation8 + $0x1340] sm:$0xff]
    %v1951 = vld [vmem:[#allocation8 + $0x1348] sm:$0xff]
    %v1952 = vld [vmem:[#allocation8 + $0x1350] sm:$0xff]
    %v1953 = vld [vmem:[#allocation8 + $0x1358] sm:$0xff]
    %v1954 = vld [vmem:[#allocation8 + $0x1360] sm:$0xff]
    %v1955 = vld [vmem:[#allocation8 + $0x1368] sm:$0xff]
    %v1956 = vld [vmem:[#allocation8 + $0x1370] sm:$0xff]
    %v1957 = vld [vmem:[#allocation8 + $0x1378] sm:$0xff]
    %v1958 = vld [vmem:[#allocation8 + $0x1380] sm:$0xff]
    %v1959 = vld [vmem:[#allocation8 + $0x1388] sm:$0xff]
    %v1960 = vld [vmem:[#allocation8 + $0x1390] sm:$0xff]
    %v1961 = vld [vmem:[#allocation8 + $0x1398] sm:$0xff]
    %v1962 = vld [vmem:[#allocation8 + $0x13a0] sm:$0xff]
    %v1963 = vld [vmem:[#allocation8 + $0x13a8] sm:$0xff]
    %v1964 = vld [vmem:[#allocation8 + $0x13b0] sm:$0xff]
    %v1965 = vld [vmem:[#allocation8 + $0x13b8] sm:$0xff]
    %v1966 = vld [vmem:[#allocation8 + $0x13c0] sm:$0xff]
    %v1967 = vld [vmem:[#allocation8 + $0x13c8] sm:$0xff]
    %v1968 = vld [vmem:[#allocation8 + $0x13d0] sm:$0xff]
    %v1969 = vld [vmem:[#allocation8 + $0x13d8] sm:$0xff]
    %v1970 = vld [vmem:[#allocation8 + $0x13e0] sm:$0xff]
    %v1971 = vld [vmem:[#allocation8 + $0x13e8] sm:$0xff]
    %v1972 = vld [vmem:[#allocation8 + $0x13f0] sm:$0xff]
    %v1973 = vld [vmem:[#allocation8 + $0x13f8] sm:$0xff]
    %v1974 = vld [vmem:[#allocation8 + $0x1400] sm:$0xff]
    %v1975 = vld [vmem:[#allocation8 + $0x1408] sm:$0xff]
    %v1976 = vld [vmem:[#allocation8 + $0x1410] sm:$0xff]
    %v1977 = vld [vmem:[#allocation8 + $0x1418] sm:$0xff]
    %v1978 = vld [vmem:[#allocation8 + $0x1420] sm:$0xff]
    %v1979 = vld [vmem:[#allocation8 + $0x1428] sm:$0xff]
    %v1980 = vld [vmem:[#allocation8 + $0x1430] sm:$0xff]
    %v1981 = vld [vmem:[#allocation8 + $0x1438] sm:$0xff]
    %v1982 = vld [vmem:[#allocation8 + $0x1440] sm:$0xff]
    %v1983 = vld [vmem:[#allocation8 + $0x1448] sm:$0xff]
    %v1984 = vld [vmem:[#allocation8 + $0x1450] sm:$0xff]
    %v1985 = vld [vmem:[#allocation8 + $0x1458] sm:$0xff]
    %v1986 = vld [vmem:[#allocation8 + $0x1460] sm:$0xff]
    %v1987 = vld [vmem:[#allocation8 + $0x1468] sm:$0xff]
    %v1988 = vld [vmem:[#allocation8 + $0x1470] sm:$0xff]
    %v1989 = vld [vmem:[#allocation8 + $0x1478] sm:$0xff]
    %v1990 = vld [vmem:[#allocation8 + $0x1480] sm:$0xff]
    %v1991 = vld [vmem:[#allocation8 + $0x1488] sm:$0xff]
    %v1992 = vld [vmem:[#allocation8 + $0x1490] sm:$0xff]
    %v1993 = vld [vmem:[#allocation8 + $0x1498] sm:$0xff]
    %v1994 = vld [vmem:[#allocation8 + $0x14a0] sm:$0xff]
    %v1995 = vld [vmem:[#allocation8 + $0x14a8] sm:$0xff]
    %v1996 = vld [vmem:[#allocation8 + $0x14b0] sm:$0xff]
    %v1997 = vld [vmem:[#allocation8 + $0x14b8] sm:$0xff]
    %v1998 = vld [vmem:[#allocation8 + $0x14c0] sm:$0xff]
    %v1999 = vld [vmem:[#allocation8 + $0x14c8] sm:$0xff]
    %v2000 = vld [vmem:[#allocation8 + $0x14d0] sm:$0xff]
    %v2001 = vld [vmem:[#allocation8 + $0x14d8] sm:$0xff]
    %v2002 = vld [vmem:[#allocation8 + $0x14e0] sm:$0xff]
    %v2003 = vld [vmem:[#allocation8 + $0x14e8] sm:$0xff]
    %v2004 = vld [vmem:[#allocation8 + $0x14f0] sm:$0xff]
    %v2005 = vld [vmem:[#allocation8 + $0x14f8] sm:$0xff]
    %v2006 = vld [vmem:[#allocation8 + $0x1500] sm:$0xff]
    %v2007 = vld [vmem:[#allocation8 + $0x1508] sm:$0xff]
    %v2008 = vld [vmem:[#allocation8 + $0x1510] sm:$0xff]
    %v2009 = vld [vmem:[#allocation8 + $0x1518] sm:$0xff]
    %v2010 = vld [vmem:[#allocation8 + $0x1520] sm:$0xff]
    %v2011 = vld [vmem:[#allocation8 + $0x1528] sm:$0xff]
    %v2012 = vld [vmem:[#allocation8 + $0x1530] sm:$0xff]
    %v2013 = vld [vmem:[#allocation8 + $0x1538] sm:$0xff]
    %v2014 = vld [vmem:[#allocation8 + $0x1540] sm:$0xff]
    %v2015 = vld [vmem:[#allocation8 + $0x1548] sm:$0xff]
    %v2016 = vld [vmem:[#allocation8 + $0x1550] sm:$0xff]
    %v2017 = vld [vmem:[#allocation8 + $0x1558] sm:$0xff]
    %v2018 = vld [vmem:[#allocation8 + $0x1560] sm:$0xff]
    %v2019 = vld [vmem:[#allocation8 + $0x1568] sm:$0xff]
    %v2020 = vld [vmem:[#allocation8 + $0x1570] sm:$0xff]
    %v2021 = vld [vmem:[#allocation8 + $0x1578] sm:$0xff]
    %v2022 = vld [vmem:[#allocation8 + $0x1580] sm:$0xff]
    %v2023 = vld [vmem:[#allocation8 + $0x1588] sm:$0xff]
    %v2024 = vld [vmem:[#allocation8 + $0x1590] sm:$0xff]
    %v2025 = vld [vmem:[#allocation8 + $0x1598] sm:$0xff]
    %v2026 = vld [vmem:[#allocation8 + $0x15a0] sm:$0xff]
    %v2027 = vld [vmem:[#allocation8 + $0x15a8] sm:$0xff]
    %v2028 = vld [vmem:[#allocation8 + $0x15b0] sm:$0xff]
    %v2029 = vld [vmem:[#allocation8 + $0x15b8] sm:$0xff]
    %v2030 = vld [vmem:[#allocation8 + $0x15c0] sm:$0xff]
    %v2031 = vld [vmem:[#allocation8 + $0x15c8] sm:$0xff]
    %v2032 = vld [vmem:[#allocation8 + $0x15d0] sm:$0xff]
    %v2033 = vld [vmem:[#allocation8 + $0x15d8] sm:$0xff]
    %v2034 = vld [vmem:[#allocation8 + $0x15e0] sm:$0xff]
    %v2035 = vld [vmem:[#allocation8 + $0x15e8] sm:$0xff]
    %v2036 = vld [vmem:[#allocation8 + $0x15f0] sm:$0xff]
    %v2037 = vld [vmem:[#allocation8 + $0x15f8] sm:$0xff]
    %v2038 = vld [vmem:[#allocation8 + $0x1600] sm:$0xff]
    %v2039 = vld [vmem:[#allocation8 + $0x1608] sm:$0xff]
    %v2040 = vld [vmem:[#allocation8 + $0x1610] sm:$0xff]
    %v2041 = vld [vmem:[#allocation8 + $0x1618] sm:$0xff]
    %v2042 = vld [vmem:[#allocation8 + $0x1620] sm:$0xff]
    %v2043 = vld [vmem:[#allocation8 + $0x1628] sm:$0xff]
    %v2044 = vld [vmem:[#allocation8 + $0x1630] sm:$0xff]
    %v2045 = vld [vmem:[#allocation8 + $0x1638] sm:$0xff]
    %v2046 = vld [vmem:[#allocation8 + $0x1640] sm:$0xff]
    %v2047 = vld [vmem:[#allocation8 + $0x1648] sm:$0xff]
    %v2048 = vld [vmem:[#allocation8 + $0x1650] sm:$0xff]
    %v2049 = vld [vmem:[#allocation8 + $0x1658] sm:$0xff]
    %v2050 = vld [vmem:[#allocation8 + $0x1660] sm:$0xff]
    %v2051 = vld [vmem:[#allocation8 + $0x1668] sm:$0xff]
    %v2052 = vld [vmem:[#allocation8 + $0x1670] sm:$0xff]
    %v2053 = vld [vmem:[#allocation8 + $0x1678] sm:$0xff]
    %v2054 = vld [vmem:[#allocation8 + $0x1680] sm:$0xff]
    %v2055 = vld [vmem:[#allocation8 + $0x1688] sm:$0xff]
    %v2056 = vld [vmem:[#allocation8 + $0x1690] sm:$0xff]
    %v2057 = vld [vmem:[#allocation8 + $0x1698] sm:$0xff]
    %v2058 = vld [vmem:[#allocation8 + $0x16a0] sm:$0xff]
    %v2059 = vld [vmem:[#allocation8 + $0x16a8] sm:$0xff]
    %v2060 = vld [vmem:[#allocation8 + $0x16b0] sm:$0xff]
    %v2061 = vld [vmem:[#allocation8 + $0x16b8] sm:$0xff]
    %v2062 = vld [vmem:[#allocation8 + $0x16c0] sm:$0xff]
    %v2063 = vld [vmem:[#allocation8 + $0x16c8] sm:$0xff]
    %v2064 = vld [vmem:[#allocation8 + $0x16d0] sm:$0xff]
    %v2065 = vld [vmem:[#allocation8 + $0x16d8] sm:$0xff]
    %v2066 = vld [vmem:[#allocation8 + $0x16e0] sm:$0xff]
    %v2067 = vld [vmem:[#allocation8 + $0x16e8] sm:$0xff]
    %v2068 = vld [vmem:[#allocation8 + $0x16f0] sm:$0xff]
    %v2069 = vld [vmem:[#allocation8 + $0x16f8] sm:$0xff]
    %v2070 = vld [vmem:[#allocation8 + $0x1700] sm:$0xff]
    %v2071 = vld [vmem:[#allocation8 + $0x1708] sm:$0xff]
    %v2072 = vld [vmem:[#allocation8 + $0x1710] sm:$0xff]
    %v2073 = vld [vmem:[#allocation8 + $0x1718] sm:$0xff]
    %v2074 = vld [vmem:[#allocation8 + $0x1720] sm:$0xff]
    %v2075 = vld [vmem:[#allocation8 + $0x1728] sm:$0xff]
    %v2076 = vld [vmem:[#allocation8 + $0x1730] sm:$0xff]
    %v2077 = vld [vmem:[#allocation8 + $0x1738] sm:$0xff]
    %v2078 = vld [vmem:[#allocation8 + $0x1740] sm:$0xff]
    %v2079 = vld [vmem:[#allocation8 + $0x1748] sm:$0xff]
    %v2080 = vld [vmem:[#allocation8 + $0x1750] sm:$0xff]
    %v2081 = vld [vmem:[#allocation8 + $0x1758] sm:$0xff]
    %v2082 = vld [vmem:[#allocation8 + $0x1760] sm:$0xff]
    %v2083 = vld [vmem:[#allocation8 + $0x1768] sm:$0xff]
    %v2084 = vld [vmem:[#allocation8 + $0x1770] sm:$0xff]
    %v2085 = vld [vmem:[#allocation8 + $0x1778] sm:$0xff]
    %v2086 = vld [vmem:[#allocation8 + $0x1780] sm:$0xff]
    %v2087 = vld [vmem:[#allocation8 + $0x1788] sm:$0xff]
    %v2088 = vld [vmem:[#allocation8 + $0x1790] sm:$0xff]
    %v2089 = vld [vmem:[#allocation8 + $0x1798] sm:$0xff]
    %v2090 = vld [vmem:[#allocation8 + $0x17a0] sm:$0xff]
    %v2091 = vld [vmem:[#allocation8 + $0x17a8] sm:$0xff]
    %v2092 = vld [vmem:[#allocation8 + $0x17b0] sm:$0xff]
    %v2093 = vld [vmem:[#allocation8 + $0x17b8] sm:$0xff]
    %v2094 = vld [vmem:[#allocation8 + $0x17c0] sm:$0xff]
    %v2095 = vld [vmem:[#allocation8 + $0x17c8] sm:$0xff]
    %v2096 = vld [vmem:[#allocation8 + $0x17d0] sm:$0xff]
    %v2097 = vld [vmem:[#allocation8 + $0x17d8] sm:$0xff]
    %v2098 = vld [vmem:[#allocation8 + $0x17e0] sm:$0xff]
    %v2099 = vld [vmem:[#allocation8 + $0x17e8] sm:$0xff]
    %v2100 = vld [vmem:[#allocation8 + $0x17f0] sm:$0xff]
    %v2101 = vld [vmem:[#allocation8 + $0x17f8] sm:$0xff]
    %v2102 = vld [vmem:[#allocation8 + $0x1800] sm:$0xff]
    %v2103 = vld [vmem:[#allocation8 + $0x1808] sm:$0xff]
    %v2104 = vld [vmem:[#allocation8 + $0x1810] sm:$0xff]
    %v2105 = vld [vmem:[#allocation8 + $0x1818] sm:$0xff]
    %v2106 = vld [vmem:[#allocation8 + $0x1820] sm:$0xff]
    %v2107 = vld [vmem:[#allocation8 + $0x1828] sm:$0xff]
    %v2108 = vld [vmem:[#allocation8 + $0x1830] sm:$0xff]
    %v2109 = vld [vmem:[#allocation8 + $0x1838] sm:$0xff]
    %v2110 = vld [vmem:[#allocation8 + $0x1840] sm:$0xff]
    %v2111 = vld [vmem:[#allocation8 + $0x1848] sm:$0xff]
    %v2112 = vld [vmem:[#allocation8 + $0x1850] sm:$0xff]
    %v2113 = vld [vmem:[#allocation8 + $0x1858] sm:$0xff]
    %v2114 = vld [vmem:[#allocation8 + $0x1860] sm:$0xff]
    %v2115 = vld [vmem:[#allocation8 + $0x1868] sm:$0xff]
    %v2116 = vld [vmem:[#allocation8 + $0x1870] sm:$0xff]
    %v2117 = vld [vmem:[#allocation8 + $0x1878] sm:$0xff]
    %v2118 = vld [vmem:[#allocation8 + $0x1880] sm:$0xff]
    %v2119 = vld [vmem:[#allocation8 + $0x1888] sm:$0xff]
    %v2120 = vld [vmem:[#allocation8 + $0x1890] sm:$0xff]
    %v2121 = vld [vmem:[#allocation8 + $0x1898] sm:$0xff]
    %v2122 = vld [vmem:[#allocation8 + $0x18a0] sm:$0xff]
    %v2123 = vld [vmem:[#allocation8 + $0x18a8] sm:$0xff]
    %v2124 = vld [vmem:[#allocation8 + $0x18b0] sm:$0xff]
    %v2125 = vld [vmem:[#allocation8 + $0x18b8] sm:$0xff]
    %v2126 = vld [vmem:[#allocation8 + $0x18c0] sm:$0xff]
    %v2127 = vld [vmem:[#allocation8 + $0x18c8] sm:$0xff]
    %v2128 = vld [vmem:[#allocation8 + $0x18d0] sm:$0xff]
    %v2129 = vld [vmem:[#allocation8 + $0x18d8] sm:$0xff]
    %v2130 = vld [vmem:[#allocation8 + $0x18e0] sm:$0xff]
    %v2131 = vld [vmem:[#allocation8 + $0x18e8] sm:$0xff]
    %v2132 = vld [vmem:[#allocation8 + $0x18f0] sm:$0xff]
    %v2133 = vld [vmem:[#allocation8 + $0x18f8] sm:$0xff]
    %v2134 = vld [vmem:[#allocation8 + $0x1900] sm:$0xff]
    %v2135 = vld [vmem:[#allocation8 + $0x1908] sm:$0xff]
    %v2136 = vld [vmem:[#allocation8 + $0x1910] sm:$0xff]
    %v2137 = vld [vmem:[#allocation8 + $0x1918] sm:$0xff]
    %v2138 = vld [vmem:[#allocation8 + $0x1920] sm:$0xff]
    %v2139 = vld [vmem:[#allocation8 + $0x1928] sm:$0xff]
    %v2140 = vld [vmem:[#allocation8 + $0x1930] sm:$0xff]
    %v2141 = vld [vmem:[#allocation8 + $0x1938] sm:$0xff]
    %v2142 = vld [vmem:[#allocation8 + $0x1940] sm:$0xff]
    %v2143 = vld [vmem:[#allocation8 + $0x1948] sm:$0xff]
    %v2144 = vld [vmem:[#allocation8 + $0x1950] sm:$0xff]
    %v2145 = vld [vmem:[#allocation8 + $0x1958] sm:$0xff]
    %v2146 = vld [vmem:[#allocation8 + $0x1960] sm:$0xff]
    %v2147 = vld [vmem:[#allocation8 + $0x1968] sm:$0xff]
    %v2148 = vld [vmem:[#allocation8 + $0x1970] sm:$0xff]
    %v2149 = vld [vmem:[#allocation8 + $0x1978] sm:$0xff]
    %v2150 = vld [vmem:[#allocation8 + $0x1980] sm:$0xff]
    %v2151 = vld [vmem:[#allocation8 + $0x1988] sm:$0xff]
    %v2152 = vld [vmem:[#allocation8 + $0x1990] sm:$0xff]
    %v2153 = vld [vmem:[#allocation8 + $0x1998] sm:$0xff]
    %v2154 = vld [vmem:[#allocation8 + $0x19a0] sm:$0xff]
    %v2155 = vld [vmem:[#allocation8 + $0x19a8] sm:$0xff]
    %v2156 = vld [vmem:[#allocation8 + $0x19b0] sm:$0xff]
    %v2157 = vld [vmem:[#allocation8 + $0x19b8] sm:$0xff]
    %v2158 = vld [vmem:[#allocation8 + $0x19c0] sm:$0xff]
    %v2159 = vld [vmem:[#allocation8 + $0x19c8] sm:$0xff]
    %v2160 = vld [vmem:[#allocation8 + $0x19d0] sm:$0xff]
    %v2161 = vld [vmem:[#allocation8 + $0x19d8] sm:$0xff]
    %v2162 = vld [vmem:[#allocation8 + $0x19e0] sm:$0xff]
    %v2163 = vld [vmem:[#allocation8 + $0x19e8] sm:$0xff]
    %v2164 = vld [vmem:[#allocation8 + $0x19f0] sm:$0xff]
    %v2165 = vld [vmem:[#allocation8 + $0x19f8] sm:$0xff]
    %v2166 = vld [vmem:[#allocation8 + $0x1a00] sm:$0xff]
    %v2167 = vld [vmem:[#allocation8 + $0x1a08] sm:$0xff]
    %v2168 = vld [vmem:[#allocation8 + $0x1a10] sm:$0xff]
    %v2169 = vld [vmem:[#allocation8 + $0x1a18] sm:$0xff]
    %v2170 = vld [vmem:[#allocation8 + $0x1a20] sm:$0xff]
    %v2171 = vld [vmem:[#allocation8 + $0x1a28] sm:$0xff]
    %v2172 = vld [vmem:[#allocation8 + $0x1a30] sm:$0xff]
    %v2173 = vld [vmem:[#allocation8 + $0x1a38] sm:$0xff]
    %v2174 = vld [vmem:[#allocation8 + $0x1a40] sm:$0xff]
    %v2175 = vld [vmem:[#allocation8 + $0x1a48] sm:$0xff]
    %v2176 = vld [vmem:[#allocation8 + $0x1a50] sm:$0xff]
    %v2177 = vld [vmem:[#allocation8 + $0x1a58] sm:$0xff]
    %v2178 = vld [vmem:[#allocation8 + $0x1a60] sm:$0xff]
    %v2179 = vld [vmem:[#allocation8 + $0x1a68] sm:$0xff]
    %v2180 = vld [vmem:[#allocation8 + $0x1a70] sm:$0xff]
    %v2181 = vld [vmem:[#allocation8 + $0x1a78] sm:$0xff]
    %v2182 = vld [vmem:[#allocation8 + $0x1a80] sm:$0xff]
    %v2183 = vld [vmem:[#allocation8 + $0x1a88] sm:$0xff]
    %v2184 = vld [vmem:[#allocation8 + $0x1a90] sm:$0xff]
    %v2185 = vld [vmem:[#allocation8 + $0x1a98] sm:$0xff]
    %v2186 = vld [vmem:[#allocation8 + $0x1aa0] sm:$0xff]
    %v2187 = vld [vmem:[#allocation8 + $0x1aa8] sm:$0xff]
    %v2188 = vld [vmem:[#allocation8 + $0x1ab0] sm:$0xff]
    %v2189 = vld [vmem:[#allocation8 + $0x1ab8] sm:$0xff]
    %v2190 = vld [vmem:[#allocation8 + $0x1ac0] sm:$0xff]
    %v2191 = vld [vmem:[#allocation8 + $0x1ac8] sm:$0xff]
    %v2192 = vld [vmem:[#allocation8 + $0x1ad0] sm:$0xff]
    %v2193 = vld [vmem:[#allocation8 + $0x1ad8] sm:$0xff]
    %v2194 = vld [vmem:[#allocation8 + $0x1ae0] sm:$0xff]
    %v2195 = vld [vmem:[#allocation8 + $0x1ae8] sm:$0xff]
    %v2196 = vld [vmem:[#allocation8 + $0x1af0] sm:$0xff]
    %v2197 = vld [vmem:[#allocation8 + $0x1af8] sm:$0xff]
    %v2198 = vld [vmem:[#allocation8 + $0x1b00] sm:$0xff]
    %v2199 = vld [vmem:[#allocation8 + $0x1b08] sm:$0xff]
    %v2200 = vld [vmem:[#allocation8 + $0x1b10] sm:$0xff]
    %v2201 = vld [vmem:[#allocation8 + $0x1b18] sm:$0xff]
    %v2202 = vld [vmem:[#allocation8 + $0x1b20] sm:$0xff]
    %v2203 = vld [vmem:[#allocation8 + $0x1b28] sm:$0xff]
    %v2204 = vld [vmem:[#allocation8 + $0x1b30] sm:$0xff]
    %v2205 = vld [vmem:[#allocation8 + $0x1b38] sm:$0xff]
    %v2206 = vld [vmem:[#allocation8 + $0x1b40] sm:$0xff]
    %v2207 = vld [vmem:[#allocation8 + $0x1b48] sm:$0xff]
    %v2208 = vld [vmem:[#allocation8 + $0x1b50] sm:$0xff]
    %v2209 = vld [vmem:[#allocation8 + $0x1b58] sm:$0xff]
    %v2210 = vld [vmem:[#allocation8 + $0x1b60] sm:$0xff]
    %v2211 = vld [vmem:[#allocation8 + $0x1b68] sm:$0xff]
    %v2212 = vld [vmem:[#allocation8 + $0x1b70] sm:$0xff]
    %v2213 = vld [vmem:[#allocation8 + $0x1b78] sm:$0xff]
    %v2214 = vld [vmem:[#allocation8 + $0x1b80] sm:$0xff]
    %v2215 = vld [vmem:[#allocation8 + $0x1b88] sm:$0xff]
    %v2216 = vld [vmem:[#allocation8 + $0x1b90] sm:$0xff]
    %v2217 = vld [vmem:[#allocation8 + $0x1b98] sm:$0xff]
    %v2218 = vld [vmem:[#allocation8 + $0x1ba0] sm:$0xff]
    %v2219 = vld [vmem:[#allocation8 + $0x1ba8] sm:$0xff]
    %v2220 = vld [vmem:[#allocation8 + $0x1bb0] sm:$0xff]
    %v2221 = vld [vmem:[#allocation8 + $0x1bb8] sm:$0xff]
    %v2222 = vld [vmem:[#allocation8 + $0x1bc0] sm:$0xff]
    %v2223 = vld [vmem:[#allocation8 + $0x1bc8] sm:$0xff]
    %v2224 = vld [vmem:[#allocation8 + $0x1bd0] sm:$0xff]
    %v2225 = vld [vmem:[#allocation8 + $0x1bd8] sm:$0xff]
    %v2226 = vld [vmem:[#allocation8 + $0x1be0] sm:$0xff]
    %v2227 = vld [vmem:[#allocation8 + $0x1be8] sm:$0xff]
    %v2228 = vld [vmem:[#allocation8 + $0x1bf0] sm:$0xff]
    %v2229 = vld [vmem:[#allocation8 + $0x1bf8] sm:$0xff]
    %v2230 = vld [vmem:[#allocation8 + $0x1c00] sm:$0xff]
    %v2231 = vld [vmem:[#allocation8 + $0x1c08] sm:$0xff]
    %v2232 = vld [vmem:[#allocation8 + $0x1c10] sm:$0xff]
    %v2233 = vld [vmem:[#allocation8 + $0x1c18] sm:$0xff]
    %v2234 = vld [vmem:[#allocation8 + $0x1c20] sm:$0xff]
    %v2235 = vld [vmem:[#allocation8 + $0x1c28] sm:$0xff]
    %v2236 = vld [vmem:[#allocation8 + $0x1c30] sm:$0xff]
    %v2237 = vld [vmem:[#allocation8 + $0x1c38] sm:$0xff]
    %v2238 = vld [vmem:[#allocation8 + $0x1c40] sm:$0xff]
    %v2239 = vld [vmem:[#allocation8 + $0x1c48] sm:$0xff]
    %v2240 = vld [vmem:[#allocation8 + $0x1c50] sm:$0xff]
    %v2241 = vld [vmem:[#allocation8 + $0x1c58] sm:$0xff]
    %v2242 = vld [vmem:[#allocation8 + $0x1c60] sm:$0xff]
    %v2243 = vld [vmem:[#allocation8 + $0x1c68] sm:$0xff]
    %v2244 = vld [vmem:[#allocation8 + $0x1c70] sm:$0xff]
    %v2245 = vld [vmem:[#allocation8 + $0x1c78] sm:$0xff]
    %v2246 = vld [vmem:[#allocation8 + $0x1c80] sm:$0xff]
    %v2247 = vld [vmem:[#allocation8 + $0x1c88] sm:$0xff]
    %v2248 = vld [vmem:[#allocation8 + $0x1c90] sm:$0xff]
    %v2249 = vld [vmem:[#allocation8 + $0x1c98] sm:$0xff]
    %v2250 = vld [vmem:[#allocation8 + $0x1ca0] sm:$0xff]
    %v2251 = vld [vmem:[#allocation8 + $0x1ca8] sm:$0xff]
    %v2252 = vld [vmem:[#allocation8 + $0x1cb0] sm:$0xff]
    %v2253 = vld [vmem:[#allocation8 + $0x1cb8] sm:$0xff]
    %v2254 = vld [vmem:[#allocation8 + $0x1cc0] sm:$0xff]
    %v2255 = vld [vmem:[#allocation8 + $0x1cc8] sm:$0xff]
    %v2256 = vld [vmem:[#allocation8 + $0x1cd0] sm:$0xff]
    %v2257 = vld [vmem:[#allocation8 + $0x1cd8] sm:$0xff]
    %v2258 = vld [vmem:[#allocation8 + $0x1ce0] sm:$0xff]
    %v2259 = vld [vmem:[#allocation8 + $0x1ce8] sm:$0xff]
    %v2260 = vld [vmem:[#allocation8 + $0x1cf0] sm:$0xff]
    %v2261 = vld [vmem:[#allocation8 + $0x1cf8] sm:$0xff]
    %v2262 = vld [vmem:[#allocation8 + $0x1d00] sm:$0xff]
    %v2263 = vld [vmem:[#allocation8 + $0x1d08] sm:$0xff]
    %v2264 = vld [vmem:[#allocation8 + $0x1d10] sm:$0xff]
    %v2265 = vld [vmem:[#allocation8 + $0x1d18] sm:$0xff]
    %v2266 = vld [vmem:[#allocation8 + $0x1d20] sm:$0xff]
    %v2267 = vld [vmem:[#allocation8 + $0x1d28] sm:$0xff]
    %v2268 = vld [vmem:[#allocation8 + $0x1d30] sm:$0xff]
    %v2269 = vld [vmem:[#allocation8 + $0x1d38] sm:$0xff]
    %v2270 = vld [vmem:[#allocation8 + $0x1d40] sm:$0xff]
    %v2271 = vld [vmem:[#allocation8 + $0x1d48] sm:$0xff]
    %v2272 = vld [vmem:[#allocation8 + $0x1d50] sm:$0xff]
    %v2273 = vld [vmem:[#allocation8 + $0x1d58] sm:$0xff]
    %v2274 = vld [vmem:[#allocation8 + $0x1d60] sm:$0xff]
    %v2275 = vld [vmem:[#allocation8 + $0x1d68] sm:$0xff]
    %v2276 = vld [vmem:[#allocation8 + $0x1d70] sm:$0xff]
    %v2277 = vld [vmem:[#allocation8 + $0x1d78] sm:$0xff]
    %v2278 = vld [vmem:[#allocation8 + $0x1d80] sm:$0xff]
    %v2279 = vld [vmem:[#allocation8 + $0x1d88] sm:$0xff]
    %v2280 = vld [vmem:[#allocation8 + $0x1d90] sm:$0xff]
    %v2281 = vld [vmem:[#allocation8 + $0x1d98] sm:$0xff]
    %v2282 = vld [vmem:[#allocation8 + $0x1da0] sm:$0xff]
    %v2283 = vld [vmem:[#allocation8 + $0x1da8] sm:$0xff]
    %v2284 = vld [vmem:[#allocation8 + $0x1db0] sm:$0xff]
    %v2285 = vld [vmem:[#allocation8 + $0x1db8] sm:$0xff]
    %v2286 = vld [vmem:[#allocation8 + $0x1dc0] sm:$0xff]
    %v2287 = vld [vmem:[#allocation8 + $0x1dc8] sm:$0xff]
    %v2288 = vld [vmem:[#allocation8 + $0x1dd0] sm:$0xff]
    %v2289 = vld [vmem:[#allocation8 + $0x1dd8] sm:$0xff]
    %v2290 = vld [vmem:[#allocation8 + $0x1de0] sm:$0xff]
    %v2291 = vld [vmem:[#allocation8 + $0x1de8] sm:$0xff]
    %v2292 = vld [vmem:[#allocation8 + $0x1df0] sm:$0xff]
    %v2293 = vld [vmem:[#allocation8 + $0x1df8] sm:$0xff]
    %v2294 = vld [vmem:[#allocation8 + $0x1e00] sm:$0xff]
    %v2295 = vld [vmem:[#allocation8 + $0x1e08] sm:$0xff]
    %v2296 = vld [vmem:[#allocation8 + $0x1e10] sm:$0xff]
    %v2297 = vld [vmem:[#allocation8 + $0x1e18] sm:$0xff]
    %v2298 = vld [vmem:[#allocation8 + $0x1e20] sm:$0xff]
    %v2299 = vld [vmem:[#allocation8 + $0x1e28] sm:$0xff]
    %v2300 = vld [vmem:[#allocation8 + $0x1e30] sm:$0xff]
    %v2301 = vld [vmem:[#allocation8 + $0x1e38] sm:$0xff]
    %v2302 = vld [vmem:[#allocation8 + $0x1e40] sm:$0xff]
    %v2303 = vld [vmem:[#allocation8 + $0x1e48] sm:$0xff]
    %v2304 = vld [vmem:[#allocation8 + $0x1e50] sm:$0xff]
    %v2305 = vld [vmem:[#allocation8 + $0x1e58] sm:$0xff]
    %v2306 = vld [vmem:[#allocation8 + $0x1e60] sm:$0xff]
    %v2307 = vld [vmem:[#allocation8 + $0x1e68] sm:$0xff]
    %v2308 = vld [vmem:[#allocation8 + $0x1e70] sm:$0xff]
    %v2309 = vld [vmem:[#allocation8 + $0x1e78] sm:$0xff]
    %v2310 = vld [vmem:[#allocation8 + $0x1e80] sm:$0xff]
    %v2311 = vld [vmem:[#allocation8 + $0x1e88] sm:$0xff]
    %v2312 = vld [vmem:[#allocation8 + $0x1e90] sm:$0xff]
    %v2313 = vld [vmem:[#allocation8 + $0x1e98] sm:$0xff]
    %v2314 = vld [vmem:[#allocation8 + $0x1ea0] sm:$0xff]
    %v2315 = vld [vmem:[#allocation8 + $0x1ea8] sm:$0xff]
    %v2316 = vld [vmem:[#allocation8 + $0x1eb0] sm:$0xff]
    %v2317 = vld [vmem:[#allocation8 + $0x1eb8] sm:$0xff]
    %v2318 = vld [vmem:[#allocation8 + $0x1ec0] sm:$0xff]
    %v2319 = vld [vmem:[#allocation8 + $0x1ec8] sm:$0xff]
    %v2320 = vld [vmem:[#allocation8 + $0x1ed0] sm:$0xff]
    %v2321 = vld [vmem:[#allocation8 + $0x1ed8] sm:$0xff]
    %v2322 = vld [vmem:[#allocation8 + $0x1ee0] sm:$0xff]
    %v2323 = vld [vmem:[#allocation8 + $0x1ee8] sm:$0xff]
    %v2324 = vld [vmem:[#allocation8 + $0x1ef0] sm:$0xff]
    %v2325 = vld [vmem:[#allocation8 + $0x1ef8] sm:$0xff]
    %v2326 = vld [vmem:[#allocation8 + $0x1f00] sm:$0xff]
    %v2327 = vld [vmem:[#allocation8 + $0x1f08] sm:$0xff]
    %v2328 = vld [vmem:[#allocation8 + $0x1f10] sm:$0xff]
    %v2329 = vld [vmem:[#allocation8 + $0x1f18] sm:$0xff]
    %v2330 = vld [vmem:[#allocation8 + $0x1f20] sm:$0xff]
    %v2331 = vld [vmem:[#allocation8 + $0x1f28] sm:$0xff]
    %v2332 = vld [vmem:[#allocation8 + $0x1f30] sm:$0xff]
    %v2333 = vld [vmem:[#allocation8 + $0x1f38] sm:$0xff]
    %v2334 = vld [vmem:[#allocation8 + $0x1f40] sm:$0xff]
    %v2335 = vld [vmem:[#allocation8 + $0x1f48] sm:$0xff]
    %v2336 = vld [vmem:[#allocation8 + $0x1f50] sm:$0xff]
    %v2337 = vld [vmem:[#allocation8 + $0x1f58] sm:$0xff]
    %v2338 = vld [vmem:[#allocation8 + $0x1f60] sm:$0xff]
    %v2339 = vld [vmem:[#allocation8 + $0x1f68] sm:$0xff]
    %v2340 = vld [vmem:[#allocation8 + $0x1f70] sm:$0xff]
    %v2341 = vld [vmem:[#allocation8 + $0x1f78] sm:$0xff]
    %v2342 = vld [vmem:[#allocation8 + $0x1f80] sm:$0xff]
    %v2343 = vld [vmem:[#allocation8 + $0x1f88] sm:$0xff]
    %v2344 = vld [vmem:[#allocation8 + $0x1f90] sm:$0xff]
    %v2345 = vld [vmem:[#allocation8 + $0x1f98] sm:$0xff]
    %v2346 = vld [vmem:[#allocation8 + $0x1fa0] sm:$0xff]
    %v2347 = vld [vmem:[#allocation8 + $0x1fa8] sm:$0xff]
    %v2348 = vld [vmem:[#allocation8 + $0x1fb0] sm:$0xff]
    %v2349 = vld [vmem:[#allocation8 + $0x1fb8] sm:$0xff]
    %v2350 = vld [vmem:[#allocation8 + $0x1fc0] sm:$0xff]
    %v2351 = vld [vmem:[#allocation8 + $0x1fc8] sm:$0xff]
    %v2352 = vld [vmem:[#allocation8 + $0x1fd0] sm:$0xff]
    %v2353 = vld [vmem:[#allocation8 + $0x1fd8] sm:$0xff]
    %v2354 = vld [vmem:[#allocation8 + $0x1fe0] sm:$0xff]
    %v2355 = vld [vmem:[#allocation8 + $0x1fe8] sm:$0xff]
    %v2356 = vld [vmem:[#allocation8 + $0x1ff0] sm:$0xff]
    %v2357 = vld [vmem:[#allocation8 + $0x1ff8] sm:$0xff]
    %v2358 = vld [vmem:[#allocation8 + $0x2000] sm:$0xff]
    %v2359 = vld [vmem:[#allocation8 + $0x2008] sm:$0xff]
    %v2360 = vld [vmem:[#allocation8 + $0x2010] sm:$0xff]
    %v2361 = vld [vmem:[#allocation8 + $0x2018] sm:$0xff]
    %v2362 = vld [vmem:[#allocation8 + $0x2020] sm:$0xff]
    %v2363 = vld [vmem:[#allocation8 + $0x2028] sm:$0xff]
    %v2364 = vld [vmem:[#allocation8 + $0x2030] sm:$0xff]
    %v2365 = vld [vmem:[#allocation8 + $0x2038] sm:$0xff]
    %v2366 = vld [vmem:[#allocation8 + $0x2040] sm:$0xff]
    %v2367 = vld [vmem:[#allocation8 + $0x2048] sm:$0xff]
    %v2368 = vld [vmem:[#allocation8 + $0x2050] sm:$0xff]
    %v2369 = vld [vmem:[#allocation8 + $0x2058] sm:$0xff]
    %v2370 = vld [vmem:[#allocation8 + $0x2060] sm:$0xff]
    %v2371 = vld [vmem:[#allocation8 + $0x2068] sm:$0xff]
    %v2372 = vld [vmem:[#allocation8 + $0x2070] sm:$0xff]
    %v2373 = vld [vmem:[#allocation8 + $0x2078] sm:$0xff]
    %v2374 = vld [vmem:[#allocation8 + $0x2080] sm:$0xff]
    %v2375 = vld [vmem:[#allocation8 + $0x2088] sm:$0xff]
    %v2376 = vld [vmem:[#allocation8 + $0x2090] sm:$0xff]
    %v2377 = vld [vmem:[#allocation8 + $0x2098] sm:$0xff]
    %v2378 = vld [vmem:[#allocation8 + $0x20a0] sm:$0xff]
    %v2379 = vld [vmem:[#allocation8 + $0x20a8] sm:$0xff]
    %v2380 = vld [vmem:[#allocation8 + $0x20b0] sm:$0xff]
    %v2381 = vld [vmem:[#allocation8 + $0x20b8] sm:$0xff]
    %v2382 = vld [vmem:[#allocation8 + $0x20c0] sm:$0xff]
    %v2383 = vld [vmem:[#allocation8 + $0x20c8] sm:$0xff]
    %v2384 = vld [vmem:[#allocation8 + $0x20d0] sm:$0xff]
    %v2385 = vld [vmem:[#allocation8 + $0x20d8] sm:$0xff]
    %v2386 = vld [vmem:[#allocation8 + $0x20e0] sm:$0xff]
    %v2387 = vld [vmem:[#allocation8 + $0x20e8] sm:$0xff]
    %v2388 = vld [vmem:[#allocation8 + $0x20f0] sm:$0xff]
    %v2389 = vld [vmem:[#allocation8 + $0x20f8] sm:$0xff]
    %v2390 = vld [vmem:[#allocation8 + $0x2100] sm:$0xff]
    %v2391 = vld [vmem:[#allocation8 + $0x2108] sm:$0xff]
    %v2392 = vld [vmem:[#allocation8 + $0x2110] sm:$0xff]
    %v2393 = vld [vmem:[#allocation8 + $0x2118] sm:$0xff]
    %v2394 = vld [vmem:[#allocation8 + $0x2120] sm:$0xff]
    %v2395 = vld [vmem:[#allocation8 + $0x2128] sm:$0xff]
    %v2396 = vld [vmem:[#allocation8 + $0x2130] sm:$0xff]
    %v2397 = vld [vmem:[#allocation8 + $0x2138] sm:$0xff]
    %v2398 = vld [vmem:[#allocation8 + $0x2140] sm:$0xff]
    %v2399 = vld [vmem:[#allocation8 + $0x2148] sm:$0xff]
    %v2400 = vld [vmem:[#allocation8 + $0x2150] sm:$0xff]
    %v2401 = vld [vmem:[#allocation8 + $0x2158] sm:$0xff]
    %v2402 = vld [vmem:[#allocation8 + $0x2160] sm:$0xff]
    %v2403 = vld [vmem:[#allocation8 + $0x2168] sm:$0xff]
    %v2404 = vld [vmem:[#allocation8 + $0x2170] sm:$0xff]
    %v2405 = vld [vmem:[#allocation8 + $0x2178] sm:$0xff]
    %v2406 = vld [vmem:[#allocation8 + $0x2180] sm:$0xff]
    %v2407 = vld [vmem:[#allocation8 + $0x2188] sm:$0xff]
    %v2408 = vld [vmem:[#allocation8 + $0x2190] sm:$0xff]
    %v2409 = vld [vmem:[#allocation8 + $0x2198] sm:$0xff]
    %v2410 = vld [vmem:[#allocation8 + $0x21a0] sm:$0xff]
    %v2411 = vld [vmem:[#allocation8 + $0x21a8] sm:$0xff]
    %v2412 = vld [vmem:[#allocation8 + $0x21b0] sm:$0xff]
    %v2413 = vld [vmem:[#allocation8 + $0x21b8] sm:$0xff]
    %v2414 = vld [vmem:[#allocation8 + $0x21c0] sm:$0xff]
    %v2415 = vld [vmem:[#allocation8 + $0x21c8] sm:$0xff]
    %v2416 = vld [vmem:[#allocation8 + $0x21d0] sm:$0xff]
    %v2417 = vld [vmem:[#allocation8 + $0x21d8] sm:$0xff]
    %v2418 = vld [vmem:[#allocation8 + $0x21e0] sm:$0xff]
    %v2419 = vld [vmem:[#allocation8 + $0x21e8] sm:$0xff]
    %v2420 = vld [vmem:[#allocation8 + $0x21f0] sm:$0xff]
    %v2421 = vld [vmem:[#allocation8 + $0x21f8] sm:$0xff]
    %v2422 = vld [vmem:[#allocation8 + $0x2200] sm:$0xff]
    %v2423 = vld [vmem:[#allocation8 + $0x2208] sm:$0xff]
    %v2424 = vld [vmem:[#allocation8 + $0x2210] sm:$0xff]
    %v2425 = vld [vmem:[#allocation8 + $0x2218] sm:$0xff]
    %v2426 = vld [vmem:[#allocation8 + $0x2220] sm:$0xff]
    %v2427 = vld [vmem:[#allocation8 + $0x2228] sm:$0xff]
    %v2428 = vld [vmem:[#allocation8 + $0x2230] sm:$0xff]
    %v2429 = vld [vmem:[#allocation8 + $0x2238] sm:$0xff]
    %v2430 = vld [vmem:[#allocation8 + $0x2240] sm:$0xff]
    %v2431 = vld [vmem:[#allocation8 + $0x2248] sm:$0xff]
    %v2432 = vld [vmem:[#allocation8 + $0x2250] sm:$0xff]
    %v2433 = vld [vmem:[#allocation8 + $0x2258] sm:$0xff]
    %v2434 = vld [vmem:[#allocation8 + $0x2260] sm:$0xff]
    %v2435 = vld [vmem:[#allocation8 + $0x2268] sm:$0xff]
    %v2436 = vld [vmem:[#allocation8 + $0x2270] sm:$0xff]
    %v2437 = vld [vmem:[#allocation8 + $0x2278] sm:$0xff]
    %v2438 = vld [vmem:[#allocation8 + $0x2280] sm:$0xff]
    %v2439 = vld [vmem:[#allocation8 + $0x2288] sm:$0xff]
    %v2440 = vld [vmem:[#allocation8 + $0x2290] sm:$0xff]
    %v2441 = vld [vmem:[#allocation8 + $0x2298] sm:$0xff]
    %v2442 = vld [vmem:[#allocation8 + $0x22a0] sm:$0xff]
    %v2443 = vld [vmem:[#allocation8 + $0x22a8] sm:$0xff]
    %v2444 = vld [vmem:[#allocation8 + $0x22b0] sm:$0xff]
    %v2445 = vld [vmem:[#allocation8 + $0x22b8] sm:$0xff]
    %v2446 = vld [vmem:[#allocation8 + $0x22c0] sm:$0xff]
    %v2447 = vld [vmem:[#allocation8 + $0x22c8] sm:$0xff]
    %v2448 = vld [vmem:[#allocation8 + $0x22d0] sm:$0xff]
    %v2449 = vld [vmem:[#allocation8 + $0x22d8] sm:$0xff]
    %v2450 = vld [vmem:[#allocation8 + $0x22e0] sm:$0xff]
    %v2451 = vld [vmem:[#allocation8 + $0x22e8] sm:$0xff]
    %v2452 = vld [vmem:[#allocation8 + $0x22f0] sm:$0xff]
    %v2453 = vld [vmem:[#allocation8 + $0x22f8] sm:$0xff]
    %v2454 = vld [vmem:[#allocation8 + $0x2300] sm:$0xff]
    %v2455 = vld [vmem:[#allocation8 + $0x2308] sm:$0xff]
    %v2456 = vld [vmem:[#allocation8 + $0x2310] sm:$0xff]
    %v2457 = vld [vmem:[#allocation8 + $0x2318] sm:$0xff]
    %v2458 = vld [vmem:[#allocation8 + $0x2320] sm:$0xff]
    %v2459 = vld [vmem:[#allocation8 + $0x2328] sm:$0xff]
    %v2460 = vld [vmem:[#allocation8 + $0x2330] sm:$0xff]
    %v2461 = vld [vmem:[#allocation8 + $0x2338] sm:$0xff]
    %v2462 = vld [vmem:[#allocation8 + $0x2340] sm:$0xff]
    %v2463 = vld [vmem:[#allocation8 + $0x2348] sm:$0xff]
    %v2464 = vld [vmem:[#allocation8 + $0x2350] sm:$0xff]
    %v2465 = vld [vmem:[#allocation8 + $0x2358] sm:$0xff]
    %v2466 = vld [vmem:[#allocation8 + $0x2360] sm:$0xff]
    %v2467 = vld [vmem:[#allocation8 + $0x2368] sm:$0xff]
    %v2468 = vld [vmem:[#allocation8 + $0x2370] sm:$0xff]
    %v2469 = vld [vmem:[#allocation8 + $0x2378] sm:$0xff]
    %v2470 = vld [vmem:[#allocation8 + $0x2380] sm:$0xff]
    %v2471 = vld [vmem:[#allocation8 + $0x2388] sm:$0xff]
    %v2472 = vld [vmem:[#allocation8 + $0x2390] sm:$0xff]
    %v2473 = vld [vmem:[#allocation8 + $0x2398] sm:$0xff]
    %v2474 = vld [vmem:[#allocation8 + $0x23a0] sm:$0xff]
    %v2475 = vld [vmem:[#allocation8 + $0x23a8] sm:$0xff]
    %v2476 = vld [vmem:[#allocation8 + $0x23b0] sm:$0xff]
    %v2477 = vld [vmem:[#allocation8 + $0x23b8] sm:$0xff]
    %v2478 = vld [vmem:[#allocation8 + $0x23c0] sm:$0xff]
    %v2479 = vld [vmem:[#allocation8 + $0x23c8] sm:$0xff]
    %v2480 = vld [vmem:[#allocation8 + $0x23d0] sm:$0xff]
    %v2481 = vld [vmem:[#allocation8 + $0x23d8] sm:$0xff]
    %v2482 = vld [vmem:[#allocation8 + $0x23e0] sm:$0xff]
    %v2483 = vld [vmem:[#allocation8 + $0x23e8] sm:$0xff]
    %v2484 = vld [vmem:[#allocation8 + $0x23f0] sm:$0xff]
    %v2485 = vld [vmem:[#allocation8 + $0x23f8] sm:$0xff]
    %v2486 = vld [vmem:[#allocation8 + $0x2400] sm:$0xff]
    %v2487 = vld [vmem:[#allocation8 + $0x2408] sm:$0xff]
    %v2488 = vld [vmem:[#allocation8 + $0x2410] sm:$0xff]
    %v2489 = vld [vmem:[#allocation8 + $0x2418] sm:$0xff]
    %v2490 = vld [vmem:[#allocation8 + $0x2420] sm:$0xff]
    %v2491 = vld [vmem:[#allocation8 + $0x2428] sm:$0xff]
    %v2492 = vld [vmem:[#allocation8 + $0x2430] sm:$0xff]
    %v2493 = vld [vmem:[#allocation8 + $0x2438] sm:$0xff]
    %v2494 = vld [vmem:[#allocation8 + $0x2440] sm:$0xff]
    %v2495 = vld [vmem:[#allocation8 + $0x2448] sm:$0xff]
    %v2496 = vld [vmem:[#allocation8 + $0x2450] sm:$0xff]
    %v2497 = vld [vmem:[#allocation8 + $0x2458] sm:$0xff]
    %v2498 = vld [vmem:[#allocation8 + $0x2460] sm:$0xff]
    %v2499 = vld [vmem:[#allocation8 + $0x2468] sm:$0xff]
    %v2500 = vld [vmem:[#allocation8 + $0x2470] sm:$0xff]
    %v2501 = vld [vmem:[#allocation8 + $0x2478] sm:$0xff]
    %v2502 = vld [vmem:[#allocation8 + $0x2480] sm:$0xff]
    %v2503 = vld [vmem:[#allocation8 + $0x2488] sm:$0xff]
    %v2504 = vld [vmem:[#allocation8 + $0x2490] sm:$0xff]
    %v2505 = vld [vmem:[#allocation8 + $0x2498] sm:$0xff]
    %v2506 = vld [vmem:[#allocation8 + $0x24a0] sm:$0xff]
    %v2507 = vld [vmem:[#allocation8 + $0x24a8] sm:$0xff]
    %v2508 = vld [vmem:[#allocation8 + $0x24b0] sm:$0xff]
    %v2509 = vld [vmem:[#allocation8 + $0x24b8] sm:$0xff]
    %v2510 = vld [vmem:[#allocation8 + $0x24c0] sm:$0xff]
    %v2511 = vld [vmem:[#allocation8 + $0x24c8] sm:$0xff]
    %v2512 = vld [vmem:[#allocation8 + $0x24d0] sm:$0xff]
    %v2513 = vld [vmem:[#allocation8 + $0x24d8] sm:$0xff]
    %v2514 = vld [vmem:[#allocation8 + $0x24e0] sm:$0xff]
    %v2515 = vld [vmem:[#allocation8 + $0x24e8] sm:$0xff]
    %v2516 = vld [vmem:[#allocation8 + $0x24f0] sm:$0xff]
    %v2517 = vld [vmem:[#allocation8 + $0x24f8] sm:$0xff]
    %v2518 = vld [vmem:[#allocation8 + $0x2500] sm:$0xff]
    %v2519 = vld [vmem:[#allocation8 + $0x2508] sm:$0xff]
    %v2520 = vld [vmem:[#allocation8 + $0x2510] sm:$0xff]
    %v2521 = vld [vmem:[#allocation8 + $0x2518] sm:$0xff]
    %v2522 = vld [vmem:[#allocation8 + $0x2520] sm:$0xff]
    %v2523 = vld [vmem:[#allocation8 + $0x2528] sm:$0xff]
    %v2524 = vld [vmem:[#allocation8 + $0x2530] sm:$0xff]
    %v2525 = vld [vmem:[#allocation8 + $0x2538] sm:$0xff]
    %v2526 = vld [vmem:[#allocation8 + $0x2540] sm:$0xff]
    %v2527 = vld [vmem:[#allocation8 + $0x2548] sm:$0xff]
    %v2528 = vld [vmem:[#allocation8 + $0x2550] sm:$0xff]
    %v2529 = vld [vmem:[#allocation8 + $0x2558] sm:$0xff]
    %v2530 = vld [vmem:[#allocation8 + $0x2560] sm:$0xff]
    %v2531 = vld [vmem:[#allocation8 + $0x2568] sm:$0xff]
    %v2532 = vld [vmem:[#allocation8 + $0x2570] sm:$0xff]
    %v2533 = vld [vmem:[#allocation8 + $0x2578] sm:$0xff]
    %v2534 = vld [vmem:[#allocation8 + $0x2580] sm:$0xff]
    %v2535 = vld [vmem:[#allocation8 + $0x2588] sm:$0xff]
    %v2536 = vld [vmem:[#allocation8 + $0x2590] sm:$0xff]
    %v2537 = vld [vmem:[#allocation8 + $0x2598] sm:$0xff]
    %v2538 = vld [vmem:[#allocation8 + $0x25a0] sm:$0xff]
    %v2539 = vld [vmem:[#allocation8 + $0x25a8] sm:$0xff]
    %v2540 = vld [vmem:[#allocation8 + $0x25b0] sm:$0xff]
    %v2541 = vld [vmem:[#allocation8 + $0x25b8] sm:$0xff]
    %v2542 = vld [vmem:[#allocation8 + $0x25c0] sm:$0xff]
    %v2543 = vld [vmem:[#allocation8 + $0x25c8] sm:$0xff]
    %v2544 = vld [vmem:[#allocation8 + $0x25d0] sm:$0xff]
    %v2545 = vld [vmem:[#allocation8 + $0x25d8] sm:$0xff]
    %v2546 = vld [vmem:[#allocation8 + $0x25e0] sm:$0xff]
    %v2547 = vld [vmem:[#allocation8 + $0x25e8] sm:$0xff]
    %v2548 = vld [vmem:[#allocation8 + $0x25f0] sm:$0xff]
    %v2549 = vld [vmem:[#allocation8 + $0x25f8] sm:$0xff]
    %v2550 = vld [vmem:[#allocation8 + $0x2600] sm:$0xff]
    %v2551 = vld [vmem:[#allocation8 + $0x2608] sm:$0xff]
    %v2552 = vld [vmem:[#allocation8 + $0x2610] sm:$0xff]
    %v2553 = vld [vmem:[#allocation8 + $0x2618] sm:$0xff]
    %v2554 = vld [vmem:[#allocation8 + $0x2620] sm:$0xff]
    %v2555 = vld [vmem:[#allocation8 + $0x2628] sm:$0xff]
    %v2556 = vld [vmem:[#allocation8 + $0x2630] sm:$0xff]
    %v2557 = vld [vmem:[#allocation8 + $0x2638] sm:$0xff]
    %v2558 = vld [vmem:[#allocation8 + $0x2640] sm:$0xff]
    %v2559 = vld [vmem:[#allocation8 + $0x2648] sm:$0xff]
    %v2560 = vld [vmem:[#allocation8 + $0x2650] sm:$0xff]
    %v2561 = vld [vmem:[#allocation8 + $0x2658] sm:$0xff]
    %v2562 = vld [vmem:[#allocation8 + $0x2660] sm:$0xff]
    %v2563 = vld [vmem:[#allocation8 + $0x2668] sm:$0xff]
    %v2564 = vld [vmem:[#allocation8 + $0x2670] sm:$0xff]
    %v2565 = vld [vmem:[#allocation8 + $0x2678] sm:$0xff]
    %v2566 = vld [vmem:[#allocation8 + $0x2680] sm:$0xff]
    %v2567 = vld [vmem:[#allocation8 + $0x2688] sm:$0xff]
    %v2568 = vld [vmem:[#allocation8 + $0x2690] sm:$0xff]
    %v2569 = vld [vmem:[#allocation8 + $0x2698] sm:$0xff]
    %v2570 = vld [vmem:[#allocation8 + $0x26a0] sm:$0xff]
    %v2571 = vld [vmem:[#allocation8 + $0x26a8] sm:$0xff]
    %v2572 = vld [vmem:[#allocation8 + $0x26b0] sm:$0xff]
    %v2573 = vld [vmem:[#allocation8 + $0x26b8] sm:$0xff]
    %v2574 = vld [vmem:[#allocation8 + $0x26c0] sm:$0xff]
    %v2575 = vld [vmem:[#allocation8 + $0x26c8] sm:$0xff]
    %v2576 = vld [vmem:[#allocation8 + $0x26d0] sm:$0xff]
    %v2577 = vld [vmem:[#allocation8 + $0x26d8] sm:$0xff]
    %v2578 = vld [vmem:[#allocation8 + $0x26e0] sm:$0xff]
    %v2579 = vld [vmem:[#allocation8 + $0x26e8] sm:$0xff]
    %v2580 = vld [vmem:[#allocation8 + $0x26f0] sm:$0xff]
    %v2581 = vld [vmem:[#allocation8 + $0x26f8] sm:$0xff]
    %v2582 = vld [vmem:[#allocation8 + $0x2700] sm:$0xff]
    %v2583 = vld [vmem:[#allocation8 + $0x2708] sm:$0xff]
    %v2584 = vld [vmem:[#allocation8 + $0x2710] sm:$0xff]
    %v2585 = vld [vmem:[#allocation8 + $0x2718] sm:$0xff]
    %v2586 = vld [vmem:[#allocation8 + $0x2720] sm:$0xff]
    %v2587 = vld [vmem:[#allocation8 + $0x2728] sm:$0xff]
    %v2588 = vld [vmem:[#allocation8 + $0x2730] sm:$0xff]
    %v2589 = vld [vmem:[#allocation8 + $0x2738] sm:$0xff]
    %v2590 = vld [vmem:[#allocation8 + $0x2740] sm:$0xff]
    %v2591 = vld [vmem:[#allocation8 + $0x2748] sm:$0xff]
    %v2592 = vld [vmem:[#allocation8 + $0x2750] sm:$0xff]
    %v2593 = vld [vmem:[#allocation8 + $0x2758] sm:$0xff]
    %v2594 = vld [vmem:[#allocation8 + $0x2760] sm:$0xff]
    %v2595 = vld [vmem:[#allocation8 + $0x2768] sm:$0xff]
    %v2596 = vld [vmem:[#allocation8 + $0x2770] sm:$0xff]
    %v2597 = vld [vmem:[#allocation8 + $0x2778] sm:$0xff]
    %v2598 = vld [vmem:[#allocation8 + $0x2780] sm:$0xff]
    %v2599 = vld [vmem:[#allocation8 + $0x2788] sm:$0xff]
    %v2600 = vld [vmem:[#allocation8 + $0x2790] sm:$0xff]
    %v2601 = vld [vmem:[#allocation8 + $0x2798] sm:$0xff]
    %v2602 = vld [vmem:[#allocation8 + $0x27a0] sm:$0xff]
    %v2603 = vld [vmem:[#allocation8 + $0x27a8] sm:$0xff]
    %v2604 = vld [vmem:[#allocation8 + $0x27b0] sm:$0xff]
    %v2605 = vld [vmem:[#allocation8 + $0x27b8] sm:$0xff]
    %v2606 = vld [vmem:[#allocation8 + $0x27c0] sm:$0xff]
    %v2607 = vld [vmem:[#allocation8 + $0x27c8] sm:$0xff]
    %v2608 = vld [vmem:[#allocation8 + $0x27d0] sm:$0xff]
    %v2609 = vld [vmem:[#allocation8 + $0x27d8] sm:$0xff]
    %v2610 = vld [vmem:[#allocation8 + $0x27e0] sm:$0xff]
    %v2611 = vld [vmem:[#allocation8 + $0x27e8] sm:$0xff]
    %v2612 = vld [vmem:[#allocation8 + $0x27f0] sm:$0xff]
    %v2613 = vld [vmem:[#allocation8 + $0x27f8] sm:$0xff]
    %v2614 = vld [vmem:[#allocation8 + $0x2800] sm:$0xff]
    %v2615 = vld [vmem:[#allocation8 + $0x2808] sm:$0xff]
    %v2616 = vld [vmem:[#allocation8 + $0x2810] sm:$0xff]
    %v2617 = vld [vmem:[#allocation8 + $0x2818] sm:$0xff]
    %v2618 = vld [vmem:[#allocation8 + $0x2820] sm:$0xff]
    %v2619 = vld [vmem:[#allocation8 + $0x2828] sm:$0xff]
    %v2620 = vld [vmem:[#allocation8 + $0x2830] sm:$0xff]
    %v2621 = vld [vmem:[#allocation8 + $0x2838] sm:$0xff]
    %v2622 = vld [vmem:[#allocation8 + $0x2840] sm:$0xff]
    %v2623 = vld [vmem:[#allocation8 + $0x2848] sm:$0xff]
    %v2624 = vld [vmem:[#allocation8 + $0x2850] sm:$0xff]
    %v2625 = vld [vmem:[#allocation8 + $0x2858] sm:$0xff]
    %v2626 = vld [vmem:[#allocation8 + $0x2860] sm:$0xff]
    %v2627 = vld [vmem:[#allocation8 + $0x2868] sm:$0xff]
    %v2628 = vld [vmem:[#allocation8 + $0x2870] sm:$0xff]
    %v2629 = vld [vmem:[#allocation8 + $0x2878] sm:$0xff]
    %v2630 = vld [vmem:[#allocation8 + $0x2880] sm:$0xff]
    %v2631 = vld [vmem:[#allocation8 + $0x2888] sm:$0xff]
    %v2632 = vld [vmem:[#allocation8 + $0x2890] sm:$0xff]
    %v2633 = vld [vmem:[#allocation8 + $0x2898] sm:$0xff]
    %v2634 = vld [vmem:[#allocation8 + $0x28a0] sm:$0xff]
    %v2635 = vld [vmem:[#allocation8 + $0x28a8] sm:$0xff]
    %v2636 = vld [vmem:[#allocation8 + $0x28b0] sm:$0xff]
    %v2637 = vld [vmem:[#allocation8 + $0x28b8] sm:$0xff]
    %v2638 = vld [vmem:[#allocation8 + $0x28c0] sm:$0xff]
    %v2639 = vld [vmem:[#allocation8 + $0x28c8] sm:$0xff]
    %v2640 = vld [vmem:[#allocation8 + $0x28d0] sm:$0xff]
    %v2641 = vld [vmem:[#allocation8 + $0x28d8] sm:$0xff]
    %v2642 = vld [vmem:[#allocation8 + $0x28e0] sm:$0xff]
    %v2643 = vld [vmem:[#allocation8 + $0x28e8] sm:$0xff]
    %v2644 = vld [vmem:[#allocation8 + $0x28f0] sm:$0xff]
    %v2645 = vld [vmem:[#allocation8 + $0x28f8] sm:$0xff]
    %v2646 = vld [vmem:[#allocation8 + $0x2900] sm:$0xff]
    %v2647 = vld [vmem:[#allocation8 + $0x2908] sm:$0xff]
    %v2648 = vld [vmem:[#allocation8 + $0x2910] sm:$0xff]
    %v2649 = vld [vmem:[#allocation8 + $0x2918] sm:$0xff]
    %v2650 = vld [vmem:[#allocation8 + $0x2920] sm:$0xff]
    %v2651 = vld [vmem:[#allocation8 + $0x2928] sm:$0xff]
    %v2652 = vld [vmem:[#allocation8 + $0x2930] sm:$0xff]
    %v2653 = vld [vmem:[#allocation8 + $0x2938] sm:$0xff]
    %v2654 = vld [vmem:[#allocation8 + $0x2940] sm:$0xff]
    %v2655 = vld [vmem:[#allocation8 + $0x2948] sm:$0xff]
    %v2656 = vld [vmem:[#allocation8 + $0x2950] sm:$0xff]
    %v2657 = vld [vmem:[#allocation8 + $0x2958] sm:$0xff]
    %v2658 = vld [vmem:[#allocation8 + $0x2960] sm:$0xff]
    %v2659 = vld [vmem:[#allocation8 + $0x2968] sm:$0xff]
    %v2660 = vld [vmem:[#allocation8 + $0x2970] sm:$0xff]
    %v2661 = vld [vmem:[#allocation8 + $0x2978] sm:$0xff]
    %v2662 = vld [vmem:[#allocation8 + $0x2980] sm:$0xff]
    %v2663 = vld [vmem:[#allocation8 + $0x2988] sm:$0xff]
    %v2664 = vld [vmem:[#allocation8 + $0x2990] sm:$0xff]
    %v2665 = vld [vmem:[#allocation8 + $0x2998] sm:$0xff]
    %v2666 = vld [vmem:[#allocation8 + $0x29a0] sm:$0xff]
    %v2667 = vld [vmem:[#allocation8 + $0x29a8] sm:$0xff]
    %v2668 = vld [vmem:[#allocation8 + $0x29b0] sm:$0xff]
    %v2669 = vld [vmem:[#allocation8 + $0x29b8] sm:$0xff]
    %v2670 = vld [vmem:[#allocation8 + $0x29c0] sm:$0xff]
    %v2671 = vld [vmem:[#allocation8 + $0x29c8] sm:$0xff]
    %v2672 = vld [vmem:[#allocation8 + $0x29d0] sm:$0xff]
    %v2673 = vld [vmem:[#allocation8 + $0x29d8] sm:$0xff]
    %v2674 = vld [vmem:[#allocation8 + $0x29e0] sm:$0xff]
    %v2675 = vld [vmem:[#allocation8 + $0x29e8] sm:$0xff]
    %v2676 = vld [vmem:[#allocation8 + $0x29f0] sm:$0xff]
    %v2677 = vld [vmem:[#allocation8 + $0x29f8] sm:$0xff]
    %v2678 = vld [vmem:[#allocation8 + $0x2a00] sm:$0xff]
    %v2679 = vld [vmem:[#allocation8 + $0x2a08] sm:$0xff]
    %v2680 = vld [vmem:[#allocation8 + $0x2a10] sm:$0xff]
    %v2681 = vld [vmem:[#allocation8 + $0x2a18] sm:$0xff]
    %v2682 = vld [vmem:[#allocation8 + $0x2a20] sm:$0xff]
    %v2683 = vld [vmem:[#allocation8 + $0x2a28] sm:$0xff]
    %v2684 = vld [vmem:[#allocation8 + $0x2a30] sm:$0xff]
    %v2685 = vld [vmem:[#allocation8 + $0x2a38] sm:$0xff]
    %v2686 = vld [vmem:[#allocation8 + $0x2a40] sm:$0xff]
    %v2687 = vld [vmem:[#allocation8 + $0x2a48] sm:$0xff]
    %v2688 = vld [vmem:[#allocation8 + $0x2a50] sm:$0xff]
    %v2689 = vld [vmem:[#allocation8 + $0x2a58] sm:$0xff]
    %v2690 = vld [vmem:[#allocation8 + $0x2a60] sm:$0xff]
    %v2691 = vld [vmem:[#allocation8 + $0x2a68] sm:$0xff]
    %v2692 = vld [vmem:[#allocation8 + $0x2a70] sm:$0xff]
    %v2693 = vld [vmem:[#allocation8 + $0x2a78] sm:$0xff]
    %v2694 = vld [vmem:[#allocation8 + $0x2a80] sm:$0xff]
    %v2695 = vld [vmem:[#allocation8 + $0x2a88] sm:$0xff]
    %v2696 = vld [vmem:[#allocation8 + $0x2a90] sm:$0xff]
    %v2697 = vld [vmem:[#allocation8 + $0x2a98] sm:$0xff]
    %v2698 = vld [vmem:[#allocation8 + $0x2aa0] sm:$0xff]
    %v2699 = vld [vmem:[#allocation8 + $0x2aa8] sm:$0xff]
    %v2700 = vld [vmem:[#allocation8 + $0x2ab0] sm:$0xff]
    %v2701 = vld [vmem:[#allocation8 + $0x2ab8] sm:$0xff]
    %v2702 = vld [vmem:[#allocation8 + $0x2ac0] sm:$0xff]
    %v2703 = vld [vmem:[#allocation8 + $0x2ac8] sm:$0xff]
    %v2704 = vld [vmem:[#allocation8 + $0x2ad0] sm:$0xff]
    %v2705 = vld [vmem:[#allocation8 + $0x2ad8] sm:$0xff]
    %v2706 = vld [vmem:[#allocation8 + $0x2ae0] sm:$0xff]
    %v2707 = vld [vmem:[#allocation8 + $0x2ae8] sm:$0xff]
    %v2708 = vld [vmem:[#allocation8 + $0x2af0] sm:$0xff]
    %v2709 = vld [vmem:[#allocation8 + $0x2af8] sm:$0xff]
    %v2710 = vld [vmem:[#allocation8 + $0x2b00] sm:$0xff]
    %v2711 = vld [vmem:[#allocation8 + $0x2b08] sm:$0xff]
    %v2712 = vld [vmem:[#allocation8 + $0x2b10] sm:$0xff]
    %v2713 = vld [vmem:[#allocation8 + $0x2b18] sm:$0xff]
    %v2714 = vld [vmem:[#allocation8 + $0x2b20] sm:$0xff]
    %v2715 = vld [vmem:[#allocation8 + $0x2b28] sm:$0xff]
    %v2716 = vld [vmem:[#allocation8 + $0x2b30] sm:$0xff]
    %v2717 = vld [vmem:[#allocation8 + $0x2b38] sm:$0xff]
    %v2718 = vld [vmem:[#allocation8 + $0x2b40] sm:$0xff]
    %v2719 = vld [vmem:[#allocation8 + $0x2b48] sm:$0xff]
    %v2720 = vld [vmem:[#allocation8 + $0x2b50] sm:$0xff]
    %v2721 = vld [vmem:[#allocation8 + $0x2b58] sm:$0xff]
    %v2722 = vld [vmem:[#allocation8 + $0x2b60] sm:$0xff]
    %v2723 = vld [vmem:[#allocation8 + $0x2b68] sm:$0xff]
    %v2724 = vld [vmem:[#allocation8 + $0x2b70] sm:$0xff]
    %v2725 = vld [vmem:[#allocation8 + $0x2b78] sm:$0xff]
    %v2726 = vld [vmem:[#allocation8 + $0x2b80] sm:$0xff]
    %v2727 = vld [vmem:[#allocation8 + $0x2b88] sm:$0xff]
    %v2728 = vld [vmem:[#allocation8 + $0x2b90] sm:$0xff]
    %v2729 = vld [vmem:[#allocation8 + $0x2b98] sm:$0xff]
    %v2730 = vld [vmem:[#allocation8 + $0x2ba0] sm:$0xff]
    %v2731 = vld [vmem:[#allocation8 + $0x2ba8] sm:$0xff]
    %v2732 = vld [vmem:[#allocation8 + $0x2bb0] sm:$0xff]
    %v2733 = vld [vmem:[#allocation8 + $0x2bb8] sm:$0xff]
    %v2734 = vld [vmem:[#allocation8 + $0x2bc0] sm:$0xff]
    %v2735 = vld [vmem:[#allocation8 + $0x2bc8] sm:$0xff]
    %v2736 = vld [vmem:[#allocation8 + $0x2bd0] sm:$0xff]
    %v2737 = vld [vmem:[#allocation8 + $0x2bd8] sm:$0xff]
    %v2738 = vld [vmem:[#allocation8 + $0x2be0] sm:$0xff]
    %v2739 = vld [vmem:[#allocation8 + $0x2be8] sm:$0xff]
    %v2740 = vld [vmem:[#allocation8 + $0x2bf0] sm:$0xff]
    %v2741 = vld [vmem:[#allocation8 + $0x2bf8] sm:$0xff]
    %v2742 = vld [vmem:[#allocation8 + $0x2c00] sm:$0xff]
    %v2743 = vld [vmem:[#allocation8 + $0x2c08] sm:$0xff]
    %v2744 = vld [vmem:[#allocation8 + $0x2c10] sm:$0xff]
    %v2745 = vld [vmem:[#allocation8 + $0x2c18] sm:$0xff]
    %v2746 = vld [vmem:[#allocation8 + $0x2c20] sm:$0xff]
    %v2747 = vld [vmem:[#allocation8 + $0x2c28] sm:$0xff]
    %v2748 = vld [vmem:[#allocation8 + $0x2c30] sm:$0xff]
    %v2749 = vld [vmem:[#allocation8 + $0x2c38] sm:$0xff]
    %v2750 = vld [vmem:[#allocation8 + $0x2c40] sm:$0xff]
    %v2751 = vld [vmem:[#allocation8 + $0x2c48] sm:$0xff]
    %v2752 = vld [vmem:[#allocation8 + $0x2c50] sm:$0xff]
    %v2753 = vld [vmem:[#allocation8 + $0x2c58] sm:$0xff]
    %v2754 = vld [vmem:[#allocation8 + $0x2c60] sm:$0xff]
    %v2755 = vld [vmem:[#allocation8 + $0x2c68] sm:$0xff]
    %v2756 = vld [vmem:[#allocation8 + $0x2c70] sm:$0xff]
    %v2757 = vld [vmem:[#allocation8 + $0x2c78] sm:$0xff]
    %v2758 = vld [vmem:[#allocation8 + $0x2c80] sm:$0xff]
    %v2759 = vld [vmem:[#allocation8 + $0x2c88] sm:$0xff]
    %v2760 = vld [vmem:[#allocation8 + $0x2c90] sm:$0xff]
    %v2761 = vld [vmem:[#allocation8 + $0x2c98] sm:$0xff]
    %v2762 = vld [vmem:[#allocation8 + $0x2ca0] sm:$0xff]
    %v2763 = vld [vmem:[#allocation8 + $0x2ca8] sm:$0xff]
    %v2764 = vld [vmem:[#allocation8 + $0x2cb0] sm:$0xff]
    %v2765 = vld [vmem:[#allocation8 + $0x2cb8] sm:$0xff]
    %v2766 = vld [vmem:[#allocation8 + $0x2cc0] sm:$0xff]
    %v2767 = vld [vmem:[#allocation8 + $0x2cc8] sm:$0xff]
    %v2768 = vld [vmem:[#allocation8 + $0x2cd0] sm:$0xff]
    %v2769 = vld [vmem:[#allocation8 + $0x2cd8] sm:$0xff]
    %v2770 = vld [vmem:[#allocation8 + $0x2ce0] sm:$0xff]
    %v2771 = vld [vmem:[#allocation8 + $0x2ce8] sm:$0xff]
    %v2772 = vld [vmem:[#allocation8 + $0x2cf0] sm:$0xff]
    %v2773 = vld [vmem:[#allocation8 + $0x2cf8] sm:$0xff]
    %v2774 = vld [vmem:[#allocation8 + $0x2d00] sm:$0xff]
    %v2775 = vld [vmem:[#allocation8 + $0x2d08] sm:$0xff]
    %v2776 = vld [vmem:[#allocation8 + $0x2d10] sm:$0xff]
    %v2777 = vld [vmem:[#allocation8 + $0x2d18] sm:$0xff]
    %v2778 = vld [vmem:[#allocation8 + $0x2d20] sm:$0xff]
    %v2779 = vld [vmem:[#allocation8 + $0x2d28] sm:$0xff]
    %v2780 = vld [vmem:[#allocation8 + $0x2d30] sm:$0xff]
    %v2781 = vld [vmem:[#allocation8 + $0x2d38] sm:$0xff]
    %v2782 = vld [vmem:[#allocation8 + $0x2d40] sm:$0xff]
    %v2783 = vld [vmem:[#allocation8 + $0x2d48] sm:$0xff]
    %v2784 = vld [vmem:[#allocation8 + $0x2d50] sm:$0xff]
    %v2785 = vld [vmem:[#allocation8 + $0x2d58] sm:$0xff]
    %v2786 = vld [vmem:[#allocation8 + $0x2d60] sm:$0xff]
    %v2787 = vld [vmem:[#allocation8 + $0x2d68] sm:$0xff]
    %v2788 = vld [vmem:[#allocation8 + $0x2d70] sm:$0xff]
    %v2789 = vld [vmem:[#allocation8 + $0x2d78] sm:$0xff]
    %v2790 = vld [vmem:[#allocation8 + $0x2d80] sm:$0xff]
    %v2791 = vld [vmem:[#allocation8 + $0x2d88] sm:$0xff]
    %v2792 = vld [vmem:[#allocation8 + $0x2d90] sm:$0xff]
    %v2793 = vld [vmem:[#allocation8 + $0x2d98] sm:$0xff]
    %v2794 = vld [vmem:[#allocation8 + $0x2da0] sm:$0xff]
    %v2795 = vld [vmem:[#allocation8 + $0x2da8] sm:$0xff]
    %v2796 = vld [vmem:[#allocation8 + $0x2db0] sm:$0xff]
    %v2797 = vld [vmem:[#allocation8 + $0x2db8] sm:$0xff]
    %v2798 = vld [vmem:[#allocation8 + $0x2dc0] sm:$0xff]
    %v2799 = vld [vmem:[#allocation8 + $0x2dc8] sm:$0xff]
    %v2800 = vld [vmem:[#allocation8 + $0x2dd0] sm:$0xff]
    %v2801 = vld [vmem:[#allocation8 + $0x2dd8] sm:$0xff]
    %v2802 = vld [vmem:[#allocation8 + $0x2de0] sm:$0xff]
    %v2803 = vld [vmem:[#allocation8 + $0x2de8] sm:$0xff]
    %v2804 = vld [vmem:[#allocation8 + $0x2df0] sm:$0xff]
    %v2805 = vld [vmem:[#allocation8 + $0x2df8] sm:$0xff]
    %v2806 = vld [vmem:[#allocation8 + $0x2e00] sm:$0xff]
    %v2807 = vld [vmem:[#allocation8 + $0x2e08] sm:$0xff]
    %v2808 = vld [vmem:[#allocation8 + $0x2e10] sm:$0xff]
    %v2809 = vld [vmem:[#allocation8 + $0x2e18] sm:$0xff]
    %v2810 = vld [vmem:[#allocation8 + $0x2e20] sm:$0xff]
    %v2811 = vld [vmem:[#allocation8 + $0x2e28] sm:$0xff]
    %v2812 = vld [vmem:[#allocation8 + $0x2e30] sm:$0xff]
    %v2813 = vld [vmem:[#allocation8 + $0x2e38] sm:$0xff]
    %v2814 = vld [vmem:[#allocation8 + $0x2e40] sm:$0xff]
    %v2815 = vld [vmem:[#allocation8 + $0x2e48] sm:$0xff]
    %v2816 = vld [vmem:[#allocation8 + $0x2e50] sm:$0xff]
    %v2817 = vld [vmem:[#allocation8 + $0x2e58] sm:$0xff]
    %v2818 = vld [vmem:[#allocation8 + $0x2e60] sm:$0xff]
    %v2819 = vld [vmem:[#allocation8 + $0x2e68] sm:$0xff]
    %v2820 = vld [vmem:[#allocation8 + $0x2e70] sm:$0xff]
    %v2821 = vld [vmem:[#allocation8 + $0x2e78] sm:$0xff]
    %v2822 = vld [vmem:[#allocation8 + $0x2e80] sm:$0xff]
    %v2823 = vld [vmem:[#allocation8 + $0x2e88] sm:$0xff]
    %v2824 = vld [vmem:[#allocation8 + $0x2e90] sm:$0xff]
    %v2825 = vld [vmem:[#allocation8 + $0x2e98] sm:$0xff]
    %v2826 = vld [vmem:[#allocation8 + $0x2ea0] sm:$0xff]
    %v2827 = vld [vmem:[#allocation8 + $0x2ea8] sm:$0xff]
    %v2828 = vld [vmem:[#allocation8 + $0x2eb0] sm:$0xff]
    %v2829 = vld [vmem:[#allocation8 + $0x2eb8] sm:$0xff]
    %v2830 = vld [vmem:[#allocation8 + $0x2ec0] sm:$0xff]
    %v2831 = vld [vmem:[#allocation8 + $0x2ec8] sm:$0xff]
    %v2832 = vld [vmem:[#allocation8 + $0x2ed0] sm:$0xff]
    %v2833 = vld [vmem:[#allocation8 + $0x2ed8] sm:$0xff]
    %v2834 = vld [vmem:[#allocation8 + $0x2ee0] sm:$0xff]
    %v2835 = vld [vmem:[#allocation8 + $0x2ee8] sm:$0xff]
    %v2836 = vld [vmem:[#allocation8 + $0x2ef0] sm:$0xff]
    %v2837 = vld [vmem:[#allocation8 + $0x2ef8] sm:$0xff]
    %v2838 = vld [vmem:[#allocation8 + $0x2f00] sm:$0xff]
    %v2839 = vld [vmem:[#allocation8 + $0x2f08] sm:$0xff]
    %v2840 = vld [vmem:[#allocation8 + $0x2f10] sm:$0xff]
    %v2841 = vld [vmem:[#allocation8 + $0x2f18] sm:$0xff]
    %v2842 = vld [vmem:[#allocation8 + $0x2f20] sm:$0xff]
    %v2843 = vld [vmem:[#allocation8 + $0x2f28] sm:$0xff]
    %v2844 = vld [vmem:[#allocation8 + $0x2f30] sm:$0xff]
    %v2845 = vld [vmem:[#allocation8 + $0x2f38] sm:$0xff]
    %v2846 = vld [vmem:[#allocation8 + $0x2f40] sm:$0xff]
    %v2847 = vld [vmem:[#allocation8 + $0x2f48] sm:$0xff]
    %v2848 = vld [vmem:[#allocation8 + $0x2f50] sm:$0xff]
    %v2849 = vld [vmem:[#allocation8 + $0x2f58] sm:$0xff]
    %v2850 = vld [vmem:[#allocation8 + $0x2f60] sm:$0xff]
    %v2851 = vld [vmem:[#allocation8 + $0x2f68] sm:$0xff]
    %v2852 = vld [vmem:[#allocation8 + $0x2f70] sm:$0xff]
    %v2853 = vld [vmem:[#allocation8 + $0x2f78] sm:$0xff]
    %v2854 = vld [vmem:[#allocation8 + $0x2f80] sm:$0xff]
    %v2855 = vld [vmem:[#allocation8 + $0x2f88] sm:$0xff]
    %v2856 = vld [vmem:[#allocation8 + $0x2f90] sm:$0xff]
    %v2857 = vld [vmem:[#allocation8 + $0x2f98] sm:$0xff]
    %v2858 = vld [vmem:[#allocation8 + $0x2fa0] sm:$0xff]
    %v2859 = vld [vmem:[#allocation8 + $0x2fa8] sm:$0xff]
    %v2860 = vld [vmem:[#allocation8 + $0x2fb0] sm:$0xff]
    %v2861 = vld [vmem:[#allocation8 + $0x2fb8] sm:$0xff]
    %v2862 = vld [vmem:[#allocation8 + $0x2fc0] sm:$0xff]
    %v2863 = vld [vmem:[#allocation8 + $0x2fc8] sm:$0xff]
    %v2864 = vld [vmem:[#allocation8 + $0x2fd0] sm:$0xff]
    %v2865 = vld [vmem:[#allocation8 + $0x2fd8] sm:$0xff]
    %v2866 = vld [vmem:[#allocation8 + $0x2fe0] sm:$0xff]
    %v2867 = vld [vmem:[#allocation8 + $0x2fe8] sm:$0xff]
    %v2868 = vld [vmem:[#allocation8 + $0x2ff0] sm:$0xff]
    %v2869 = vld [vmem:[#allocation8 + $0x2ff8] sm:$0xff]
    %v2870 = vld [vmem:[#allocation8 + $0x3000] sm:$0xff]
    %v2871 = vld [vmem:[#allocation8 + $0x3008] sm:$0xff]
    %v2872 = vld [vmem:[#allocation8 + $0x3010] sm:$0xff]
    %v2873 = vld [vmem:[#allocation8 + $0x3018] sm:$0xff]
    %v2874 = vld [vmem:[#allocation8 + $0x3020] sm:$0xff]
    %v2875 = vld [vmem:[#allocation8 + $0x3028] sm:$0xff]
    %v2876 = vld [vmem:[#allocation8 + $0x3030] sm:$0xff]
    %v2877 = vld [vmem:[#allocation8 + $0x3038] sm:$0xff]
    %v2878 = vld [vmem:[#allocation8 + $0x3040] sm:$0xff]
    %v2879 = vld [vmem:[#allocation8 + $0x3048] sm:$0xff]
    %v2880 = vld [vmem:[#allocation8 + $0x3050] sm:$0xff]
    %v2881 = vld [vmem:[#allocation8 + $0x3058] sm:$0xff]
    %v2882 = vld [vmem:[#allocation8 + $0x3060] sm:$0xff]
    %v2883 = vld [vmem:[#allocation8 + $0x3068] sm:$0xff]
    %v2884 = vld [vmem:[#allocation8 + $0x3070] sm:$0xff]
    %v2885 = vld [vmem:[#allocation8 + $0x3078] sm:$0xff]
    %v2886 = vld [vmem:[#allocation8 + $0x3080] sm:$0xff]
    %v2887 = vld [vmem:[#allocation8 + $0x3088] sm:$0xff]
    %v2888 = vld [vmem:[#allocation8 + $0x3090] sm:$0xff]
    %v2889 = vld [vmem:[#allocation8 + $0x3098] sm:$0xff]
    %v2890 = vld [vmem:[#allocation8 + $0x30a0] sm:$0xff]
    %v2891 = vld [vmem:[#allocation8 + $0x30a8] sm:$0xff]
    %v2892 = vld [vmem:[#allocation8 + $0x30b0] sm:$0xff]
    %v2893 = vld [vmem:[#allocation8 + $0x30b8] sm:$0xff]
    %v2894 = vld [vmem:[#allocation8 + $0x30c0] sm:$0xff]
    %v2895 = vld [vmem:[#allocation8 + $0x30c8] sm:$0xff]
    %v2896 = vld [vmem:[#allocation8 + $0x30d0] sm:$0xff]
    %v2897 = vld [vmem:[#allocation8 + $0x30d8] sm:$0xff]
    %v2898 = vld [vmem:[#allocation8 + $0x30e0] sm:$0xff]
    %v2899 = vld [vmem:[#allocation8 + $0x30e8] sm:$0xff]
    %v2900 = vld [vmem:[#allocation8 + $0x30f0] sm:$0xff]
    %v2901 = vld [vmem:[#allocation8 + $0x30f8] sm:$0xff]
    %v2902 = vld [vmem:[#allocation8 + $0x3100] sm:$0xff]
    %v2903 = vld [vmem:[#allocation8 + $0x3108] sm:$0xff]
    %v2904 = vld [vmem:[#allocation8 + $0x3110] sm:$0xff]
    %v2905 = vld [vmem:[#allocation8 + $0x3118] sm:$0xff]
    %v2906 = vld [vmem:[#allocation8 + $0x3120] sm:$0xff]
    %v2907 = vld [vmem:[#allocation8 + $0x3128] sm:$0xff]
    %v2908 = vld [vmem:[#allocation8 + $0x3130] sm:$0xff]
    %v2909 = vld [vmem:[#allocation8 + $0x3138] sm:$0xff]
    %v2910 = vld [vmem:[#allocation8 + $0x3140] sm:$0xff]
    %v2911 = vld [vmem:[#allocation8 + $0x3148] sm:$0xff]
    %v2912 = vld [vmem:[#allocation8 + $0x3150] sm:$0xff]
    %v2913 = vld [vmem:[#allocation8 + $0x3158] sm:$0xff]
    %v2914 = vld [vmem:[#allocation8 + $0x3160] sm:$0xff]
    %v2915 = vld [vmem:[#allocation8 + $0x3168] sm:$0xff]
    %v2916 = vld [vmem:[#allocation8 + $0x3170] sm:$0xff]
    %v2917 = vld [vmem:[#allocation8 + $0x3178] sm:$0xff]
    %v2918 = vld [vmem:[#allocation8 + $0x3180] sm:$0xff]
    %v2919 = vld [vmem:[#allocation8 + $0x3188] sm:$0xff]
    %v2920 = vld [vmem:[#allocation8 + $0x3190] sm:$0xff]
    %v2921 = vld [vmem:[#allocation8 + $0x3198] sm:$0xff]
    %v2922 = vld [vmem:[#allocation8 + $0x31a0] sm:$0xff]
    %v2923 = vld [vmem:[#allocation8 + $0x31a8] sm:$0xff]
    %v2924 = vld [vmem:[#allocation8 + $0x31b0] sm:$0xff]
    %v2925 = vld [vmem:[#allocation8 + $0x31b8] sm:$0xff]
    %v2926 = vld [vmem:[#allocation8 + $0x31c0] sm:$0xff]
    %v2927 = vld [vmem:[#allocation8 + $0x31c8] sm:$0xff]
    %v2928 = vld [vmem:[#allocation8 + $0x31d0] sm:$0xff]
    %v2929 = vld [vmem:[#allocation8 + $0x31d8] sm:$0xff]
    %v2930 = vld [vmem:[#allocation8 + $0x31e0] sm:$0xff]
    %v2931 = vld [vmem:[#allocation8 + $0x31e8] sm:$0xff]
    %v2932 = vld [vmem:[#allocation8 + $0x31f0] sm:$0xff]
    %v2933 = vld [vmem:[#allocation8 + $0x31f8] sm:$0xff]
    %v2934 = vld [vmem:[#allocation8 + $0x3200] sm:$0xff]
    %v2935 = vld [vmem:[#allocation8 + $0x3208] sm:$0xff]
    %v2936 = vld [vmem:[#allocation8 + $0x3210] sm:$0xff]
    %v2937 = vld [vmem:[#allocation8 + $0x3218] sm:$0xff]
    %v2938 = vld [vmem:[#allocation8 + $0x3220] sm:$0xff]
    %v2939 = vld [vmem:[#allocation8 + $0x3228] sm:$0xff]
    %v2940 = vld [vmem:[#allocation8 + $0x3230] sm:$0xff]
    %v2941 = vld [vmem:[#allocation8 + $0x3238] sm:$0xff]
    %v2942 = vld [vmem:[#allocation8 + $0x3240] sm:$0xff]
    %v2943 = vld [vmem:[#allocation8 + $0x3248] sm:$0xff]
    %v2944 = vld [vmem:[#allocation8 + $0x3250] sm:$0xff]
    %v2945 = vld [vmem:[#allocation8 + $0x3258] sm:$0xff]
    %v2946 = vld [vmem:[#allocation8 + $0x3260] sm:$0xff]
    %v2947 = vld [vmem:[#allocation8 + $0x3268] sm:$0xff]
    %v2948 = vld [vmem:[#allocation8 + $0x3270] sm:$0xff]
    %v2949 = vld [vmem:[#allocation8 + $0x3278] sm:$0xff]
    %v2950 = vld [vmem:[#allocation8 + $0x3280] sm:$0xff]
    %v2951 = vld [vmem:[#allocation8 + $0x3288] sm:$0xff]
    %v2952 = vld [vmem:[#allocation8 + $0x3290] sm:$0xff]
    %v2953 = vld [vmem:[#allocation8 + $0x3298] sm:$0xff]
    %v2954 = vld [vmem:[#allocation8 + $0x32a0] sm:$0xff]
    %v2955 = vld [vmem:[#allocation8 + $0x32a8] sm:$0xff]
    %v2956 = vld [vmem:[#allocation8 + $0x32b0] sm:$0xff]
    %v2957 = vld [vmem:[#allocation8 + $0x32b8] sm:$0xff]
    %v2958 = vld [vmem:[#allocation8 + $0x32c0] sm:$0xff]
    %v2959 = vld [vmem:[#allocation8 + $0x32c8] sm:$0xff]
    %v2960 = vld [vmem:[#allocation8 + $0x32d0] sm:$0xff]
    %v2961 = vld [vmem:[#allocation8 + $0x32d8] sm:$0xff]
    %v2962 = vld [vmem:[#allocation8 + $0x32e0] sm:$0xff]
    %v2963 = vld [vmem:[#allocation8 + $0x32e8] sm:$0xff]
    %v2964 = vld [vmem:[#allocation8 + $0x32f0] sm:$0xff]
    %v2965 = vld [vmem:[#allocation8 + $0x32f8] sm:$0xff]
    %v2966 = vld [vmem:[#allocation8 + $0x3300] sm:$0xff]
    %v2967 = vld [vmem:[#allocation8 + $0x3308] sm:$0xff]
    %v2968 = vld [vmem:[#allocation8 + $0x3310] sm:$0xff]
    %v2969 = vld [vmem:[#allocation8 + $0x3318] sm:$0xff]
    %v2970 = vld [vmem:[#allocation8 + $0x3320] sm:$0xff]
    %v2971 = vld [vmem:[#allocation8 + $0x3328] sm:$0xff]
    %v2972 = vld [vmem:[#allocation8 + $0x3330] sm:$0xff]
    %v2973 = vld [vmem:[#allocation8 + $0x3338] sm:$0xff]
    %v2974 = vld [vmem:[#allocation8 + $0x3340] sm:$0xff]
    %v2975 = vld [vmem:[#allocation8 + $0x3348] sm:$0xff]
    %v2976 = vld [vmem:[#allocation8 + $0x3350] sm:$0xff]
    %v2977 = vld [vmem:[#allocation8 + $0x3358] sm:$0xff]
    %v2978 = vld [vmem:[#allocation8 + $0x3360] sm:$0xff]
    %v2979 = vld [vmem:[#allocation8 + $0x3368] sm:$0xff]
    %v2980 = vld [vmem:[#allocation8 + $0x3370] sm:$0xff]
    %v2981 = vld [vmem:[#allocation8 + $0x3378] sm:$0xff]
    %v2982 = vld [vmem:[#allocation8 + $0x3380] sm:$0xff]
    %v2983 = vld [vmem:[#allocation8 + $0x3388] sm:$0xff]
    %v2984 = vld [vmem:[#allocation8 + $0x3390] sm:$0xff]
    %v2985 = vld [vmem:[#allocation8 + $0x3398] sm:$0xff]
    %v2986 = vld [vmem:[#allocation8 + $0x33a0] sm:$0xff]
    %v2987 = vld [vmem:[#allocation8 + $0x33a8] sm:$0xff]
    %v2988 = vld [vmem:[#allocation8 + $0x33b0] sm:$0xff]
    %v2989 = vld [vmem:[#allocation8 + $0x33b8] sm:$0xff]
    %v2990 = vld [vmem:[#allocation8 + $0x33c0] sm:$0xff]
    %v2991 = vld [vmem:[#allocation8 + $0x33c8] sm:$0xff]
    %v2992 = vld [vmem:[#allocation8 + $0x33d0] sm:$0xff]
    %v2993 = vld [vmem:[#allocation8 + $0x33d8] sm:$0xff]
    %v2994 = vld [vmem:[#allocation8 + $0x33e0] sm:$0xff]
    %v2995 = vld [vmem:[#allocation8 + $0x33e8] sm:$0xff]
    %v2996 = vld [vmem:[#allocation8 + $0x33f0] sm:$0xff]
    %v2997 = vld [vmem:[#allocation8 + $0x33f8] sm:$0xff]
    %v2998 = vld [vmem:[#allocation8 + $0x3400] sm:$0xff]
    %v2999 = vld [vmem:[#allocation8 + $0x3408] sm:$0xff]
    %v3000 = vld [vmem:[#allocation8 + $0x3410] sm:$0xff]
    %v3001 = vld [vmem:[#allocation8 + $0x3418] sm:$0xff]
    %v3002 = vld [vmem:[#allocation8 + $0x3420] sm:$0xff]
    %v3003 = vld [vmem:[#allocation8 + $0x3428] sm:$0xff]
    %v3004 = vld [vmem:[#allocation8 + $0x3430] sm:$0xff]
    %v3005 = vld [vmem:[#allocation8 + $0x3438] sm:$0xff]
    %v3006 = vld [vmem:[#allocation8 + $0x3440] sm:$0xff]
    %v3007 = vld [vmem:[#allocation8 + $0x3448] sm:$0xff]
    %v3008 = vld [vmem:[#allocation8 + $0x3450] sm:$0xff]
    %v3009 = vld [vmem:[#allocation8 + $0x3458] sm:$0xff]
    %v3010 = vld [vmem:[#allocation8 + $0x3460] sm:$0xff]
    %v3011 = vld [vmem:[#allocation8 + $0x3468] sm:$0xff]
    %v3012 = vld [vmem:[#allocation8 + $0x3470] sm:$0xff]
    %v3013 = vld [vmem:[#allocation8 + $0x3478] sm:$0xff]
    %v3014 = vld [vmem:[#allocation8 + $0x3480] sm:$0xff]
    %v3015 = vld [vmem:[#allocation8 + $0x3488] sm:$0xff]
    %v3016 = vld [vmem:[#allocation8 + $0x3490] sm:$0xff]
    %v3017 = vld [vmem:[#allocation8 + $0x3498] sm:$0xff]
    %v3018 = vld [vmem:[#allocation8 + $0x34a0] sm:$0xff]
    %v3019 = vld [vmem:[#allocation8 + $0x34a8] sm:$0xff]
    %v3020 = vld [vmem:[#allocation8 + $0x34b0] sm:$0xff]
    %v3021 = vld [vmem:[#allocation8 + $0x34b8] sm:$0xff]
    %v3022 = vld [vmem:[#allocation8 + $0x34c0] sm:$0xff]
    %v3023 = vld [vmem:[#allocation8 + $0x34c8] sm:$0xff]
    %v3024 = vld [vmem:[#allocation8 + $0x34d0] sm:$0xff]
    %v3025 = vld [vmem:[#allocation8 + $0x34d8] sm:$0xff]
    %v3026 = vld [vmem:[#allocation8 + $0x34e0] sm:$0xff]
    %v3027 = vld [vmem:[#allocation8 + $0x34e8] sm:$0xff]
    %v3028 = vld [vmem:[#allocation8 + $0x34f0] sm:$0xff]
    %v3029 = vld [vmem:[#allocation8 + $0x34f8] sm:$0xff]
    %v3030 = vld [vmem:[#allocation8 + $0x3500] sm:$0xff]
    %v3031 = vld [vmem:[#allocation8 + $0x3508] sm:$0xff]
    %v3032 = vld [vmem:[#allocation8 + $0x3510] sm:$0xff]
    %v3033 = vld [vmem:[#allocation8 + $0x3518] sm:$0xff]
    %v3034 = vld [vmem:[#allocation8 + $0x3520] sm:$0xff]
    %v3035 = vld [vmem:[#allocation8 + $0x3528] sm:$0xff]
    %v3036 = vld [vmem:[#allocation8 + $0x3530] sm:$0xff]
    %v3037 = vld [vmem:[#allocation8 + $0x3538] sm:$0xff]
    %v3038 = vld [vmem:[#allocation8 + $0x3540] sm:$0xff]
    %v3039 = vld [vmem:[#allocation8 + $0x3548] sm:$0xff]
    %v3040 = vld [vmem:[#allocation8 + $0x3550] sm:$0xff]
    %v3041 = vld [vmem:[#allocation8 + $0x3558] sm:$0xff]
    %v3042 = vld [vmem:[#allocation8 + $0x3560] sm:$0xff]
    %v3043 = vld [vmem:[#allocation8 + $0x3568] sm:$0xff]
    %v3044 = vld [vmem:[#allocation8 + $0x3570] sm:$0xff]
    %v3045 = vld [vmem:[#allocation8 + $0x3578] sm:$0xff]
    %v3046 = vld [vmem:[#allocation8 + $0x3580] sm:$0xff]
    %v3047 = vld [vmem:[#allocation8 + $0x3588] sm:$0xff]
    %v3048 = vld [vmem:[#allocation8 + $0x3590] sm:$0xff]
    %v3049 = vld [vmem:[#allocation8 + $0x3598] sm:$0xff]
    %v3050 = vld [vmem:[#allocation8 + $0x35a0] sm:$0xff]
    %v3051 = vld [vmem:[#allocation8 + $0x35a8] sm:$0xff]
    %v3052 = vld [vmem:[#allocation8 + $0x35b0] sm:$0xff]
    %v3053 = vld [vmem:[#allocation8 + $0x35b8] sm:$0xff]
    %v3054 = vld [vmem:[#allocation8 + $0x35c0] sm:$0xff]
    %v3055 = vld [vmem:[#allocation8 + $0x35c8] sm:$0xff]
    %v3056 = vld [vmem:[#allocation8 + $0x35d0] sm:$0xff]
    %v3057 = vld [vmem:[#allocation8 + $0x35d8] sm:$0xff]
    %v3058 = vld [vmem:[#allocation8 + $0x35e0] sm:$0xff]
    %v3059 = vld [vmem:[#allocation8 + $0x35e8] sm:$0xff]
    %v3060 = vld [vmem:[#allocation8 + $0x35f0] sm:$0xff]
    %v3061 = vld [vmem:[#allocation8 + $0x35f8] sm:$0xff]
    %v3062 = vld [vmem:[#allocation8 + $0x3600] sm:$0xff]
    %v3063 = vld [vmem:[#allocation8 + $0x3608] sm:$0xff]
    %v3064 = vld [vmem:[#allocation8 + $0x3610] sm:$0xff]
    %v3065 = vld [vmem:[#allocation8 + $0x3618] sm:$0xff]
    %v3066 = vld [vmem:[#allocation8 + $0x3620] sm:$0xff]
    %v3067 = vld [vmem:[#allocation8 + $0x3628] sm:$0xff]
    %v3068 = vld [vmem:[#allocation8 + $0x3630] sm:$0xff]
    %v3069 = vld [vmem:[#allocation8 + $0x3638] sm:$0xff]
    %v3070 = vld [vmem:[#allocation8 + $0x3640] sm:$0xff]
    %v3071 = vld [vmem:[#allocation8 + $0x3648] sm:$0xff]
    %v3072 = vld [vmem:[#allocation8 + $0x3650] sm:$0xff]
    %v3073 = vld [vmem:[#allocation8 + $0x3658] sm:$0xff]
    %v3074 = vld [vmem:[#allocation8 + $0x3660] sm:$0xff]
    %v3075 = vld [vmem:[#allocation8 + $0x3668] sm:$0xff]
    %v3076 = vld [vmem:[#allocation8 + $0x3670] sm:$0xff]
    %v3077 = vld [vmem:[#allocation8 + $0x3678] sm:$0xff]
    %v3078 = vld [vmem:[#allocation8 + $0x3680] sm:$0xff]
    %v3079 = vld [vmem:[#allocation8 + $0x3688] sm:$0xff]
    %v3080 = vld [vmem:[#allocation8 + $0x3690] sm:$0xff]
    %v3081 = vld [vmem:[#allocation8 + $0x3698] sm:$0xff]
    %v3082 = vld [vmem:[#allocation8 + $0x36a0] sm:$0xff]
    %v3083 = vld [vmem:[#allocation8 + $0x36a8] sm:$0xff]
    %v3084 = vld [vmem:[#allocation8 + $0x36b0] sm:$0xff]
    %v3085 = vld [vmem:[#allocation8 + $0x36b8] sm:$0xff]
    %v3086 = vld [vmem:[#allocation8 + $0x36c0] sm:$0xff]
    %v3087 = vld [vmem:[#allocation8 + $0x36c8] sm:$0xff]
    %v3088 = vld [vmem:[#allocation8 + $0x36d0] sm:$0xff]
    %v3089 = vld [vmem:[#allocation8 + $0x36d8] sm:$0xff]
    %v3090 = vld [vmem:[#allocation8 + $0x36e0] sm:$0xff]
    %v3091 = vld [vmem:[#allocation8 + $0x36e8] sm:$0xff]
    %v3092 = vld [vmem:[#allocation8 + $0x36f0] sm:$0xff]
    %v3093 = vld [vmem:[#allocation8 + $0x36f8] sm:$0xff]
    %v3094 = vld [vmem:[#allocation8 + $0x3700] sm:$0xff]
    %v3095 = vld [vmem:[#allocation8 + $0x3708] sm:$0xff]
    %v3096 = vld [vmem:[#allocation8 + $0x3710] sm:$0xff]
    %v3097 = vld [vmem:[#allocation8 + $0x3718] sm:$0xff]
    %v3098 = vld [vmem:[#allocation8 + $0x3720] sm:$0xff]
    %v3099 = vld [vmem:[#allocation8 + $0x3728] sm:$0xff]
    %v3100 = vld [vmem:[#allocation8 + $0x3730] sm:$0xff]
    %v3101 = vld [vmem:[#allocation8 + $0x3738] sm:$0xff]
    %v3102 = vld [vmem:[#allocation8 + $0x3740] sm:$0xff]
    %v3103 = vld [vmem:[#allocation8 + $0x3748] sm:$0xff]
    %v3104 = vld [vmem:[#allocation8 + $0x3750] sm:$0xff]
    %v3105 = vld [vmem:[#allocation8 + $0x3758] sm:$0xff]
    %v3106 = vld [vmem:[#allocation8 + $0x3760] sm:$0xff]
    %v3107 = vld [vmem:[#allocation8 + $0x3768] sm:$0xff]
    %v3108 = vld [vmem:[#allocation8 + $0x3770] sm:$0xff]
    %v3109 = vld [vmem:[#allocation8 + $0x3778] sm:$0xff]
    %v3110 = vld [vmem:[#allocation8 + $0x3780] sm:$0xff]
    %v3111 = vld [vmem:[#allocation8 + $0x3788] sm:$0xff]
    %v3112 = vld [vmem:[#allocation8 + $0x3790] sm:$0xff]
    %v3113 = vld [vmem:[#allocation8 + $0x3798] sm:$0xff]
    %v3114 = vld [vmem:[#allocation8 + $0x37a0] sm:$0xff]
    %v3115 = vld [vmem:[#allocation8 + $0x37a8] sm:$0xff]
    %v3116 = vld [vmem:[#allocation8 + $0x37b0] sm:$0xff]
    %v3117 = vld [vmem:[#allocation8 + $0x37b8] sm:$0xff]
    %v3118 = vld [vmem:[#allocation8 + $0x37c0] sm:$0xff]
    %v3119 = vld [vmem:[#allocation8 + $0x37c8] sm:$0xff]
    %v3120 = vld [vmem:[#allocation8 + $0x37d0] sm:$0xff]
    %v3121 = vld [vmem:[#allocation8 + $0x37d8] sm:$0xff]
    %v3122 = vld [vmem:[#allocation8 + $0x37e0] sm:$0xff]
    %v3123 = vld [vmem:[#allocation8 + $0x37e8] sm:$0xff]
    %v3124 = vld [vmem:[#allocation8 + $0x37f0] sm:$0xff]
    %v3125 = vld [vmem:[#allocation8 + $0x37f8] sm:$0xff]
    %v3126 = vld [vmem:[#allocation8 + $0x3800] sm:$0xff]
    %v3127 = vld [vmem:[#allocation8 + $0x3808] sm:$0xff]
    %v3128 = vld [vmem:[#allocation8 + $0x3810] sm:$0xff]
    %v3129 = vld [vmem:[#allocation8 + $0x3818] sm:$0xff]
    %v3130 = vld [vmem:[#allocation8 + $0x3820] sm:$0xff]
    %v3131 = vld [vmem:[#allocation8 + $0x3828] sm:$0xff]
    %v3132 = vld [vmem:[#allocation8 + $0x3830] sm:$0xff]
    %v3133 = vld [vmem:[#allocation8 + $0x3838] sm:$0xff]
    %v3134 = vld [vmem:[#allocation8 + $0x3840] sm:$0xff]
    %v3135 = vld [vmem:[#allocation8 + $0x3848] sm:$0xff]
    %v3136 = vld [vmem:[#allocation8 + $0x3850] sm:$0xff]
    %v3137 = vld [vmem:[#allocation8 + $0x3858] sm:$0xff]
    %v3138 = vld [vmem:[#allocation8 + $0x3860] sm:$0xff]
    %v3139 = vld [vmem:[#allocation8 + $0x3868] sm:$0xff]
    %v3140 = vld [vmem:[#allocation8 + $0x3870] sm:$0xff]
    %v3141 = vld [vmem:[#allocation8 + $0x3878] sm:$0xff]
    %v3142 = vld [vmem:[#allocation8 + $0x3880] sm:$0xff]
    %v3143 = vld [vmem:[#allocation8 + $0x3888] sm:$0xff]
    %v3144 = vld [vmem:[#allocation8 + $0x3890] sm:$0xff]
    %v3145 = vld [vmem:[#allocation8 + $0x3898] sm:$0xff]
    %v3146 = vld [vmem:[#allocation8 + $0x38a0] sm:$0xff]
    %v3147 = vld [vmem:[#allocation8 + $0x38a8] sm:$0xff]
    %v3148 = vld [vmem:[#allocation8 + $0x38b0] sm:$0xff]
    %v3149 = vld [vmem:[#allocation8 + $0x38b8] sm:$0xff]
    %v3150 = vld [vmem:[#allocation8 + $0x38c0] sm:$0xff]
    %v3151 = vld [vmem:[#allocation8 + $0x38c8] sm:$0xff]
    %v3152 = vld [vmem:[#allocation8 + $0x38d0] sm:$0xff]
    %v3153 = vld [vmem:[#allocation8 + $0x38d8] sm:$0xff]
    %v3154 = vld [vmem:[#allocation8 + $0x38e0] sm:$0xff]
    %v3155 = vld [vmem:[#allocation8 + $0x38e8] sm:$0xff]
    %v3156 = vld [vmem:[#allocation8 + $0x38f0] sm:$0xff]
    %v3157 = vld [vmem:[#allocation8 + $0x38f8] sm:$0xff]
    %v3158 = vld [vmem:[#allocation8 + $0x3900] sm:$0xff]
    %v3159 = vld [vmem:[#allocation8 + $0x3908] sm:$0xff]
    %v3160 = vld [vmem:[#allocation8 + $0x3910] sm:$0xff]
    %v3161 = vld [vmem:[#allocation8 + $0x3918] sm:$0xff]
    %v3162 = vld [vmem:[#allocation8 + $0x3920] sm:$0xff]
    %v3163 = vld [vmem:[#allocation8 + $0x3928] sm:$0xff]
    %v3164 = vld [vmem:[#allocation8 + $0x3930] sm:$0xff]
    %v3165 = vld [vmem:[#allocation8 + $0x3938] sm:$0xff]
    %v3166 = vld [vmem:[#allocation8 + $0x3940] sm:$0xff]
    %v3167 = vld [vmem:[#allocation8 + $0x3948] sm:$0xff]
    %v3168 = vld [vmem:[#allocation8 + $0x3950] sm:$0xff]
    %v3169 = vld [vmem:[#allocation8 + $0x3958] sm:$0xff]
    %v3170 = vld [vmem:[#allocation8 + $0x3960] sm:$0xff]
    %v3171 = vld [vmem:[#allocation8 + $0x3968] sm:$0xff]
    %v3172 = vld [vmem:[#allocation8 + $0x3970] sm:$0xff]
    %v3173 = vld [vmem:[#allocation8 + $0x3978] sm:$0xff]
    %v3174 = vld [vmem:[#allocation8 + $0x3980] sm:$0xff]
    %v3175 = vld [vmem:[#allocation8 + $0x3988] sm:$0xff]
    %v3176 = vld [vmem:[#allocation8 + $0x3990] sm:$0xff]
    %v3177 = vld [vmem:[#allocation8 + $0x3998] sm:$0xff]
    %v3178 = vld [vmem:[#allocation8 + $0x39a0] sm:$0xff]
    %v3179 = vld [vmem:[#allocation8 + $0x39a8] sm:$0xff]
    %v3180 = vld [vmem:[#allocation8 + $0x39b0] sm:$0xff]
    %v3181 = vld [vmem:[#allocation8 + $0x39b8] sm:$0xff]
    %v3182 = vld [vmem:[#allocation8 + $0x39c0] sm:$0xff]
    %v3183 = vld [vmem:[#allocation8 + $0x39c8] sm:$0xff]
    %v3184 = vld [vmem:[#allocation8 + $0x39d0] sm:$0xff]
    %v3185 = vld [vmem:[#allocation8 + $0x39d8] sm:$0xff]
    %v3186 = vld [vmem:[#allocation8 + $0x39e0] sm:$0xff]
    %v3187 = vld [vmem:[#allocation8 + $0x39e8] sm:$0xff]
    %v3188 = vld [vmem:[#allocation8 + $0x39f0] sm:$0xff]
    %v3189 = vld [vmem:[#allocation8 + $0x39f8] sm:$0xff]
    %v3190 = vld [vmem:[#allocation8 + $0x3a00] sm:$0xff]
    %v3191 = vld [vmem:[#allocation8 + $0x3a08] sm:$0xff]
    %v3192 = vld [vmem:[#allocation8 + $0x3a10] sm:$0xff]
    %v3193 = vld [vmem:[#allocation8 + $0x3a18] sm:$0xff]
    %v3194 = vld [vmem:[#allocation8 + $0x3a20] sm:$0xff]
    %v3195 = vld [vmem:[#allocation8 + $0x3a28] sm:$0xff]
    %v3196 = vld [vmem:[#allocation8 + $0x3a30] sm:$0xff]
    %v3197 = vld [vmem:[#allocation8 + $0x3a38] sm:$0xff]
    %v3198 = vld [vmem:[#allocation8 + $0x3a40] sm:$0xff]
    %v3199 = vld [vmem:[#allocation8 + $0x3a48] sm:$0xff]
    %v3200 = vld [vmem:[#allocation8 + $0x3a50] sm:$0xff]
    %v3201 = vld [vmem:[#allocation8 + $0x3a58] sm:$0xff]
    %v3202 = vld [vmem:[#allocation8 + $0x3a60] sm:$0xff]
    %v3203 = vld [vmem:[#allocation8 + $0x3a68] sm:$0xff]
    %v3204 = vld [vmem:[#allocation8 + $0x3a70] sm:$0xff]
    %v3205 = vld [vmem:[#allocation8 + $0x3a78] sm:$0xff]
    %v3206 = vld [vmem:[#allocation8 + $0x3a80] sm:$0xff]
    %v3207 = vld [vmem:[#allocation8 + $0x3a88] sm:$0xff]
    %v3208 = vld [vmem:[#allocation8 + $0x3a90] sm:$0xff]
    %v3209 = vld [vmem:[#allocation8 + $0x3a98] sm:$0xff]
    %v3210 = vld [vmem:[#allocation8 + $0x3aa0] sm:$0xff]
    %v3211 = vld [vmem:[#allocation8 + $0x3aa8] sm:$0xff]
    %v3212 = vld [vmem:[#allocation8 + $0x3ab0] sm:$0xff]
    %v3213 = vld [vmem:[#allocation8 + $0x3ab8] sm:$0xff]
    %v3214 = vld [vmem:[#allocation8 + $0x3ac0] sm:$0xff]
    %v3215 = vld [vmem:[#allocation8 + $0x3ac8] sm:$0xff]
    %v3216 = vld [vmem:[#allocation8 + $0x3ad0] sm:$0xff]
    %v3217 = vld [vmem:[#allocation8 + $0x3ad8] sm:$0xff]
    %v3218 = vld [vmem:[#allocation8 + $0x3ae0] sm:$0xff]
    %v3219 = vld [vmem:[#allocation8 + $0x3ae8] sm:$0xff]
    %v3220 = vld [vmem:[#allocation8 + $0x3af0] sm:$0xff]
    %v3221 = vld [vmem:[#allocation8 + $0x3af8] sm:$0xff]
    %v3222 = vld [vmem:[#allocation8 + $0x3b00] sm:$0xff]
    %v3223 = vld [vmem:[#allocation8 + $0x3b08] sm:$0xff]
    %v3224 = vld [vmem:[#allocation8 + $0x3b10] sm:$0xff]
    %v3225 = vld [vmem:[#allocation8 + $0x3b18] sm:$0xff]
    %v3226 = vld [vmem:[#allocation8 + $0x3b20] sm:$0xff]
    %v3227 = vld [vmem:[#allocation8 + $0x3b28] sm:$0xff]
    %v3228 = vld [vmem:[#allocation8 + $0x3b30] sm:$0xff]
    %v3229 = vld [vmem:[#allocation8 + $0x3b38] sm:$0xff]
    %v3230 = vld [vmem:[#allocation8 + $0x3b40] sm:$0xff]
    %v3231 = vld [vmem:[#allocation8 + $0x3b48] sm:$0xff]
    %v3232 = vld [vmem:[#allocation8 + $0x3b50] sm:$0xff]
    %v3233 = vld [vmem:[#allocation8 + $0x3b58] sm:$0xff]
    %v3234 = vld [vmem:[#allocation8 + $0x3b60] sm:$0xff]
    %v3235 = vld [vmem:[#allocation8 + $0x3b68] sm:$0xff]
    %v3236 = vld [vmem:[#allocation8 + $0x3b70] sm:$0xff]
    %v3237 = vld [vmem:[#allocation8 + $0x3b78] sm:$0xff]
    %v3238 = vld [vmem:[#allocation8 + $0x3b80] sm:$0xff]
    %v3239 = vld [vmem:[#allocation8 + $0x3b88] sm:$0xff]
    %v3240 = vld [vmem:[#allocation8 + $0x3b90] sm:$0xff]
    %v3241 = vld [vmem:[#allocation8 + $0x3b98] sm:$0xff]
    %v3242 = vld [vmem:[#allocation8 + $0x3ba0] sm:$0xff]
    %v3243 = vld [vmem:[#allocation8 + $0x3ba8] sm:$0xff]
    %v3244 = vld [vmem:[#allocation8 + $0x3bb0] sm:$0xff]
    %v3245 = vld [vmem:[#allocation8 + $0x3bb8] sm:$0xff]
    %v3246 = vld [vmem:[#allocation8 + $0x3bc0] sm:$0xff]
    %v3247 = vld [vmem:[#allocation8 + $0x3bc8] sm:$0xff]
    %v3248 = vld [vmem:[#allocation8 + $0x3bd0] sm:$0xff]
    %v3249 = vld [vmem:[#allocation8 + $0x3bd8] sm:$0xff]
    %v3250 = vld [vmem:[#allocation8 + $0x3be0] sm:$0xff]
    %v3251 = vld [vmem:[#allocation8 + $0x3be8] sm:$0xff]
    %v3252 = vld [vmem:[#allocation8 + $0x3bf0] sm:$0xff]
    %v3253 = vld [vmem:[#allocation8 + $0x3bf8] sm:$0xff]
    %v3254 = vld [vmem:[#allocation8 + $0x3c00] sm:$0xff]
    %v3255 = vld [vmem:[#allocation8 + $0x3c08] sm:$0xff]
    %v3256 = vld [vmem:[#allocation8 + $0x3c10] sm:$0xff]
    %v3257 = vld [vmem:[#allocation8 + $0x3c18] sm:$0xff]
    %v3258 = vld [vmem:[#allocation8 + $0x3c20] sm:$0xff]
    %v3259 = vld [vmem:[#allocation8 + $0x3c28] sm:$0xff]
    %v3260 = vld [vmem:[#allocation8 + $0x3c30] sm:$0xff]
    %v3261 = vld [vmem:[#allocation8 + $0x3c38] sm:$0xff]
    %v3262 = vld [vmem:[#allocation8 + $0x3c40] sm:$0xff]
    %v3263 = vld [vmem:[#allocation8 + $0x3c48] sm:$0xff]
    %v3264 = vld [vmem:[#allocation8 + $0x3c50] sm:$0xff]
    %v3265 = vld [vmem:[#allocation8 + $0x3c58] sm:$0xff]
    %v3266 = vld [vmem:[#allocation8 + $0x3c60] sm:$0xff]
    %v3267 = vld [vmem:[#allocation8 + $0x3c68] sm:$0xff]
    %v3268 = vld [vmem:[#allocation8 + $0x3c70] sm:$0xff]
    %v3269 = vld [vmem:[#allocation8 + $0x3c78] sm:$0xff]
    %v3270 = vld [vmem:[#allocation8 + $0x3c80] sm:$0xff]
    %v3271 = vld [vmem:[#allocation8 + $0x3c88] sm:$0xff]
    %v3272 = vld [vmem:[#allocation8 + $0x3c90] sm:$0xff]
    %v3273 = vld [vmem:[#allocation8 + $0x3c98] sm:$0xff]
    %v3274 = vld [vmem:[#allocation8 + $0x3ca0] sm:$0xff]
    %v3275 = vld [vmem:[#allocation8 + $0x3ca8] sm:$0xff]
    %v3276 = vld [vmem:[#allocation8 + $0x3cb0] sm:$0xff]
    %v3277 = vld [vmem:[#allocation8 + $0x3cb8] sm:$0xff]
    %v3278 = vld [vmem:[#allocation8 + $0x3cc0] sm:$0xff]
    %v3279 = vld [vmem:[#allocation8 + $0x3cc8] sm:$0xff]
    %v3280 = vld [vmem:[#allocation8 + $0x3cd0] sm:$0xff]
    %v3281 = vld [vmem:[#allocation8 + $0x3cd8] sm:$0xff]
    %v3282 = vld [vmem:[#allocation8 + $0x3ce0] sm:$0xff]
    %v3283 = vld [vmem:[#allocation8 + $0x3ce8] sm:$0xff]
    %v3284 = vld [vmem:[#allocation8 + $0x3cf0] sm:$0xff]
    %v3285 = vld [vmem:[#allocation8 + $0x3cf8] sm:$0xff]
    %v3286 = vld [vmem:[#allocation8 + $0x3d00] sm:$0xff]
    %v3287 = vld [vmem:[#allocation8 + $0x3d08] sm:$0xff]
    %v3288 = vld [vmem:[#allocation8 + $0x3d10] sm:$0xff]
    %v3289 = vld [vmem:[#allocation8 + $0x3d18] sm:$0xff]
    %v3290 = vld [vmem:[#allocation8 + $0x3d20] sm:$0xff]
    %v3291 = vld [vmem:[#allocation8 + $0x3d28] sm:$0xff]
    %v3292 = vld [vmem:[#allocation8 + $0x3d30] sm:$0xff]
    %v3293 = vld [vmem:[#allocation8 + $0x3d38] sm:$0xff]
    %v3294 = vld [vmem:[#allocation8 + $0x3d40] sm:$0xff]
    %v3295 = vld [vmem:[#allocation8 + $0x3d48] sm:$0xff]
    %v3296 = vld [vmem:[#allocation8 + $0x3d50] sm:$0xff]
    %v3297 = vld [vmem:[#allocation8 + $0x3d58] sm:$0xff]
    %v3298 = vld [vmem:[#allocation8 + $0x3d60] sm:$0xff]
    %v3299 = vld [vmem:[#allocation8 + $0x3d68] sm:$0xff]
    %v3300 = vld [vmem:[#allocation8 + $0x3d70] sm:$0xff]
    %v3301 = vld [vmem:[#allocation8 + $0x3d78] sm:$0xff]
    %v3302 = vld [vmem:[#allocation8 + $0x3d80] sm:$0xff]
    %v3303 = vld [vmem:[#allocation8 + $0x3d88] sm:$0xff]
    %v3304 = vld [vmem:[#allocation8 + $0x3d90] sm:$0xff]
    %v3305 = vld [vmem:[#allocation8 + $0x3d98] sm:$0xff]
    %v3306 = vld [vmem:[#allocation8 + $0x3da0] sm:$0xff]
    %v3307 = vld [vmem:[#allocation8 + $0x3da8] sm:$0xff]
    %v3308 = vld [vmem:[#allocation8 + $0x3db0] sm:$0xff]
    %v3309 = vld [vmem:[#allocation8 + $0x3db8] sm:$0xff]
    %v3310 = vld [vmem:[#allocation8 + $0x3dc0] sm:$0xff]
    %v3311 = vld [vmem:[#allocation8 + $0x3dc8] sm:$0xff]
    %v3312 = vld [vmem:[#allocation8 + $0x3dd0] sm:$0xff]
    %v3313 = vld [vmem:[#allocation8 + $0x3dd8] sm:$0xff]
    %v3314 = vld [vmem:[#allocation8 + $0x3de0] sm:$0xff]
    %v3315 = vld [vmem:[#allocation8 + $0x3de8] sm:$0xff]
    %v3316 = vld [vmem:[#allocation8 + $0x3df0] sm:$0xff]
    %v3317 = vld [vmem:[#allocation8 + $0x3df8] sm:$0xff]
    %v3318 = vld [vmem:[#allocation8 + $0x3e00] sm:$0xff]
    %v3319 = vld [vmem:[#allocation8 + $0x3e08] sm:$0xff]
    %v3320 = vld [vmem:[#allocation8 + $0x3e10] sm:$0xff]
    %v3321 = vld [vmem:[#allocation8 + $0x3e18] sm:$0xff]
    %v3322 = vld [vmem:[#allocation8 + $0x3e20] sm:$0xff]
    %v3323 = vld [vmem:[#allocation8 + $0x3e28] sm:$0xff]
    %v3324 = vld [vmem:[#allocation8 + $0x3e30] sm:$0xff]
    %v3325 = vld [vmem:[#allocation8 + $0x3e38] sm:$0xff]
    %v3326 = vld [vmem:[#allocation8 + $0x3e40] sm:$0xff]
    %v3327 = vld [vmem:[#allocation8 + $0x3e48] sm:$0xff]
    %v3328 = vld [vmem:[#allocation8 + $0x3e50] sm:$0xff]
    %v3329 = vld [vmem:[#allocation8 + $0x3e58] sm:$0xff]
    %v3330 = vld [vmem:[#allocation8 + $0x3e60] sm:$0xff]
    %v3331 = vld [vmem:[#allocation8 + $0x3e68] sm:$0xff]
    %v3332 = vld [vmem:[#allocation8 + $0x3e70] sm:$0xff]
    %v3333 = vld [vmem:[#allocation8 + $0x3e78] sm:$0xff]
    %v3334 = vld [vmem:[#allocation8 + $0x3e80] sm:$0xff]
    %v3335 = vld [vmem:[#allocation8 + $0x3e88] sm:$0xff]
    %v3336 = vld [vmem:[#allocation8 + $0x3e90] sm:$0xff]
    %v3337 = vld [vmem:[#allocation8 + $0x3e98] sm:$0xff]
    %v3338 = vld [vmem:[#allocation8 + $0x3ea0] sm:$0xff]
    %v3339 = vld [vmem:[#allocation8 + $0x3ea8] sm:$0xff]
    %v3340 = vld [vmem:[#allocation8 + $0x3eb0] sm:$0xff]
    %v3341 = vld [vmem:[#allocation8 + $0x3eb8] sm:$0xff]
    %v3342 = vld [vmem:[#allocation8 + $0x3ec0] sm:$0xff]
    %v3343 = vld [vmem:[#allocation8 + $0x3ec8] sm:$0xff]
    %v3344 = vld [vmem:[#allocation8 + $0x3ed0] sm:$0xff]
    %v3345 = vld [vmem:[#allocation8 + $0x3ed8] sm:$0xff]
    %v3346 = vld [vmem:[#allocation8 + $0x3ee0] sm:$0xff]
    %v3347 = vld [vmem:[#allocation8 + $0x3ee8] sm:$0xff]
    %v3348 = vld [vmem:[#allocation8 + $0x3ef0] sm:$0xff]
    %v3349 = vld [vmem:[#allocation8 + $0x3ef8] sm:$0xff]
    %v3350 = vld [vmem:[#allocation8 + $0x3f00] sm:$0xff]
    %v3351 = vld [vmem:[#allocation8 + $0x3f08] sm:$0xff]
    %v3352 = vld [vmem:[#allocation8 + $0x3f10] sm:$0xff]
    %v3353 = vld [vmem:[#allocation8 + $0x3f18] sm:$0xff]
    %v3354 = vld [vmem:[#allocation8 + $0x3f20] sm:$0xff]
    %v3355 = vld [vmem:[#allocation8 + $0x3f28] sm:$0xff]
    %v3356 = vld [vmem:[#allocation8 + $0x3f30] sm:$0xff]
    %v3357 = vld [vmem:[#allocation8 + $0x3f38] sm:$0xff]
    %v3358 = vld [vmem:[#allocation8 + $0x3f40] sm:$0xff]
    %v3359 = vld [vmem:[#allocation8 + $0x3f48] sm:$0xff]
    %v3360 = vld [vmem:[#allocation8 + $0x3f50] sm:$0xff]
    %v3361 = vld [vmem:[#allocation8 + $0x3f58] sm:$0xff]
    %v3362 = vld [vmem:[#allocation8 + $0x3f60] sm:$0xff]
    %v3363 = vld [vmem:[#allocation8 + $0x3f68] sm:$0xff]
    %v3364 = vld [vmem:[#allocation8 + $0x3f70] sm:$0xff]
    %v3365 = vld [vmem:[#allocation8 + $0x3f78] sm:$0xff]
    %v3366 = vld [vmem:[#allocation8 + $0x3f80] sm:$0xff]
    %v3367 = vld [vmem:[#allocation8 + $0x3f88] sm:$0xff]
    %v3368 = vld [vmem:[#allocation8 + $0x3f90] sm:$0xff]
    %v3369 = vld [vmem:[#allocation8 + $0x3f98] sm:$0xff]
    %v3370 = vld [vmem:[#allocation8 + $0x3fa0] sm:$0xff]
    %v3371 = vld [vmem:[#allocation8 + $0x3fa8] sm:$0xff]
    %v3372 = vld [vmem:[#allocation8 + $0x3fb0] sm:$0xff]
    %v3373 = vld [vmem:[#allocation8 + $0x3fb8] sm:$0xff]
    %v3374 = vld [vmem:[#allocation8 + $0x3fc0] sm:$0xff]
    %v3375 = vld [vmem:[#allocation8 + $0x3fc8] sm:$0xff]
    %v3376 = vld [vmem:[#allocation8 + $0x3fd0] sm:$0xff]
    %v3377 = vld [vmem:[#allocation8 + $0x3fd8] sm:$0xff]
    %v3378 = vld [vmem:[#allocation8 + $0x3fe0] sm:$0xff]
    %v3379 = vld [vmem:[#allocation8 + $0x3fe8] sm:$0xff]
    %v3380 = vld [vmem:[#allocation8 + $0x3ff0] sm:$0xff]
    %v3381 = vld [vmem:[#allocation8 + $0x3ff8] sm:$0xff]
    %v3382 = vld [vmem:[#allocation10] sm:$0xff]
    %v3384 = vperm.slane %v3382, 0
    %v3385 = vperm.slane %v3382, 1
    %v3386 = vperm.slane %v3382, 2
    %v3387 = vperm.slane %v3382, 3
    %v3388 = vperm.slane %v3382, 4
    %v3389 = vperm.slane %v3382, 5
    %v3390 = vperm.slane %v3382, 6
    %v3391 = vperm.slane %v3382, 7
    %3400 = vmatpush.msra.mxu0 %v1454
    %3401 = vmatpush.msra.mxu0 %v1446
    %3402 = vmatpush.msra.mxu0 %v1438
    %3403 = vmatpush.msra.mxu0 %v1430
    %3404 = vmatpush.msra.mxu0 %v1422
    %3405 = vmatpush.msra.mxu0 %v1414
    %3406 = vmatpush.msra.mxu0 %v1406
    %3407 = vmatpush.msra.mxu0 %v1398
    %3408 = vmatpush.msra.mxu0 %v1390
    %3409 = vmatpush.msra.mxu0 %v1382
    %3410 = vmatpush.msra.mxu0 %v1374
    %3411 = vmatpush.msra.mxu0 %v1366
    %3412 = vmatpush.msra.mxu0 %v1358
    %3413 = vmatpush.msra.mxu0 %v1350
    %3414 = vmatpush.msra.mxu0 %v1342
    %3415 = vmatpush.msra.mxu0 %v1334
    %3416 = vmatmul.f32.gmra.mxu0 %v1318
    %v3417 = vpop.f32.mrf.mxu0
    %v3418 = vadd.f32 %v3384, %v3417
    %3419 = vdwg.mxu0
    %3420 = vmatpush.msra.mxu0 %v1582
    %3421 = vmatpush.msra.mxu0 %v1574
    %3422 = vmatpush.msra.mxu0 %v1566
    %3423 = vmatpush.msra.mxu0 %v1558
    %3424 = vmatpush.msra.mxu0 %v1550
    %3425 = vmatpush.msra.mxu0 %v1542
    %3426 = vmatpush.msra.mxu0 %v1534
    %3427 = vmatpush.msra.mxu0 %v1526
    %3428 = vmatpush.msra.mxu0 %v1518
    %3429 = vmatpush.msra.mxu0 %v1510
    %3430 = vmatpush.msra.mxu0 %v1502
    %3431 = vmatpush.msra.mxu0 %v1494
    %3432 = vmatpush.msra.mxu0 %v1486
    %3433 = vmatpush.msra.mxu0 %v1478
    %3434 = vmatpush.msra.mxu0 %v1470
    %3435 = vmatpush.msra.mxu0 %v1462
    %3436 = vmatmul.f32.gmra.mxu0 %v1319
    %v3437 = vpop.f32.mrf.mxu0
    %v3438 = vadd.f32 %v3418, %v3437
    %3439 = vdwg.mxu0
    %3440 = vmatpush.msra.mxu0 %v1710
    %3441 = vmatpush.msra.mxu0 %v1702
    %3442 = vmatpush.msra.mxu0 %v1694
    %3443 = vmatpush.msra.mxu0 %v1686
    %3444 = vmatpush.msra.mxu0 %v1678
    %3445 = vmatpush.msra.mxu0 %v1670
    %3446 = vmatpush.msra.mxu0 %v1662
    %3447 = vmatpush.msra.mxu0 %v1654
    %3448 = vmatpush.msra.mxu0 %v1646
    %3449 = vmatpush.msra.mxu0 %v1638
    %3450 = vmatpush.msra.mxu0 %v1630
    %3451 = vmatpush.msra.mxu0 %v1622
    %3452 = vmatpush.msra.mxu0 %v1614
    %3453 = vmatpush.msra.mxu0 %v1606
    %3454 = vmatpush.msra.mxu0 %v1598
    %3455 = vmatpush.msra.mxu0 %v1590
    %3456 = vmatmul.f32.gmra.mxu0 %v1320
    %v3457 = vpop.f32.mrf.mxu0
    %v3458 = vadd.f32 %v3438, %v3457
    %3459 = vdwg.mxu0
    %3460 = vmatpush.msra.mxu0 %v1838
    %3461 = vmatpush.msra.mxu0 %v1830
    %3462 = vmatpush.msra.mxu0 %v1822
    %3463 = vmatpush.msra.mxu0 %v1814
    %3464 = vmatpush.msra.mxu0 %v1806
    %3465 = vmatpush.msra.mxu0 %v1798
    %3466 = vmatpush.msra.mxu0 %v1790
    %3467 = vmatpush.msra.mxu0 %v1782
    %3468 = vmatpush.msra.mxu0 %v1774
    %3469 = vmatpush.msra.mxu0 %v1766
    %3470 = vmatpush.msra.mxu0 %v1758
    %3471 = vmatpush.msra.mxu0 %v1750
    %3472 = vmatpush.msra.mxu0 %v1742
    %3473 = vmatpush.msra.mxu0 %v1734
    %3474 = vmatpush.msra.mxu0 %v1726
    %3475 = vmatpush.msra.mxu0 %v1718
    %3476 = vmatmul.f32.gmra.mxu0 %v1321
    %v3477 = vpop.f32.mrf.mxu0
    %v3478 = vadd.f32 %v3458, %v3477
    %3479 = vdwg.mxu0
    %3480 = vmatpush.msra.mxu0 %v1966
    %3481 = vmatpush.msra.mxu0 %v1958
    %3482 = vmatpush.msra.mxu0 %v1950
    %3483 = vmatpush.msra.mxu0 %v1942
    %3484 = vmatpush.msra.mxu0 %v1934
    %3485 = vmatpush.msra.mxu0 %v1926
    %3486 = vmatpush.msra.mxu0 %v1918
    %3487 = vmatpush.msra.mxu0 %v1910
    %3488 = vmatpush.msra.mxu0 %v1902
    %3489 = vmatpush.msra.mxu0 %v1894
    %3490 = vmatpush.msra.mxu0 %v1886
    %3491 = vmatpush.msra.mxu0 %v1878
    %3492 = vmatpush.msra.mxu0 %v1870
    %3493 = vmatpush.msra.mxu0 %v1862
    %3494 = vmatpush.msra.mxu0 %v1854
    %3495 = vmatpush.msra.mxu0 %v1846
    %3496 = vmatmul.f32.gmra.mxu0 %v1322
    %v3497 = vpop.f32.mrf.mxu0
    %v3498 = vadd.f32 %v3478, %v3497
    %3499 = vdwg.mxu0
    %3500 = vmatpush.msra.mxu0 %v2094
    %3501 = vmatpush.msra.mxu0 %v2086
    %3502 = vmatpush.msra.mxu0 %v2078
    %3503 = vmatpush.msra.mxu0 %v2070
    %3504 = vmatpush.msra.mxu0 %v2062
    %3505 = vmatpush.msra.mxu0 %v2054
    %3506 = vmatpush.msra.mxu0 %v2046
    %3507 = vmatpush.msra.mxu0 %v2038
    %3508 = vmatpush.msra.mxu0 %v2030
    %3509 = vmatpush.msra.mxu0 %v2022
    %3510 = vmatpush.msra.mxu0 %v2014
    %3511 = vmatpush.msra.mxu0 %v2006
    %3512 = vmatpush.msra.mxu0 %v1998
    %3513 = vmatpush.msra.mxu0 %v1990
    %3514 = vmatpush.msra.mxu0 %v1982
    %3515 = vmatpush.msra.mxu0 %v1974
    %3516 = vmatmul.f32.gmra.mxu0 %v1323
    %v3517 = vpop.f32.mrf.mxu0
    %v3518 = vadd.f32 %v3498, %v3517
    %3519 = vdwg.mxu0
    %3520 = vmatpush.msra.mxu0 %v2222
    %3521 = vmatpush.msra.mxu0 %v2214
    %3522 = vmatpush.msra.mxu0 %v2206
    %3523 = vmatpush.msra.mxu0 %v2198
    %3524 = vmatpush.msra.mxu0 %v2190
    %3525 = vmatpush.msra.mxu0 %v2182
    %3526 = vmatpush.msra.mxu0 %v2174
    %3527 = vmatpush.msra.mxu0 %v2166
    %3528 = vmatpush.msra.mxu0 %v2158
    %3529 = vmatpush.msra.mxu0 %v2150
    %3530 = vmatpush.msra.mxu0 %v2142
    %3531 = vmatpush.msra.mxu0 %v2134
    %3532 = vmatpush.msra.mxu0 %v2126
    %3533 = vmatpush.msra.mxu0 %v2118
    %3534 = vmatpush.msra.mxu0 %v2110
    %3535 = vmatpush.msra.mxu0 %v2102
    %3536 = vmatmul.f32.gmra.mxu0 %v1324
    %v3537 = vpop.f32.mrf.mxu0
    %v3538 = vadd.f32 %v3518, %v3537
    %3539 = vdwg.mxu0
    %3540 = vmatpush.msra.mxu0 %v2350
    %3541 = vmatpush.msra.mxu0 %v2342
    %3542 = vmatpush.msra.mxu0 %v2334
    %3543 = vmatpush.msra.mxu0 %v2326
    %3544 = vmatpush.msra.mxu0 %v2318
    %3545 = vmatpush.msra.mxu0 %v2310
    %3546 = vmatpush.msra.mxu0 %v2302
    %3547 = vmatpush.msra.mxu0 %v2294
    %3548 = vmatpush.msra.mxu0 %v2286
    %3549 = vmatpush.msra.mxu0 %v2278
    %3550 = vmatpush.msra.mxu0 %v2270
    %3551 = vmatpush.msra.mxu0 %v2262
    %3552 = vmatpush.msra.mxu0 %v2254
    %3553 = vmatpush.msra.mxu0 %v2246
    %3554 = vmatpush.msra.mxu0 %v2238
    %3555 = vmatpush.msra.mxu0 %v2230
    %3556 = vmatmul.f32.gmra.mxu0 %v1325
    %v3557 = vpop.f32.mrf.mxu0
    %v3558 = vadd.f32 %v3538, %v3557
    %3559 = vdwg.mxu0
    %3560 = vmatpush.msra.mxu0 %v2478
    %3561 = vmatpush.msra.mxu0 %v2470
    %3562 = vmatpush.msra.mxu0 %v2462
    %3563 = vmatpush.msra.mxu0 %v2454
    %3564 = vmatpush.msra.mxu0 %v2446
    %3565 = vmatpush.msra.mxu0 %v2438
    %3566 = vmatpush.msra.mxu0 %v2430
    %3567 = vmatpush.msra.mxu0 %v2422
    %3568 = vmatpush.msra.mxu0 %v2414
    %3569 = vmatpush.msra.mxu0 %v2406
    %3570 = vmatpush.msra.mxu0 %v2398
    %3571 = vmatpush.msra.mxu0 %v2390
    %3572 = vmatpush.msra.mxu0 %v2382
    %3573 = vmatpush.msra.mxu0 %v2374
    %3574 = vmatpush.msra.mxu0 %v2366
    %3575 = vmatpush.msra.mxu0 %v2358
    %3576 = vmatmul.f32.gmra.mxu0 %v1326
    %v3577 = vpop.f32.mrf.mxu0
    %v3578 = vadd.f32 %v3558, %v3577
    %3579 = vdwg.mxu0
    %3580 = vmatpush.msra.mxu0 %v2606
    %3581 = vmatpush.msra.mxu0 %v2598
    %3582 = vmatpush.msra.mxu0 %v2590
    %3583 = vmatpush.msra.mxu0 %v2582
    %3584 = vmatpush.msra.mxu0 %v2574
    %3585 = vmatpush.msra.mxu0 %v2566
    %3586 = vmatpush.msra.mxu0 %v2558
    %3587 = vmatpush.msra.mxu0 %v2550
    %3588 = vmatpush.msra.mxu0 %v2542
    %3589 = vmatpush.msra.mxu0 %v2534
    %3590 = vmatpush.msra.mxu0 %v2526
    %3591 = vmatpush.msra.mxu0 %v2518
    %3592 = vmatpush.msra.mxu0 %v2510
    %3593 = vmatpush.msra.mxu0 %v2502
    %3594 = vmatpush.msra.mxu0 %v2494
    %3595 = vmatpush.msra.mxu0 %v2486
    %3596 = vmatmul.f32.gmra.mxu0 %v1327
    %v3597 = vpop.f32.mrf.mxu0
    %v3598 = vadd.f32 %v3578, %v3597
    %3599 = vdwg.mxu0
    %3600 = vmatpush.msra.mxu0 %v2734
    %3601 = vmatpush.msra.mxu0 %v2726
    %3602 = vmatpush.msra.mxu0 %v2718
    %3603 = vmatpush.msra.mxu0 %v2710
    %3604 = vmatpush.msra.mxu0 %v2702
    %3605 = vmatpush.msra.mxu0 %v2694
    %3606 = vmatpush.msra.mxu0 %v2686
    %3607 = vmatpush.msra.mxu0 %v2678
    %3608 = vmatpush.msra.mxu0 %v2670
    %3609 = vmatpush.msra.mxu0 %v2662
    %3610 = vmatpush.msra.mxu0 %v2654
    %3611 = vmatpush.msra.mxu0 %v2646
    %3612 = vmatpush.msra.mxu0 %v2638
    %3613 = vmatpush.msra.mxu0 %v2630
    %3614 = vmatpush.msra.mxu0 %v2622
    %3615 = vmatpush.msra.mxu0 %v2614
    %3616 = vmatmul.f32.gmra.mxu0 %v1328
    %v3617 = vpop.f32.mrf.mxu0
    %v3618 = vadd.f32 %v3598, %v3617
    %3619 = vdwg.mxu0
    %3620 = vmatpush.msra.mxu0 %v2862
    %3621 = vmatpush.msra.mxu0 %v2854
    %3622 = vmatpush.msra.mxu0 %v2846
    %3623 = vmatpush.msra.mxu0 %v2838
    %3624 = vmatpush.msra.mxu0 %v2830
    %3625 = vmatpush.msra.mxu0 %v2822
    %3626 = vmatpush.msra.mxu0 %v2814
    %3627 = vmatpush.msra.mxu0 %v2806
    %3628 = vmatpush.msra.mxu0 %v2798
    %3629 = vmatpush.msra.mxu0 %v2790
    %3630 = vmatpush.msra.mxu0 %v2782
    %3631 = vmatpush.msra.mxu0 %v2774
    %3632 = vmatpush.msra.mxu0 %v2766
    %3633 = vmatpush.msra.mxu0 %v2758
    %3634 = vmatpush.msra.mxu0 %v2750
    %3635 = vmatpush.msra.mxu0 %v2742
    %3636 = vmatmul.f32.gmra.mxu0 %v1329
    %v3637 = vpop.f32.mrf.mxu0
    %v3638 = vadd.f32 %v3618, %v3637
    %3639 = vdwg.mxu0
    %3640 = vmatpush.msra.mxu0 %v2990
    %3641 = vmatpush.msra.mxu0 %v2982
    %3642 = vmatpush.msra.mxu0 %v2974
    %3643 = vmatpush.msra.mxu0 %v2966
    %3644 = vmatpush.msra.mxu0 %v2958
    %3645 = vmatpush.msra.mxu0 %v2950
    %3646 = vmatpush.msra.mxu0 %v2942
    %3647 = vmatpush.msra.mxu0 %v2934
    %3648 = vmatpush.msra.mxu0 %v2926
    %3649 = vmatpush.msra.mxu0 %v2918
    %3650 = vmatpush.msra.mxu0 %v2910
    %3651 = vmatpush.msra.mxu0 %v2902
    %3652 = vmatpush.msra.mxu0 %v2894
    %3653 = vmatpush.msra.mxu0 %v2886
    %3654 = vmatpush.msra.mxu0 %v2878
    %3655 = vmatpush.msra.mxu0 %v2870
    %3656 = vmatmul.f32.gmra.mxu0 %v1330
    %v3657 = vpop.f32.mrf.mxu0
    %v3658 = vadd.f32 %v3638, %v3657
    %3659 = vdwg.mxu0
    %3660 = vmatpush.msra.mxu0 %v3118
    %3661 = vmatpush.msra.mxu0 %v3110
    %3662 = vmatpush.msra.mxu0 %v3102
    %3663 = vmatpush.msra.mxu0 %v3094
    %3664 = vmatpush.msra.mxu0 %v3086
    %3665 = vmatpush.msra.mxu0 %v3078
    %3666 = vmatpush.msra.mxu0 %v3070
    %3667 = vmatpush.msra.mxu0 %v3062
    %3668 = vmatpush.msra.mxu0 %v3054
    %3669 = vmatpush.msra.mxu0 %v3046
    %3670 = vmatpush.msra.mxu0 %v3038
    %3671 = vmatpush.msra.mxu0 %v3030
    %3672 = vmatpush.msra.mxu0 %v3022
    %3673 = vmatpush.msra.mxu0 %v3014
    %3674 = vmatpush.msra.mxu0 %v3006
    %3675 = vmatpush.msra.mxu0 %v2998
    %3676 = vmatmul.f32.gmra.mxu0 %v1331
    %v3677 = vpop.f32.mrf.mxu0
    %v3678 = vadd.f32 %v3658, %v3677
    %3679 = vdwg.mxu0
    %3680 = vmatpush.msra.mxu0 %v3246
    %3681 = vmatpush.msra.mxu0 %v3238
    %3682 = vmatpush.msra.mxu0 %v3230
    %3683 = vmatpush.msra.mxu0 %v3222
    %3684 = vmatpush.msra.mxu0 %v3214
    %3685 = vmatpush.msra.mxu0 %v3206
    %3686 = vmatpush.msra.mxu0 %v3198
    %3687 = vmatpush.msra.mxu0 %v3190
    %3688 = vmatpush.msra.mxu0 %v3182
    %3689 = vmatpush.msra.mxu0 %v3174
    %3690 = vmatpush.msra.mxu0 %v3166
    %3691 = vmatpush.msra.mxu0 %v3158
    %3692 = vmatpush.msra.mxu0 %v3150
    %3693 = vmatpush.msra.mxu0 %v3142
    %3694 = vmatpush.msra.mxu0 %v3134
    %3695 = vmatpush.msra.mxu0 %v3126
    %3696 = vmatmul.f32.gmra.mxu0 %v1332
    %v3697 = vpop.f32.mrf.mxu0
    %v3698 = vadd.f32 %v3678, %v3697
    %3699 = vdwg.mxu0
    %3700 = vmatpush.msra.mxu0 %v3374
    %3701 = vmatpush.msra.mxu0 %v3366
    %3702 = vmatpush.msra.mxu0 %v3358
    %3703 = vmatpush.msra.mxu0 %v3350
    %3704 = vmatpush.msra.mxu0 %v3342
    %3705 = vmatpush.msra.mxu0 %v3334
    %3706 = vmatpush.msra.mxu0 %v3326
    %3707 = vmatpush.msra.mxu0 %v3318
    %3708 = vmatpush.msra.mxu0 %v3310
    %3709 = vmatpush.msra.mxu0 %v3302
    %3710 = vmatpush.msra.mxu0 %v3294
    %3711 = vmatpush.msra.mxu0 %v3286
    %3712 = vmatpush.msra.mxu0 %v3278
    %3713 = vmatpush.msra.mxu0 %v3270
    %3714 = vmatpush.msra.mxu0 %v3262
    %3715 = vmatpush.msra.mxu0 %v3254
    %3716 = vmatmul.f32.gmra.mxu0 %v1333
    %v3717 = vpop.f32.mrf.mxu0
    %v3718 = vadd.f32 %v3698, %v3717
    %3719 = vdwg.mxu0
    %3720 = vmatpush.msra.mxu0 %v1455
    %3721 = vmatpush.msra.mxu0 %v1447
    %3722 = vmatpush.msra.mxu0 %v1439
    %3723 = vmatpush.msra.mxu0 %v1431
    %3724 = vmatpush.msra.mxu0 %v1423
    %3725 = vmatpush.msra.mxu0 %v1415
    %3726 = vmatpush.msra.mxu0 %v1407
    %3727 = vmatpush.msra.mxu0 %v1399
    %3728 = vmatpush.msra.mxu0 %v1391
    %3729 = vmatpush.msra.mxu0 %v1383
    %3730 = vmatpush.msra.mxu0 %v1375
    %3731 = vmatpush.msra.mxu0 %v1367
    %3732 = vmatpush.msra.mxu0 %v1359
    %3733 = vmatpush.msra.mxu0 %v1351
    %3734 = vmatpush.msra.mxu0 %v1343
    %3735 = vmatpush.msra.mxu0 %v1335
    %3736 = vmatmul.f32.gmra.mxu0 %v1318
    %v3737 = vpop.f32.mrf.mxu0
    %v3738 = vadd.f32 %v3385, %v3737
    %3739 = vdwg.mxu0
    %3740 = vmatpush.msra.mxu0 %v1583
    %3741 = vmatpush.msra.mxu0 %v1575
    %3742 = vmatpush.msra.mxu0 %v1567
    %3743 = vmatpush.msra.mxu0 %v1559
    %3744 = vmatpush.msra.mxu0 %v1551
    %3745 = vmatpush.msra.mxu0 %v1543
    %3746 = vmatpush.msra.mxu0 %v1535
    %3747 = vmatpush.msra.mxu0 %v1527
    %3748 = vmatpush.msra.mxu0 %v1519
    %3749 = vmatpush.msra.mxu0 %v1511
    %3750 = vmatpush.msra.mxu0 %v1503
    %3751 = vmatpush.msra.mxu0 %v1495
    %3752 = vmatpush.msra.mxu0 %v1487
    %3753 = vmatpush.msra.mxu0 %v1479
    %3754 = vmatpush.msra.mxu0 %v1471
    %3755 = vmatpush.msra.mxu0 %v1463
    %3756 = vmatmul.f32.gmra.mxu0 %v1319
    %v3757 = vpop.f32.mrf.mxu0
    %v3758 = vadd.f32 %v3738, %v3757
    %3759 = vdwg.mxu0
    %3760 = vmatpush.msra.mxu0 %v1711
    %3761 = vmatpush.msra.mxu0 %v1703
    %3762 = vmatpush.msra.mxu0 %v1695
    %3763 = vmatpush.msra.mxu0 %v1687
    %3764 = vmatpush.msra.mxu0 %v1679
    %3765 = vmatpush.msra.mxu0 %v1671
    %3766 = vmatpush.msra.mxu0 %v1663
    %3767 = vmatpush.msra.mxu0 %v1655
    %3768 = vmatpush.msra.mxu0 %v1647
    %3769 = vmatpush.msra.mxu0 %v1639
    %3770 = vmatpush.msra.mxu0 %v1631
    %3771 = vmatpush.msra.mxu0 %v1623
    %3772 = vmatpush.msra.mxu0 %v1615
    %3773 = vmatpush.msra.mxu0 %v1607
    %3774 = vmatpush.msra.mxu0 %v1599
    %3775 = vmatpush.msra.mxu0 %v1591
    %3776 = vmatmul.f32.gmra.mxu0 %v1320
    %v3777 = vpop.f32.mrf.mxu0
    %v3778 = vadd.f32 %v3758, %v3777
    %3779 = vdwg.mxu0
    %3780 = vmatpush.msra.mxu0 %v1839
    %3781 = vmatpush.msra.mxu0 %v1831
    %3782 = vmatpush.msra.mxu0 %v1823
    %3783 = vmatpush.msra.mxu0 %v1815
    %3784 = vmatpush.msra.mxu0 %v1807
    %3785 = vmatpush.msra.mxu0 %v1799
    %3786 = vmatpush.msra.mxu0 %v1791
    %3787 = vmatpush.msra.mxu0 %v1783
    %3788 = vmatpush.msra.mxu0 %v1775
    %3789 = vmatpush.msra.mxu0 %v1767
    %3790 = vmatpush.msra.mxu0 %v1759
    %3791 = vmatpush.msra.mxu0 %v1751
    %3792 = vmatpush.msra.mxu0 %v1743
    %3793 = vmatpush.msra.mxu0 %v1735
    %3794 = vmatpush.msra.mxu0 %v1727
    %3795 = vmatpush.msra.mxu0 %v1719
    %3796 = vmatmul.f32.gmra.mxu0 %v1321
    %v3797 = vpop.f32.mrf.mxu0
    %v3798 = vadd.f32 %v3778, %v3797
    %3799 = vdwg.mxu0
    %3800 = vmatpush.msra.mxu0 %v1967
    %3801 = vmatpush.msra.mxu0 %v1959
    %3802 = vmatpush.msra.mxu0 %v1951
    %3803 = vmatpush.msra.mxu0 %v1943
    %3804 = vmatpush.msra.mxu0 %v1935
    %3805 = vmatpush.msra.mxu0 %v1927
    %3806 = vmatpush.msra.mxu0 %v1919
    %3807 = vmatpush.msra.mxu0 %v1911
    %3808 = vmatpush.msra.mxu0 %v1903
    %3809 = vmatpush.msra.mxu0 %v1895
    %3810 = vmatpush.msra.mxu0 %v1887
    %3811 = vmatpush.msra.mxu0 %v1879
    %3812 = vmatpush.msra.mxu0 %v1871
    %3813 = vmatpush.msra.mxu0 %v1863
    %3814 = vmatpush.msra.mxu0 %v1855
    %3815 = vmatpush.msra.mxu0 %v1847
    %3816 = vmatmul.f32.gmra.mxu0 %v1322
    %v3817 = vpop.f32.mrf.mxu0
    %v3818 = vadd.f32 %v3798, %v3817
    %3819 = vdwg.mxu0
    %3820 = vmatpush.msra.mxu0 %v2095
    %3821 = vmatpush.msra.mxu0 %v2087
    %3822 = vmatpush.msra.mxu0 %v2079
    %3823 = vmatpush.msra.mxu0 %v2071
    %3824 = vmatpush.msra.mxu0 %v2063
    %3825 = vmatpush.msra.mxu0 %v2055
    %3826 = vmatpush.msra.mxu0 %v2047
    %3827 = vmatpush.msra.mxu0 %v2039
    %3828 = vmatpush.msra.mxu0 %v2031
    %3829 = vmatpush.msra.mxu0 %v2023
    %3830 = vmatpush.msra.mxu0 %v2015
    %3831 = vmatpush.msra.mxu0 %v2007
    %3832 = vmatpush.msra.mxu0 %v1999
    %3833 = vmatpush.msra.mxu0 %v1991
    %3834 = vmatpush.msra.mxu0 %v1983
    %3835 = vmatpush.msra.mxu0 %v1975
    %3836 = vmatmul.f32.gmra.mxu0 %v1323
    %v3837 = vpop.f32.mrf.mxu0
    %v3838 = vadd.f32 %v3818, %v3837
    %3839 = vdwg.mxu0
    %3840 = vmatpush.msra.mxu0 %v2223
    %3841 = vmatpush.msra.mxu0 %v2215
    %3842 = vmatpush.msra.mxu0 %v2207
    %3843 = vmatpush.msra.mxu0 %v2199
    %3844 = vmatpush.msra.mxu0 %v2191
    %3845 = vmatpush.msra.mxu0 %v2183
    %3846 = vmatpush.msra.mxu0 %v2175
    %3847 = vmatpush.msra.mxu0 %v2167
    %3848 = vmatpush.msra.mxu0 %v2159
    %3849 = vmatpush.msra.mxu0 %v2151
    %3850 = vmatpush.msra.mxu0 %v2143
    %3851 = vmatpush.msra.mxu0 %v2135
    %3852 = vmatpush.msra.mxu0 %v2127
    %3853 = vmatpush.msra.mxu0 %v2119
    %3854 = vmatpush.msra.mxu0 %v2111
    %3855 = vmatpush.msra.mxu0 %v2103
    %3856 = vmatmul.f32.gmra.mxu0 %v1324
    %v3857 = vpop.f32.mrf.mxu0
    %v3858 = vadd.f32 %v3838, %v3857
    %3859 = vdwg.mxu0
    %3860 = vmatpush.msra.mxu0 %v2351
    %3861 = vmatpush.msra.mxu0 %v2343
    %3862 = vmatpush.msra.mxu0 %v2335
    %3863 = vmatpush.msra.mxu0 %v2327
    %3864 = vmatpush.msra.mxu0 %v2319
    %3865 = vmatpush.msra.mxu0 %v2311
    %3866 = vmatpush.msra.mxu0 %v2303
    %3867 = vmatpush.msra.mxu0 %v2295
    %3868 = vmatpush.msra.mxu0 %v2287
    %3869 = vmatpush.msra.mxu0 %v2279
    %3870 = vmatpush.msra.mxu0 %v2271
    %3871 = vmatpush.msra.mxu0 %v2263
    %3872 = vmatpush.msra.mxu0 %v2255
    %3873 = vmatpush.msra.mxu0 %v2247
    %3874 = vmatpush.msra.mxu0 %v2239
    %3875 = vmatpush.msra.mxu0 %v2231
    %3876 = vmatmul.f32.gmra.mxu0 %v1325
    %v3877 = vpop.f32.mrf.mxu0
    %v3878 = vadd.f32 %v3858, %v3877
    %3879 = vdwg.mxu0
    %3880 = vmatpush.msra.mxu0 %v2479
    %3881 = vmatpush.msra.mxu0 %v2471
    %3882 = vmatpush.msra.mxu0 %v2463
    %3883 = vmatpush.msra.mxu0 %v2455
    %3884 = vmatpush.msra.mxu0 %v2447
    %3885 = vmatpush.msra.mxu0 %v2439
    %3886 = vmatpush.msra.mxu0 %v2431
    %3887 = vmatpush.msra.mxu0 %v2423
    %3888 = vmatpush.msra.mxu0 %v2415
    %3889 = vmatpush.msra.mxu0 %v2407
    %3890 = vmatpush.msra.mxu0 %v2399
    %3891 = vmatpush.msra.mxu0 %v2391
    %3892 = vmatpush.msra.mxu0 %v2383
    %3893 = vmatpush.msra.mxu0 %v2375
    %3894 = vmatpush.msra.mxu0 %v2367
    %3895 = vmatpush.msra.mxu0 %v2359
    %3896 = vmatmul.f32.gmra.mxu0 %v1326
    %v3897 = vpop.f32.mrf.mxu0
    %v3898 = vadd.f32 %v3878, %v3897
    %3899 = vdwg.mxu0
    %3900 = vmatpush.msra.mxu0 %v2607
    %3901 = vmatpush.msra.mxu0 %v2599
    %3902 = vmatpush.msra.mxu0 %v2591
    %3903 = vmatpush.msra.mxu0 %v2583
    %3904 = vmatpush.msra.mxu0 %v2575
    %3905 = vmatpush.msra.mxu0 %v2567
    %3906 = vmatpush.msra.mxu0 %v2559
    %3907 = vmatpush.msra.mxu0 %v2551
    %3908 = vmatpush.msra.mxu0 %v2543
    %3909 = vmatpush.msra.mxu0 %v2535
    %3910 = vmatpush.msra.mxu0 %v2527
    %3911 = vmatpush.msra.mxu0 %v2519
    %3912 = vmatpush.msra.mxu0 %v2511
    %3913 = vmatpush.msra.mxu0 %v2503
    %3914 = vmatpush.msra.mxu0 %v2495
    %3915 = vmatpush.msra.mxu0 %v2487
    %3916 = vmatmul.f32.gmra.mxu0 %v1327
    %v3917 = vpop.f32.mrf.mxu0
    %v3918 = vadd.f32 %v3898, %v3917
    %3919 = vdwg.mxu0
    %3920 = vmatpush.msra.mxu0 %v2735
    %3921 = vmatpush.msra.mxu0 %v2727
    %3922 = vmatpush.msra.mxu0 %v2719
    %3923 = vmatpush.msra.mxu0 %v2711
    %3924 = vmatpush.msra.mxu0 %v2703
    %3925 = vmatpush.msra.mxu0 %v2695
    %3926 = vmatpush.msra.mxu0 %v2687
    %3927 = vmatpush.msra.mxu0 %v2679
    %3928 = vmatpush.msra.mxu0 %v2671
    %3929 = vmatpush.msra.mxu0 %v2663
    %3930 = vmatpush.msra.mxu0 %v2655
    %3931 = vmatpush.msra.mxu0 %v2647
    %3932 = vmatpush.msra.mxu0 %v2639
    %3933 = vmatpush.msra.mxu0 %v2631
    %3934 = vmatpush.msra.mxu0 %v2623
    %3935 = vmatpush.msra.mxu0 %v2615
    %3936 = vmatmul.f32.gmra.mxu0 %v1328
    %v3937 = vpop.f32.mrf.mxu0
    %v3938 = vadd.f32 %v3918, %v3937
    %3939 = vdwg.mxu0
    %3940 = vmatpush.msra.mxu0 %v2863
    %3941 = vmatpush.msra.mxu0 %v2855
    %3942 = vmatpush.msra.mxu0 %v2847
    %3943 = vmatpush.msra.mxu0 %v2839
    %3944 = vmatpush.msra.mxu0 %v2831
    %3945 = vmatpush.msra.mxu0 %v2823
    %3946 = vmatpush.msra.mxu0 %v2815
    %3947 = vmatpush.msra.mxu0 %v2807
    %3948 = vmatpush.msra.mxu0 %v2799
    %3949 = vmatpush.msra.mxu0 %v2791
    %3950 = vmatpush.msra.mxu0 %v2783
    %3951 = vmatpush.msra.mxu0 %v2775
    %3952 = vmatpush.msra.mxu0 %v2767
    %3953 = vmatpush.msra.mxu0 %v2759
    %3954 = vmatpush.msra.mxu0 %v2751
    %3955 = vmatpush.msra.mxu0 %v2743
    %3956 = vmatmul.f32.gmra.mxu0 %v1329
    %v3957 = vpop.f32.mrf.mxu0
    %v3958 = vadd.f32 %v3938, %v3957
    %3959 = vdwg.mxu0
    %3960 = vmatpush.msra.mxu0 %v2991
    %3961 = vmatpush.msra.mxu0 %v2983
    %3962 = vmatpush.msra.mxu0 %v2975
    %3963 = vmatpush.msra.mxu0 %v2967
    %3964 = vmatpush.msra.mxu0 %v2959
    %3965 = vmatpush.msra.mxu0 %v2951
    %3966 = vmatpush.msra.mxu0 %v2943
    %3967 = vmatpush.msra.mxu0 %v2935
    %3968 = vmatpush.msra.mxu0 %v2927
    %3969 = vmatpush.msra.mxu0 %v2919
    %3970 = vmatpush.msra.mxu0 %v2911
    %3971 = vmatpush.msra.mxu0 %v2903
    %3972 = vmatpush.msra.mxu0 %v2895
    %3973 = vmatpush.msra.mxu0 %v2887
    %3974 = vmatpush.msra.mxu0 %v2879
    %3975 = vmatpush.msra.mxu0 %v2871
    %3976 = vmatmul.f32.gmra.mxu0 %v1330
    %v3977 = vpop.f32.mrf.mxu0
    %v3978 = vadd.f32 %v3958, %v3977
    %3979 = vdwg.mxu0
    %3980 = vmatpush.msra.mxu0 %v3119
    %3981 = vmatpush.msra.mxu0 %v3111
    %3982 = vmatpush.msra.mxu0 %v3103
    %3983 = vmatpush.msra.mxu0 %v3095
    %3984 = vmatpush.msra.mxu0 %v3087
    %3985 = vmatpush.msra.mxu0 %v3079
    %3986 = vmatpush.msra.mxu0 %v3071
    %3987 = vmatpush.msra.mxu0 %v3063
    %3988 = vmatpush.msra.mxu0 %v3055
    %3989 = vmatpush.msra.mxu0 %v3047
    %3990 = vmatpush.msra.mxu0 %v3039
    %3991 = vmatpush.msra.mxu0 %v3031
    %3992 = vmatpush.msra.mxu0 %v3023
    %3993 = vmatpush.msra.mxu0 %v3015
    %3994 = vmatpush.msra.mxu0 %v3007
    %3995 = vmatpush.msra.mxu0 %v2999
    %3996 = vmatmul.f32.gmra.mxu0 %v1331
    %v3997 = vpop.f32.mrf.mxu0
    %v3998 = vadd.f32 %v3978, %v3997
    %3999 = vdwg.mxu0
    %4000 = vmatpush.msra.mxu0 %v3247
    %4001 = vmatpush.msra.mxu0 %v3239
    %4002 = vmatpush.msra.mxu0 %v3231
    %4003 = vmatpush.msra.mxu0 %v3223
    %4004 = vmatpush.msra.mxu0 %v3215
    %4005 = vmatpush.msra.mxu0 %v3207
    %4006 = vmatpush.msra.mxu0 %v3199
    %4007 = vmatpush.msra.mxu0 %v3191
    %4008 = vmatpush.msra.mxu0 %v3183
    %4009 = vmatpush.msra.mxu0 %v3175
    %4010 = vmatpush.msra.mxu0 %v3167
    %4011 = vmatpush.msra.mxu0 %v3159
    %4012 = vmatpush.msra.mxu0 %v3151
    %4013 = vmatpush.msra.mxu0 %v3143
    %4014 = vmatpush.msra.mxu0 %v3135
    %4015 = vmatpush.msra.mxu0 %v3127
    %4016 = vmatmul.f32.gmra.mxu0 %v1332
    %v4017 = vpop.f32.mrf.mxu0
    %v4018 = vadd.f32 %v3998, %v4017
    %4019 = vdwg.mxu0
    %4020 = vmatpush.msra.mxu0 %v3375
    %4021 = vmatpush.msra.mxu0 %v3367
    %4022 = vmatpush.msra.mxu0 %v3359
    %4023 = vmatpush.msra.mxu0 %v3351
    %4024 = vmatpush.msra.mxu0 %v3343
    %4025 = vmatpush.msra.mxu0 %v3335
    %4026 = vmatpush.msra.mxu0 %v3327
    %4027 = vmatpush.msra.mxu0 %v3319
    %4028 = vmatpush.msra.mxu0 %v3311
    %4029 = vmatpush.msra.mxu0 %v3303
    %4030 = vmatpush.msra.mxu0 %v3295
    %4031 = vmatpush.msra.mxu0 %v3287
    %4032 = vmatpush.msra.mxu0 %v3279
    %4033 = vmatpush.msra.mxu0 %v3271
    %4034 = vmatpush.msra.mxu0 %v3263
    %4035 = vmatpush.msra.mxu0 %v3255
    %4036 = vmatmul.f32.gmra.mxu0 %v1333
    %v4037 = vpop.f32.mrf.mxu0
    %v4038 = vadd.f32 %v4018, %v4037
    %4039 = vdwg.mxu0
    %4040 = vmatpush.msra.mxu0 %v1456
    %4041 = vmatpush.msra.mxu0 %v1448
    %4042 = vmatpush.msra.mxu0 %v1440
    %4043 = vmatpush.msra.mxu0 %v1432
    %4044 = vmatpush.msra.mxu0 %v1424
    %4045 = vmatpush.msra.mxu0 %v1416
    %4046 = vmatpush.msra.mxu0 %v1408
    %4047 = vmatpush.msra.mxu0 %v1400
    %4048 = vmatpush.msra.mxu0 %v1392
    %4049 = vmatpush.msra.mxu0 %v1384
    %4050 = vmatpush.msra.mxu0 %v1376
    %4051 = vmatpush.msra.mxu0 %v1368
    %4052 = vmatpush.msra.mxu0 %v1360
    %4053 = vmatpush.msra.mxu0 %v1352
    %4054 = vmatpush.msra.mxu0 %v1344
    %4055 = vmatpush.msra.mxu0 %v1336
    %4056 = vmatmul.f32.gmra.mxu0 %v1318
    %v4057 = vpop.f32.mrf.mxu0
    %v4058 = vadd.f32 %v3386, %v4057
    %4059 = vdwg.mxu0
    %4060 = vmatpush.msra.mxu0 %v1584
    %4061 = vmatpush.msra.mxu0 %v1576
    %4062 = vmatpush.msra.mxu0 %v1568
    %4063 = vmatpush.msra.mxu0 %v1560
    %4064 = vmatpush.msra.mxu0 %v1552
    %4065 = vmatpush.msra.mxu0 %v1544
    %4066 = vmatpush.msra.mxu0 %v1536
    %4067 = vmatpush.msra.mxu0 %v1528
    %4068 = vmatpush.msra.mxu0 %v1520
    %4069 = vmatpush.msra.mxu0 %v1512
    %4070 = vmatpush.msra.mxu0 %v1504
    %4071 = vmatpush.msra.mxu0 %v1496
    %4072 = vmatpush.msra.mxu0 %v1488
    %4073 = vmatpush.msra.mxu0 %v1480
    %4074 = vmatpush.msra.mxu0 %v1472
    %4075 = vmatpush.msra.mxu0 %v1464
    %4076 = vmatmul.f32.gmra.mxu0 %v1319
    %v4077 = vpop.f32.mrf.mxu0
    %v4078 = vadd.f32 %v4058, %v4077
    %4079 = vdwg.mxu0
    %4080 = vmatpush.msra.mxu0 %v1712
    %4081 = vmatpush.msra.mxu0 %v1704
    %4082 = vmatpush.msra.mxu0 %v1696
    %4083 = vmatpush.msra.mxu0 %v1688
    %4084 = vmatpush.msra.mxu0 %v1680
    %4085 = vmatpush.msra.mxu0 %v1672
    %4086 = vmatpush.msra.mxu0 %v1664
    %4087 = vmatpush.msra.mxu0 %v1656
    %4088 = vmatpush.msra.mxu0 %v1648
    %4089 = vmatpush.msra.mxu0 %v1640
    %4090 = vmatpush.msra.mxu0 %v1632
    %4091 = vmatpush.msra.mxu0 %v1624
    %4092 = vmatpush.msra.mxu0 %v1616
    %4093 = vmatpush.msra.mxu0 %v1608
    %4094 = vmatpush.msra.mxu0 %v1600
    %4095 = vmatpush.msra.mxu0 %v1592
    %4096 = vmatmul.f32.gmra.mxu0 %v1320
    %v4097 = vpop.f32.mrf.mxu0
    %v4098 = vadd.f32 %v4078, %v4097
    %4099 = vdwg.mxu0
    %4100 = vmatpush.msra.mxu0 %v1840
    %4101 = vmatpush.msra.mxu0 %v1832
    %4102 = vmatpush.msra.mxu0 %v1824
    %4103 = vmatpush.msra.mxu0 %v1816
    %4104 = vmatpush.msra.mxu0 %v1808
    %4105 = vmatpush.msra.mxu0 %v1800
    %4106 = vmatpush.msra.mxu0 %v1792
    %4107 = vmatpush.msra.mxu0 %v1784
    %4108 = vmatpush.msra.mxu0 %v1776
    %4109 = vmatpush.msra.mxu0 %v1768
    %4110 = vmatpush.msra.mxu0 %v1760
    %4111 = vmatpush.msra.mxu0 %v1752
    %4112 = vmatpush.msra.mxu0 %v1744
    %4113 = vmatpush.msra.mxu0 %v1736
    %4114 = vmatpush.msra.mxu0 %v1728
    %4115 = vmatpush.msra.mxu0 %v1720
    %4116 = vmatmul.f32.gmra.mxu0 %v1321
    %v4117 = vpop.f32.mrf.mxu0
    %v4118 = vadd.f32 %v4098, %v4117
    %4119 = vdwg.mxu0
    %4120 = vmatpush.msra.mxu0 %v1968
    %4121 = vmatpush.msra.mxu0 %v1960
    %4122 = vmatpush.msra.mxu0 %v1952
    %4123 = vmatpush.msra.mxu0 %v1944
    %4124 = vmatpush.msra.mxu0 %v1936
    %4125 = vmatpush.msra.mxu0 %v1928
    %4126 = vmatpush.msra.mxu0 %v1920
    %4127 = vmatpush.msra.mxu0 %v1912
    %4128 = vmatpush.msra.mxu0 %v1904
    %4129 = vmatpush.msra.mxu0 %v1896
    %4130 = vmatpush.msra.mxu0 %v1888
    %4131 = vmatpush.msra.mxu0 %v1880
    %4132 = vmatpush.msra.mxu0 %v1872
    %4133 = vmatpush.msra.mxu0 %v1864
    %4134 = vmatpush.msra.mxu0 %v1856
    %4135 = vmatpush.msra.mxu0 %v1848
    %4136 = vmatmul.f32.gmra.mxu0 %v1322
    %v4137 = vpop.f32.mrf.mxu0
    %v4138 = vadd.f32 %v4118, %v4137
    %4139 = vdwg.mxu0
    %4140 = vmatpush.msra.mxu0 %v2096
    %4141 = vmatpush.msra.mxu0 %v2088
    %4142 = vmatpush.msra.mxu0 %v2080
    %4143 = vmatpush.msra.mxu0 %v2072
    %4144 = vmatpush.msra.mxu0 %v2064
    %4145 = vmatpush.msra.mxu0 %v2056
    %4146 = vmatpush.msra.mxu0 %v2048
    %4147 = vmatpush.msra.mxu0 %v2040
    %4148 = vmatpush.msra.mxu0 %v2032
    %4149 = vmatpush.msra.mxu0 %v2024
    %4150 = vmatpush.msra.mxu0 %v2016
    %4151 = vmatpush.msra.mxu0 %v2008
    %4152 = vmatpush.msra.mxu0 %v2000
    %4153 = vmatpush.msra.mxu0 %v1992
    %4154 = vmatpush.msra.mxu0 %v1984
    %4155 = vmatpush.msra.mxu0 %v1976
    %4156 = vmatmul.f32.gmra.mxu0 %v1323
    %v4157 = vpop.f32.mrf.mxu0
    %v4158 = vadd.f32 %v4138, %v4157
    %4159 = vdwg.mxu0
    %4160 = vmatpush.msra.mxu0 %v2224
    %4161 = vmatpush.msra.mxu0 %v2216
    %4162 = vmatpush.msra.mxu0 %v2208
    %4163 = vmatpush.msra.mxu0 %v2200
    %4164 = vmatpush.msra.mxu0 %v2192
    %4165 = vmatpush.msra.mxu0 %v2184
    %4166 = vmatpush.msra.mxu0 %v2176
    %4167 = vmatpush.msra.mxu0 %v2168
    %4168 = vmatpush.msra.mxu0 %v2160
    %4169 = vmatpush.msra.mxu0 %v2152
    %4170 = vmatpush.msra.mxu0 %v2144
    %4171 = vmatpush.msra.mxu0 %v2136
    %4172 = vmatpush.msra.mxu0 %v2128
    %4173 = vmatpush.msra.mxu0 %v2120
    %4174 = vmatpush.msra.mxu0 %v2112
    %4175 = vmatpush.msra.mxu0 %v2104
    %4176 = vmatmul.f32.gmra.mxu0 %v1324
    %v4177 = vpop.f32.mrf.mxu0
    %v4178 = vadd.f32 %v4158, %v4177
    %4179 = vdwg.mxu0
    %4180 = vmatpush.msra.mxu0 %v2352
    %4181 = vmatpush.msra.mxu0 %v2344
    %4182 = vmatpush.msra.mxu0 %v2336
    %4183 = vmatpush.msra.mxu0 %v2328
    %4184 = vmatpush.msra.mxu0 %v2320
    %4185 = vmatpush.msra.mxu0 %v2312
    %4186 = vmatpush.msra.mxu0 %v2304
    %4187 = vmatpush.msra.mxu0 %v2296
    %4188 = vmatpush.msra.mxu0 %v2288
    %4189 = vmatpush.msra.mxu0 %v2280
    %4190 = vmatpush.msra.mxu0 %v2272
    %4191 = vmatpush.msra.mxu0 %v2264
    %4192 = vmatpush.msra.mxu0 %v2256
    %4193 = vmatpush.msra.mxu0 %v2248
    %4194 = vmatpush.msra.mxu0 %v2240
    %4195 = vmatpush.msra.mxu0 %v2232
    %4196 = vmatmul.f32.gmra.mxu0 %v1325
    %v4197 = vpop.f32.mrf.mxu0
    %v4198 = vadd.f32 %v4178, %v4197
    %4199 = vdwg.mxu0
    %4200 = vmatpush.msra.mxu0 %v2480
    %4201 = vmatpush.msra.mxu0 %v2472
    %4202 = vmatpush.msra.mxu0 %v2464
    %4203 = vmatpush.msra.mxu0 %v2456
    %4204 = vmatpush.msra.mxu0 %v2448
    %4205 = vmatpush.msra.mxu0 %v2440
    %4206 = vmatpush.msra.mxu0 %v2432
    %4207 = vmatpush.msra.mxu0 %v2424
    %4208 = vmatpush.msra.mxu0 %v2416
    %4209 = vmatpush.msra.mxu0 %v2408
    %4210 = vmatpush.msra.mxu0 %v2400
    %4211 = vmatpush.msra.mxu0 %v2392
    %4212 = vmatpush.msra.mxu0 %v2384
    %4213 = vmatpush.msra.mxu0 %v2376
    %4214 = vmatpush.msra.mxu0 %v2368
    %4215 = vmatpush.msra.mxu0 %v2360
    %4216 = vmatmul.f32.gmra.mxu0 %v1326
    %v4217 = vpop.f32.mrf.mxu0
    %v4218 = vadd.f32 %v4198, %v4217
    %4219 = vdwg.mxu0
    %4220 = vmatpush.msra.mxu0 %v2608
    %4221 = vmatpush.msra.mxu0 %v2600
    %4222 = vmatpush.msra.mxu0 %v2592
    %4223 = vmatpush.msra.mxu0 %v2584
    %4224 = vmatpush.msra.mxu0 %v2576
    %4225 = vmatpush.msra.mxu0 %v2568
    %4226 = vmatpush.msra.mxu0 %v2560
    %4227 = vmatpush.msra.mxu0 %v2552
    %4228 = vmatpush.msra.mxu0 %v2544
    %4229 = vmatpush.msra.mxu0 %v2536
    %4230 = vmatpush.msra.mxu0 %v2528
    %4231 = vmatpush.msra.mxu0 %v2520
    %4232 = vmatpush.msra.mxu0 %v2512
    %4233 = vmatpush.msra.mxu0 %v2504
    %4234 = vmatpush.msra.mxu0 %v2496
    %4235 = vmatpush.msra.mxu0 %v2488
    %4236 = vmatmul.f32.gmra.mxu0 %v1327
    %v4237 = vpop.f32.mrf.mxu0
    %v4238 = vadd.f32 %v4218, %v4237
    %4239 = vdwg.mxu0
    %4240 = vmatpush.msra.mxu0 %v2736
    %4241 = vmatpush.msra.mxu0 %v2728
    %4242 = vmatpush.msra.mxu0 %v2720
    %4243 = vmatpush.msra.mxu0 %v2712
    %4244 = vmatpush.msra.mxu0 %v2704
    %4245 = vmatpush.msra.mxu0 %v2696
    %4246 = vmatpush.msra.mxu0 %v2688
    %4247 = vmatpush.msra.mxu0 %v2680
    %4248 = vmatpush.msra.mxu0 %v2672
    %4249 = vmatpush.msra.mxu0 %v2664
    %4250 = vmatpush.msra.mxu0 %v2656
    %4251 = vmatpush.msra.mxu0 %v2648
    %4252 = vmatpush.msra.mxu0 %v2640
    %4253 = vmatpush.msra.mxu0 %v2632
    %4254 = vmatpush.msra.mxu0 %v2624
    %4255 = vmatpush.msra.mxu0 %v2616
    %4256 = vmatmul.f32.gmra.mxu0 %v1328
    %v4257 = vpop.f32.mrf.mxu0
    %v4258 = vadd.f32 %v4238, %v4257
    %4259 = vdwg.mxu0
    %4260 = vmatpush.msra.mxu0 %v2864
    %4261 = vmatpush.msra.mxu0 %v2856
    %4262 = vmatpush.msra.mxu0 %v2848
    %4263 = vmatpush.msra.mxu0 %v2840
    %4264 = vmatpush.msra.mxu0 %v2832
    %4265 = vmatpush.msra.mxu0 %v2824
    %4266 = vmatpush.msra.mxu0 %v2816
    %4267 = vmatpush.msra.mxu0 %v2808
    %4268 = vmatpush.msra.mxu0 %v2800
    %4269 = vmatpush.msra.mxu0 %v2792
    %4270 = vmatpush.msra.mxu0 %v2784
    %4271 = vmatpush.msra.mxu0 %v2776
    %4272 = vmatpush.msra.mxu0 %v2768
    %4273 = vmatpush.msra.mxu0 %v2760
    %4274 = vmatpush.msra.mxu0 %v2752
    %4275 = vmatpush.msra.mxu0 %v2744
    %4276 = vmatmul.f32.gmra.mxu0 %v1329
    %v4277 = vpop.f32.mrf.mxu0
    %v4278 = vadd.f32 %v4258, %v4277
    %4279 = vdwg.mxu0
    %4280 = vmatpush.msra.mxu0 %v2992
    %4281 = vmatpush.msra.mxu0 %v2984
    %4282 = vmatpush.msra.mxu0 %v2976
    %4283 = vmatpush.msra.mxu0 %v2968
    %4284 = vmatpush.msra.mxu0 %v2960
    %4285 = vmatpush.msra.mxu0 %v2952
    %4286 = vmatpush.msra.mxu0 %v2944
    %4287 = vmatpush.msra.mxu0 %v2936
    %4288 = vmatpush.msra.mxu0 %v2928
    %4289 = vmatpush.msra.mxu0 %v2920
    %4290 = vmatpush.msra.mxu0 %v2912
    %4291 = vmatpush.msra.mxu0 %v2904
    %4292 = vmatpush.msra.mxu0 %v2896
    %4293 = vmatpush.msra.mxu0 %v2888
    %4294 = vmatpush.msra.mxu0 %v2880
    %4295 = vmatpush.msra.mxu0 %v2872
    %4296 = vmatmul.f32.gmra.mxu0 %v1330
    %v4297 = vpop.f32.mrf.mxu0
    %v4298 = vadd.f32 %v4278, %v4297
    %4299 = vdwg.mxu0
    %4300 = vmatpush.msra.mxu0 %v3120
    %4301 = vmatpush.msra.mxu0 %v3112
    %4302 = vmatpush.msra.mxu0 %v3104
    %4303 = vmatpush.msra.mxu0 %v3096
    %4304 = vmatpush.msra.mxu0 %v3088
    %4305 = vmatpush.msra.mxu0 %v3080
    %4306 = vmatpush.msra.mxu0 %v3072
    %4307 = vmatpush.msra.mxu0 %v3064
    %4308 = vmatpush.msra.mxu0 %v3056
    %4309 = vmatpush.msra.mxu0 %v3048
    %4310 = vmatpush.msra.mxu0 %v3040
    %4311 = vmatpush.msra.mxu0 %v3032
    %4312 = vmatpush.msra.mxu0 %v3024
    %4313 = vmatpush.msra.mxu0 %v3016
    %4314 = vmatpush.msra.mxu0 %v3008
    %4315 = vmatpush.msra.mxu0 %v3000
    %4316 = vmatmul.f32.gmra.mxu0 %v1331
    %v4317 = vpop.f32.mrf.mxu0
    %v4318 = vadd.f32 %v4298, %v4317
    %4319 = vdwg.mxu0
    %4320 = vmatpush.msra.mxu0 %v3248
    %4321 = vmatpush.msra.mxu0 %v3240
    %4322 = vmatpush.msra.mxu0 %v3232
    %4323 = vmatpush.msra.mxu0 %v3224
    %4324 = vmatpush.msra.mxu0 %v3216
    %4325 = vmatpush.msra.mxu0 %v3208
    %4326 = vmatpush.msra.mxu0 %v3200
    %4327 = vmatpush.msra.mxu0 %v3192
    %4328 = vmatpush.msra.mxu0 %v3184
    %4329 = vmatpush.msra.mxu0 %v3176
    %4330 = vmatpush.msra.mxu0 %v3168
    %4331 = vmatpush.msra.mxu0 %v3160
    %4332 = vmatpush.msra.mxu0 %v3152
    %4333 = vmatpush.msra.mxu0 %v3144
    %4334 = vmatpush.msra.mxu0 %v3136
    %4335 = vmatpush.msra.mxu0 %v3128
    %4336 = vmatmul.f32.gmra.mxu0 %v1332
    %v4337 = vpop.f32.mrf.mxu0
    %v4338 = vadd.f32 %v4318, %v4337
    %4339 = vdwg.mxu0
    %4340 = vmatpush.msra.mxu0 %v3376
    %4341 = vmatpush.msra.mxu0 %v3368
    %4342 = vmatpush.msra.mxu0 %v3360
    %4343 = vmatpush.msra.mxu0 %v3352
    %4344 = vmatpush.msra.mxu0 %v3344
    %4345 = vmatpush.msra.mxu0 %v3336
    %4346 = vmatpush.msra.mxu0 %v3328
    %4347 = vmatpush.msra.mxu0 %v3320
    %4348 = vmatpush.msra.mxu0 %v3312
    %4349 = vmatpush.msra.mxu0 %v3304
    %4350 = vmatpush.msra.mxu0 %v3296
    %4351 = vmatpush.msra.mxu0 %v3288
    %4352 = vmatpush.msra.mxu0 %v3280
    %4353 = vmatpush.msra.mxu0 %v3272
    %4354 = vmatpush.msra.mxu0 %v3264
    %4355 = vmatpush.msra.mxu0 %v3256
    %4356 = vmatmul.f32.gmra.mxu0 %v1333
    %v4357 = vpop.f32.mrf.mxu0
    %v4358 = vadd.f32 %v4338, %v4357
    %4359 = vdwg.mxu0
    %4360 = vmatpush.msra.mxu0 %v1457
    %4361 = vmatpush.msra.mxu0 %v1449
    %4362 = vmatpush.msra.mxu0 %v1441
    %4363 = vmatpush.msra.mxu0 %v1433
    %4364 = vmatpush.msra.mxu0 %v1425
    %4365 = vmatpush.msra.mxu0 %v1417
    %4366 = vmatpush.msra.mxu0 %v1409
    %4367 = vmatpush.msra.mxu0 %v1401
    %4368 = vmatpush.msra.mxu0 %v1393
    %4369 = vmatpush.msra.mxu0 %v1385
    %4370 = vmatpush.msra.mxu0 %v1377
    %4371 = vmatpush.msra.mxu0 %v1369
    %4372 = vmatpush.msra.mxu0 %v1361
    %4373 = vmatpush.msra.mxu0 %v1353
    %4374 = vmatpush.msra.mxu0 %v1345
    %4375 = vmatpush.msra.mxu0 %v1337
    %4376 = vmatmul.f32.gmra.mxu0 %v1318
    %v4377 = vpop.f32.mrf.mxu0
    %v4378 = vadd.f32 %v3387, %v4377
    %4379 = vdwg.mxu0
    %4380 = vmatpush.msra.mxu0 %v1585
    %4381 = vmatpush.msra.mxu0 %v1577
    %4382 = vmatpush.msra.mxu0 %v1569
    %4383 = vmatpush.msra.mxu0 %v1561
    %4384 = vmatpush.msra.mxu0 %v1553
    %4385 = vmatpush.msra.mxu0 %v1545
    %4386 = vmatpush.msra.mxu0 %v1537
    %4387 = vmatpush.msra.mxu0 %v1529
    %4388 = vmatpush.msra.mxu0 %v1521
    %4389 = vmatpush.msra.mxu0 %v1513
    %4390 = vmatpush.msra.mxu0 %v1505
    %4391 = vmatpush.msra.mxu0 %v1497
    %4392 = vmatpush.msra.mxu0 %v1489
    %4393 = vmatpush.msra.mxu0 %v1481
    %4394 = vmatpush.msra.mxu0 %v1473
    %4395 = vmatpush.msra.mxu0 %v1465
    %4396 = vmatmul.f32.gmra.mxu0 %v1319
    %v4397 = vpop.f32.mrf.mxu0
    %v4398 = vadd.f32 %v4378, %v4397
    %4399 = vdwg.mxu0
    %4400 = vmatpush.msra.mxu0 %v1713
    %4401 = vmatpush.msra.mxu0 %v1705
    %4402 = vmatpush.msra.mxu0 %v1697
    %4403 = vmatpush.msra.mxu0 %v1689
    %4404 = vmatpush.msra.mxu0 %v1681
    %4405 = vmatpush.msra.mxu0 %v1673
    %4406 = vmatpush.msra.mxu0 %v1665
    %4407 = vmatpush.msra.mxu0 %v1657
    %4408 = vmatpush.msra.mxu0 %v1649
    %4409 = vmatpush.msra.mxu0 %v1641
    %4410 = vmatpush.msra.mxu0 %v1633
    %4411 = vmatpush.msra.mxu0 %v1625
    %4412 = vmatpush.msra.mxu0 %v1617
    %4413 = vmatpush.msra.mxu0 %v1609
    %4414 = vmatpush.msra.mxu0 %v1601
    %4415 = vmatpush.msra.mxu0 %v1593
    %4416 = vmatmul.f32.gmra.mxu0 %v1320
    %v4417 = vpop.f32.mrf.mxu0
    %v4418 = vadd.f32 %v4398, %v4417
    %4419 = vdwg.mxu0
    %4420 = vmatpush.msra.mxu0 %v1841
    %4421 = vmatpush.msra.mxu0 %v1833
    %4422 = vmatpush.msra.mxu0 %v1825
    %4423 = vmatpush.msra.mxu0 %v1817
    %4424 = vmatpush.msra.mxu0 %v1809
    %4425 = vmatpush.msra.mxu0 %v1801
    %4426 = vmatpush.msra.mxu0 %v1793
    %4427 = vmatpush.msra.mxu0 %v1785
    %4428 = vmatpush.msra.mxu0 %v1777
    %4429 = vmatpush.msra.mxu0 %v1769
    %4430 = vmatpush.msra.mxu0 %v1761
    %4431 = vmatpush.msra.mxu0 %v1753
    %4432 = vmatpush.msra.mxu0 %v1745
    %4433 = vmatpush.msra.mxu0 %v1737
    %4434 = vmatpush.msra.mxu0 %v1729
    %4435 = vmatpush.msra.mxu0 %v1721
    %4436 = vmatmul.f32.gmra.mxu0 %v1321
    %v4437 = vpop.f32.mrf.mxu0
    %v4438 = vadd.f32 %v4418, %v4437
    %4439 = vdwg.mxu0
    %4440 = vmatpush.msra.mxu0 %v1969
    %4441 = vmatpush.msra.mxu0 %v1961
    %4442 = vmatpush.msra.mxu0 %v1953
    %4443 = vmatpush.msra.mxu0 %v1945
    %4444 = vmatpush.msra.mxu0 %v1937
    %4445 = vmatpush.msra.mxu0 %v1929
    %4446 = vmatpush.msra.mxu0 %v1921
    %4447 = vmatpush.msra.mxu0 %v1913
    %4448 = vmatpush.msra.mxu0 %v1905
    %4449 = vmatpush.msra.mxu0 %v1897
    %4450 = vmatpush.msra.mxu0 %v1889
    %4451 = vmatpush.msra.mxu0 %v1881
    %4452 = vmatpush.msra.mxu0 %v1873
    %4453 = vmatpush.msra.mxu0 %v1865
    %4454 = vmatpush.msra.mxu0 %v1857
    %4455 = vmatpush.msra.mxu0 %v1849
    %4456 = vmatmul.f32.gmra.mxu0 %v1322
    %v4457 = vpop.f32.mrf.mxu0
    %v4458 = vadd.f32 %v4438, %v4457
    %4459 = vdwg.mxu0
    %4460 = vmatpush.msra.mxu0 %v2097
    %4461 = vmatpush.msra.mxu0 %v2089
    %4462 = vmatpush.msra.mxu0 %v2081
    %4463 = vmatpush.msra.mxu0 %v2073
    %4464 = vmatpush.msra.mxu0 %v2065
    %4465 = vmatpush.msra.mxu0 %v2057
    %4466 = vmatpush.msra.mxu0 %v2049
    %4467 = vmatpush.msra.mxu0 %v2041
    %4468 = vmatpush.msra.mxu0 %v2033
    %4469 = vmatpush.msra.mxu0 %v2025
    %4470 = vmatpush.msra.mxu0 %v2017
    %4471 = vmatpush.msra.mxu0 %v2009
    %4472 = vmatpush.msra.mxu0 %v2001
    %4473 = vmatpush.msra.mxu0 %v1993
    %4474 = vmatpush.msra.mxu0 %v1985
    %4475 = vmatpush.msra.mxu0 %v1977
    %4476 = vmatmul.f32.gmra.mxu0 %v1323
    %v4477 = vpop.f32.mrf.mxu0
    %v4478 = vadd.f32 %v4458, %v4477
    %4479 = vdwg.mxu0
    %4480 = vmatpush.msra.mxu0 %v2225
    %4481 = vmatpush.msra.mxu0 %v2217
    %4482 = vmatpush.msra.mxu0 %v2209
    %4483 = vmatpush.msra.mxu0 %v2201
    %4484 = vmatpush.msra.mxu0 %v2193
    %4485 = vmatpush.msra.mxu0 %v2185
    %4486 = vmatpush.msra.mxu0 %v2177
    %4487 = vmatpush.msra.mxu0 %v2169
    %4488 = vmatpush.msra.mxu0 %v2161
    %4489 = vmatpush.msra.mxu0 %v2153
    %4490 = vmatpush.msra.mxu0 %v2145
    %4491 = vmatpush.msra.mxu0 %v2137
    %4492 = vmatpush.msra.mxu0 %v2129
    %4493 = vmatpush.msra.mxu0 %v2121
    %4494 = vmatpush.msra.mxu0 %v2113
    %4495 = vmatpush.msra.mxu0 %v2105
    %4496 = vmatmul.f32.gmra.mxu0 %v1324
    %v4497 = vpop.f32.mrf.mxu0
    %v4498 = vadd.f32 %v4478, %v4497
    %4499 = vdwg.mxu0
    %4500 = vmatpush.msra.mxu0 %v2353
    %4501 = vmatpush.msra.mxu0 %v2345
    %4502 = vmatpush.msra.mxu0 %v2337
    %4503 = vmatpush.msra.mxu0 %v2329
    %4504 = vmatpush.msra.mxu0 %v2321
    %4505 = vmatpush.msra.mxu0 %v2313
    %4506 = vmatpush.msra.mxu0 %v2305
    %4507 = vmatpush.msra.mxu0 %v2297
    %4508 = vmatpush.msra.mxu0 %v2289
    %4509 = vmatpush.msra.mxu0 %v2281
    %4510 = vmatpush.msra.mxu0 %v2273
    %4511 = vmatpush.msra.mxu0 %v2265
    %4512 = vmatpush.msra.mxu0 %v2257
    %4513 = vmatpush.msra.mxu0 %v2249
    %4514 = vmatpush.msra.mxu0 %v2241
    %4515 = vmatpush.msra.mxu0 %v2233
    %4516 = vmatmul.f32.gmra.mxu0 %v1325
    %v4517 = vpop.f32.mrf.mxu0
    %v4518 = vadd.f32 %v4498, %v4517
    %4519 = vdwg.mxu0
    %4520 = vmatpush.msra.mxu0 %v2481
    %4521 = vmatpush.msra.mxu0 %v2473
    %4522 = vmatpush.msra.mxu0 %v2465
    %4523 = vmatpush.msra.mxu0 %v2457
    %4524 = vmatpush.msra.mxu0 %v2449
    %4525 = vmatpush.msra.mxu0 %v2441
    %4526 = vmatpush.msra.mxu0 %v2433
    %4527 = vmatpush.msra.mxu0 %v2425
    %4528 = vmatpush.msra.mxu0 %v2417
    %4529 = vmatpush.msra.mxu0 %v2409
    %4530 = vmatpush.msra.mxu0 %v2401
    %4531 = vmatpush.msra.mxu0 %v2393
    %4532 = vmatpush.msra.mxu0 %v2385
    %4533 = vmatpush.msra.mxu0 %v2377
    %4534 = vmatpush.msra.mxu0 %v2369
    %4535 = vmatpush.msra.mxu0 %v2361
    %4536 = vmatmul.f32.gmra.mxu0 %v1326
    %v4537 = vpop.f32.mrf.mxu0
    %v4538 = vadd.f32 %v4518, %v4537
    %4539 = vdwg.mxu0
    %4540 = vmatpush.msra.mxu0 %v2609
    %4541 = vmatpush.msra.mxu0 %v2601
    %4542 = vmatpush.msra.mxu0 %v2593
    %4543 = vmatpush.msra.mxu0 %v2585
    %4544 = vmatpush.msra.mxu0 %v2577
    %4545 = vmatpush.msra.mxu0 %v2569
    %4546 = vmatpush.msra.mxu0 %v2561
    %4547 = vmatpush.msra.mxu0 %v2553
    %4548 = vmatpush.msra.mxu0 %v2545
    %4549 = vmatpush.msra.mxu0 %v2537
    %4550 = vmatpush.msra.mxu0 %v2529
    %4551 = vmatpush.msra.mxu0 %v2521
    %4552 = vmatpush.msra.mxu0 %v2513
    %4553 = vmatpush.msra.mxu0 %v2505
    %4554 = vmatpush.msra.mxu0 %v2497
    %4555 = vmatpush.msra.mxu0 %v2489
    %4556 = vmatmul.f32.gmra.mxu0 %v1327
    %v4557 = vpop.f32.mrf.mxu0
    %v4558 = vadd.f32 %v4538, %v4557
    %4559 = vdwg.mxu0
    %4560 = vmatpush.msra.mxu0 %v2737
    %4561 = vmatpush.msra.mxu0 %v2729
    %4562 = vmatpush.msra.mxu0 %v2721
    %4563 = vmatpush.msra.mxu0 %v2713
    %4564 = vmatpush.msra.mxu0 %v2705
    %4565 = vmatpush.msra.mxu0 %v2697
    %4566 = vmatpush.msra.mxu0 %v2689
    %4567 = vmatpush.msra.mxu0 %v2681
    %4568 = vmatpush.msra.mxu0 %v2673
    %4569 = vmatpush.msra.mxu0 %v2665
    %4570 = vmatpush.msra.mxu0 %v2657
    %4571 = vmatpush.msra.mxu0 %v2649
    %4572 = vmatpush.msra.mxu0 %v2641
    %4573 = vmatpush.msra.mxu0 %v2633
    %4574 = vmatpush.msra.mxu0 %v2625
    %4575 = vmatpush.msra.mxu0 %v2617
    %4576 = vmatmul.f32.gmra.mxu0 %v1328
    %v4577 = vpop.f32.mrf.mxu0
    %v4578 = vadd.f32 %v4558, %v4577
    %4579 = vdwg.mxu0
    %4580 = vmatpush.msra.mxu0 %v2865
    %4581 = vmatpush.msra.mxu0 %v2857
    %4582 = vmatpush.msra.mxu0 %v2849
    %4583 = vmatpush.msra.mxu0 %v2841
    %4584 = vmatpush.msra.mxu0 %v2833
    %4585 = vmatpush.msra.mxu0 %v2825
    %4586 = vmatpush.msra.mxu0 %v2817
    %4587 = vmatpush.msra.mxu0 %v2809
    %4588 = vmatpush.msra.mxu0 %v2801
    %4589 = vmatpush.msra.mxu0 %v2793
    %4590 = vmatpush.msra.mxu0 %v2785
    %4591 = vmatpush.msra.mxu0 %v2777
    %4592 = vmatpush.msra.mxu0 %v2769
    %4593 = vmatpush.msra.mxu0 %v2761
    %4594 = vmatpush.msra.mxu0 %v2753
    %4595 = vmatpush.msra.mxu0 %v2745
    %4596 = vmatmul.f32.gmra.mxu0 %v1329
    %v4597 = vpop.f32.mrf.mxu0
    %v4598 = vadd.f32 %v4578, %v4597
    %4599 = vdwg.mxu0
    %4600 = vmatpush.msra.mxu0 %v2993
    %4601 = vmatpush.msra.mxu0 %v2985
    %4602 = vmatpush.msra.mxu0 %v2977
    %4603 = vmatpush.msra.mxu0 %v2969
    %4604 = vmatpush.msra.mxu0 %v2961
    %4605 = vmatpush.msra.mxu0 %v2953
    %4606 = vmatpush.msra.mxu0 %v2945
    %4607 = vmatpush.msra.mxu0 %v2937
    %4608 = vmatpush.msra.mxu0 %v2929
    %4609 = vmatpush.msra.mxu0 %v2921
    %4610 = vmatpush.msra.mxu0 %v2913
    %4611 = vmatpush.msra.mxu0 %v2905
    %4612 = vmatpush.msra.mxu0 %v2897
    %4613 = vmatpush.msra.mxu0 %v2889
    %4614 = vmatpush.msra.mxu0 %v2881
    %4615 = vmatpush.msra.mxu0 %v2873
    %4616 = vmatmul.f32.gmra.mxu0 %v1330
    %v4617 = vpop.f32.mrf.mxu0
    %v4618 = vadd.f32 %v4598, %v4617
    %4619 = vdwg.mxu0
    %4620 = vmatpush.msra.mxu0 %v3121
    %4621 = vmatpush.msra.mxu0 %v3113
    %4622 = vmatpush.msra.mxu0 %v3105
    %4623 = vmatpush.msra.mxu0 %v3097
    %4624 = vmatpush.msra.mxu0 %v3089
    %4625 = vmatpush.msra.mxu0 %v3081
    %4626 = vmatpush.msra.mxu0 %v3073
    %4627 = vmatpush.msra.mxu0 %v3065
    %4628 = vmatpush.msra.mxu0 %v3057
    %4629 = vmatpush.msra.mxu0 %v3049
    %4630 = vmatpush.msra.mxu0 %v3041
    %4631 = vmatpush.msra.mxu0 %v3033
    %4632 = vmatpush.msra.mxu0 %v3025
    %4633 = vmatpush.msra.mxu0 %v3017
    %4634 = vmatpush.msra.mxu0 %v3009
    %4635 = vmatpush.msra.mxu0 %v3001
    %4636 = vmatmul.f32.gmra.mxu0 %v1331
    %v4637 = vpop.f32.mrf.mxu0
    %v4638 = vadd.f32 %v4618, %v4637
    %4639 = vdwg.mxu0
    %4640 = vmatpush.msra.mxu0 %v3249
    %4641 = vmatpush.msra.mxu0 %v3241
    %4642 = vmatpush.msra.mxu0 %v3233
    %4643 = vmatpush.msra.mxu0 %v3225
    %4644 = vmatpush.msra.mxu0 %v3217
    %4645 = vmatpush.msra.mxu0 %v3209
    %4646 = vmatpush.msra.mxu0 %v3201
    %4647 = vmatpush.msra.mxu0 %v3193
    %4648 = vmatpush.msra.mxu0 %v3185
    %4649 = vmatpush.msra.mxu0 %v3177
    %4650 = vmatpush.msra.mxu0 %v3169
    %4651 = vmatpush.msra.mxu0 %v3161
    %4652 = vmatpush.msra.mxu0 %v3153
    %4653 = vmatpush.msra.mxu0 %v3145
    %4654 = vmatpush.msra.mxu0 %v3137
    %4655 = vmatpush.msra.mxu0 %v3129
    %4656 = vmatmul.f32.gmra.mxu0 %v1332
    %v4657 = vpop.f32.mrf.mxu0
    %v4658 = vadd.f32 %v4638, %v4657
    %4659 = vdwg.mxu0
    %4660 = vmatpush.msra.mxu0 %v3377
    %4661 = vmatpush.msra.mxu0 %v3369
    %4662 = vmatpush.msra.mxu0 %v3361
    %4663 = vmatpush.msra.mxu0 %v3353
    %4664 = vmatpush.msra.mxu0 %v3345
    %4665 = vmatpush.msra.mxu0 %v3337
    %4666 = vmatpush.msra.mxu0 %v3329
    %4667 = vmatpush.msra.mxu0 %v3321
    %4668 = vmatpush.msra.mxu0 %v3313
    %4669 = vmatpush.msra.mxu0 %v3305
    %4670 = vmatpush.msra.mxu0 %v3297
    %4671 = vmatpush.msra.mxu0 %v3289
    %4672 = vmatpush.msra.mxu0 %v3281
    %4673 = vmatpush.msra.mxu0 %v3273
    %4674 = vmatpush.msra.mxu0 %v3265
    %4675 = vmatpush.msra.mxu0 %v3257
    %4676 = vmatmul.f32.gmra.mxu0 %v1333
    %v4677 = vpop.f32.mrf.mxu0
    %v4678 = vadd.f32 %v4658, %v4677
    %4679 = vdwg.mxu0
    %4680 = vmatpush.msra.mxu0 %v1458
    %4681 = vmatpush.msra.mxu0 %v1450
    %4682 = vmatpush.msra.mxu0 %v1442
    %4683 = vmatpush.msra.mxu0 %v1434
    %4684 = vmatpush.msra.mxu0 %v1426
    %4685 = vmatpush.msra.mxu0 %v1418
    %4686 = vmatpush.msra.mxu0 %v1410
    %4687 = vmatpush.msra.mxu0 %v1402
    %4688 = vmatpush.msra.mxu0 %v1394
    %4689 = vmatpush.msra.mxu0 %v1386
    %4690 = vmatpush.msra.mxu0 %v1378
    %4691 = vmatpush.msra.mxu0 %v1370
    %4692 = vmatpush.msra.mxu0 %v1362
    %4693 = vmatpush.msra.mxu0 %v1354
    %4694 = vmatpush.msra.mxu0 %v1346
    %4695 = vmatpush.msra.mxu0 %v1338
    %4696 = vmatmul.f32.gmra.mxu0 %v1318
    %v4697 = vpop.f32.mrf.mxu0
    %v4698 = vadd.f32 %v3388, %v4697
    %4699 = vdwg.mxu0
    %4700 = vmatpush.msra.mxu0 %v1586
    %4701 = vmatpush.msra.mxu0 %v1578
    %4702 = vmatpush.msra.mxu0 %v1570
    %4703 = vmatpush.msra.mxu0 %v1562
    %4704 = vmatpush.msra.mxu0 %v1554
    %4705 = vmatpush.msra.mxu0 %v1546
    %4706 = vmatpush.msra.mxu0 %v1538
    %4707 = vmatpush.msra.mxu0 %v1530
    %4708 = vmatpush.msra.mxu0 %v1522
    %4709 = vmatpush.msra.mxu0 %v1514
    %4710 = vmatpush.msra.mxu0 %v1506
    %4711 = vmatpush.msra.mxu0 %v1498
    %4712 = vmatpush.msra.mxu0 %v1490
    %4713 = vmatpush.msra.mxu0 %v1482
    %4714 = vmatpush.msra.mxu0 %v1474
    %4715 = vmatpush.msra.mxu0 %v1466
    %4716 = vmatmul.f32.gmra.mxu0 %v1319
    %v4717 = vpop.f32.mrf.mxu0
    %v4718 = vadd.f32 %v4698, %v4717
    %4719 = vdwg.mxu0
    %4720 = vmatpush.msra.mxu0 %v1714
    %4721 = vmatpush.msra.mxu0 %v1706
    %4722 = vmatpush.msra.mxu0 %v1698
    %4723 = vmatpush.msra.mxu0 %v1690
    %4724 = vmatpush.msra.mxu0 %v1682
    %4725 = vmatpush.msra.mxu0 %v1674
    %4726 = vmatpush.msra.mxu0 %v1666
    %4727 = vmatpush.msra.mxu0 %v1658
    %4728 = vmatpush.msra.mxu0 %v1650
    %4729 = vmatpush.msra.mxu0 %v1642
    %4730 = vmatpush.msra.mxu0 %v1634
    %4731 = vmatpush.msra.mxu0 %v1626
    %4732 = vmatpush.msra.mxu0 %v1618
    %4733 = vmatpush.msra.mxu0 %v1610
    %4734 = vmatpush.msra.mxu0 %v1602
    %4735 = vmatpush.msra.mxu0 %v1594
    %4736 = vmatmul.f32.gmra.mxu0 %v1320
    %v4737 = vpop.f32.mrf.mxu0
    %v4738 = vadd.f32 %v4718, %v4737
    %4739 = vdwg.mxu0
    %4740 = vmatpush.msra.mxu0 %v1842
    %4741 = vmatpush.msra.mxu0 %v1834
    %4742 = vmatpush.msra.mxu0 %v1826
    %4743 = vmatpush.msra.mxu0 %v1818
    %4744 = vmatpush.msra.mxu0 %v1810
    %4745 = vmatpush.msra.mxu0 %v1802
    %4746 = vmatpush.msra.mxu0 %v1794
    %4747 = vmatpush.msra.mxu0 %v1786
    %4748 = vmatpush.msra.mxu0 %v1778
    %4749 = vmatpush.msra.mxu0 %v1770
    %4750 = vmatpush.msra.mxu0 %v1762
    %4751 = vmatpush.msra.mxu0 %v1754
    %4752 = vmatpush.msra.mxu0 %v1746
    %4753 = vmatpush.msra.mxu0 %v1738
    %4754 = vmatpush.msra.mxu0 %v1730
    %4755 = vmatpush.msra.mxu0 %v1722
    %4756 = vmatmul.f32.gmra.mxu0 %v1321
    %v4757 = vpop.f32.mrf.mxu0
    %v4758 = vadd.f32 %v4738, %v4757
    %4759 = vdwg.mxu0
    %4760 = vmatpush.msra.mxu0 %v1970
    %4761 = vmatpush.msra.mxu0 %v1962
    %4762 = vmatpush.msra.mxu0 %v1954
    %4763 = vmatpush.msra.mxu0 %v1946
    %4764 = vmatpush.msra.mxu0 %v1938
    %4765 = vmatpush.msra.mxu0 %v1930
    %4766 = vmatpush.msra.mxu0 %v1922
    %4767 = vmatpush.msra.mxu0 %v1914
    %4768 = vmatpush.msra.mxu0 %v1906
    %4769 = vmatpush.msra.mxu0 %v1898
    %4770 = vmatpush.msra.mxu0 %v1890
    %4771 = vmatpush.msra.mxu0 %v1882
    %4772 = vmatpush.msra.mxu0 %v1874
    %4773 = vmatpush.msra.mxu0 %v1866
    %4774 = vmatpush.msra.mxu0 %v1858
    %4775 = vmatpush.msra.mxu0 %v1850
    %4776 = vmatmul.f32.gmra.mxu0 %v1322
    %v4777 = vpop.f32.mrf.mxu0
    %v4778 = vadd.f32 %v4758, %v4777
    %4779 = vdwg.mxu0
    %4780 = vmatpush.msra.mxu0 %v2098
    %4781 = vmatpush.msra.mxu0 %v2090
    %4782 = vmatpush.msra.mxu0 %v2082
    %4783 = vmatpush.msra.mxu0 %v2074
    %4784 = vmatpush.msra.mxu0 %v2066
    %4785 = vmatpush.msra.mxu0 %v2058
    %4786 = vmatpush.msra.mxu0 %v2050
    %4787 = vmatpush.msra.mxu0 %v2042
    %4788 = vmatpush.msra.mxu0 %v2034
    %4789 = vmatpush.msra.mxu0 %v2026
    %4790 = vmatpush.msra.mxu0 %v2018
    %4791 = vmatpush.msra.mxu0 %v2010
    %4792 = vmatpush.msra.mxu0 %v2002
    %4793 = vmatpush.msra.mxu0 %v1994
    %4794 = vmatpush.msra.mxu0 %v1986
    %4795 = vmatpush.msra.mxu0 %v1978
    %4796 = vmatmul.f32.gmra.mxu0 %v1323
    %v4797 = vpop.f32.mrf.mxu0
    %v4798 = vadd.f32 %v4778, %v4797
    %4799 = vdwg.mxu0
    %4800 = vmatpush.msra.mxu0 %v2226
    %4801 = vmatpush.msra.mxu0 %v2218
    %4802 = vmatpush.msra.mxu0 %v2210
    %4803 = vmatpush.msra.mxu0 %v2202
    %4804 = vmatpush.msra.mxu0 %v2194
    %4805 = vmatpush.msra.mxu0 %v2186
    %4806 = vmatpush.msra.mxu0 %v2178
    %4807 = vmatpush.msra.mxu0 %v2170
    %4808 = vmatpush.msra.mxu0 %v2162
    %4809 = vmatpush.msra.mxu0 %v2154
    %4810 = vmatpush.msra.mxu0 %v2146
    %4811 = vmatpush.msra.mxu0 %v2138
    %4812 = vmatpush.msra.mxu0 %v2130
    %4813 = vmatpush.msra.mxu0 %v2122
    %4814 = vmatpush.msra.mxu0 %v2114
    %4815 = vmatpush.msra.mxu0 %v2106
    %4816 = vmatmul.f32.gmra.mxu0 %v1324
    %v4817 = vpop.f32.mrf.mxu0
    %v4818 = vadd.f32 %v4798, %v4817
    %4819 = vdwg.mxu0
    %4820 = vmatpush.msra.mxu0 %v2354
    %4821 = vmatpush.msra.mxu0 %v2346
    %4822 = vmatpush.msra.mxu0 %v2338
    %4823 = vmatpush.msra.mxu0 %v2330
    %4824 = vmatpush.msra.mxu0 %v2322
    %4825 = vmatpush.msra.mxu0 %v2314
    %4826 = vmatpush.msra.mxu0 %v2306
    %4827 = vmatpush.msra.mxu0 %v2298
    %4828 = vmatpush.msra.mxu0 %v2290
    %4829 = vmatpush.msra.mxu0 %v2282
    %4830 = vmatpush.msra.mxu0 %v2274
    %4831 = vmatpush.msra.mxu0 %v2266
    %4832 = vmatpush.msra.mxu0 %v2258
    %4833 = vmatpush.msra.mxu0 %v2250
    %4834 = vmatpush.msra.mxu0 %v2242
    %4835 = vmatpush.msra.mxu0 %v2234
    %4836 = vmatmul.f32.gmra.mxu0 %v1325
    %v4837 = vpop.f32.mrf.mxu0
    %v4838 = vadd.f32 %v4818, %v4837
    %4839 = vdwg.mxu0
    %4840 = vmatpush.msra.mxu0 %v2482
    %4841 = vmatpush.msra.mxu0 %v2474
    %4842 = vmatpush.msra.mxu0 %v2466
    %4843 = vmatpush.msra.mxu0 %v2458
    %4844 = vmatpush.msra.mxu0 %v2450
    %4845 = vmatpush.msra.mxu0 %v2442
    %4846 = vmatpush.msra.mxu0 %v2434
    %4847 = vmatpush.msra.mxu0 %v2426
    %4848 = vmatpush.msra.mxu0 %v2418
    %4849 = vmatpush.msra.mxu0 %v2410
    %4850 = vmatpush.msra.mxu0 %v2402
    %4851 = vmatpush.msra.mxu0 %v2394
    %4852 = vmatpush.msra.mxu0 %v2386
    %4853 = vmatpush.msra.mxu0 %v2378
    %4854 = vmatpush.msra.mxu0 %v2370
    %4855 = vmatpush.msra.mxu0 %v2362
    %4856 = vmatmul.f32.gmra.mxu0 %v1326
    %v4857 = vpop.f32.mrf.mxu0
    %v4858 = vadd.f32 %v4838, %v4857
    %4859 = vdwg.mxu0
    %4860 = vmatpush.msra.mxu0 %v2610
    %4861 = vmatpush.msra.mxu0 %v2602
    %4862 = vmatpush.msra.mxu0 %v2594
    %4863 = vmatpush.msra.mxu0 %v2586
    %4864 = vmatpush.msra.mxu0 %v2578
    %4865 = vmatpush.msra.mxu0 %v2570
    %4866 = vmatpush.msra.mxu0 %v2562
    %4867 = vmatpush.msra.mxu0 %v2554
    %4868 = vmatpush.msra.mxu0 %v2546
    %4869 = vmatpush.msra.mxu0 %v2538
    %4870 = vmatpush.msra.mxu0 %v2530
    %4871 = vmatpush.msra.mxu0 %v2522
    %4872 = vmatpush.msra.mxu0 %v2514
    %4873 = vmatpush.msra.mxu0 %v2506
    %4874 = vmatpush.msra.mxu0 %v2498
    %4875 = vmatpush.msra.mxu0 %v2490
    %4876 = vmatmul.f32.gmra.mxu0 %v1327
    %v4877 = vpop.f32.mrf.mxu0
    %v4878 = vadd.f32 %v4858, %v4877
    %4879 = vdwg.mxu0
    %4880 = vmatpush.msra.mxu0 %v2738
    %4881 = vmatpush.msra.mxu0 %v2730
    %4882 = vmatpush.msra.mxu0 %v2722
    %4883 = vmatpush.msra.mxu0 %v2714
    %4884 = vmatpush.msra.mxu0 %v2706
    %4885 = vmatpush.msra.mxu0 %v2698
    %4886 = vmatpush.msra.mxu0 %v2690
    %4887 = vmatpush.msra.mxu0 %v2682
    %4888 = vmatpush.msra.mxu0 %v2674
    %4889 = vmatpush.msra.mxu0 %v2666
    %4890 = vmatpush.msra.mxu0 %v2658
    %4891 = vmatpush.msra.mxu0 %v2650
    %4892 = vmatpush.msra.mxu0 %v2642
    %4893 = vmatpush.msra.mxu0 %v2634
    %4894 = vmatpush.msra.mxu0 %v2626
    %4895 = vmatpush.msra.mxu0 %v2618
    %4896 = vmatmul.f32.gmra.mxu0 %v1328
    %v4897 = vpop.f32.mrf.mxu0
    %v4898 = vadd.f32 %v4878, %v4897
    %4899 = vdwg.mxu0
    %4900 = vmatpush.msra.mxu0 %v2866
    %4901 = vmatpush.msra.mxu0 %v2858
    %4902 = vmatpush.msra.mxu0 %v2850
    %4903 = vmatpush.msra.mxu0 %v2842
    %4904 = vmatpush.msra.mxu0 %v2834
    %4905 = vmatpush.msra.mxu0 %v2826
    %4906 = vmatpush.msra.mxu0 %v2818
    %4907 = vmatpush.msra.mxu0 %v2810
    %4908 = vmatpush.msra.mxu0 %v2802
    %4909 = vmatpush.msra.mxu0 %v2794
    %4910 = vmatpush.msra.mxu0 %v2786
    %4911 = vmatpush.msra.mxu0 %v2778
    %4912 = vmatpush.msra.mxu0 %v2770
    %4913 = vmatpush.msra.mxu0 %v2762
    %4914 = vmatpush.msra.mxu0 %v2754
    %4915 = vmatpush.msra.mxu0 %v2746
    %4916 = vmatmul.f32.gmra.mxu0 %v1329
    %v4917 = vpop.f32.mrf.mxu0
    %v4918 = vadd.f32 %v4898, %v4917
    %4919 = vdwg.mxu0
    %4920 = vmatpush.msra.mxu0 %v2994
    %4921 = vmatpush.msra.mxu0 %v2986
    %4922 = vmatpush.msra.mxu0 %v2978
    %4923 = vmatpush.msra.mxu0 %v2970
    %4924 = vmatpush.msra.mxu0 %v2962
    %4925 = vmatpush.msra.mxu0 %v2954
    %4926 = vmatpush.msra.mxu0 %v2946
    %4927 = vmatpush.msra.mxu0 %v2938
    %4928 = vmatpush.msra.mxu0 %v2930
    %4929 = vmatpush.msra.mxu0 %v2922
    %4930 = vmatpush.msra.mxu0 %v2914
    %4931 = vmatpush.msra.mxu0 %v2906
    %4932 = vmatpush.msra.mxu0 %v2898
    %4933 = vmatpush.msra.mxu0 %v2890
    %4934 = vmatpush.msra.mxu0 %v2882
    %4935 = vmatpush.msra.mxu0 %v2874
    %4936 = vmatmul.f32.gmra.mxu0 %v1330
    %v4937 = vpop.f32.mrf.mxu0
    %v4938 = vadd.f32 %v4918, %v4937
    %4939 = vdwg.mxu0
    %4940 = vmatpush.msra.mxu0 %v3122
    %4941 = vmatpush.msra.mxu0 %v3114
    %4942 = vmatpush.msra.mxu0 %v3106
    %4943 = vmatpush.msra.mxu0 %v3098
    %4944 = vmatpush.msra.mxu0 %v3090
    %4945 = vmatpush.msra.mxu0 %v3082
    %4946 = vmatpush.msra.mxu0 %v3074
    %4947 = vmatpush.msra.mxu0 %v3066
    %4948 = vmatpush.msra.mxu0 %v3058
    %4949 = vmatpush.msra.mxu0 %v3050
    %4950 = vmatpush.msra.mxu0 %v3042
    %4951 = vmatpush.msra.mxu0 %v3034
    %4952 = vmatpush.msra.mxu0 %v3026
    %4953 = vmatpush.msra.mxu0 %v3018
    %4954 = vmatpush.msra.mxu0 %v3010
    %4955 = vmatpush.msra.mxu0 %v3002
    %4956 = vmatmul.f32.gmra.mxu0 %v1331
    %v4957 = vpop.f32.mrf.mxu0
    %v4958 = vadd.f32 %v4938, %v4957
    %4959 = vdwg.mxu0
    %4960 = vmatpush.msra.mxu0 %v3250
    %4961 = vmatpush.msra.mxu0 %v3242
    %4962 = vmatpush.msra.mxu0 %v3234
    %4963 = vmatpush.msra.mxu0 %v3226
    %4964 = vmatpush.msra.mxu0 %v3218
    %4965 = vmatpush.msra.mxu0 %v3210
    %4966 = vmatpush.msra.mxu0 %v3202
    %4967 = vmatpush.msra.mxu0 %v3194
    %4968 = vmatpush.msra.mxu0 %v3186
    %4969 = vmatpush.msra.mxu0 %v3178
    %4970 = vmatpush.msra.mxu0 %v3170
    %4971 = vmatpush.msra.mxu0 %v3162
    %4972 = vmatpush.msra.mxu0 %v3154
    %4973 = vmatpush.msra.mxu0 %v3146
    %4974 = vmatpush.msra.mxu0 %v3138
    %4975 = vmatpush.msra.mxu0 %v3130
    %4976 = vmatmul.f32.gmra.mxu0 %v1332
    %v4977 = vpop.f32.mrf.mxu0
    %v4978 = vadd.f32 %v4958, %v4977
    %4979 = vdwg.mxu0
    %4980 = vmatpush.msra.mxu0 %v3378
    %4981 = vmatpush.msra.mxu0 %v3370
    %4982 = vmatpush.msra.mxu0 %v3362
    %4983 = vmatpush.msra.mxu0 %v3354
    %4984 = vmatpush.msra.mxu0 %v3346
    %4985 = vmatpush.msra.mxu0 %v3338
    %4986 = vmatpush.msra.mxu0 %v3330
    %4987 = vmatpush.msra.mxu0 %v3322
    %4988 = vmatpush.msra.mxu0 %v3314
    %4989 = vmatpush.msra.mxu0 %v3306
    %4990 = vmatpush.msra.mxu0 %v3298
    %4991 = vmatpush.msra.mxu0 %v3290
    %4992 = vmatpush.msra.mxu0 %v3282
    %4993 = vmatpush.msra.mxu0 %v3274
    %4994 = vmatpush.msra.mxu0 %v3266
    %4995 = vmatpush.msra.mxu0 %v3258
    %4996 = vmatmul.f32.gmra.mxu0 %v1333
    %v4997 = vpop.f32.mrf.mxu0
    %v4998 = vadd.f32 %v4978, %v4997
    %4999 = vdwg.mxu0
    %5000 = vmatpush.msra.mxu0 %v1459
    %5001 = vmatpush.msra.mxu0 %v1451
    %5002 = vmatpush.msra.mxu0 %v1443
    %5003 = vmatpush.msra.mxu0 %v1435
    %5004 = vmatpush.msra.mxu0 %v1427
    %5005 = vmatpush.msra.mxu0 %v1419
    %5006 = vmatpush.msra.mxu0 %v1411
    %5007 = vmatpush.msra.mxu0 %v1403
    %5008 = vmatpush.msra.mxu0 %v1395
    %5009 = vmatpush.msra.mxu0 %v1387
    %5010 = vmatpush.msra.mxu0 %v1379
    %5011 = vmatpush.msra.mxu0 %v1371
    %5012 = vmatpush.msra.mxu0 %v1363
    %5013 = vmatpush.msra.mxu0 %v1355
    %5014 = vmatpush.msra.mxu0 %v1347
    %5015 = vmatpush.msra.mxu0 %v1339
    %5016 = vmatmul.f32.gmra.mxu0 %v1318
    %v5017 = vpop.f32.mrf.mxu0
    %v5018 = vadd.f32 %v3389, %v5017
    %5019 = vdwg.mxu0
    %5020 = vmatpush.msra.mxu0 %v1587
    %5021 = vmatpush.msra.mxu0 %v1579
    %5022 = vmatpush.msra.mxu0 %v1571
    %5023 = vmatpush.msra.mxu0 %v1563
    %5024 = vmatpush.msra.mxu0 %v1555
    %5025 = vmatpush.msra.mxu0 %v1547
    %5026 = vmatpush.msra.mxu0 %v1539
    %5027 = vmatpush.msra.mxu0 %v1531
    %5028 = vmatpush.msra.mxu0 %v1523
    %5029 = vmatpush.msra.mxu0 %v1515
    %5030 = vmatpush.msra.mxu0 %v1507
    %5031 = vmatpush.msra.mxu0 %v1499
    %5032 = vmatpush.msra.mxu0 %v1491
    %5033 = vmatpush.msra.mxu0 %v1483
    %5034 = vmatpush.msra.mxu0 %v1475
    %5035 = vmatpush.msra.mxu0 %v1467
    %5036 = vmatmul.f32.gmra.mxu0 %v1319
    %v5037 = vpop.f32.mrf.mxu0
    %v5038 = vadd.f32 %v5018, %v5037
    %5039 = vdwg.mxu0
    %5040 = vmatpush.msra.mxu0 %v1715
    %5041 = vmatpush.msra.mxu0 %v1707
    %5042 = vmatpush.msra.mxu0 %v1699
    %5043 = vmatpush.msra.mxu0 %v1691
    %5044 = vmatpush.msra.mxu0 %v1683
    %5045 = vmatpush.msra.mxu0 %v1675
    %5046 = vmatpush.msra.mxu0 %v1667
    %5047 = vmatpush.msra.mxu0 %v1659
    %5048 = vmatpush.msra.mxu0 %v1651
    %5049 = vmatpush.msra.mxu0 %v1643
    %5050 = vmatpush.msra.mxu0 %v1635
    %5051 = vmatpush.msra.mxu0 %v1627
    %5052 = vmatpush.msra.mxu0 %v1619
    %5053 = vmatpush.msra.mxu0 %v1611
    %5054 = vmatpush.msra.mxu0 %v1603
    %5055 = vmatpush.msra.mxu0 %v1595
    %5056 = vmatmul.f32.gmra.mxu0 %v1320
    %v5057 = vpop.f32.mrf.mxu0
    %v5058 = vadd.f32 %v5038, %v5057
    %5059 = vdwg.mxu0
    %5060 = vmatpush.msra.mxu0 %v1843
    %5061 = vmatpush.msra.mxu0 %v1835
    %5062 = vmatpush.msra.mxu0 %v1827
    %5063 = vmatpush.msra.mxu0 %v1819
    %5064 = vmatpush.msra.mxu0 %v1811
    %5065 = vmatpush.msra.mxu0 %v1803
    %5066 = vmatpush.msra.mxu0 %v1795
    %5067 = vmatpush.msra.mxu0 %v1787
    %5068 = vmatpush.msra.mxu0 %v1779
    %5069 = vmatpush.msra.mxu0 %v1771
    %5070 = vmatpush.msra.mxu0 %v1763
    %5071 = vmatpush.msra.mxu0 %v1755
    %5072 = vmatpush.msra.mxu0 %v1747
    %5073 = vmatpush.msra.mxu0 %v1739
    %5074 = vmatpush.msra.mxu0 %v1731
    %5075 = vmatpush.msra.mxu0 %v1723
    %5076 = vmatmul.f32.gmra.mxu0 %v1321
    %v5077 = vpop.f32.mrf.mxu0
    %v5078 = vadd.f32 %v5058, %v5077
    %5079 = vdwg.mxu0
    %5080 = vmatpush.msra.mxu0 %v1971
    %5081 = vmatpush.msra.mxu0 %v1963
    %5082 = vmatpush.msra.mxu0 %v1955
    %5083 = vmatpush.msra.mxu0 %v1947
    %5084 = vmatpush.msra.mxu0 %v1939
    %5085 = vmatpush.msra.mxu0 %v1931
    %5086 = vmatpush.msra.mxu0 %v1923
    %5087 = vmatpush.msra.mxu0 %v1915
    %5088 = vmatpush.msra.mxu0 %v1907
    %5089 = vmatpush.msra.mxu0 %v1899
    %5090 = vmatpush.msra.mxu0 %v1891
    %5091 = vmatpush.msra.mxu0 %v1883
    %5092 = vmatpush.msra.mxu0 %v1875
    %5093 = vmatpush.msra.mxu0 %v1867
    %5094 = vmatpush.msra.mxu0 %v1859
    %5095 = vmatpush.msra.mxu0 %v1851
    %5096 = vmatmul.f32.gmra.mxu0 %v1322
    %v5097 = vpop.f32.mrf.mxu0
    %v5098 = vadd.f32 %v5078, %v5097
    %5099 = vdwg.mxu0
    %5100 = vmatpush.msra.mxu0 %v2099
    %5101 = vmatpush.msra.mxu0 %v2091
    %5102 = vmatpush.msra.mxu0 %v2083
    %5103 = vmatpush.msra.mxu0 %v2075
    %5104 = vmatpush.msra.mxu0 %v2067
    %5105 = vmatpush.msra.mxu0 %v2059
    %5106 = vmatpush.msra.mxu0 %v2051
    %5107 = vmatpush.msra.mxu0 %v2043
    %5108 = vmatpush.msra.mxu0 %v2035
    %5109 = vmatpush.msra.mxu0 %v2027
    %5110 = vmatpush.msra.mxu0 %v2019
    %5111 = vmatpush.msra.mxu0 %v2011
    %5112 = vmatpush.msra.mxu0 %v2003
    %5113 = vmatpush.msra.mxu0 %v1995
    %5114 = vmatpush.msra.mxu0 %v1987
    %5115 = vmatpush.msra.mxu0 %v1979
    %5116 = vmatmul.f32.gmra.mxu0 %v1323
    %v5117 = vpop.f32.mrf.mxu0
    %v5118 = vadd.f32 %v5098, %v5117
    %5119 = vdwg.mxu0
    %5120 = vmatpush.msra.mxu0 %v2227
    %5121 = vmatpush.msra.mxu0 %v2219
    %5122 = vmatpush.msra.mxu0 %v2211
    %5123 = vmatpush.msra.mxu0 %v2203
    %5124 = vmatpush.msra.mxu0 %v2195
    %5125 = vmatpush.msra.mxu0 %v2187
    %5126 = vmatpush.msra.mxu0 %v2179
    %5127 = vmatpush.msra.mxu0 %v2171
    %5128 = vmatpush.msra.mxu0 %v2163
    %5129 = vmatpush.msra.mxu0 %v2155
    %5130 = vmatpush.msra.mxu0 %v2147
    %5131 = vmatpush.msra.mxu0 %v2139
    %5132 = vmatpush.msra.mxu0 %v2131
    %5133 = vmatpush.msra.mxu0 %v2123
    %5134 = vmatpush.msra.mxu0 %v2115
    %5135 = vmatpush.msra.mxu0 %v2107
    %5136 = vmatmul.f32.gmra.mxu0 %v1324
    %v5137 = vpop.f32.mrf.mxu0
    %v5138 = vadd.f32 %v5118, %v5137
    %5139 = vdwg.mxu0
    %5140 = vmatpush.msra.mxu0 %v2355
    %5141 = vmatpush.msra.mxu0 %v2347
    %5142 = vmatpush.msra.mxu0 %v2339
    %5143 = vmatpush.msra.mxu0 %v2331
    %5144 = vmatpush.msra.mxu0 %v2323
    %5145 = vmatpush.msra.mxu0 %v2315
    %5146 = vmatpush.msra.mxu0 %v2307
    %5147 = vmatpush.msra.mxu0 %v2299
    %5148 = vmatpush.msra.mxu0 %v2291
    %5149 = vmatpush.msra.mxu0 %v2283
    %5150 = vmatpush.msra.mxu0 %v2275
    %5151 = vmatpush.msra.mxu0 %v2267
    %5152 = vmatpush.msra.mxu0 %v2259
    %5153 = vmatpush.msra.mxu0 %v2251
    %5154 = vmatpush.msra.mxu0 %v2243
    %5155 = vmatpush.msra.mxu0 %v2235
    %5156 = vmatmul.f32.gmra.mxu0 %v1325
    %v5157 = vpop.f32.mrf.mxu0
    %v5158 = vadd.f32 %v5138, %v5157
    %5159 = vdwg.mxu0
    %5160 = vmatpush.msra.mxu0 %v2483
    %5161 = vmatpush.msra.mxu0 %v2475
    %5162 = vmatpush.msra.mxu0 %v2467
    %5163 = vmatpush.msra.mxu0 %v2459
    %5164 = vmatpush.msra.mxu0 %v2451
    %5165 = vmatpush.msra.mxu0 %v2443
    %5166 = vmatpush.msra.mxu0 %v2435
    %5167 = vmatpush.msra.mxu0 %v2427
    %5168 = vmatpush.msra.mxu0 %v2419
    %5169 = vmatpush.msra.mxu0 %v2411
    %5170 = vmatpush.msra.mxu0 %v2403
    %5171 = vmatpush.msra.mxu0 %v2395
    %5172 = vmatpush.msra.mxu0 %v2387
    %5173 = vmatpush.msra.mxu0 %v2379
    %5174 = vmatpush.msra.mxu0 %v2371
    %5175 = vmatpush.msra.mxu0 %v2363
    %5176 = vmatmul.f32.gmra.mxu0 %v1326
    %v5177 = vpop.f32.mrf.mxu0
    %v5178 = vadd.f32 %v5158, %v5177
    %5179 = vdwg.mxu0
    %5180 = vmatpush.msra.mxu0 %v2611
    %5181 = vmatpush.msra.mxu0 %v2603
    %5182 = vmatpush.msra.mxu0 %v2595
    %5183 = vmatpush.msra.mxu0 %v2587
    %5184 = vmatpush.msra.mxu0 %v2579
    %5185 = vmatpush.msra.mxu0 %v2571
    %5186 = vmatpush.msra.mxu0 %v2563
    %5187 = vmatpush.msra.mxu0 %v2555
    %5188 = vmatpush.msra.mxu0 %v2547
    %5189 = vmatpush.msra.mxu0 %v2539
    %5190 = vmatpush.msra.mxu0 %v2531
    %5191 = vmatpush.msra.mxu0 %v2523
    %5192 = vmatpush.msra.mxu0 %v2515
    %5193 = vmatpush.msra.mxu0 %v2507
    %5194 = vmatpush.msra.mxu0 %v2499
    %5195 = vmatpush.msra.mxu0 %v2491
    %5196 = vmatmul.f32.gmra.mxu0 %v1327
    %v5197 = vpop.f32.mrf.mxu0
    %v5198 = vadd.f32 %v5178, %v5197
    %5199 = vdwg.mxu0
    %5200 = vmatpush.msra.mxu0 %v2739
    %5201 = vmatpush.msra.mxu0 %v2731
    %5202 = vmatpush.msra.mxu0 %v2723
    %5203 = vmatpush.msra.mxu0 %v2715
    %5204 = vmatpush.msra.mxu0 %v2707
    %5205 = vmatpush.msra.mxu0 %v2699
    %5206 = vmatpush.msra.mxu0 %v2691
    %5207 = vmatpush.msra.mxu0 %v2683
    %5208 = vmatpush.msra.mxu0 %v2675
    %5209 = vmatpush.msra.mxu0 %v2667
    %5210 = vmatpush.msra.mxu0 %v2659
    %5211 = vmatpush.msra.mxu0 %v2651
    %5212 = vmatpush.msra.mxu0 %v2643
    %5213 = vmatpush.msra.mxu0 %v2635
    %5214 = vmatpush.msra.mxu0 %v2627
    %5215 = vmatpush.msra.mxu0 %v2619
    %5216 = vmatmul.f32.gmra.mxu0 %v1328
    %v5217 = vpop.f32.mrf.mxu0
    %v5218 = vadd.f32 %v5198, %v5217
    %5219 = vdwg.mxu0
    %5220 = vmatpush.msra.mxu0 %v2867
    %5221 = vmatpush.msra.mxu0 %v2859
    %5222 = vmatpush.msra.mxu0 %v2851
    %5223 = vmatpush.msra.mxu0 %v2843
    %5224 = vmatpush.msra.mxu0 %v2835
    %5225 = vmatpush.msra.mxu0 %v2827
    %5226 = vmatpush.msra.mxu0 %v2819
    %5227 = vmatpush.msra.mxu0 %v2811
    %5228 = vmatpush.msra.mxu0 %v2803
    %5229 = vmatpush.msra.mxu0 %v2795
    %5230 = vmatpush.msra.mxu0 %v2787
    %5231 = vmatpush.msra.mxu0 %v2779
    %5232 = vmatpush.msra.mxu0 %v2771
    %5233 = vmatpush.msra.mxu0 %v2763
    %5234 = vmatpush.msra.mxu0 %v2755
    %5235 = vmatpush.msra.mxu0 %v2747
    %5236 = vmatmul.f32.gmra.mxu0 %v1329
    %v5237 = vpop.f32.mrf.mxu0
    %v5238 = vadd.f32 %v5218, %v5237
    %5239 = vdwg.mxu0
    %5240 = vmatpush.msra.mxu0 %v2995
    %5241 = vmatpush.msra.mxu0 %v2987
    %5242 = vmatpush.msra.mxu0 %v2979
    %5243 = vmatpush.msra.mxu0 %v2971
    %5244 = vmatpush.msra.mxu0 %v2963
    %5245 = vmatpush.msra.mxu0 %v2955
    %5246 = vmatpush.msra.mxu0 %v2947
    %5247 = vmatpush.msra.mxu0 %v2939
    %5248 = vmatpush.msra.mxu0 %v2931
    %5249 = vmatpush.msra.mxu0 %v2923
    %5250 = vmatpush.msra.mxu0 %v2915
    %5251 = vmatpush.msra.mxu0 %v2907
    %5252 = vmatpush.msra.mxu0 %v2899
    %5253 = vmatpush.msra.mxu0 %v2891
    %5254 = vmatpush.msra.mxu0 %v2883
    %5255 = vmatpush.msra.mxu0 %v2875
    %5256 = vmatmul.f32.gmra.mxu0 %v1330
    %v5257 = vpop.f32.mrf.mxu0
    %v5258 = vadd.f32 %v5238, %v5257
    %5259 = vdwg.mxu0
    %5260 = vmatpush.msra.mxu0 %v3123
    %5261 = vmatpush.msra.mxu0 %v3115
    %5262 = vmatpush.msra.mxu0 %v3107
    %5263 = vmatpush.msra.mxu0 %v3099
    %5264 = vmatpush.msra.mxu0 %v3091
    %5265 = vmatpush.msra.mxu0 %v3083
    %5266 = vmatpush.msra.mxu0 %v3075
    %5267 = vmatpush.msra.mxu0 %v3067
    %5268 = vmatpush.msra.mxu0 %v3059
    %5269 = vmatpush.msra.mxu0 %v3051
    %5270 = vmatpush.msra.mxu0 %v3043
    %5271 = vmatpush.msra.mxu0 %v3035
    %5272 = vmatpush.msra.mxu0 %v3027
    %5273 = vmatpush.msra.mxu0 %v3019
    %5274 = vmatpush.msra.mxu0 %v3011
    %5275 = vmatpush.msra.mxu0 %v3003
    %5276 = vmatmul.f32.gmra.mxu0 %v1331
    %v5277 = vpop.f32.mrf.mxu0
    %v5278 = vadd.f32 %v5258, %v5277
    %5279 = vdwg.mxu0
    %5280 = vmatpush.msra.mxu0 %v3251
    %5281 = vmatpush.msra.mxu0 %v3243
    %5282 = vmatpush.msra.mxu0 %v3235
    %5283 = vmatpush.msra.mxu0 %v3227
    %5284 = vmatpush.msra.mxu0 %v3219
    %5285 = vmatpush.msra.mxu0 %v3211
    %5286 = vmatpush.msra.mxu0 %v3203
    %5287 = vmatpush.msra.mxu0 %v3195
    %5288 = vmatpush.msra.mxu0 %v3187
    %5289 = vmatpush.msra.mxu0 %v3179
    %5290 = vmatpush.msra.mxu0 %v3171
    %5291 = vmatpush.msra.mxu0 %v3163
    %5292 = vmatpush.msra.mxu0 %v3155
    %5293 = vmatpush.msra.mxu0 %v3147
    %5294 = vmatpush.msra.mxu0 %v3139
    %5295 = vmatpush.msra.mxu0 %v3131
    %5296 = vmatmul.f32.gmra.mxu0 %v1332
    %v5297 = vpop.f32.mrf.mxu0
    %v5298 = vadd.f32 %v5278, %v5297
    %5299 = vdwg.mxu0
    %5300 = vmatpush.msra.mxu0 %v3379
    %5301 = vmatpush.msra.mxu0 %v3371
    %5302 = vmatpush.msra.mxu0 %v3363
    %5303 = vmatpush.msra.mxu0 %v3355
    %5304 = vmatpush.msra.mxu0 %v3347
    %5305 = vmatpush.msra.mxu0 %v3339
    %5306 = vmatpush.msra.mxu0 %v3331
    %5307 = vmatpush.msra.mxu0 %v3323
    %5308 = vmatpush.msra.mxu0 %v3315
    %5309 = vmatpush.msra.mxu0 %v3307
    %5310 = vmatpush.msra.mxu0 %v3299
    %5311 = vmatpush.msra.mxu0 %v3291
    %5312 = vmatpush.msra.mxu0 %v3283
    %5313 = vmatpush.msra.mxu0 %v3275
    %5314 = vmatpush.msra.mxu0 %v3267
    %5315 = vmatpush.msra.mxu0 %v3259
    %5316 = vmatmul.f32.gmra.mxu0 %v1333
    %v5317 = vpop.f32.mrf.mxu0
    %v5318 = vadd.f32 %v5298, %v5317
    %5319 = vdwg.mxu0
    %5320 = vmatpush.msra.mxu0 %v1460
    %5321 = vmatpush.msra.mxu0 %v1452
    %5322 = vmatpush.msra.mxu0 %v1444
    %5323 = vmatpush.msra.mxu0 %v1436
    %5324 = vmatpush.msra.mxu0 %v1428
    %5325 = vmatpush.msra.mxu0 %v1420
    %5326 = vmatpush.msra.mxu0 %v1412
    %5327 = vmatpush.msra.mxu0 %v1404
    %5328 = vmatpush.msra.mxu0 %v1396
    %5329 = vmatpush.msra.mxu0 %v1388
    %5330 = vmatpush.msra.mxu0 %v1380
    %5331 = vmatpush.msra.mxu0 %v1372
    %5332 = vmatpush.msra.mxu0 %v1364
    %5333 = vmatpush.msra.mxu0 %v1356
    %5334 = vmatpush.msra.mxu0 %v1348
    %5335 = vmatpush.msra.mxu0 %v1340
    %5336 = vmatmul.f32.gmra.mxu0 %v1318
    %v5337 = vpop.f32.mrf.mxu0
    %v5338 = vadd.f32 %v3390, %v5337
    %5339 = vdwg.mxu0
    %5340 = vmatpush.msra.mxu0 %v1588
    %5341 = vmatpush.msra.mxu0 %v1580
    %5342 = vmatpush.msra.mxu0 %v1572
    %5343 = vmatpush.msra.mxu0 %v1564
    %5344 = vmatpush.msra.mxu0 %v1556
    %5345 = vmatpush.msra.mxu0 %v1548
    %5346 = vmatpush.msra.mxu0 %v1540
    %5347 = vmatpush.msra.mxu0 %v1532
    %5348 = vmatpush.msra.mxu0 %v1524
    %5349 = vmatpush.msra.mxu0 %v1516
    %5350 = vmatpush.msra.mxu0 %v1508
    %5351 = vmatpush.msra.mxu0 %v1500
    %5352 = vmatpush.msra.mxu0 %v1492
    %5353 = vmatpush.msra.mxu0 %v1484
    %5354 = vmatpush.msra.mxu0 %v1476
    %5355 = vmatpush.msra.mxu0 %v1468
    %5356 = vmatmul.f32.gmra.mxu0 %v1319
    %v5357 = vpop.f32.mrf.mxu0
    %v5358 = vadd.f32 %v5338, %v5357
    %5359 = vdwg.mxu0
    %5360 = vmatpush.msra.mxu0 %v1716
    %5361 = vmatpush.msra.mxu0 %v1708
    %5362 = vmatpush.msra.mxu0 %v1700
    %5363 = vmatpush.msra.mxu0 %v1692
    %5364 = vmatpush.msra.mxu0 %v1684
    %5365 = vmatpush.msra.mxu0 %v1676
    %5366 = vmatpush.msra.mxu0 %v1668
    %5367 = vmatpush.msra.mxu0 %v1660
    %5368 = vmatpush.msra.mxu0 %v1652
    %5369 = vmatpush.msra.mxu0 %v1644
    %5370 = vmatpush.msra.mxu0 %v1636
    %5371 = vmatpush.msra.mxu0 %v1628
    %5372 = vmatpush.msra.mxu0 %v1620
    %5373 = vmatpush.msra.mxu0 %v1612
    %5374 = vmatpush.msra.mxu0 %v1604
    %5375 = vmatpush.msra.mxu0 %v1596
    %5376 = vmatmul.f32.gmra.mxu0 %v1320
    %v5377 = vpop.f32.mrf.mxu0
    %v5378 = vadd.f32 %v5358, %v5377
    %5379 = vdwg.mxu0
    %5380 = vmatpush.msra.mxu0 %v1844
    %5381 = vmatpush.msra.mxu0 %v1836
    %5382 = vmatpush.msra.mxu0 %v1828
    %5383 = vmatpush.msra.mxu0 %v1820
    %5384 = vmatpush.msra.mxu0 %v1812
    %5385 = vmatpush.msra.mxu0 %v1804
    %5386 = vmatpush.msra.mxu0 %v1796
    %5387 = vmatpush.msra.mxu0 %v1788
    %5388 = vmatpush.msra.mxu0 %v1780
    %5389 = vmatpush.msra.mxu0 %v1772
    %5390 = vmatpush.msra.mxu0 %v1764
    %5391 = vmatpush.msra.mxu0 %v1756
    %5392 = vmatpush.msra.mxu0 %v1748
    %5393 = vmatpush.msra.mxu0 %v1740
    %5394 = vmatpush.msra.mxu0 %v1732
    %5395 = vmatpush.msra.mxu0 %v1724
    %5396 = vmatmul.f32.gmra.mxu0 %v1321
    %v5397 = vpop.f32.mrf.mxu0
    %v5398 = vadd.f32 %v5378, %v5397
    %5399 = vdwg.mxu0
    %5400 = vmatpush.msra.mxu0 %v1972
    %5401 = vmatpush.msra.mxu0 %v1964
    %5402 = vmatpush.msra.mxu0 %v1956
    %5403 = vmatpush.msra.mxu0 %v1948
    %5404 = vmatpush.msra.mxu0 %v1940
    %5405 = vmatpush.msra.mxu0 %v1932
    %5406 = vmatpush.msra.mxu0 %v1924
    %5407 = vmatpush.msra.mxu0 %v1916
    %5408 = vmatpush.msra.mxu0 %v1908
    %5409 = vmatpush.msra.mxu0 %v1900
    %5410 = vmatpush.msra.mxu0 %v1892
    %5411 = vmatpush.msra.mxu0 %v1884
    %5412 = vmatpush.msra.mxu0 %v1876
    %5413 = vmatpush.msra.mxu0 %v1868
    %5414 = vmatpush.msra.mxu0 %v1860
    %5415 = vmatpush.msra.mxu0 %v1852
    %5416 = vmatmul.f32.gmra.mxu0 %v1322
    %v5417 = vpop.f32.mrf.mxu0
    %v5418 = vadd.f32 %v5398, %v5417
    %5419 = vdwg.mxu0
    %5420 = vmatpush.msra.mxu0 %v2100
    %5421 = vmatpush.msra.mxu0 %v2092
    %5422 = vmatpush.msra.mxu0 %v2084
    %5423 = vmatpush.msra.mxu0 %v2076
    %5424 = vmatpush.msra.mxu0 %v2068
    %5425 = vmatpush.msra.mxu0 %v2060
    %5426 = vmatpush.msra.mxu0 %v2052
    %5427 = vmatpush.msra.mxu0 %v2044
    %5428 = vmatpush.msra.mxu0 %v2036
    %5429 = vmatpush.msra.mxu0 %v2028
    %5430 = vmatpush.msra.mxu0 %v2020
    %5431 = vmatpush.msra.mxu0 %v2012
    %5432 = vmatpush.msra.mxu0 %v2004
    %5433 = vmatpush.msra.mxu0 %v1996
    %5434 = vmatpush.msra.mxu0 %v1988
    %5435 = vmatpush.msra.mxu0 %v1980
    %5436 = vmatmul.f32.gmra.mxu0 %v1323
    %v5437 = vpop.f32.mrf.mxu0
    %v5438 = vadd.f32 %v5418, %v5437
    %5439 = vdwg.mxu0
    %5440 = vmatpush.msra.mxu0 %v2228
    %5441 = vmatpush.msra.mxu0 %v2220
    %5442 = vmatpush.msra.mxu0 %v2212
    %5443 = vmatpush.msra.mxu0 %v2204
    %5444 = vmatpush.msra.mxu0 %v2196
    %5445 = vmatpush.msra.mxu0 %v2188
    %5446 = vmatpush.msra.mxu0 %v2180
    %5447 = vmatpush.msra.mxu0 %v2172
    %5448 = vmatpush.msra.mxu0 %v2164
    %5449 = vmatpush.msra.mxu0 %v2156
    %5450 = vmatpush.msra.mxu0 %v2148
    %5451 = vmatpush.msra.mxu0 %v2140
    %5452 = vmatpush.msra.mxu0 %v2132
    %5453 = vmatpush.msra.mxu0 %v2124
    %5454 = vmatpush.msra.mxu0 %v2116
    %5455 = vmatpush.msra.mxu0 %v2108
    %5456 = vmatmul.f32.gmra.mxu0 %v1324
    %v5457 = vpop.f32.mrf.mxu0
    %v5458 = vadd.f32 %v5438, %v5457
    %5459 = vdwg.mxu0
    %5460 = vmatpush.msra.mxu0 %v2356
    %5461 = vmatpush.msra.mxu0 %v2348
    %5462 = vmatpush.msra.mxu0 %v2340
    %5463 = vmatpush.msra.mxu0 %v2332
    %5464 = vmatpush.msra.mxu0 %v2324
    %5465 = vmatpush.msra.mxu0 %v2316
    %5466 = vmatpush.msra.mxu0 %v2308
    %5467 = vmatpush.msra.mxu0 %v2300
    %5468 = vmatpush.msra.mxu0 %v2292
    %5469 = vmatpush.msra.mxu0 %v2284
    %5470 = vmatpush.msra.mxu0 %v2276
    %5471 = vmatpush.msra.mxu0 %v2268
    %5472 = vmatpush.msra.mxu0 %v2260
    %5473 = vmatpush.msra.mxu0 %v2252
    %5474 = vmatpush.msra.mxu0 %v2244
    %5475 = vmatpush.msra.mxu0 %v2236
    %5476 = vmatmul.f32.gmra.mxu0 %v1325
    %v5477 = vpop.f32.mrf.mxu0
    %v5478 = vadd.f32 %v5458, %v5477
    %5479 = vdwg.mxu0
    %5480 = vmatpush.msra.mxu0 %v2484
    %5481 = vmatpush.msra.mxu0 %v2476
    %5482 = vmatpush.msra.mxu0 %v2468
    %5483 = vmatpush.msra.mxu0 %v2460
    %5484 = vmatpush.msra.mxu0 %v2452
    %5485 = vmatpush.msra.mxu0 %v2444
    %5486 = vmatpush.msra.mxu0 %v2436
    %5487 = vmatpush.msra.mxu0 %v2428
    %5488 = vmatpush.msra.mxu0 %v2420
    %5489 = vmatpush.msra.mxu0 %v2412
    %5490 = vmatpush.msra.mxu0 %v2404
    %5491 = vmatpush.msra.mxu0 %v2396
    %5492 = vmatpush.msra.mxu0 %v2388
    %5493 = vmatpush.msra.mxu0 %v2380
    %5494 = vmatpush.msra.mxu0 %v2372
    %5495 = vmatpush.msra.mxu0 %v2364
    %5496 = vmatmul.f32.gmra.mxu0 %v1326
    %v5497 = vpop.f32.mrf.mxu0
    %v5498 = vadd.f32 %v5478, %v5497
    %5499 = vdwg.mxu0
    %5500 = vmatpush.msra.mxu0 %v2612
    %5501 = vmatpush.msra.mxu0 %v2604
    %5502 = vmatpush.msra.mxu0 %v2596
    %5503 = vmatpush.msra.mxu0 %v2588
    %5504 = vmatpush.msra.mxu0 %v2580
    %5505 = vmatpush.msra.mxu0 %v2572
    %5506 = vmatpush.msra.mxu0 %v2564
    %5507 = vmatpush.msra.mxu0 %v2556
    %5508 = vmatpush.msra.mxu0 %v2548
    %5509 = vmatpush.msra.mxu0 %v2540
    %5510 = vmatpush.msra.mxu0 %v2532
    %5511 = vmatpush.msra.mxu0 %v2524
    %5512 = vmatpush.msra.mxu0 %v2516
    %5513 = vmatpush.msra.mxu0 %v2508
    %5514 = vmatpush.msra.mxu0 %v2500
    %5515 = vmatpush.msra.mxu0 %v2492
    %5516 = vmatmul.f32.gmra.mxu0 %v1327
    %v5517 = vpop.f32.mrf.mxu0
    %v5518 = vadd.f32 %v5498, %v5517
    %5519 = vdwg.mxu0
    %5520 = vmatpush.msra.mxu0 %v2740
    %5521 = vmatpush.msra.mxu0 %v2732
    %5522 = vmatpush.msra.mxu0 %v2724
    %5523 = vmatpush.msra.mxu0 %v2716
    %5524 = vmatpush.msra.mxu0 %v2708
    %5525 = vmatpush.msra.mxu0 %v2700
    %5526 = vmatpush.msra.mxu0 %v2692
    %5527 = vmatpush.msra.mxu0 %v2684
    %5528 = vmatpush.msra.mxu0 %v2676
    %5529 = vmatpush.msra.mxu0 %v2668
    %5530 = vmatpush.msra.mxu0 %v2660
    %5531 = vmatpush.msra.mxu0 %v2652
    %5532 = vmatpush.msra.mxu0 %v2644
    %5533 = vmatpush.msra.mxu0 %v2636
    %5534 = vmatpush.msra.mxu0 %v2628
    %5535 = vmatpush.msra.mxu0 %v2620
    %5536 = vmatmul.f32.gmra.mxu0 %v1328
    %v5537 = vpop.f32.mrf.mxu0
    %v5538 = vadd.f32 %v5518, %v5537
    %5539 = vdwg.mxu0
    %5540 = vmatpush.msra.mxu0 %v2868
    %5541 = vmatpush.msra.mxu0 %v2860
    %5542 = vmatpush.msra.mxu0 %v2852
    %5543 = vmatpush.msra.mxu0 %v2844
    %5544 = vmatpush.msra.mxu0 %v2836
    %5545 = vmatpush.msra.mxu0 %v2828
    %5546 = vmatpush.msra.mxu0 %v2820
    %5547 = vmatpush.msra.mxu0 %v2812
    %5548 = vmatpush.msra.mxu0 %v2804
    %5549 = vmatpush.msra.mxu0 %v2796
    %5550 = vmatpush.msra.mxu0 %v2788
    %5551 = vmatpush.msra.mxu0 %v2780
    %5552 = vmatpush.msra.mxu0 %v2772
    %5553 = vmatpush.msra.mxu0 %v2764
    %5554 = vmatpush.msra.mxu0 %v2756
    %5555 = vmatpush.msra.mxu0 %v2748
    %5556 = vmatmul.f32.gmra.mxu0 %v1329
    %v5557 = vpop.f32.mrf.mxu0
    %v5558 = vadd.f32 %v5538, %v5557
    %5559 = vdwg.mxu0
    %5560 = vmatpush.msra.mxu0 %v2996
    %5561 = vmatpush.msra.mxu0 %v2988
    %5562 = vmatpush.msra.mxu0 %v2980
    %5563 = vmatpush.msra.mxu0 %v2972
    %5564 = vmatpush.msra.mxu0 %v2964
    %5565 = vmatpush.msra.mxu0 %v2956
    %5566 = vmatpush.msra.mxu0 %v2948
    %5567 = vmatpush.msra.mxu0 %v2940
    %5568 = vmatpush.msra.mxu0 %v2932
    %5569 = vmatpush.msra.mxu0 %v2924
    %5570 = vmatpush.msra.mxu0 %v2916
    %5571 = vmatpush.msra.mxu0 %v2908
    %5572 = vmatpush.msra.mxu0 %v2900
    %5573 = vmatpush.msra.mxu0 %v2892
    %5574 = vmatpush.msra.mxu0 %v2884
    %5575 = vmatpush.msra.mxu0 %v2876
    %5576 = vmatmul.f32.gmra.mxu0 %v1330
    %v5577 = vpop.f32.mrf.mxu0
    %v5578 = vadd.f32 %v5558, %v5577
    %5579 = vdwg.mxu0
    %5580 = vmatpush.msra.mxu0 %v3124
    %5581 = vmatpush.msra.mxu0 %v3116
    %5582 = vmatpush.msra.mxu0 %v3108
    %5583 = vmatpush.msra.mxu0 %v3100
    %5584 = vmatpush.msra.mxu0 %v3092
    %5585 = vmatpush.msra.mxu0 %v3084
    %5586 = vmatpush.msra.mxu0 %v3076
    %5587 = vmatpush.msra.mxu0 %v3068
    %5588 = vmatpush.msra.mxu0 %v3060
    %5589 = vmatpush.msra.mxu0 %v3052
    %5590 = vmatpush.msra.mxu0 %v3044
    %5591 = vmatpush.msra.mxu0 %v3036
    %5592 = vmatpush.msra.mxu0 %v3028
    %5593 = vmatpush.msra.mxu0 %v3020
    %5594 = vmatpush.msra.mxu0 %v3012
    %5595 = vmatpush.msra.mxu0 %v3004
    %5596 = vmatmul.f32.gmra.mxu0 %v1331
    %v5597 = vpop.f32.mrf.mxu0
    %v5598 = vadd.f32 %v5578, %v5597
    %5599 = vdwg.mxu0
    %5600 = vmatpush.msra.mxu0 %v3252
    %5601 = vmatpush.msra.mxu0 %v3244
    %5602 = vmatpush.msra.mxu0 %v3236
    %5603 = vmatpush.msra.mxu0 %v3228
    %5604 = vmatpush.msra.mxu0 %v3220
    %5605 = vmatpush.msra.mxu0 %v3212
    %5606 = vmatpush.msra.mxu0 %v3204
    %5607 = vmatpush.msra.mxu0 %v3196
    %5608 = vmatpush.msra.mxu0 %v3188
    %5609 = vmatpush.msra.mxu0 %v3180
    %5610 = vmatpush.msra.mxu0 %v3172
    %5611 = vmatpush.msra.mxu0 %v3164
    %5612 = vmatpush.msra.mxu0 %v3156
    %5613 = vmatpush.msra.mxu0 %v3148
    %5614 = vmatpush.msra.mxu0 %v3140
    %5615 = vmatpush.msra.mxu0 %v3132
    %5616 = vmatmul.f32.gmra.mxu0 %v1332
    %v5617 = vpop.f32.mrf.mxu0
    %v5618 = vadd.f32 %v5598, %v5617
    %5619 = vdwg.mxu0
    %5620 = vmatpush.msra.mxu0 %v3380
    %5621 = vmatpush.msra.mxu0 %v3372
    %5622 = vmatpush.msra.mxu0 %v3364
    %5623 = vmatpush.msra.mxu0 %v3356
    %5624 = vmatpush.msra.mxu0 %v3348
    %5625 = vmatpush.msra.mxu0 %v3340
    %5626 = vmatpush.msra.mxu0 %v3332
    %5627 = vmatpush.msra.mxu0 %v3324
    %5628 = vmatpush.msra.mxu0 %v3316
    %5629 = vmatpush.msra.mxu0 %v3308
    %5630 = vmatpush.msra.mxu0 %v3300
    %5631 = vmatpush.msra.mxu0 %v3292
    %5632 = vmatpush.msra.mxu0 %v3284
    %5633 = vmatpush.msra.mxu0 %v3276
    %5634 = vmatpush.msra.mxu0 %v3268
    %5635 = vmatpush.msra.mxu0 %v3260
    %5636 = vmatmul.f32.gmra.mxu0 %v1333
    %v5637 = vpop.f32.mrf.mxu0
    %v5638 = vadd.f32 %v5618, %v5637
    %5639 = vdwg.mxu0
    %5640 = vmatpush.msra.mxu0 %v1461
    %5641 = vmatpush.msra.mxu0 %v1453
    %5642 = vmatpush.msra.mxu0 %v1445
    %5643 = vmatpush.msra.mxu0 %v1437
    %5644 = vmatpush.msra.mxu0 %v1429
    %5645 = vmatpush.msra.mxu0 %v1421
    %5646 = vmatpush.msra.mxu0 %v1413
    %5647 = vmatpush.msra.mxu0 %v1405
    %5648 = vmatpush.msra.mxu0 %v1397
    %5649 = vmatpush.msra.mxu0 %v1389
    %5650 = vmatpush.msra.mxu0 %v1381
    %5651 = vmatpush.msra.mxu0 %v1373
    %5652 = vmatpush.msra.mxu0 %v1365
    %5653 = vmatpush.msra.mxu0 %v1357
    %5654 = vmatpush.msra.mxu0 %v1349
    %5655 = vmatpush.msra.mxu0 %v1341
    %5656 = vmatmul.f32.gmra.mxu0 %v1318
    %v5657 = vpop.f32.mrf.mxu0
    %v5658 = vadd.f32 %v3391, %v5657
    %5659 = vdwg.mxu0
    %5660 = vmatpush.msra.mxu0 %v1589
    %5661 = vmatpush.msra.mxu0 %v1581
    %5662 = vmatpush.msra.mxu0 %v1573
    %5663 = vmatpush.msra.mxu0 %v1565
    %5664 = vmatpush.msra.mxu0 %v1557
    %5665 = vmatpush.msra.mxu0 %v1549
    %5666 = vmatpush.msra.mxu0 %v1541
    %5667 = vmatpush.msra.mxu0 %v1533
    %5668 = vmatpush.msra.mxu0 %v1525
    %5669 = vmatpush.msra.mxu0 %v1517
    %5670 = vmatpush.msra.mxu0 %v1509
    %5671 = vmatpush.msra.mxu0 %v1501
    %5672 = vmatpush.msra.mxu0 %v1493
    %5673 = vmatpush.msra.mxu0 %v1485
    %5674 = vmatpush.msra.mxu0 %v1477
    %5675 = vmatpush.msra.mxu0 %v1469
    %5676 = vmatmul.f32.gmra.mxu0 %v1319
    %v5677 = vpop.f32.mrf.mxu0
    %v5678 = vadd.f32 %v5658, %v5677
    %5679 = vdwg.mxu0
    %5680 = vmatpush.msra.mxu0 %v1717
    %5681 = vmatpush.msra.mxu0 %v1709
    %5682 = vmatpush.msra.mxu0 %v1701
    %5683 = vmatpush.msra.mxu0 %v1693
    %5684 = vmatpush.msra.mxu0 %v1685
    %5685 = vmatpush.msra.mxu0 %v1677
    %5686 = vmatpush.msra.mxu0 %v1669
    %5687 = vmatpush.msra.mxu0 %v1661
    %5688 = vmatpush.msra.mxu0 %v1653
    %5689 = vmatpush.msra.mxu0 %v1645
    %5690 = vmatpush.msra.mxu0 %v1637
    %5691 = vmatpush.msra.mxu0 %v1629
    %5692 = vmatpush.msra.mxu0 %v1621
    %5693 = vmatpush.msra.mxu0 %v1613
    %5694 = vmatpush.msra.mxu0 %v1605
    %5695 = vmatpush.msra.mxu0 %v1597
    %5696 = vmatmul.f32.gmra.mxu0 %v1320
    %v5697 = vpop.f32.mrf.mxu0
    %v5698 = vadd.f32 %v5678, %v5697
    %5699 = vdwg.mxu0
    %5700 = vmatpush.msra.mxu0 %v1845
    %5701 = vmatpush.msra.mxu0 %v1837
    %5702 = vmatpush.msra.mxu0 %v1829
    %5703 = vmatpush.msra.mxu0 %v1821
    %5704 = vmatpush.msra.mxu0 %v1813
    %5705 = vmatpush.msra.mxu0 %v1805
    %5706 = vmatpush.msra.mxu0 %v1797
    %5707 = vmatpush.msra.mxu0 %v1789
    %5708 = vmatpush.msra.mxu0 %v1781
    %5709 = vmatpush.msra.mxu0 %v1773
    %5710 = vmatpush.msra.mxu0 %v1765
    %5711 = vmatpush.msra.mxu0 %v1757
    %5712 = vmatpush.msra.mxu0 %v1749
    %5713 = vmatpush.msra.mxu0 %v1741
    %5714 = vmatpush.msra.mxu0 %v1733
    %5715 = vmatpush.msra.mxu0 %v1725
    %5716 = vmatmul.f32.gmra.mxu0 %v1321
    %v5717 = vpop.f32.mrf.mxu0
    %v5718 = vadd.f32 %v5698, %v5717
    %5719 = vdwg.mxu0
    %5720 = vmatpush.msra.mxu0 %v1973
    %5721 = vmatpush.msra.mxu0 %v1965
    %5722 = vmatpush.msra.mxu0 %v1957
    %5723 = vmatpush.msra.mxu0 %v1949
    %5724 = vmatpush.msra.mxu0 %v1941
    %5725 = vmatpush.msra.mxu0 %v1933
    %5726 = vmatpush.msra.mxu0 %v1925
    %5727 = vmatpush.msra.mxu0 %v1917
    %5728 = vmatpush.msra.mxu0 %v1909
    %5729 = vmatpush.msra.mxu0 %v1901
    %5730 = vmatpush.msra.mxu0 %v1893
    %5731 = vmatpush.msra.mxu0 %v1885
    %5732 = vmatpush.msra.mxu0 %v1877
    %5733 = vmatpush.msra.mxu0 %v1869
    %5734 = vmatpush.msra.mxu0 %v1861
    %5735 = vmatpush.msra.mxu0 %v1853
    %5736 = vmatmul.f32.gmra.mxu0 %v1322
    %v5737 = vpop.f32.mrf.mxu0
    %v5738 = vadd.f32 %v5718, %v5737
    %5739 = vdwg.mxu0
    %5740 = vmatpush.msra.mxu0 %v2101
    %5741 = vmatpush.msra.mxu0 %v2093
    %5742 = vmatpush.msra.mxu0 %v2085
    %5743 = vmatpush.msra.mxu0 %v2077
    %5744 = vmatpush.msra.mxu0 %v2069
    %5745 = vmatpush.msra.mxu0 %v2061
    %5746 = vmatpush.msra.mxu0 %v2053
    %5747 = vmatpush.msra.mxu0 %v2045
    %5748 = vmatpush.msra.mxu0 %v2037
    %5749 = vmatpush.msra.mxu0 %v2029
    %5750 = vmatpush.msra.mxu0 %v2021
    %5751 = vmatpush.msra.mxu0 %v2013
    %5752 = vmatpush.msra.mxu0 %v2005
    %5753 = vmatpush.msra.mxu0 %v1997
    %5754 = vmatpush.msra.mxu0 %v1989
    %5755 = vmatpush.msra.mxu0 %v1981
    %5756 = vmatmul.f32.gmra.mxu0 %v1323
    %v5757 = vpop.f32.mrf.mxu0
    %v5758 = vadd.f32 %v5738, %v5757
    %5759 = vdwg.mxu0
    %5760 = vmatpush.msra.mxu0 %v2229
    %5761 = vmatpush.msra.mxu0 %v2221
    %5762 = vmatpush.msra.mxu0 %v2213
    %5763 = vmatpush.msra.mxu0 %v2205
    %5764 = vmatpush.msra.mxu0 %v2197
    %5765 = vmatpush.msra.mxu0 %v2189
    %5766 = vmatpush.msra.mxu0 %v2181
    %5767 = vmatpush.msra.mxu0 %v2173
    %5768 = vmatpush.msra.mxu0 %v2165
    %5769 = vmatpush.msra.mxu0 %v2157
    %5770 = vmatpush.msra.mxu0 %v2149
    %5771 = vmatpush.msra.mxu0 %v2141
    %5772 = vmatpush.msra.mxu0 %v2133
    %5773 = vmatpush.msra.mxu0 %v2125
    %5774 = vmatpush.msra.mxu0 %v2117
    %5775 = vmatpush.msra.mxu0 %v2109
    %5776 = vmatmul.f32.gmra.mxu0 %v1324
    %v5777 = vpop.f32.mrf.mxu0
    %v5778 = vadd.f32 %v5758, %v5777
    %5779 = vdwg.mxu0
    %5780 = vmatpush.msra.mxu0 %v2357
    %5781 = vmatpush.msra.mxu0 %v2349
    %5782 = vmatpush.msra.mxu0 %v2341
    %5783 = vmatpush.msra.mxu0 %v2333
    %5784 = vmatpush.msra.mxu0 %v2325
    %5785 = vmatpush.msra.mxu0 %v2317
    %5786 = vmatpush.msra.mxu0 %v2309
    %5787 = vmatpush.msra.mxu0 %v2301
    %5788 = vmatpush.msra.mxu0 %v2293
    %5789 = vmatpush.msra.mxu0 %v2285
    %5790 = vmatpush.msra.mxu0 %v2277
    %5791 = vmatpush.msra.mxu0 %v2269
    %5792 = vmatpush.msra.mxu0 %v2261
    %5793 = vmatpush.msra.mxu0 %v2253
    %5794 = vmatpush.msra.mxu0 %v2245
    %5795 = vmatpush.msra.mxu0 %v2237
    %5796 = vmatmul.f32.gmra.mxu0 %v1325
    %v5797 = vpop.f32.mrf.mxu0
    %v5798 = vadd.f32 %v5778, %v5797
    %5799 = vdwg.mxu0
    %5800 = vmatpush.msra.mxu0 %v2485
    %5801 = vmatpush.msra.mxu0 %v2477
    %5802 = vmatpush.msra.mxu0 %v2469
    %5803 = vmatpush.msra.mxu0 %v2461
    %5804 = vmatpush.msra.mxu0 %v2453
    %5805 = vmatpush.msra.mxu0 %v2445
    %5806 = vmatpush.msra.mxu0 %v2437
    %5807 = vmatpush.msra.mxu0 %v2429
    %5808 = vmatpush.msra.mxu0 %v2421
    %5809 = vmatpush.msra.mxu0 %v2413
    %5810 = vmatpush.msra.mxu0 %v2405
    %5811 = vmatpush.msra.mxu0 %v2397
    %5812 = vmatpush.msra.mxu0 %v2389
    %5813 = vmatpush.msra.mxu0 %v2381
    %5814 = vmatpush.msra.mxu0 %v2373
    %5815 = vmatpush.msra.mxu0 %v2365
    %5816 = vmatmul.f32.gmra.mxu0 %v1326
    %v5817 = vpop.f32.mrf.mxu0
    %v5818 = vadd.f32 %v5798, %v5817
    %5819 = vdwg.mxu0
    %5820 = vmatpush.msra.mxu0 %v2613
    %5821 = vmatpush.msra.mxu0 %v2605
    %5822 = vmatpush.msra.mxu0 %v2597
    %5823 = vmatpush.msra.mxu0 %v2589
    %5824 = vmatpush.msra.mxu0 %v2581
    %5825 = vmatpush.msra.mxu0 %v2573
    %5826 = vmatpush.msra.mxu0 %v2565
    %5827 = vmatpush.msra.mxu0 %v2557
    %5828 = vmatpush.msra.mxu0 %v2549
    %5829 = vmatpush.msra.mxu0 %v2541
    %5830 = vmatpush.msra.mxu0 %v2533
    %5831 = vmatpush.msra.mxu0 %v2525
    %5832 = vmatpush.msra.mxu0 %v2517
    %5833 = vmatpush.msra.mxu0 %v2509
    %5834 = vmatpush.msra.mxu0 %v2501
    %5835 = vmatpush.msra.mxu0 %v2493
    %5836 = vmatmul.f32.gmra.mxu0 %v1327
    %v5837 = vpop.f32.mrf.mxu0
    %v5838 = vadd.f32 %v5818, %v5837
    %5839 = vdwg.mxu0
    %5840 = vmatpush.msra.mxu0 %v2741
    %5841 = vmatpush.msra.mxu0 %v2733
    %5842 = vmatpush.msra.mxu0 %v2725
    %5843 = vmatpush.msra.mxu0 %v2717
    %5844 = vmatpush.msra.mxu0 %v2709
    %5845 = vmatpush.msra.mxu0 %v2701
    %5846 = vmatpush.msra.mxu0 %v2693
    %5847 = vmatpush.msra.mxu0 %v2685
    %5848 = vmatpush.msra.mxu0 %v2677
    %5849 = vmatpush.msra.mxu0 %v2669
    %5850 = vmatpush.msra.mxu0 %v2661
    %5851 = vmatpush.msra.mxu0 %v2653
    %5852 = vmatpush.msra.mxu0 %v2645
    %5853 = vmatpush.msra.mxu0 %v2637
    %5854 = vmatpush.msra.mxu0 %v2629
    %5855 = vmatpush.msra.mxu0 %v2621
    %5856 = vmatmul.f32.gmra.mxu0 %v1328
    %v5857 = vpop.f32.mrf.mxu0
    %v5858 = vadd.f32 %v5838, %v5857
    %5859 = vdwg.mxu0
    %5860 = vmatpush.msra.mxu0 %v2869
    %5861 = vmatpush.msra.mxu0 %v2861
    %5862 = vmatpush.msra.mxu0 %v2853
    %5863 = vmatpush.msra.mxu0 %v2845
    %5864 = vmatpush.msra.mxu0 %v2837
    %5865 = vmatpush.msra.mxu0 %v2829
    %5866 = vmatpush.msra.mxu0 %v2821
    %5867 = vmatpush.msra.mxu0 %v2813
    %5868 = vmatpush.msra.mxu0 %v2805
    %5869 = vmatpush.msra.mxu0 %v2797
    %5870 = vmatpush.msra.mxu0 %v2789
    %5871 = vmatpush.msra.mxu0 %v2781
    %5872 = vmatpush.msra.mxu0 %v2773
    %5873 = vmatpush.msra.mxu0 %v2765
    %5874 = vmatpush.msra.mxu0 %v2757
    %5875 = vmatpush.msra.mxu0 %v2749
    %5876 = vmatmul.f32.gmra.mxu0 %v1329
    %v5877 = vpop.f32.mrf.mxu0
    %v5878 = vadd.f32 %v5858, %v5877
    %5879 = vdwg.mxu0
    %5880 = vmatpush.msra.mxu0 %v2997
    %5881 = vmatpush.msra.mxu0 %v2989
    %5882 = vmatpush.msra.mxu0 %v2981
    %5883 = vmatpush.msra.mxu0 %v2973
    %5884 = vmatpush.msra.mxu0 %v2965
    %5885 = vmatpush.msra.mxu0 %v2957
    %5886 = vmatpush.msra.mxu0 %v2949
    %5887 = vmatpush.msra.mxu0 %v2941
    %5888 = vmatpush.msra.mxu0 %v2933
    %5889 = vmatpush.msra.mxu0 %v2925
    %5890 = vmatpush.msra.mxu0 %v2917
    %5891 = vmatpush.msra.mxu0 %v2909
    %5892 = vmatpush.msra.mxu0 %v2901
    %5893 = vmatpush.msra.mxu0 %v2893
    %5894 = vmatpush.msra.mxu0 %v2885
    %5895 = vmatpush.msra.mxu0 %v2877
    %5896 = vmatmul.f32.gmra.mxu0 %v1330
    %v5897 = vpop.f32.mrf.mxu0
    %v5898 = vadd.f32 %v5878, %v5897
    %5899 = vdwg.mxu0
    %5900 = vmatpush.msra.mxu0 %v3125
    %5901 = vmatpush.msra.mxu0 %v3117
    %5902 = vmatpush.msra.mxu0 %v3109
    %5903 = vmatpush.msra.mxu0 %v3101
    %5904 = vmatpush.msra.mxu0 %v3093
    %5905 = vmatpush.msra.mxu0 %v3085
    %5906 = vmatpush.msra.mxu0 %v3077
    %5907 = vmatpush.msra.mxu0 %v3069
    %5908 = vmatpush.msra.mxu0 %v3061
    %5909 = vmatpush.msra.mxu0 %v3053
    %5910 = vmatpush.msra.mxu0 %v3045
    %5911 = vmatpush.msra.mxu0 %v3037
    %5912 = vmatpush.msra.mxu0 %v3029
    %5913 = vmatpush.msra.mxu0 %v3021
    %5914 = vmatpush.msra.mxu0 %v3013
    %5915 = vmatpush.msra.mxu0 %v3005
    %5916 = vmatmul.f32.gmra.mxu0 %v1331
    %v5917 = vpop.f32.mrf.mxu0
    %v5918 = vadd.f32 %v5898, %v5917
    %5919 = vdwg.mxu0
    %5920 = vmatpush.msra.mxu0 %v3253
    %5921 = vmatpush.msra.mxu0 %v3245
    %5922 = vmatpush.msra.mxu0 %v3237
    %5923 = vmatpush.msra.mxu0 %v3229
    %5924 = vmatpush.msra.mxu0 %v3221
    %5925 = vmatpush.msra.mxu0 %v3213
    %5926 = vmatpush.msra.mxu0 %v3205
    %5927 = vmatpush.msra.mxu0 %v3197
    %5928 = vmatpush.msra.mxu0 %v3189
    %5929 = vmatpush.msra.mxu0 %v3181
    %5930 = vmatpush.msra.mxu0 %v3173
    %5931 = vmatpush.msra.mxu0 %v3165
    %5932 = vmatpush.msra.mxu0 %v3157
    %5933 = vmatpush.msra.mxu0 %v3149
    %5934 = vmatpush.msra.mxu0 %v3141
    %5935 = vmatpush.msra.mxu0 %v3133
    %5936 = vmatmul.f32.gmra.mxu0 %v1332
    %v5937 = vpop.f32.mrf.mxu0
    %v5938 = vadd.f32 %v5918, %v5937
    %5939 = vdwg.mxu0
    %5940 = vmatpush.msra.mxu0 %v3381
    %5941 = vmatpush.msra.mxu0 %v3373
    %5942 = vmatpush.msra.mxu0 %v3365
    %5943 = vmatpush.msra.mxu0 %v3357
    %5944 = vmatpush.msra.mxu0 %v3349
    %5945 = vmatpush.msra.mxu0 %v3341
    %5946 = vmatpush.msra.mxu0 %v3333
    %5947 = vmatpush.msra.mxu0 %v3325
    %5948 = vmatpush.msra.mxu0 %v3317
    %5949 = vmatpush.msra.mxu0 %v3309
    %5950 = vmatpush.msra.mxu0 %v3301
    %5951 = vmatpush.msra.mxu0 %v3293
    %5952 = vmatpush.msra.mxu0 %v3285
    %5953 = vmatpush.msra.mxu0 %v3277
    %5954 = vmatpush.msra.mxu0 %v3269
    %5955 = vmatpush.msra.mxu0 %v3261
    %5956 = vmatmul.f32.gmra.mxu0 %v1333
    %v5957 = vpop.f32.mrf.mxu0
    %v5958 = vadd.f32 %v5938, %v5957
    %5959 = vdwg.mxu0
    %v5960 = vmax.f32 %v3718, 0.0
    %v5961 = vmax.f32 %v4038, 0.0
    %v5962 = vmax.f32 %v4358, 0.0
    %v5963 = vmax.f32 %v4678, 0.0
    %v5964 = vmax.f32 %v4998, 0.0
    %v5965 = vmax.f32 %v5318, 0.0
    %v5966 = vmax.f32 %v5638, 0.0
    %v5967 = vmax.f32 %v5958, 0.0
    %v5968 = vld [vmem:[#allocation11] sm:$0xff]
    %v5969 = vld [vmem:[#allocation11 + $0x8] sm:$0xff]
    %v5970 = vld [vmem:[#allocation11 + $0x10] sm:$0xff]
    %v5971 = vld [vmem:[#allocation11 + $0x18] sm:$0xff]
    %v5972 = vld [vmem:[#allocation11 + $0x20] sm:$0xff]
    %v5973 = vld [vmem:[#allocation11 + $0x28] sm:$0xff]
    %v5974 = vld [vmem:[#allocation11 + $0x30] sm:$0xff]
    %v5975 = vld [vmem:[#allocation11 + $0x38] sm:$0xff]
    %v5976 = vld [vmem:[#allocation11 + $0x40] sm:$0xff]
    %v5977 = vld [vmem:[#allocation11 + $0x48] sm:$0xff]
    %v5978 = vld [vmem:[#allocation11 + $0x50] sm:$0xff]
    %v5979 = vld [vmem:[#allocation11 + $0x58] sm:$0xff]
    %v5980 = vld [vmem:[#allocation11 + $0x60] sm:$0xff]
    %v5981 = vld [vmem:[#allocation11 + $0x68] sm:$0xff]
    %v5982 = vld [vmem:[#allocation11 + $0x70] sm:$0xff]
    %v5983 = vld [vmem:[#allocation11 + $0x78] sm:$0xff]
    %v5984 = vld [vmem:[#allocation11 + $0x80] sm:$0xff]
    %v5985 = vld [vmem:[#allocation11 + $0x88] sm:$0xff]
    %v5986 = vld [vmem:[#allocation11 + $0x90] sm:$0xff]
    %v5987 = vld [vmem:[#allocation11 + $0x98] sm:$0xff]
    %v5988 = vld [vmem:[#allocation11 + $0xa0] sm:$0xff]
    %v5989 = vld [vmem:[#allocation11 + $0xa8] sm:$0xff]
    %v5990 = vld [vmem:[#allocation11 + $0xb0] sm:$0xff]
    %v5991 = vld [vmem:[#allocation11 + $0xb8] sm:$0xff]
    %v5992 = vld [vmem:[#allocation11 + $0xc0] sm:$0xff]
    %v5993 = vld [vmem:[#allocation11 + $0xc8] sm:$0xff]
    %v5994 = vld [vmem:[#allocation11 + $0xd0] sm:$0xff]
    %v5995 = vld [vmem:[#allocation11 + $0xd8] sm:$0xff]
    %v5996 = vld [vmem:[#allocation11 + $0xe0] sm:$0xff]
    %v5997 = vld [vmem:[#allocation11 + $0xe8] sm:$0xff]
    %v5998 = vld [vmem:[#allocation11 + $0xf0] sm:$0xff]
    %v5999 = vld [vmem:[#allocation11 + $0xf8] sm:$0xff]
    %v6000 = vld [vmem:[#allocation11 + $0x100] sm:$0xff]
    %v6001 = vld [vmem:[#allocation11 + $0x108] sm:$0xff]
    %v6002 = vld [vmem:[#allocation11 + $0x110] sm:$0xff]
    %v6003 = vld [vmem:[#allocation11 + $0x118] sm:$0xff]
    %v6004 = vld [vmem:[#allocation11 + $0x120] sm:$0xff]
    %v6005 = vld [vmem:[#allocation11 + $0x128] sm:$0xff]
    %v6006 = vld [vmem:[#allocation11 + $0x130] sm:$0xff]
    %v6007 = vld [vmem:[#allocation11 + $0x138] sm:$0xff]
    %v6008 = vld [vmem:[#allocation11 + $0x140] sm:$0xff]
    %v6009 = vld [vmem:[#allocation11 + $0x148] sm:$0xff]
    %v6010 = vld [vmem:[#allocation11 + $0x150] sm:$0xff]
    %v6011 = vld [vmem:[#allocation11 + $0x158] sm:$0xff]
    %v6012 = vld [vmem:[#allocation11 + $0x160] sm:$0xff]
    %v6013 = vld [vmem:[#allocation11 + $0x168] sm:$0xff]
    %v6014 = vld [vmem:[#allocation11 + $0x170] sm:$0xff]
    %v6015 = vld [vmem:[#allocation11 + $0x178] sm:$0xff]
    %v6016 = vld [vmem:[#allocation11 + $0x180] sm:$0xff]
    %v6017 = vld [vmem:[#allocation11 + $0x188] sm:$0xff]
    %v6018 = vld [vmem:[#allocation11 + $0x190] sm:$0xff]
    %v6019 = vld [vmem:[#allocation11 + $0x198] sm:$0xff]
    %v6020 = vld [vmem:[#allocation11 + $0x1a0] sm:$0xff]
    %v6021 = vld [vmem:[#allocation11 + $0x1a8] sm:$0xff]
    %v6022 = vld [vmem:[#allocation11 + $0x1b0] sm:$0xff]
    %v6023 = vld [vmem:[#allocation11 + $0x1b8] sm:$0xff]
    %v6024 = vld [vmem:[#allocation11 + $0x1c0] sm:$0xff]
    %v6025 = vld [vmem:[#allocation11 + $0x1c8] sm:$0xff]
    %v6026 = vld [vmem:[#allocation11 + $0x1d0] sm:$0xff]
    %v6027 = vld [vmem:[#allocation11 + $0x1d8] sm:$0xff]
    %v6028 = vld [vmem:[#allocation11 + $0x1e0] sm:$0xff]
    %v6029 = vld [vmem:[#allocation11 + $0x1e8] sm:$0xff]
    %v6030 = vld [vmem:[#allocation11 + $0x1f0] sm:$0xff]
    %v6031 = vld [vmem:[#allocation11 + $0x1f8] sm:$0xff]
    %v6032 = vld [vmem:[#allocation11 + $0x200] sm:$0xff]
    %v6033 = vld [vmem:[#allocation11 + $0x208] sm:$0xff]
    %v6034 = vld [vmem:[#allocation11 + $0x210] sm:$0xff]
    %v6035 = vld [vmem:[#allocation11 + $0x218] sm:$0xff]
    %v6036 = vld [vmem:[#allocation11 + $0x220] sm:$0xff]
    %v6037 = vld [vmem:[#allocation11 + $0x228] sm:$0xff]
    %v6038 = vld [vmem:[#allocation11 + $0x230] sm:$0xff]
    %v6039 = vld [vmem:[#allocation11 + $0x238] sm:$0xff]
    %v6040 = vld [vmem:[#allocation11 + $0x240] sm:$0xff]
    %v6041 = vld [vmem:[#allocation11 + $0x248] sm:$0xff]
    %v6042 = vld [vmem:[#allocation11 + $0x250] sm:$0xff]
    %v6043 = vld [vmem:[#allocation11 + $0x258] sm:$0xff]
    %v6044 = vld [vmem:[#allocation11 + $0x260] sm:$0xff]
    %v6045 = vld [vmem:[#allocation11 + $0x268] sm:$0xff]
    %v6046 = vld [vmem:[#allocation11 + $0x270] sm:$0xff]
    %v6047 = vld [vmem:[#allocation11 + $0x278] sm:$0xff]
    %v6048 = vld [vmem:[#allocation11 + $0x280] sm:$0xff]
    %v6049 = vld [vmem:[#allocation11 + $0x288] sm:$0xff]
    %v6050 = vld [vmem:[#allocation11 + $0x290] sm:$0xff]
    %v6051 = vld [vmem:[#allocation11 + $0x298] sm:$0xff]
    %v6052 = vld [vmem:[#allocation11 + $0x2a0] sm:$0xff]
    %v6053 = vld [vmem:[#allocation11 + $0x2a8] sm:$0xff]
    %v6054 = vld [vmem:[#allocation11 + $0x2b0] sm:$0xff]
    %v6055 = vld [vmem:[#allocation11 + $0x2b8] sm:$0xff]
    %v6056 = vld [vmem:[#allocation11 + $0x2c0] sm:$0xff]
    %v6057 = vld [vmem:[#allocation11 + $0x2c8] sm:$0xff]
    %v6058 = vld [vmem:[#allocation11 + $0x2d0] sm:$0xff]
    %v6059 = vld [vmem:[#allocation11 + $0x2d8] sm:$0xff]
    %v6060 = vld [vmem:[#allocation11 + $0x2e0] sm:$0xff]
    %v6061 = vld [vmem:[#allocation11 + $0x2e8] sm:$0xff]
    %v6062 = vld [vmem:[#allocation11 + $0x2f0] sm:$0xff]
    %v6063 = vld [vmem:[#allocation11 + $0x2f8] sm:$0xff]
    %v6064 = vld [vmem:[#allocation11 + $0x300] sm:$0xff]
    %v6065 = vld [vmem:[#allocation11 + $0x308] sm:$0xff]
    %v6066 = vld [vmem:[#allocation11 + $0x310] sm:$0xff]
    %v6067 = vld [vmem:[#allocation11 + $0x318] sm:$0xff]
    %v6068 = vld [vmem:[#allocation11 + $0x320] sm:$0xff]
    %v6069 = vld [vmem:[#allocation11 + $0x328] sm:$0xff]
    %v6070 = vld [vmem:[#allocation11 + $0x330] sm:$0xff]
    %v6071 = vld [vmem:[#allocation11 + $0x338] sm:$0xff]
    %v6072 = vld [vmem:[#allocation11 + $0x340] sm:$0xff]
    %v6073 = vld [vmem:[#allocation11 + $0x348] sm:$0xff]
    %v6074 = vld [vmem:[#allocation11 + $0x350] sm:$0xff]
    %v6075 = vld [vmem:[#allocation11 + $0x358] sm:$0xff]
    %v6076 = vld [vmem:[#allocation11 + $0x360] sm:$0xff]
    %v6077 = vld [vmem:[#allocation11 + $0x368] sm:$0xff]
    %v6078 = vld [vmem:[#allocation11 + $0x370] sm:$0xff]
    %v6079 = vld [vmem:[#allocation11 + $0x378] sm:$0xff]
    %v6080 = vld [vmem:[#allocation11 + $0x380] sm:$0xff]
    %v6081 = vld [vmem:[#allocation11 + $0x388] sm:$0xff]
    %v6082 = vld [vmem:[#allocation11 + $0x390] sm:$0xff]
    %v6083 = vld [vmem:[#allocation11 + $0x398] sm:$0xff]
    %v6084 = vld [vmem:[#allocation11 + $0x3a0] sm:$0xff]
    %v6085 = vld [vmem:[#allocation11 + $0x3a8] sm:$0xff]
    %v6086 = vld [vmem:[#allocation11 + $0x3b0] sm:$0xff]
    %v6087 = vld [vmem:[#allocation11 + $0x3b8] sm:$0xff]
    %v6088 = vld [vmem:[#allocation11 + $0x3c0] sm:$0xff]
    %v6089 = vld [vmem:[#allocation11 + $0x3c8] sm:$0xff]
    %v6090 = vld [vmem:[#allocation11 + $0x3d0] sm:$0xff]
    %v6091 = vld [vmem:[#allocation11 + $0x3d8] sm:$0xff]
    %v6092 = vld [vmem:[#allocation11 + $0x3e0] sm:$0xff]
    %v6093 = vld [vmem:[#allocation11 + $0x3e8] sm:$0xff]
    %v6094 = vld [vmem:[#allocation11 + $0x3f0] sm:$0xff]
    %v6095 = vld [vmem:[#allocation11 + $0x3f8] sm:$0xff]
    %v6096 = vld [vmem:[#allocation13] sm:$0x1]
    %v6098 = vperm.slane %v6096, 0
    %6100 = vmatpush.msra.mxu0 %v5983
    %6101 = vmatpush.msra.mxu0 %v5982
    %6102 = vmatpush.msra.mxu0 %v5981
    %6103 = vmatpush.msra.mxu0 %v5980
    %6104 = vmatpush.msra.mxu0 %v5979
    %6105 = vmatpush.msra.mxu0 %v5978
    %6106 = vmatpush.msra.mxu0 %v5977
    %6107 = vmatpush.msra.mxu0 %v5976
    %6108 = vmatpush.msra.mxu0 %v5975
    %6109 = vmatpush.msra.mxu0 %v5974
    %6110 = vmatpush.msra.mxu0 %v5973
    %6111 = vmatpush.msra.mxu0 %v5972
    %6112 = vmatpush.msra.mxu0 %v5971
    %6113 = vmatpush.msra.mxu0 %v5970
    %6114 = vmatpush.msra.mxu0 %v5969
    %6115 = vmatpush.msra.mxu0 %v5968
    %6116 = vmatmul.f32.gmra.mxu0 %v5960
    %v6117 = vpop.f32.mrf.mxu0
    %v6118 = vadd.f32 %v6098, %v6117
    %6119 = vdwg.mxu0
    %6120 = vmatpush.msra.mxu0 %v5999
    %6121 = vmatpush.msra.mxu0 %v5998
    %6122 = vmatpush.msra.mxu0 %v5997
    %6123 = vmatpush.msra.mxu0 %v5996
    %6124 = vmatpush.msra.mxu0 %v5995
    %6125 = vmatpush.msra.mxu0 %v5994
    %6126 = vmatpush.msra.mxu0 %v5993
    %6127 = vmatpush.msra.mxu0 %v5992
    %6128 = vmatpush.msra.mxu0 %v5991
    %6129 = vmatpush.msra.mxu0 %v5990
    %6130 = vmatpush.msra.mxu0 %v5989
    %6131 = vmatpush.msra.mxu0 %v5988
    %6132 = vmatpush.msra.mxu0 %v5987
    %6133 = vmatpush.msra.mxu0 %v5986
    %6134 = vmatpush.msra.mxu0 %v5985
    %6135 = vmatpush.msra.mxu0 %v5984
    %6136 = vmatmul.f32.gmra.mxu0 %v5961
    %v6137 = vpop.f32.mrf.mxu0
    %v6138 = vadd.f32 %v6118, %v6137
    %6139 = vdwg.mxu0
    %6140 = vmatpush.msra.mxu0 %v6015
    %6141 = vmatpush.msra.mxu0 %v6014
    %6142 = vmatpush.msra.mxu0 %v6013
    %6143 = vmatpush.msra.mxu0 %v6012
    %6144 = vmatpush.msra.mxu0 %v6011
    %6145 = vmatpush.msra.mxu0 %v6010
    %6146 = vmatpush.msra.mxu0 %v6009
    %6147 = vmatpush.msra.mxu0 %v6008
    %6148 = vmatpush.msra.mxu0 %v6007
    %6149 = vmatpush.msra.mxu0 %v6006
    %6150 = vmatpush.msra.mxu0 %v6005
    %6151 = vmatpush.msra.mxu0 %v6004
    %6152 = vmatpush.msra.mxu0 %v6003
    %6153 = vmatpush.msra.mxu0 %v6002
    %6154 = vmatpush.msra.mxu0 %v6001
    %6155 = vmatpush.msra.mxu0 %v6000
    %6156 = vmatmul.f32.gmra.mxu0 %v5962
    %v6157 = vpop.f32.mrf.mxu0
    %v6158 = vadd.f32 %v6138, %v6157
    %6159 = vdwg.mxu0
    %6160 = vmatpush.msra.mxu0 %v6031
    %6161 = vmatpush.msra.mxu0 %v6030
    %6162 = vmatpush.msra.mxu0 %v6029
    %6163 = vmatpush.msra.mxu0 %v6028
    %6164 = vmatpush.msra.mxu0 %v6027
    %6165 = vmatpush.msra.mxu0 %v6026
    %6166 = vmatpush.msra.mxu0 %v6025
    %6167 = vmatpush.msra.mxu0 %v6024
    %6168 = vmatpush.msra.mxu0 %v6023
    %6169 = vmatpush.msra.mxu0 %v6022
    %6170 = vmatpush.msra.mxu0 %v6021
    %6171 = vmatpush.msra.mxu0 %v6020
    %6172 = vmatpush.msra.mxu0 %v6019
    %6173 = vmatpush.msra.mxu0 %v6018
    %6174 = vmatpush.msra.mxu0 %v6017
    %6175 = vmatpush.msra.mxu0 %v6016
    %6176 = vmatmul.f32.gmra.mxu0 %v5963
    %v6177 = vpop.f32.mrf.mxu0
    %v6178 = vadd.f32 %v6158, %v6177
    %6179 = vdwg.mxu0
    %6180 = vmatpush.msra.mxu0 %v6047
    %6181 = vmatpush.msra.mxu0 %v6046
    %6182 = vmatpush.msra.mxu0 %v6045
    %6183 = vmatpush.msra.mxu0 %v6044
    %6184 = vmatpush.msra.mxu0 %v6043
    %6185 = vmatpush.msra.mxu0 %v6042
    %6186 = vmatpush.msra.mxu0 %v6041
    %6187 = vmatpush.msra.mxu0 %v6040
    %6188 = vmatpush.msra.mxu0 %v6039
    %6189 = vmatpush.msra.mxu0 %v6038
    %6190 = vmatpush.msra.mxu0 %v6037
    %6191 = vmatpush.msra.mxu0 %v6036
    %6192 = vmatpush.msra.mxu0 %v6035
    %6193 = vmatpush.msra.mxu0 %v6034
    %6194 = vmatpush.msra.mxu0 %v6033
    %6195 = vmatpush.msra.mxu0 %v6032
    %6196 = vmatmul.f32.gmra.mxu0 %v5964
    %v6197 = vpop.f32.mrf.mxu0
    %v6198 = vadd.f32 %v6178, %v6197
    %6199 = vdwg.mxu0
    %6200 = vmatpush.msra.mxu0 %v6063
    %6201 = vmatpush.msra.mxu0 %v6062
    %6202 = vmatpush.msra.mxu0 %v6061
    %6203 = vmatpush.msra.mxu0 %v6060
    %6204 = vmatpush.msra.mxu0 %v6059
    %6205 = vmatpush.msra.mxu0 %v6058
    %6206 = vmatpush.msra.mxu0 %v6057
    %6207 = vmatpush.msra.mxu0 %v6056
    %6208 = vmatpush.msra.mxu0 %v6055
    %6209 = vmatpush.msra.mxu0 %v6054
    %6210 = vmatpush.msra.mxu0 %v6053
    %6211 = vmatpush.msra.mxu0 %v6052
    %6212 = vmatpush.msra.mxu0 %v6051
    %6213 = vmatpush.msra.mxu0 %v6050
    %6214 = vmatpush.msra.mxu0 %v6049
    %6215 = vmatpush.msra.mxu0 %v6048
    %6216 = vmatmul.f32.gmra.mxu0 %v5965
    %v6217 = vpop.f32.mrf.mxu0
    %v6218 = vadd.f32 %v6198, %v6217
    %6219 = vdwg.mxu0
    %6220 = vmatpush.msra.mxu0 %v6079
    %6221 = vmatpush.msra.mxu0 %v6078
    %6222 = vmatpush.msra.mxu0 %v6077
    %6223 = vmatpush.msra.mxu0 %v6076
    %6224 = vmatpush.msra.mxu0 %v6075
    %6225 = vmatpush.msra.mxu0 %v6074
    %6226 = vmatpush.msra.mxu0 %v6073
    %6227 = vmatpush.msra.mxu0 %v6072
    %6228 = vmatpush.msra.mxu0 %v6071
    %6229 = vmatpush.msra.mxu0 %v6070
    %6230 = vmatpush.msra.mxu0 %v6069
    %6231 = vmatpush.msra.mxu0 %v6068
    %6232 = vmatpush.msra.mxu0 %v6067
    %6233 = vmatpush.msra.mxu0 %v6066
    %6234 = vmatpush.msra.mxu0 %v6065
    %6235 = vmatpush.msra.mxu0 %v6064
    %6236 = vmatmul.f32.gmra.mxu0 %v5966
    %v6237 = vpop.f32.mrf.mxu0
    %v6238 = vadd.f32 %v6218, %v6237
    %6239 = vdwg.mxu0
    %6240 = vmatpush.msra.mxu0 %v6095
    %6241 = vmatpush.msra.mxu0 %v6094
    %6242 = vmatpush.msra.mxu0 %v6093
    %6243 = vmatpush.msra.mxu0 %v6092
    %6244 = vmatpush.msra.mxu0 %v6091
    %6245 = vmatpush.msra.mxu0 %v6090
    %6246 = vmatpush.msra.mxu0 %v6089
    %6247 = vmatpush.msra.mxu0 %v6088
    %6248 = vmatpush.msra.mxu0 %v6087
    %6249 = vmatpush.msra.mxu0 %v6086
    %6250 = vmatpush.msra.mxu0 %v6085
    %6251 = vmatpush.msra.mxu0 %v6084
    %6252 = vmatpush.msra.mxu0 %v6083
    %6253 = vmatpush.msra.mxu0 %v6082
    %6254 = vmatpush.msra.mxu0 %v6081
    %6255 = vmatpush.msra.mxu0 %v6080
    %6256 = vmatmul.f32.gmra.mxu0 %v5967
    %v6257 = vpop.f32.mrf.mxu0
    %v6258 = vadd.f32 %v6238, %v6257
    %6259 = vdwg.mxu0
    %6260 = vst [vmem:[#allocation14] sm:$0xff] %v6258
    // Predicated region
    $region58: #{tpu_custom_call.1} parent=1 // pred_check
      _
    $region59: #{tpu_custom_call.1} parent=1 // pred_check_branch
      %6262 = sbr.rel (0) target = $region61
    $region60: #{tpu_custom_call.1} parent=1 // pred_region
      %6264 = vsyncadd [#allocation4], 0
      %s6266 = sshll.u32 [#allocation14], 4
      %s6267 = int_to_ptr.vmem [resolvable:$true] %s6266
      %s6268 = sshll.u32 %s7, 4
      %s6269 = int_to_ptr.hbm [resolvable:$true] %s6268
      %6271 = dma.vmem_to_hbm [thread:$0]  %s6267, 128, %s6269, [#allocation4]
    $region61: #{tpu_custom_call.1} parent=1 // pred_fallthru
      _
    // Predicated region
    $region62: #{tpu_custom_call.1} parent=1 // pred_check
      _
    $region63: #{tpu_custom_call.1} parent=1 // pred_check_branch
      %6273 = sbr.rel (0) target = $region65
    $region64: #{tpu_custom_call.1} parent=1 // pred_region
      %6275 = dma.done [#allocation4], 128
    $region65: #{tpu_custom_call.1} parent=1 // pred_fallthru
      _
    %6276 = vsyncpa [#allocation3], 1
    %6277 = vsyncpa [#allocation6], 1
    %6278 = vsyncpa [#allocation9], 1
    %6279 = vsyncpa [#allocation12], 1
    %6280 = vsyncpa [#allocation4], 1

</llo_original>
